<compile_context>
chip_gen: v7x
topology: tpu7x:2x2x1
jax: 0.10.0
libtpu: 0.0.40
codegen_flags: <defaults>
</compile_context>

<pallas_src>
import numpy as np
import jax
import jax.numpy as jnp
from jax.experimental import pallas as pl
from jax.experimental.pallas import tpu as pltpu

# ---------------- module config (consistent with __init__) -----------------
CHANNELS = 8          # `channels` (must be even); also inter_channels here
HIDDEN = 32           # hidden_channels
KERNEL_SIZE = 5       # kernel_size (odd -> "same" padding)
DILATION_RATE = 1     # dilation_rate
N_LAYERS = 4          # n_layers
N_FLOWS = 4           # n_flows (even -> flip-folding leaves channels in order)
# gin_channels = 0 -> g is None (no conditioning branch)

INTER_CHANNELS = CHANNELS
YIN_CHANNELS = 4
YIN_START = 1
YIN_SCOPE = 2

B, T = 2, 16
HALF = CHANNELS // 2
BT = B * T
SPEC_CH = INTER_CHANNELS - YIN_CHANNELS          # 4 (== HALF for this config)
OUT_CH = SPEC_CH + YIN_SCOPE                     # 6
PAD_C = (KERNEL_SIZE - 1) // 2

assert SPEC_CH == HALF, "kernel's direct-output path assumes spec half == x0"
assert YIN_START + YIN_SCOPE <= HALF
assert N_FLOWS % 2 == 0, "odd n_flows would need a final channel flip"

# ---------------- packed parameter index layout -----------------------------
# big bf16 matrix bank, per flow: [ w_in (N_LAYERS*K taps) | w_rs (N_LAYERS) | w_post(padded) ]
W_IN_BASE = 0
W_RS_BASE = N_LAYERS * KERNEL_SIZE               # 20
W_POST_IDX = W_RS_BASE + N_LAYERS                # 24
N_MATS = W_POST_IDX + 1                          # 25
# f32 bias bank rows, per flow: [ b_pre | b_in (N_LAYERS) | b_rs (N_LAYERS) | b_post ]
B_PRE_ROW = 0
B_IN_BASE = 1
B_RS_BASE = 1 + N_LAYERS                         # 5
B_POST_ROW = 1 + 2 * N_LAYERS                    # 9
N_BIAS = B_POST_ROW + 1                          # 10


# ---------------- fused Pallas kernel: all flows, flips folded --------------
def _fused_block_kernel(x_ref, m_ref, wpre_ref, wbig_ref, bias_ref, o_ref):
    x = x_ref[...].reshape(BT, CHANNELS)              # batch folded onto sublanes
    mask1 = m_ref[...].reshape(BT, 1)
    # hoisted broadcasts (JAX does not CSE broadcast_in_dim)
    mask_h = jnp.broadcast_to(mask1, (BT, HIDDEN))
    mask_half = jnp.broadcast_to(mask1, (BT, HALF))
    mask_out = jnp.broadcast_to(mask1, (BT, OUT_CH))

    # Per-tap validity masks, hoisted once: with the (B*T) sublane folding, a
    # sublane roll by -o gives row r <- row r+o; rows where t+o falls outside
    # [0, T) (conv zero-padding AND batch-boundary wrap) are zeroed.
    all_offsets = sorted({(k - PAD_C) * DILATION_RATE ** i
                          for i in range(N_LAYERS) for k in range(KERNEL_SIZE)})
    t_idx = jax.lax.broadcasted_iota(jnp.int32, (BT, HIDDEN), 0) % T
    tap_mask = {o: ((t_idx + o >= 0) & (t_idx + o < T)).astype(jnp.float32)
                for o in all_offsets if o != 0}

    x0 = x[:, :HALF]
    x1 = x[:, HALF:]

    for j in range(N_FLOWS):        # static unroll; weights are step-ordered
        # modules.Flip folded into weights: even steps read x1 / update x0
        # (channel-reversed pre rows & post cols baked offline); odd steps read
        # x0 / update x1 with the original weights.
        src = x1 if (j % 2 == 0) else x0

        # pre 1x1 conv (bf16 operands, f32 accumulate)
        b_pre = bias_ref[j, B_PRE_ROW][:, :HIDDEN]
        h = (jnp.dot(src.astype(jnp.bfloat16), wpre_ref[j],
                     preferred_element_type=jnp.float32) + b_pre) * mask_h

        # WN stack (g is None, p_dropout = 0)
        skip = None
        for i in range(N_LAYERS):
            dil = DILATION_RATE ** i
            conv = None
            for k in range(KERNEL_SIZE):
                o = (k - PAD_C) * dil
                if o == 0:
                    tap = h
                else:
                    tap = pltpu.roll(h, (-o) % BT, axis=0) * tap_mask[o]
                d = jnp.dot(tap.astype(jnp.bfloat16),
                            wbig_ref[j, W_IN_BASE + i * KERNEL_SIZE + k],
                            preferred_element_type=jnp.float32)
                conv = d if conv is None else conv + d
            conv = conv + bias_ref[j, B_IN_BASE + i]           # (1, 2H) broadcast
            # fused_add_tanh_sigmoid_multiply with zero conditioning; the gate
            # half of w_in/b_in was pre-scaled by 0.5 offline, so
            # sigmoid(z) == 0.5 * tanh(z/2) + 0.5 becomes one wide tanh.
            t = jnp.tanh(conv)
            acts = t[:, :HIDDEN] * (t[:, HIDDEN:] * 0.5 + 0.5)
            rs = (jnp.dot(acts.astype(jnp.bfloat16),
                          wbig_ref[j, W_RS_BASE + i],
                          preferred_element_type=jnp.float32)
                  + bias_ref[j, B_RS_BASE + i])
            if i < N_LAYERS - 1:
                h = (h + rs[:, :HIDDEN]) * mask_h              # residual
            skip = rs[:, HIDDEN:] if skip is None else skip + rs[:, HIDDEN:]
        out = skip * mask_h

        # post 1x1 conv -> mean (mean_only=True => logs == 0); cols padded to 2H
        post = jnp.dot(out.astype(jnp.bfloat16), wbig_ref[j, W_POST_IDX],
                       preferred_element_type=jnp.float32)
        m = (post[:, :HALF] + bias_ref[j, B_POST_ROW][:, :HALF]) * mask_half
        if j % 2 == 0:
            x0 = (x0 - m) * mask_half
        else:
            x1 = (x1 - m) * mask_half

    # final split / yin-crop / concat / mask written directly from the kernel
    res = jnp.concatenate(
        [x0, x1[:, YIN_START:YIN_START + YIN_SCOPE]], axis=-1) * mask_out
    o_ref[...] = res.reshape(B, T, OUT_CH).astype(o_ref.dtype)


def _full_spec(shape):
    nd = len(shape)
    return pl.BlockSpec(shape, lambda i, _n=nd: (0,) * _n)


def _fused_block_call(x, x_mask, wpre, wbig, bias):
    grid_spec = pltpu.PrefetchScalarGridSpec(
        num_scalar_prefetch=0,
        grid=(1,),                  # single invocation; batch handled in-kernel
        in_specs=[_full_spec((B, T, CHANNELS)), _full_spec((B, T, 1)),
                  _full_spec(wpre.shape), _full_spec(wbig.shape),
                  _full_spec(bias.shape)],
        out_specs=_full_spec((B, T, OUT_CH)),
    )
    return pl.pallas_call(
        _fused_block_kernel,
        out_shape=jax.ShapeDtypeStruct((B, T, OUT_CH), jnp.float32),
        grid_spec=grid_spec,
        compiler_params=pltpu.CompilerParams(
            dimension_semantics=("arbitrary",)),
    )(x, x_mask, wpre, wbig, bias)


# ---------------- offline weight prep: fold flips, pack, bf16 ---------------
def prepare_fused_params(flow_params):
    """Pack per-flow weights in processing order (flow N_FLOWS-1 .. 0):
       * modules.Flip folded into pre/post weights of every even step,
       * gating sigmoid folded into tanh (gate half of w_in/b_in scaled by 0.5),
       * all matmul weights cast to bf16, biases kept f32,
       * everything packed into 3 buffers to minimize DMA descriptors."""
    wpre_l, wbig_l, bias_l = [], [], []
    for j in range(N_FLOWS):
        w_pre, b_pre, w_in, b_in, w_rs, b_rs, w_post, b_post = \
            flow_params[N_FLOWS - 1 - j]
        if j % 2 == 0:                             # fold modules.Flip
            w_pre = w_pre[::-1, :]                 # reversed input channels
            w_post = w_post[:, ::-1]               # reversed output channels
            b_post = b_post[:, ::-1]
        # sigmoid(z) = 0.5*tanh(z/2)+0.5 : pre-scale gate half by 0.5 (exact in bf16)
        w_in_s = jnp.concatenate([w_in[..., :HIDDEN], 0.5 * w_in[..., HIDDEN:]], -1)
        b_in_s = jnp.concatenate([b_in[..., :HIDDEN], 0.5 * b_in[..., HIDDEN:]], -1)
        # big matrix bank: per-tap conv weights, res/skip weights, padded post
        w_post_pad = jnp.pad(w_post, ((0, 0), (0, 2 * HIDDEN - HALF)))
        mats = jnp.concatenate([w_in_s, w_rs, w_post_pad[None]], axis=0)
        # bias bank rows, all padded to 2*HIDDEN lanes
        b_rows = jnp.concatenate([
            jnp.pad(b_pre, ((0, 0), (0, HIDDEN)))[None],
            b_in_s,
            b_rs,
            jnp.pad(b_post, ((0, 0), (0, 2 * HIDDEN - HALF)))[None],
        ], axis=0)
        wpre_l.append(w_pre)
        wbig_l.append(mats)
        bias_l.append(b_rows)
    wpre = jnp.stack(wpre_l).astype(jnp.bfloat16)          # (F, HALF, H)
    wbig = jnp.stack(wbig_l).astype(jnp.bfloat16)          # (F, N_MATS, H, 2H)
    bias = jnp.stack(bias_l).astype(jnp.float32)           # (F, N_BIAS, 1, 2H)
    assert wbig.shape == (N_FLOWS, N_MATS, HIDDEN, 2 * HIDDEN)
    assert bias.shape == (N_FLOWS, N_BIAS, 1, 2 * HIDDEN)
    return wpre, wbig, bias


# ---------------- ResidualCouplingBlock forward (reverse=True) --------------
def make_residual_coupling_block_reverse(flow_params):
    """Weight prep runs once at init; the returned callable is one jitted
    pallas_call producing the final cropped/masked output."""
    wpre, wbig, bias = prepare_fused_params(flow_params)

    @jax.jit
    def run(x, x_mask):
        return _fused_block_call(x, x_mask, wpre, wbig, bias)

    return run


# ---------------- deterministic synthetic parameters ------------------------
def init_flow_params(key):
    ks = jax.random.split(key, 8)
    s = 0.1
    w_pre = s * jax.random.normal(ks[0], (HALF, HIDDEN), jnp.float32)
    b_pre = s * jax.random.normal(ks[1], (1, HIDDEN), jnp.float32)
    w_in = s * jax.random.normal(
        ks[2], (N_LAYERS * KERNEL_SIZE, HIDDEN, 2 * HIDDEN), jnp.float32)
    b_in = s * jax.random.normal(ks[3], (N_LAYERS, 1, 2 * HIDDEN), jnp.float32)
    w_rs = s * jax.random.normal(ks[4], (N_LAYERS, HIDDEN, 2 * HIDDEN), jnp.float32)
    b_rs = s * jax.random.normal(ks[5], (N_LAYERS, 1, 2 * HIDDEN), jnp.float32)
    # NOTE: PyTorch zero-inits the `post` conv; small random values are used
    # here so the WN compute path is numerically exercised.
    w_post = s * jax.random.normal(ks[6], (HIDDEN, HALF), jnp.float32)
    b_post = s * jax.random.normal(ks[7], (1, HALF), jnp.float32)
    return (w_pre, b_pre, w_in, b_in, w_rs, b_rs, w_post, b_post)


# ---------------- pure-JAX reference (mirrors the PyTorch module) -----------
def _shift_time(h, off):
    if off == 0:
        return h
    tlen = h.shape[1]
    zeros = jnp.zeros(h.shape[:1] + (abs(off),) + h.shape[2:], h.dtype)
    if off > 0:
        return jnp.concatenate([h[:, off:], zeros], axis=1)
    return jnp.concatenate([zeros, h[:, :tlen + off]], axis=1)


def _coupling_ref(x, mask, params, q):
    """q = identity for exact module semantics, or bf16-rounding to mirror the
    kernel's bf16 matmul operands (weights + LHS) for a tight structural check."""
    w_pre, b_pre, w_in, b_in, w_rs, b_rs, w_post, b_post = params
    x0, x1 = x[..., :HALF], x[..., HALF:]
    h = (q(x0) @ q(w_pre) + b_pre) * mask
    out = jnp.zeros((B, T, HIDDEN), jnp.float32)
    for i in range(N_LAYERS):
        dil = DILATION_RATE ** i
        conv = jnp.zeros((B, T, 2 * HIDDEN), jnp.float32) + b_in[i]
        for k in range(KERNEL_SIZE):
            off = (k - PAD_C) * dil
            conv = conv + q(_shift_time(h, off)) @ q(w_in[i * KERNEL_SIZE + k])
        acts = jnp.tanh(conv[..., :HIDDEN]) * jax.nn.sigmoid(conv[..., HIDDEN:])
        rs = q(acts) @ q(w_rs[i]) + b_rs[i]
        if i < N_LAYERS - 1:
            h = (h + rs[..., :HIDDEN]) * mask
        out = out + rs[..., HIDDEN:]
    out = out * mask
    m = (q(out) @ q(w_post) + b_post) * mask
    return jnp.concatenate([x0, (x1 - m) * mask], axis=-1)


def _block_ref(x, mask, flow_params, q=lambda a: a):
    # flows = [RCL_0, Flip_0, ..., RCL_{n-1}, Flip_{n-1}]; reversed iteration
    # applies Flip_i then RCL_i for i = n-1 .. 0, all with reverse=True.
    for i in reversed(range(N_FLOWS)):
        x = jnp.flip(x, axis=-1)
        x = _coupling_ref(x, mask, flow_params[i], q)
    return jnp.concatenate(
        [x[..., :SPEC_CH],
         x[..., SPEC_CH + YIN_START: SPEC_CH + YIN_START + YIN_SCOPE]],
        axis=-1) * mask


def _bf16_round(a):
    return a.astype(jnp.bfloat16).astype(jnp.float32)


# ---------------- main -------------------------------------------------------
if __name__ == "__main__":
    key = jax.random.PRNGKey(0)
    kx, kp = jax.random.split(key)

    x = jax.random.normal(kx, (B, T, CHANNELS), jnp.float32)
    lengths = jnp.array([T, T - 5], jnp.int32)
    t_idx = jnp.arange(T)[None, :, None]
    x_mask = (t_idx < lengths[:, None, None]).astype(jnp.float32)   # (B, T, 1)

    flow_params = [init_flow_params(k) for k in jax.random.split(kp, N_FLOWS)]

    run = make_residual_coupling_block_reverse(flow_params)   # prep once at init
    out = jax.block_until_ready(run(x, x_mask))

    with jax.default_matmul_precision("highest"):
        ref_f32 = _block_ref(x, x_mask, flow_params)                  # module semantics
        ref_q = _block_ref(x, x_mask, flow_params, q=_bf16_round)     # mirrors bf16 dots

    # Tight check vs. the bf16-operand-mirrored reference: isolates kernel bugs
    # (flip folding, tap offsets/masks, packing) from the deliberate bf16 cast;
    # remaining diff is MXU accumulation order + sigmoid==0.5*tanh(z/2)+0.5 identity.
    np.testing.assert_allclose(np.asarray(out), np.asarray(ref_q),
                               rtol=5e-3, atol=5e-3)
    # Loose check vs. the exact-f32 module semantics: bf16 mantissa (eps~4e-3) on
    # O(1) activations through 4 flows x 4 layers bounds the drift well under 3e-2.
    np.testing.assert_allclose(np.asarray(out), np.asarray(ref_f32),
                               rtol=3e-2, atol=3e-2)
    assert out.shape == (B, T, OUT_CH)
    print("KERNEL_OK")
</pallas_src>

<mosaic_0001>
module attributes {stable_mosaic.version = 11 : i64} {
  func.func @_fused_block_kernel(%arg0: i32, %arg1: memref<2x16x8xf32, #tpu.memory_space<vmem>>, %arg2: memref<2x16x1xf32, #tpu.memory_space<vmem>>, %arg3: memref<4x4x32xbf16, #tpu.memory_space<vmem>>, %arg4: memref<4x25x32x64xbf16, #tpu.memory_space<vmem>>, %arg5: memref<4x10x1x64xf32, #tpu.memory_space<vmem>>, %arg6: memref<2x16x6xf32, #tpu.memory_space<vmem>>) attributes {dimension_semantics = [#tpu.dimension_semantics<arbitrary>], iteration_bounds = array<i64: 1>, scalar_prefetch = 0 : i64, scratch_operands = 0 : i64, tpu.core_type = #tpu.core_type<tc>, window_params = [{pipeline_mode = #tpu.pipeline_mode<synchronous>, transform_indices = @transform_0, window_bounds = array<i64: 2, 16, 8>}, {pipeline_mode = #tpu.pipeline_mode<synchronous>, transform_indices = @transform_1, window_bounds = array<i64: 2, 16, 1>}, {pipeline_mode = #tpu.pipeline_mode<synchronous>, transform_indices = @transform_2, window_bounds = array<i64: 4, 4, 32>}, {pipeline_mode = #tpu.pipeline_mode<synchronous>, transform_indices = @transform_3, window_bounds = array<i64: 4, 25, 32, 64>}, {pipeline_mode = #tpu.pipeline_mode<synchronous>, transform_indices = @transform_4, window_bounds = array<i64: 4, 10, 1, 64>}, {pipeline_mode = #tpu.pipeline_mode<synchronous>, transform_indices = @transform_5, window_bounds = array<i64: 2, 16, 6>}]} {
    %c0 = arith.constant 0 : index
    %c0_0 = arith.constant 0 : index
    %c0_1 = arith.constant 0 : index
    %0 = vector.load %arg1[%c0, %c0_0, %c0_1] : memref<2x16x8xf32, #tpu.memory_space<vmem>>, vector<2x16x8xf32>
    %1 = vector.shape_cast %0 : vector<2x16x8xf32> to vector<32x8xf32>
    %c0_2 = arith.constant 0 : index
    %c0_3 = arith.constant 0 : index
    %c0_4 = arith.constant 0 : index
    %2 = vector.load %arg2[%c0_2, %c0_3, %c0_4] : memref<2x16x1xf32, #tpu.memory_space<vmem>>, vector<2x16x1xf32>
    %3 = vector.shape_cast %2 : vector<2x16x1xf32> to vector<32x1xf32>
    %4 = vector.shape_cast %3 : vector<32x1xf32> to vector<32x1xf32>
    %5 = vector.broadcast %4 : vector<32x1xf32> to vector<32x32xf32>
    %6 = vector.shape_cast %3 : vector<32x1xf32> to vector<32x1xf32>
    %7 = vector.broadcast %6 : vector<32x1xf32> to vector<32x4xf32>
    %8 = vector.shape_cast %3 : vector<32x1xf32> to vector<32x1xf32>
    %9 = vector.broadcast %8 : vector<32x1xf32> to vector<32x6xf32>
    %10 = tpu.iota {dimensions = array<i32: 0>} : vector<32x32xi32>
    %c16_i32 = arith.constant 16 : i32
    %c0_i32 = arith.constant 0 : i32
    %11 = arith.cmpi eq, %c16_i32, %c0_i32 : i32
    %c1_i32 = arith.constant 1 : i32
    %12 = arith.select %11, %c1_i32, %c16_i32 : i32
    %13 = vector.broadcast %12 : i32 to vector<32x32xi32>
    %14 = arith.remsi %10, %13 : vector<32x32xi32>
    %c0_i32_5 = arith.constant 0 : i32
    %15 = vector.broadcast %c0_i32_5 : i32 to vector<32x32xi32>
    %16 = arith.cmpi ne, %14, %15 : vector<32x32xi32>
    %c0_i32_6 = arith.constant 0 : i32
    %17 = vector.broadcast %c0_i32_6 : i32 to vector<32x32xi32>
    %18 = arith.cmpi slt, %14, %17 : vector<32x32xi32>
    %c0_i32_7 = arith.constant 0 : i32
    %19 = arith.cmpi slt, %12, %c0_i32_7 : i32
    %20 = vector.broadcast %19 : i1 to vector<32x32xi1>
    %21 = vector.broadcast %20 : vector<32x32xi1> to vector<32x32xi1>
    %22 = arith.xori %18, %21 : vector<32x32xi1>
    %23 = arith.andi %22, %16 : vector<32x32xi1>
    %24 = vector.broadcast %12 : i32 to vector<32x32xi32>
    %25 = arith.addi %14, %24 : vector<32x32xi32>
    %26 = arith.select %23, %25, %14 : vector<32x32xi1>, vector<32x32xi32>
    %c-2_i32 = arith.constant -2 : i32
    %27 = vector.broadcast %c-2_i32 : i32 to vector<32x32xi32>
    %28 = arith.addi %26, %27 : vector<32x32xi32>
    %c0_i32_8 = arith.constant 0 : i32
    %29 = vector.broadcast %c0_i32_8 : i32 to vector<32x32xi32>
    %30 = arith.cmpi sge, %28, %29 : vector<32x32xi32>
    %c-2_i32_9 = arith.constant -2 : i32
    %31 = vector.broadcast %c-2_i32_9 : i32 to vector<32x32xi32>
    %32 = arith.addi %26, %31 : vector<32x32xi32>
    %c16_i32_10 = arith.constant 16 : i32
    %33 = vector.broadcast %c16_i32_10 : i32 to vector<32x32xi32>
    %34 = arith.cmpi slt, %32, %33 : vector<32x32xi32>
    %35 = arith.andi %30, %34 : vector<32x32xi1>
    %36 = arith.extui %35 : vector<32x32xi1> to vector<32x32xi32>
    %37 = arith.sitofp %36 : vector<32x32xi32> to vector<32x32xf32>
    %c-1_i32 = arith.constant -1 : i32
    %38 = vector.broadcast %c-1_i32 : i32 to vector<32x32xi32>
    %39 = arith.addi %26, %38 : vector<32x32xi32>
    %c0_i32_11 = arith.constant 0 : i32
    %40 = vector.broadcast %c0_i32_11 : i32 to vector<32x32xi32>
    %41 = arith.cmpi sge, %39, %40 : vector<32x32xi32>
    %c-1_i32_12 = arith.constant -1 : i32
    %42 = vector.broadcast %c-1_i32_12 : i32 to vector<32x32xi32>
    %43 = arith.addi %26, %42 : vector<32x32xi32>
    %c16_i32_13 = arith.constant 16 : i32
    %44 = vector.broadcast %c16_i32_13 : i32 to vector<32x32xi32>
    %45 = arith.cmpi slt, %43, %44 : vector<32x32xi32>
    %46 = arith.andi %41, %45 : vector<32x32xi1>
    %47 = arith.extui %46 : vector<32x32xi1> to vector<32x32xi32>
    %48 = arith.sitofp %47 : vector<32x32xi32> to vector<32x32xf32>
    %c1_i32_14 = arith.constant 1 : i32
    %49 = vector.broadcast %c1_i32_14 : i32 to vector<32x32xi32>
    %50 = arith.addi %26, %49 : vector<32x32xi32>
    %c0_i32_15 = arith.constant 0 : i32
    %51 = vector.broadcast %c0_i32_15 : i32 to vector<32x32xi32>
    %52 = arith.cmpi sge, %50, %51 : vector<32x32xi32>
    %c1_i32_16 = arith.constant 1 : i32
    %53 = vector.broadcast %c1_i32_16 : i32 to vector<32x32xi32>
    %54 = arith.addi %26, %53 : vector<32x32xi32>
    %c16_i32_17 = arith.constant 16 : i32
    %55 = vector.broadcast %c16_i32_17 : i32 to vector<32x32xi32>
    %56 = arith.cmpi slt, %54, %55 : vector<32x32xi32>
    %57 = arith.andi %52, %56 : vector<32x32xi1>
    %58 = arith.extui %57 : vector<32x32xi1> to vector<32x32xi32>
    %59 = arith.sitofp %58 : vector<32x32xi32> to vector<32x32xf32>
    %c2_i32 = arith.constant 2 : i32
    %60 = vector.broadcast %c2_i32 : i32 to vector<32x32xi32>
    %61 = arith.addi %26, %60 : vector<32x32xi32>
    %c0_i32_18 = arith.constant 0 : i32
    %62 = vector.broadcast %c0_i32_18 : i32 to vector<32x32xi32>
    %63 = arith.cmpi sge, %61, %62 : vector<32x32xi32>
    %c2_i32_19 = arith.constant 2 : i32
    %64 = vector.broadcast %c2_i32_19 : i32 to vector<32x32xi32>
    %65 = arith.addi %26, %64 : vector<32x32xi32>
    %c16_i32_20 = arith.constant 16 : i32
    %66 = vector.broadcast %c16_i32_20 : i32 to vector<32x32xi32>
    %67 = arith.cmpi slt, %65, %66 : vector<32x32xi32>
    %68 = arith.andi %63, %67 : vector<32x32xi1>
    %69 = arith.extui %68 : vector<32x32xi1> to vector<32x32xi32>
    %70 = arith.sitofp %69 : vector<32x32xi32> to vector<32x32xf32>
    %71 = vector.extract_strided_slice %1 {offsets = [0, 0], sizes = [32, 4], strides = [1, 1]} : vector<32x8xf32> to vector<32x4xf32>
    %72 = vector.extract_strided_slice %1 {offsets = [0, 4], sizes = [32, 4], strides = [1, 1]} : vector<32x8xf32> to vector<32x4xf32>
    %c0_21 = arith.constant 0 : index
    %c0_22 = arith.constant 0 : index
    %c0_23 = arith.constant 0 : index
    %c0_24 = arith.constant 0 : index
    %73 = vector.load %arg5[%c0_21, %c0_22, %c0_23, %c0_24] : memref<4x10x1x64xf32, #tpu.memory_space<vmem>>, vector<1x1x1x64xf32>
    %74 = vector.shape_cast %73 : vector<1x1x1x64xf32> to vector<1x64xf32>
    %75 = vector.extract_strided_slice %74 {offsets = [0, 0], sizes = [1, 32], strides = [1, 1]} : vector<1x64xf32> to vector<1x32xf32>
    %76 = arith.truncf %72 : vector<32x4xf32> to vector<32x4xbf16>
    %c0_25 = arith.constant 0 : index
    %c0_26 = arith.constant 0 : index
    %c0_27 = arith.constant 0 : index
    %77 = vector.load %arg3[%c0_25, %c0_26, %c0_27] : memref<4x4x32xbf16, #tpu.memory_space<vmem>>, vector<1x4x32xbf16>
    %78 = vector.shape_cast %77 : vector<1x4x32xbf16> to vector<4x32xbf16>
    %cst = arith.constant dense<0.000000e+00> : vector<32x32xf32>
    %79 = tpu.matmul %76, %78, %cst {dimension_numbers = #tpu.dot_dimension_numbers<[1], [0], [0], [1], [0, 0, 1, 1], [], []>} : vector<32x4xbf16>, vector<4x32xbf16>, vector<32x32xf32> -> vector<32x32xf32>
    %80 = vector.broadcast %75 : vector<1x32xf32> to vector<32x32xf32>
    %81 = arith.addf %79, %80 : vector<32x32xf32>
    %82 = arith.mulf %81, %5 : vector<32x32xf32>
    %c2_i32_28 = arith.constant 2 : i32
    %83 = tpu.dynamic_rotate %82 by %c2_i32_28 dim 0 : vector<32x32xf32>, i32 -> vector<32x32xf32>
    %84 = arith.mulf %83, %37 : vector<32x32xf32>
    %85 = arith.truncf %84 : vector<32x32xf32> to vector<32x32xbf16>
    %c0_29 = arith.constant 0 : index
    %c0_30 = arith.constant 0 : index
    %c0_31 = arith.constant 0 : index
    %c0_32 = arith.constant 0 : index
    %86 = vector.load %arg4[%c0_29, %c0_30, %c0_31, %c0_32] : memref<4x25x32x64xbf16, #tpu.memory_space<vmem>>, vector<1x1x32x64xbf16>
    %87 = vector.shape_cast %86 : vector<1x1x32x64xbf16> to vector<32x64xbf16>
    %cst_33 = arith.constant dense<0.000000e+00> : vector<32x64xf32>
    %88 = tpu.matmul %85, %87, %cst_33 {dimension_numbers = #tpu.dot_dimension_numbers<[1], [0], [0], [1], [0, 0, 1, 1], [], []>} : vector<32x32xbf16>, vector<32x64xbf16>, vector<32x64xf32> -> vector<32x64xf32>
    %c1_i32_34 = arith.constant 1 : i32
    %89 = tpu.dynamic_rotate %82 by %c1_i32_34 dim 0 : vector<32x32xf32>, i32 -> vector<32x32xf32>
    %90 = arith.mulf %89, %48 : vector<32x32xf32>
    %91 = arith.truncf %90 : vector<32x32xf32> to vector<32x32xbf16>
    %c0_35 = arith.constant 0 : index
    %c1 = arith.constant 1 : index
    %c0_36 = arith.constant 0 : index
    %c0_37 = arith.constant 0 : index
    %92 = vector.load %arg4[%c0_35, %c1, %c0_36, %c0_37] : memref<4x25x32x64xbf16, #tpu.memory_space<vmem>>, vector<1x1x32x64xbf16>
    %93 = vector.shape_cast %92 : vector<1x1x32x64xbf16> to vector<32x64xbf16>
    %cst_38 = arith.constant dense<0.000000e+00> : vector<32x64xf32>
    %94 = tpu.matmul %91, %93, %cst_38 {dimension_numbers = #tpu.dot_dimension_numbers<[1], [0], [0], [1], [0, 0, 1, 1], [], []>} : vector<32x32xbf16>, vector<32x64xbf16>, vector<32x64xf32> -> vector<32x64xf32>
    %95 = arith.addf %88, %94 : vector<32x64xf32>
    %96 = arith.truncf %82 : vector<32x32xf32> to vector<32x32xbf16>
    %c0_39 = arith.constant 0 : index
    %c2 = arith.constant 2 : index
    %c0_40 = arith.constant 0 : index
    %c0_41 = arith.constant 0 : index
    %97 = vector.load %arg4[%c0_39, %c2, %c0_40, %c0_41] : memref<4x25x32x64xbf16, #tpu.memory_space<vmem>>, vector<1x1x32x64xbf16>
    %98 = vector.shape_cast %97 : vector<1x1x32x64xbf16> to vector<32x64xbf16>
    %cst_42 = arith.constant dense<0.000000e+00> : vector<32x64xf32>
    %99 = tpu.matmul %96, %98, %cst_42 {dimension_numbers = #tpu.dot_dimension_numbers<[1], [0], [0], [1], [0, 0, 1, 1], [], []>} : vector<32x32xbf16>, vector<32x64xbf16>, vector<32x64xf32> -> vector<32x64xf32>
    %100 = arith.addf %95, %99 : vector<32x64xf32>
    %c31_i32 = arith.constant 31 : i32
    %101 = tpu.dynamic_rotate %82 by %c31_i32 dim 0 : vector<32x32xf32>, i32 -> vector<32x32xf32>
    %102 = arith.mulf %101, %59 : vector<32x32xf32>
    %103 = arith.truncf %102 : vector<32x32xf32> to vector<32x32xbf16>
    %c0_43 = arith.constant 0 : index
    %c3 = arith.constant 3 : index
    %c0_44 = arith.constant 0 : index
    %c0_45 = arith.constant 0 : index
    %104 = vector.load %arg4[%c0_43, %c3, %c0_44, %c0_45] : memref<4x25x32x64xbf16, #tpu.memory_space<vmem>>, vector<1x1x32x64xbf16>
    %105 = vector.shape_cast %104 : vector<1x1x32x64xbf16> to vector<32x64xbf16>
    %cst_46 = arith.constant dense<0.000000e+00> : vector<32x64xf32>
    %106 = tpu.matmul %103, %105, %cst_46 {dimension_numbers = #tpu.dot_dimension_numbers<[1], [0], [0], [1], [0, 0, 1, 1], [], []>} : vector<32x32xbf16>, vector<32x64xbf16>, vector<32x64xf32> -> vector<32x64xf32>
    %107 = arith.addf %100, %106 : vector<32x64xf32>
    %c30_i32 = arith.constant 30 : i32
    %108 = tpu.dynamic_rotate %82 by %c30_i32 dim 0 : vector<32x32xf32>, i32 -> vector<32x32xf32>
    %109 = arith.mulf %108, %70 : vector<32x32xf32>
    %110 = arith.truncf %109 : vector<32x32xf32> to vector<32x32xbf16>
    %c0_47 = arith.constant 0 : index
    %c4 = arith.constant 4 : index
    %c0_48 = arith.constant 0 : index
    %c0_49 = arith.constant 0 : index
    %111 = vector.load %arg4[%c0_47, %c4, %c0_48, %c0_49] : memref<4x25x32x64xbf16, #tpu.memory_space<vmem>>, vector<1x1x32x64xbf16>
    %112 = vector.shape_cast %111 : vector<1x1x32x64xbf16> to vector<32x64xbf16>
    %cst_50 = arith.constant dense<0.000000e+00> : vector<32x64xf32>
    %113 = tpu.matmul %110, %112, %cst_50 {dimension_numbers = #tpu.dot_dimension_numbers<[1], [0], [0], [1], [0, 0, 1, 1], [], []>} : vector<32x32xbf16>, vector<32x64xbf16>, vector<32x64xf32> -> vector<32x64xf32>
    %114 = arith.addf %107, %113 : vector<32x64xf32>
    %c0_51 = arith.constant 0 : index
    %c1_52 = arith.constant 1 : index
    %c0_53 = arith.constant 0 : index
    %c0_54 = arith.constant 0 : index
    %115 = vector.load %arg5[%c0_51, %c1_52, %c0_53, %c0_54] : memref<4x10x1x64xf32, #tpu.memory_space<vmem>>, vector<1x1x1x64xf32>
    %116 = vector.shape_cast %115 : vector<1x1x1x64xf32> to vector<1x64xf32>
    %117 = vector.broadcast %116 : vector<1x64xf32> to vector<32x64xf32>
    %118 = arith.addf %114, %117 : vector<32x64xf32>
    %119 = math.tanh %118 : vector<32x64xf32>
    %120 = vector.extract_strided_slice %119 {offsets = [0, 0], sizes = [32, 32], strides = [1, 1]} : vector<32x64xf32> to vector<32x32xf32>
    %121 = vector.extract_strided_slice %119 {offsets = [0, 32], sizes = [32, 32], strides = [1, 1]} : vector<32x64xf32> to vector<32x32xf32>
    %cst_55 = arith.constant 5.000000e-01 : f32
    %122 = vector.broadcast %cst_55 : f32 to vector<32x32xf32>
    %123 = arith.mulf %121, %122 : vector<32x32xf32>
    %cst_56 = arith.constant 5.000000e-01 : f32
    %124 = vector.broadcast %cst_56 : f32 to vector<32x32xf32>
    %125 = arith.addf %123, %124 : vector<32x32xf32>
    %126 = arith.mulf %120, %125 : vector<32x32xf32>
    %127 = arith.truncf %126 : vector<32x32xf32> to vector<32x32xbf16>
    %c0_57 = arith.constant 0 : index
    %c20 = arith.constant 20 : index
    %c0_58 = arith.constant 0 : index
    %c0_59 = arith.constant 0 : index
    %128 = vector.load %arg4[%c0_57, %c20, %c0_58, %c0_59] : memref<4x25x32x64xbf16, #tpu.memory_space<vmem>>, vector<1x1x32x64xbf16>
    %129 = vector.shape_cast %128 : vector<1x1x32x64xbf16> to vector<32x64xbf16>
    %cst_60 = arith.constant dense<0.000000e+00> : vector<32x64xf32>
    %130 = tpu.matmul %127, %129, %cst_60 {dimension_numbers = #tpu.dot_dimension_numbers<[1], [0], [0], [1], [0, 0, 1, 1], [], []>} : vector<32x32xbf16>, vector<32x64xbf16>, vector<32x64xf32> -> vector<32x64xf32>
    %c0_61 = arith.constant 0 : index
    %c5 = arith.constant 5 : index
    %c0_62 = arith.constant 0 : index
    %c0_63 = arith.constant 0 : index
    %131 = vector.load %arg5[%c0_61, %c5, %c0_62, %c0_63] : memref<4x10x1x64xf32, #tpu.memory_space<vmem>>, vector<1x1x1x64xf32>
    %132 = vector.shape_cast %131 : vector<1x1x1x64xf32> to vector<1x64xf32>
    %133 = vector.broadcast %132 : vector<1x64xf32> to vector<32x64xf32>
    %134 = arith.addf %130, %133 : vector<32x64xf32>
    %135 = vector.extract_strided_slice %134 {offsets = [0, 0], sizes = [32, 32], strides = [1, 1]} : vector<32x64xf32> to vector<32x32xf32>
    %136 = arith.addf %82, %135 : vector<32x32xf32>
    %137 = arith.mulf %136, %5 : vector<32x32xf32>
    %138 = vector.extract_strided_slice %134 {offsets = [0, 32], sizes = [32, 32], strides = [1, 1]} : vector<32x64xf32> to vector<32x32xf32>
    %c2_i32_64 = arith.constant 2 : i32
    %139 = tpu.dynamic_rotate %137 by %c2_i32_64 dim 0 : vector<32x32xf32>, i32 -> vector<32x32xf32>
    %140 = arith.mulf %139, %37 : vector<32x32xf32>
    %141 = arith.truncf %140 : vector<32x32xf32> to vector<32x32xbf16>
    %c0_65 = arith.constant 0 : index
    %c5_66 = arith.constant 5 : index
    %c0_67 = arith.constant 0 : index
    %c0_68 = arith.constant 0 : index
    %142 = vector.load %arg4[%c0_65, %c5_66, %c0_67, %c0_68] : memref<4x25x32x64xbf16, #tpu.memory_space<vmem>>, vector<1x1x32x64xbf16>
    %143 = vector.shape_cast %142 : vector<1x1x32x64xbf16> to vector<32x64xbf16>
    %cst_69 = arith.constant dense<0.000000e+00> : vector<32x64xf32>
    %144 = tpu.matmul %141, %143, %cst_69 {dimension_numbers = #tpu.dot_dimension_numbers<[1], [0], [0], [1], [0, 0, 1, 1], [], []>} : vector<32x32xbf16>, vector<32x64xbf16>, vector<32x64xf32> -> vector<32x64xf32>
    %c1_i32_70 = arith.constant 1 : i32
    %145 = tpu.dynamic_rotate %137 by %c1_i32_70 dim 0 : vector<32x32xf32>, i32 -> vector<32x32xf32>
    %146 = arith.mulf %145, %48 : vector<32x32xf32>
    %147 = arith.truncf %146 : vector<32x32xf32> to vector<32x32xbf16>
    %c0_71 = arith.constant 0 : index
    %c6 = arith.constant 6 : index
    %c0_72 = arith.constant 0 : index
    %c0_73 = arith.constant 0 : index
    %148 = vector.load %arg4[%c0_71, %c6, %c0_72, %c0_73] : memref<4x25x32x64xbf16, #tpu.memory_space<vmem>>, vector<1x1x32x64xbf16>
    %149 = vector.shape_cast %148 : vector<1x1x32x64xbf16> to vector<32x64xbf16>
    %cst_74 = arith.constant dense<0.000000e+00> : vector<32x64xf32>
    %150 = tpu.matmul %147, %149, %cst_74 {dimension_numbers = #tpu.dot_dimension_numbers<[1], [0], [0], [1], [0, 0, 1, 1], [], []>} : vector<32x32xbf16>, vector<32x64xbf16>, vector<32x64xf32> -> vector<32x64xf32>
    %151 = arith.addf %144, %150 : vector<32x64xf32>
    %152 = arith.truncf %137 : vector<32x32xf32> to vector<32x32xbf16>
    %c0_75 = arith.constant 0 : index
    %c7 = arith.constant 7 : index
    %c0_76 = arith.constant 0 : index
    %c0_77 = arith.constant 0 : index
    %153 = vector.load %arg4[%c0_75, %c7, %c0_76, %c0_77] : memref<4x25x32x64xbf16, #tpu.memory_space<vmem>>, vector<1x1x32x64xbf16>
    %154 = vector.shape_cast %153 : vector<1x1x32x64xbf16> to vector<32x64xbf16>
    %cst_78 = arith.constant dense<0.000000e+00> : vector<32x64xf32>
    %155 = tpu.matmul %152, %154, %cst_78 {dimension_numbers = #tpu.dot_dimension_numbers<[1], [0], [0], [1], [0, 0, 1, 1], [], []>} : vector<32x32xbf16>, vector<32x64xbf16>, vector<32x64xf32> -> vector<32x64xf32>
    %156 = arith.addf %151, %155 : vector<32x64xf32>
    %c31_i32_79 = arith.constant 31 : i32
    %157 = tpu.dynamic_rotate %137 by %c31_i32_79 dim 0 : vector<32x32xf32>, i32 -> vector<32x32xf32>
    %158 = arith.mulf %157, %59 : vector<32x32xf32>
    %159 = arith.truncf %158 : vector<32x32xf32> to vector<32x32xbf16>
    %c0_80 = arith.constant 0 : index
    %c8 = arith.constant 8 : index
    %c0_81 = arith.constant 0 : index
    %c0_82 = arith.constant 0 : index
    %160 = vector.load %arg4[%c0_80, %c8, %c0_81, %c0_82] : memref<4x25x32x64xbf16, #tpu.memory_space<vmem>>, vector<1x1x32x64xbf16>
    %161 = vector.shape_cast %160 : vector<1x1x32x64xbf16> to vector<32x64xbf16>
    %cst_83 = arith.constant dense<0.000000e+00> : vector<32x64xf32>
    %162 = tpu.matmul %159, %161, %cst_83 {dimension_numbers = #tpu.dot_dimension_numbers<[1], [0], [0], [1], [0, 0, 1, 1], [], []>} : vector<32x32xbf16>, vector<32x64xbf16>, vector<32x64xf32> -> vector<32x64xf32>
    %163 = arith.addf %156, %162 : vector<32x64xf32>
    %c30_i32_84 = arith.constant 30 : i32
    %164 = tpu.dynamic_rotate %137 by %c30_i32_84 dim 0 : vector<32x32xf32>, i32 -> vector<32x32xf32>
    %165 = arith.mulf %164, %70 : vector<32x32xf32>
    %166 = arith.truncf %165 : vector<32x32xf32> to vector<32x32xbf16>
    %c0_85 = arith.constant 0 : index
    %c9 = arith.constant 9 : index
    %c0_86 = arith.constant 0 : index
    %c0_87 = arith.constant 0 : index
    %167 = vector.load %arg4[%c0_85, %c9, %c0_86, %c0_87] : memref<4x25x32x64xbf16, #tpu.memory_space<vmem>>, vector<1x1x32x64xbf16>
    %168 = vector.shape_cast %167 : vector<1x1x32x64xbf16> to vector<32x64xbf16>
    %cst_88 = arith.constant dense<0.000000e+00> : vector<32x64xf32>
    %169 = tpu.matmul %166, %168, %cst_88 {dimension_numbers = #tpu.dot_dimension_numbers<[1], [0], [0], [1], [0, 0, 1, 1], [], []>} : vector<32x32xbf16>, vector<32x64xbf16>, vector<32x64xf32> -> vector<32x64xf32>
    %170 = arith.addf %163, %169 : vector<32x64xf32>
    %c0_89 = arith.constant 0 : index
    %c2_90 = arith.constant 2 : index
    %c0_91 = arith.constant 0 : index
    %c0_92 = arith.constant 0 : index
    %171 = vector.load %arg5[%c0_89, %c2_90, %c0_91, %c0_92] : memref<4x10x1x64xf32, #tpu.memory_space<vmem>>, vector<1x1x1x64xf32>
    %172 = vector.shape_cast %171 : vector<1x1x1x64xf32> to vector<1x64xf32>
    %173 = vector.broadcast %172 : vector<1x64xf32> to vector<32x64xf32>
    %174 = arith.addf %170, %173 : vector<32x64xf32>
    %175 = math.tanh %174 : vector<32x64xf32>
    %176 = vector.extract_strided_slice %175 {offsets = [0, 0], sizes = [32, 32], strides = [1, 1]} : vector<32x64xf32> to vector<32x32xf32>
    %177 = vector.extract_strided_slice %175 {offsets = [0, 32], sizes = [32, 32], strides = [1, 1]} : vector<32x64xf32> to vector<32x32xf32>
    %cst_93 = arith.constant 5.000000e-01 : f32
    %178 = vector.broadcast %cst_93 : f32 to vector<32x32xf32>
    %179 = arith.mulf %177, %178 : vector<32x32xf32>
    %cst_94 = arith.constant 5.000000e-01 : f32
    %180 = vector.broadcast %cst_94 : f32 to vector<32x32xf32>
    %181 = arith.addf %179, %180 : vector<32x32xf32>
    %182 = arith.mulf %176, %181 : vector<32x32xf32>
    %183 = arith.truncf %182 : vector<32x32xf32> to vector<32x32xbf16>
    %c0_95 = arith.constant 0 : index
    %c21 = arith.constant 21 : index
    %c0_96 = arith.constant 0 : index
    %c0_97 = arith.constant 0 : index
    %184 = vector.load %arg4[%c0_95, %c21, %c0_96, %c0_97] : memref<4x25x32x64xbf16, #tpu.memory_space<vmem>>, vector<1x1x32x64xbf16>
    %185 = vector.shape_cast %184 : vector<1x1x32x64xbf16> to vector<32x64xbf16>
    %cst_98 = arith.constant dense<0.000000e+00> : vector<32x64xf32>
    %186 = tpu.matmul %183, %185, %cst_98 {dimension_numbers = #tpu.dot_dimension_numbers<[1], [0], [0], [1], [0, 0, 1, 1], [], []>} : vector<32x32xbf16>, vector<32x64xbf16>, vector<32x64xf32> -> vector<32x64xf32>
    %c0_99 = arith.constant 0 : index
    %c6_100 = arith.constant 6 : index
    %c0_101 = arith.constant 0 : index
    %c0_102 = arith.constant 0 : index
    %187 = vector.load %arg5[%c0_99, %c6_100, %c0_101, %c0_102] : memref<4x10x1x64xf32, #tpu.memory_space<vmem>>, vector<1x1x1x64xf32>
    %188 = vector.shape_cast %187 : vector<1x1x1x64xf32> to vector<1x64xf32>
    %189 = vector.broadcast %188 : vector<1x64xf32> to vector<32x64xf32>
    %190 = arith.addf %186, %189 : vector<32x64xf32>
    %191 = vector.extract_strided_slice %190 {offsets = [0, 0], sizes = [32, 32], strides = [1, 1]} : vector<32x64xf32> to vector<32x32xf32>
    %192 = arith.addf %137, %191 : vector<32x32xf32>
    %193 = arith.mulf %192, %5 : vector<32x32xf32>
    %194 = vector.extract_strided_slice %190 {offsets = [0, 32], sizes = [32, 32], strides = [1, 1]} : vector<32x64xf32> to vector<32x32xf32>
    %195 = arith.addf %138, %194 : vector<32x32xf32>
    %c2_i32_103 = arith.constant 2 : i32
    %196 = tpu.dynamic_rotate %193 by %c2_i32_103 dim 0 : vector<32x32xf32>, i32 -> vector<32x32xf32>
    %197 = arith.mulf %196, %37 : vector<32x32xf32>
    %198 = arith.truncf %197 : vector<32x32xf32> to vector<32x32xbf16>
    %c0_104 = arith.constant 0 : index
    %c10 = arith.constant 10 : index
    %c0_105 = arith.constant 0 : index
    %c0_106 = arith.constant 0 : index
    %199 = vector.load %arg4[%c0_104, %c10, %c0_105, %c0_106] : memref<4x25x32x64xbf16, #tpu.memory_space<vmem>>, vector<1x1x32x64xbf16>
    %200 = vector.shape_cast %199 : vector<1x1x32x64xbf16> to vector<32x64xbf16>
    %cst_107 = arith.constant dense<0.000000e+00> : vector<32x64xf32>
    %201 = tpu.matmul %198, %200, %cst_107 {dimension_numbers = #tpu.dot_dimension_numbers<[1], [0], [0], [1], [0, 0, 1, 1], [], []>} : vector<32x32xbf16>, vector<32x64xbf16>, vector<32x64xf32> -> vector<32x64xf32>
    %c1_i32_108 = arith.constant 1 : i32
    %202 = tpu.dynamic_rotate %193 by %c1_i32_108 dim 0 : vector<32x32xf32>, i32 -> vector<32x32xf32>
    %203 = arith.mulf %202, %48 : vector<32x32xf32>
    %204 = arith.truncf %203 : vector<32x32xf32> to vector<32x32xbf16>
    %c0_109 = arith.constant 0 : index
    %c11 = arith.constant 11 : index
    %c0_110 = arith.constant 0 : index
    %c0_111 = arith.constant 0 : index
    %205 = vector.load %arg4[%c0_109, %c11, %c0_110, %c0_111] : memref<4x25x32x64xbf16, #tpu.memory_space<vmem>>, vector<1x1x32x64xbf16>
    %206 = vector.shape_cast %205 : vector<1x1x32x64xbf16> to vector<32x64xbf16>
    %cst_112 = arith.constant dense<0.000000e+00> : vector<32x64xf32>
    %207 = tpu.matmul %204, %206, %cst_112 {dimension_numbers = #tpu.dot_dimension_numbers<[1], [0], [0], [1], [0, 0, 1, 1], [], []>} : vector<32x32xbf16>, vector<32x64xbf16>, vector<32x64xf32> -> vector<32x64xf32>
    %208 = arith.addf %201, %207 : vector<32x64xf32>
    %209 = arith.truncf %193 : vector<32x32xf32> to vector<32x32xbf16>
    %c0_113 = arith.constant 0 : index
    %c12 = arith.constant 12 : index
    %c0_114 = arith.constant 0 : index
    %c0_115 = arith.constant 0 : index
    %210 = vector.load %arg4[%c0_113, %c12, %c0_114, %c0_115] : memref<4x25x32x64xbf16, #tpu.memory_space<vmem>>, vector<1x1x32x64xbf16>
    %211 = vector.shape_cast %210 : vector<1x1x32x64xbf16> to vector<32x64xbf16>
    %cst_116 = arith.constant dense<0.000000e+00> : vector<32x64xf32>
    %212 = tpu.matmul %209, %211, %cst_116 {dimension_numbers = #tpu.dot_dimension_numbers<[1], [0], [0], [1], [0, 0, 1, 1], [], []>} : vector<32x32xbf16>, vector<32x64xbf16>, vector<32x64xf32> -> vector<32x64xf32>
    %213 = arith.addf %208, %212 : vector<32x64xf32>
    %c31_i32_117 = arith.constant 31 : i32
    %214 = tpu.dynamic_rotate %193 by %c31_i32_117 dim 0 : vector<32x32xf32>, i32 -> vector<32x32xf32>
    %215 = arith.mulf %214, %59 : vector<32x32xf32>
    %216 = arith.truncf %215 : vector<32x32xf32> to vector<32x32xbf16>
    %c0_118 = arith.constant 0 : index
    %c13 = arith.constant 13 : index
    %c0_119 = arith.constant 0 : index
    %c0_120 = arith.constant 0 : index
    %217 = vector.load %arg4[%c0_118, %c13, %c0_119, %c0_120] : memref<4x25x32x64xbf16, #tpu.memory_space<vmem>>, vector<1x1x32x64xbf16>
    %218 = vector.shape_cast %217 : vector<1x1x32x64xbf16> to vector<32x64xbf16>
    %cst_121 = arith.constant dense<0.000000e+00> : vector<32x64xf32>
    %219 = tpu.matmul %216, %218, %cst_121 {dimension_numbers = #tpu.dot_dimension_numbers<[1], [0], [0], [1], [0, 0, 1, 1], [], []>} : vector<32x32xbf16>, vector<32x64xbf16>, vector<32x64xf32> -> vector<32x64xf32>
    %220 = arith.addf %213, %219 : vector<32x64xf32>
    %c30_i32_122 = arith.constant 30 : i32
    %221 = tpu.dynamic_rotate %193 by %c30_i32_122 dim 0 : vector<32x32xf32>, i32 -> vector<32x32xf32>
    %222 = arith.mulf %221, %70 : vector<32x32xf32>
    %223 = arith.truncf %222 : vector<32x32xf32> to vector<32x32xbf16>
    %c0_123 = arith.constant 0 : index
    %c14 = arith.constant 14 : index
    %c0_124 = arith.constant 0 : index
    %c0_125 = arith.constant 0 : index
    %224 = vector.load %arg4[%c0_123, %c14, %c0_124, %c0_125] : memref<4x25x32x64xbf16, #tpu.memory_space<vmem>>, vector<1x1x32x64xbf16>
    %225 = vector.shape_cast %224 : vector<1x1x32x64xbf16> to vector<32x64xbf16>
    %cst_126 = arith.constant dense<0.000000e+00> : vector<32x64xf32>
    %226 = tpu.matmul %223, %225, %cst_126 {dimension_numbers = #tpu.dot_dimension_numbers<[1], [0], [0], [1], [0, 0, 1, 1], [], []>} : vector<32x32xbf16>, vector<32x64xbf16>, vector<32x64xf32> -> vector<32x64xf32>
    %227 = arith.addf %220, %226 : vector<32x64xf32>
    %c0_127 = arith.constant 0 : index
    %c3_128 = arith.constant 3 : index
    %c0_129 = arith.constant 0 : index
    %c0_130 = arith.constant 0 : index
    %228 = vector.load %arg5[%c0_127, %c3_128, %c0_129, %c0_130] : memref<4x10x1x64xf32, #tpu.memory_space<vmem>>, vector<1x1x1x64xf32>
    %229 = vector.shape_cast %228 : vector<1x1x1x64xf32> to vector<1x64xf32>
    %230 = vector.broadcast %229 : vector<1x64xf32> to vector<32x64xf32>
    %231 = arith.addf %227, %230 : vector<32x64xf32>
    %232 = math.tanh %231 : vector<32x64xf32>
    %233 = vector.extract_strided_slice %232 {offsets = [0, 0], sizes = [32, 32], strides = [1, 1]} : vector<32x64xf32> to vector<32x32xf32>
    %234 = vector.extract_strided_slice %232 {offsets = [0, 32], sizes = [32, 32], strides = [1, 1]} : vector<32x64xf32> to vector<32x32xf32>
    %cst_131 = arith.constant 5.000000e-01 : f32
    %235 = vector.broadcast %cst_131 : f32 to vector<32x32xf32>
    %236 = arith.mulf %234, %235 : vector<32x32xf32>
    %cst_132 = arith.constant 5.000000e-01 : f32
    %237 = vector.broadcast %cst_132 : f32 to vector<32x32xf32>
    %238 = arith.addf %236, %237 : vector<32x32xf32>
    %239 = arith.mulf %233, %238 : vector<32x32xf32>
    %240 = arith.truncf %239 : vector<32x32xf32> to vector<32x32xbf16>
    %c0_133 = arith.constant 0 : index
    %c22 = arith.constant 22 : index
    %c0_134 = arith.constant 0 : index
    %c0_135 = arith.constant 0 : index
    %241 = vector.load %arg4[%c0_133, %c22, %c0_134, %c0_135] : memref<4x25x32x64xbf16, #tpu.memory_space<vmem>>, vector<1x1x32x64xbf16>
    %242 = vector.shape_cast %241 : vector<1x1x32x64xbf16> to vector<32x64xbf16>
    %cst_136 = arith.constant dense<0.000000e+00> : vector<32x64xf32>
    %243 = tpu.matmul %240, %242, %cst_136 {dimension_numbers = #tpu.dot_dimension_numbers<[1], [0], [0], [1], [0, 0, 1, 1], [], []>} : vector<32x32xbf16>, vector<32x64xbf16>, vector<32x64xf32> -> vector<32x64xf32>
    %c0_137 = arith.constant 0 : index
    %c7_138 = arith.constant 7 : index
    %c0_139 = arith.constant 0 : index
    %c0_140 = arith.constant 0 : index
    %244 = vector.load %arg5[%c0_137, %c7_138, %c0_139, %c0_140] : memref<4x10x1x64xf32, #tpu.memory_space<vmem>>, vector<1x1x1x64xf32>
    %245 = vector.shape_cast %244 : vector<1x1x1x64xf32> to vector<1x64xf32>
    %246 = vector.broadcast %245 : vector<1x64xf32> to vector<32x64xf32>
    %247 = arith.addf %243, %246 : vector<32x64xf32>
    %248 = vector.extract_strided_slice %247 {offsets = [0, 0], sizes = [32, 32], strides = [1, 1]} : vector<32x64xf32> to vector<32x32xf32>
    %249 = arith.addf %193, %248 : vector<32x32xf32>
    %250 = arith.mulf %249, %5 : vector<32x32xf32>
    %251 = vector.extract_strided_slice %247 {offsets = [0, 32], sizes = [32, 32], strides = [1, 1]} : vector<32x64xf32> to vector<32x32xf32>
    %252 = arith.addf %195, %251 : vector<32x32xf32>
    %c2_i32_141 = arith.constant 2 : i32
    %253 = tpu.dynamic_rotate %250 by %c2_i32_141 dim 0 : vector<32x32xf32>, i32 -> vector<32x32xf32>
    %254 = arith.mulf %253, %37 : vector<32x32xf32>
    %255 = arith.truncf %254 : vector<32x32xf32> to vector<32x32xbf16>
    %c0_142 = arith.constant 0 : index
    %c15 = arith.constant 15 : index
    %c0_143 = arith.constant 0 : index
    %c0_144 = arith.constant 0 : index
    %256 = vector.load %arg4[%c0_142, %c15, %c0_143, %c0_144] : memref<4x25x32x64xbf16, #tpu.memory_space<vmem>>, vector<1x1x32x64xbf16>
    %257 = vector.shape_cast %256 : vector<1x1x32x64xbf16> to vector<32x64xbf16>
    %cst_145 = arith.constant dense<0.000000e+00> : vector<32x64xf32>
    %258 = tpu.matmul %255, %257, %cst_145 {dimension_numbers = #tpu.dot_dimension_numbers<[1], [0], [0], [1], [0, 0, 1, 1], [], []>} : vector<32x32xbf16>, vector<32x64xbf16>, vector<32x64xf32> -> vector<32x64xf32>
    %c1_i32_146 = arith.constant 1 : i32
    %259 = tpu.dynamic_rotate %250 by %c1_i32_146 dim 0 : vector<32x32xf32>, i32 -> vector<32x32xf32>
    %260 = arith.mulf %259, %48 : vector<32x32xf32>
    %261 = arith.truncf %260 : vector<32x32xf32> to vector<32x32xbf16>
    %c0_147 = arith.constant 0 : index
    %c16 = arith.constant 16 : index
    %c0_148 = arith.constant 0 : index
    %c0_149 = arith.constant 0 : index
    %262 = vector.load %arg4[%c0_147, %c16, %c0_148, %c0_149] : memref<4x25x32x64xbf16, #tpu.memory_space<vmem>>, vector<1x1x32x64xbf16>
    %263 = vector.shape_cast %262 : vector<1x1x32x64xbf16> to vector<32x64xbf16>
    %cst_150 = arith.constant dense<0.000000e+00> : vector<32x64xf32>
    %264 = tpu.matmul %261, %263, %cst_150 {dimension_numbers = #tpu.dot_dimension_numbers<[1], [0], [0], [1], [0, 0, 1, 1], [], []>} : vector<32x32xbf16>, vector<32x64xbf16>, vector<32x64xf32> -> vector<32x64xf32>
    %265 = arith.addf %258, %264 : vector<32x64xf32>
    %266 = arith.truncf %250 : vector<32x32xf32> to vector<32x32xbf16>
    %c0_151 = arith.constant 0 : index
    %c17 = arith.constant 17 : index
    %c0_152 = arith.constant 0 : index
    %c0_153 = arith.constant 0 : index
    %267 = vector.load %arg4[%c0_151, %c17, %c0_152, %c0_153] : memref<4x25x32x64xbf16, #tpu.memory_space<vmem>>, vector<1x1x32x64xbf16>
    %268 = vector.shape_cast %267 : vector<1x1x32x64xbf16> to vector<32x64xbf16>
    %cst_154 = arith.constant dense<0.000000e+00> : vector<32x64xf32>
    %269 = tpu.matmul %266, %268, %cst_154 {dimension_numbers = #tpu.dot_dimension_numbers<[1], [0], [0], [1], [0, 0, 1, 1], [], []>} : vector<32x32xbf16>, vector<32x64xbf16>, vector<32x64xf32> -> vector<32x64xf32>
    %270 = arith.addf %265, %269 : vector<32x64xf32>
    %c31_i32_155 = arith.constant 31 : i32
    %271 = tpu.dynamic_rotate %250 by %c31_i32_155 dim 0 : vector<32x32xf32>, i32 -> vector<32x32xf32>
    %272 = arith.mulf %271, %59 : vector<32x32xf32>
    %273 = arith.truncf %272 : vector<32x32xf32> to vector<32x32xbf16>
    %c0_156 = arith.constant 0 : index
    %c18 = arith.constant 18 : index
    %c0_157 = arith.constant 0 : index
    %c0_158 = arith.constant 0 : index
    %274 = vector.load %arg4[%c0_156, %c18, %c0_157, %c0_158] : memref<4x25x32x64xbf16, #tpu.memory_space<vmem>>, vector<1x1x32x64xbf16>
    %275 = vector.shape_cast %274 : vector<1x1x32x64xbf16> to vector<32x64xbf16>
    %cst_159 = arith.constant dense<0.000000e+00> : vector<32x64xf32>
    %276 = tpu.matmul %273, %275, %cst_159 {dimension_numbers = #tpu.dot_dimension_numbers<[1], [0], [0], [1], [0, 0, 1, 1], [], []>} : vector<32x32xbf16>, vector<32x64xbf16>, vector<32x64xf32> -> vector<32x64xf32>
    %277 = arith.addf %270, %276 : vector<32x64xf32>
    %c30_i32_160 = arith.constant 30 : i32
    %278 = tpu.dynamic_rotate %250 by %c30_i32_160 dim 0 : vector<32x32xf32>, i32 -> vector<32x32xf32>
    %279 = arith.mulf %278, %70 : vector<32x32xf32>
    %280 = arith.truncf %279 : vector<32x32xf32> to vector<32x32xbf16>
    %c0_161 = arith.constant 0 : index
    %c19 = arith.constant 19 : index
    %c0_162 = arith.constant 0 : index
    %c0_163 = arith.constant 0 : index
    %281 = vector.load %arg4[%c0_161, %c19, %c0_162, %c0_163] : memref<4x25x32x64xbf16, #tpu.memory_space<vmem>>, vector<1x1x32x64xbf16>
    %282 = vector.shape_cast %281 : vector<1x1x32x64xbf16> to vector<32x64xbf16>
    %cst_164 = arith.constant dense<0.000000e+00> : vector<32x64xf32>
    %283 = tpu.matmul %280, %282, %cst_164 {dimension_numbers = #tpu.dot_dimension_numbers<[1], [0], [0], [1], [0, 0, 1, 1], [], []>} : vector<32x32xbf16>, vector<32x64xbf16>, vector<32x64xf32> -> vector<32x64xf32>
    %284 = arith.addf %277, %283 : vector<32x64xf32>
    %c0_165 = arith.constant 0 : index
    %c4_166 = arith.constant 4 : index
    %c0_167 = arith.constant 0 : index
    %c0_168 = arith.constant 0 : index
    %285 = vector.load %arg5[%c0_165, %c4_166, %c0_167, %c0_168] : memref<4x10x1x64xf32, #tpu.memory_space<vmem>>, vector<1x1x1x64xf32>
    %286 = vector.shape_cast %285 : vector<1x1x1x64xf32> to vector<1x64xf32>
    %287 = vector.broadcast %286 : vector<1x64xf32> to vector<32x64xf32>
    %288 = arith.addf %284, %287 : vector<32x64xf32>
    %289 = math.tanh %288 : vector<32x64xf32>
    %290 = vector.extract_strided_slice %289 {offsets = [0, 0], sizes = [32, 32], strides = [1, 1]} : vector<32x64xf32> to vector<32x32xf32>
    %291 = vector.extract_strided_slice %289 {offsets = [0, 32], sizes = [32, 32], strides = [1, 1]} : vector<32x64xf32> to vector<32x32xf32>
    %cst_169 = arith.constant 5.000000e-01 : f32
    %292 = vector.broadcast %cst_169 : f32 to vector<32x32xf32>
    %293 = arith.mulf %291, %292 : vector<32x32xf32>
    %cst_170 = arith.constant 5.000000e-01 : f32
    %294 = vector.broadcast %cst_170 : f32 to vector<32x32xf32>
    %295 = arith.addf %293, %294 : vector<32x32xf32>
    %296 = arith.mulf %290, %295 : vector<32x32xf32>
    %297 = arith.truncf %296 : vector<32x32xf32> to vector<32x32xbf16>
    %c0_171 = arith.constant 0 : index
    %c23 = arith.constant 23 : index
    %c0_172 = arith.constant 0 : index
    %c0_173 = arith.constant 0 : index
    %298 = vector.load %arg4[%c0_171, %c23, %c0_172, %c0_173] : memref<4x25x32x64xbf16, #tpu.memory_space<vmem>>, vector<1x1x32x64xbf16>
    %299 = vector.shape_cast %298 : vector<1x1x32x64xbf16> to vector<32x64xbf16>
    %cst_174 = arith.constant dense<0.000000e+00> : vector<32x64xf32>
    %300 = tpu.matmul %297, %299, %cst_174 {dimension_numbers = #tpu.dot_dimension_numbers<[1], [0], [0], [1], [0, 0, 1, 1], [], []>} : vector<32x32xbf16>, vector<32x64xbf16>, vector<32x64xf32> -> vector<32x64xf32>
    %c0_175 = arith.constant 0 : index
    %c8_176 = arith.constant 8 : index
    %c0_177 = arith.constant 0 : index
    %c0_178 = arith.constant 0 : index
    %301 = vector.load %arg5[%c0_175, %c8_176, %c0_177, %c0_178] : memref<4x10x1x64xf32, #tpu.memory_space<vmem>>, vector<1x1x1x64xf32>
    %302 = vector.shape_cast %301 : vector<1x1x1x64xf32> to vector<1x64xf32>
    %303 = vector.broadcast %302 : vector<1x64xf32> to vector<32x64xf32>
    %304 = arith.addf %300, %303 : vector<32x64xf32>
    %305 = vector.extract_strided_slice %304 {offsets = [0, 32], sizes = [32, 32], strides = [1, 1]} : vector<32x64xf32> to vector<32x32xf32>
    %306 = arith.addf %252, %305 : vector<32x32xf32>
    %307 = arith.mulf %306, %5 : vector<32x32xf32>
    %308 = arith.truncf %307 : vector<32x32xf32> to vector<32x32xbf16>
    %c0_179 = arith.constant 0 : index
    %c24 = arith.constant 24 : index
    %c0_180 = arith.constant 0 : index
    %c0_181 = arith.constant 0 : index
    %309 = vector.load %arg4[%c0_179, %c24, %c0_180, %c0_181] : memref<4x25x32x64xbf16, #tpu.memory_space<vmem>>, vector<1x1x32x64xbf16>
    %310 = vector.shape_cast %309 : vector<1x1x32x64xbf16> to vector<32x64xbf16>
    %cst_182 = arith.constant dense<0.000000e+00> : vector<32x64xf32>
    %311 = tpu.matmul %308, %310, %cst_182 {dimension_numbers = #tpu.dot_dimension_numbers<[1], [0], [0], [1], [0, 0, 1, 1], [], []>} : vector<32x32xbf16>, vector<32x64xbf16>, vector<32x64xf32> -> vector<32x64xf32>
    %312 = vector.extract_strided_slice %311 {offsets = [0, 0], sizes = [32, 4], strides = [1, 1]} : vector<32x64xf32> to vector<32x4xf32>
    %c0_183 = arith.constant 0 : index
    %c9_184 = arith.constant 9 : index
    %c0_185 = arith.constant 0 : index
    %c0_186 = arith.constant 0 : index
    %313 = vector.load %arg5[%c0_183, %c9_184, %c0_185, %c0_186] : memref<4x10x1x64xf32, #tpu.memory_space<vmem>>, vector<1x1x1x64xf32>
    %314 = vector.shape_cast %313 : vector<1x1x1x64xf32> to vector<1x64xf32>
    %315 = vector.extract_strided_slice %314 {offsets = [0, 0], sizes = [1, 4], strides = [1, 1]} : vector<1x64xf32> to vector<1x4xf32>
    %316 = vector.broadcast %315 : vector<1x4xf32> to vector<32x4xf32>
    %317 = arith.addf %312, %316 : vector<32x4xf32>
    %318 = arith.mulf %317, %7 : vector<32x4xf32>
    %319 = arith.subf %71, %318 : vector<32x4xf32>
    %320 = arith.mulf %319, %7 : vector<32x4xf32>
    %c1_187 = arith.constant 1 : index
    %c0_188 = arith.constant 0 : index
    %c0_189 = arith.constant 0 : index
    %c0_190 = arith.constant 0 : index
    %321 = vector.load %arg5[%c1_187, %c0_188, %c0_189, %c0_190] : memref<4x10x1x64xf32, #tpu.memory_space<vmem>>, vector<1x1x1x64xf32>
    %322 = vector.shape_cast %321 : vector<1x1x1x64xf32> to vector<1x64xf32>
    %323 = vector.extract_strided_slice %322 {offsets = [0, 0], sizes = [1, 32], strides = [1, 1]} : vector<1x64xf32> to vector<1x32xf32>
    %324 = arith.truncf %320 : vector<32x4xf32> to vector<32x4xbf16>
    %c1_191 = arith.constant 1 : index
    %c0_192 = arith.constant 0 : index
    %c0_193 = arith.constant 0 : index
    %325 = vector.load %arg3[%c1_191, %c0_192, %c0_193] : memref<4x4x32xbf16, #tpu.memory_space<vmem>>, vector<1x4x32xbf16>
    %326 = vector.shape_cast %325 : vector<1x4x32xbf16> to vector<4x32xbf16>
    %cst_194 = arith.constant dense<0.000000e+00> : vector<32x32xf32>
    %327 = tpu.matmul %324, %326, %cst_194 {dimension_numbers = #tpu.dot_dimension_numbers<[1], [0], [0], [1], [0, 0, 1, 1], [], []>} : vector<32x4xbf16>, vector<4x32xbf16>, vector<32x32xf32> -> vector<32x32xf32>
    %328 = vector.broadcast %323 : vector<1x32xf32> to vector<32x32xf32>
    %329 = arith.addf %327, %328 : vector<32x32xf32>
    %330 = arith.mulf %329, %5 : vector<32x32xf32>
    %c2_i32_195 = arith.constant 2 : i32
    %331 = tpu.dynamic_rotate %330 by %c2_i32_195 dim 0 : vector<32x32xf32>, i32 -> vector<32x32xf32>
    %332 = arith.mulf %331, %37 : vector<32x32xf32>
    %333 = arith.truncf %332 : vector<32x32xf32> to vector<32x32xbf16>
    %c1_196 = arith.constant 1 : index
    %c0_197 = arith.constant 0 : index
    %c0_198 = arith.constant 0 : index
    %c0_199 = arith.constant 0 : index
    %334 = vector.load %arg4[%c1_196, %c0_197, %c0_198, %c0_199] : memref<4x25x32x64xbf16, #tpu.memory_space<vmem>>, vector<1x1x32x64xbf16>
    %335 = vector.shape_cast %334 : vector<1x1x32x64xbf16> to vector<32x64xbf16>
    %cst_200 = arith.constant dense<0.000000e+00> : vector<32x64xf32>
    %336 = tpu.matmul %333, %335, %cst_200 {dimension_numbers = #tpu.dot_dimension_numbers<[1], [0], [0], [1], [0, 0, 1, 1], [], []>} : vector<32x32xbf16>, vector<32x64xbf16>, vector<32x64xf32> -> vector<32x64xf32>
    %c1_i32_201 = arith.constant 1 : i32
    %337 = tpu.dynamic_rotate %330 by %c1_i32_201 dim 0 : vector<32x32xf32>, i32 -> vector<32x32xf32>
    %338 = arith.mulf %337, %48 : vector<32x32xf32>
    %339 = arith.truncf %338 : vector<32x32xf32> to vector<32x32xbf16>
    %c1_202 = arith.constant 1 : index
    %c1_203 = arith.constant 1 : index
    %c0_204 = arith.constant 0 : index
    %c0_205 = arith.constant 0 : index
    %340 = vector.load %arg4[%c1_202, %c1_203, %c0_204, %c0_205] : memref<4x25x32x64xbf16, #tpu.memory_space<vmem>>, vector<1x1x32x64xbf16>
    %341 = vector.shape_cast %340 : vector<1x1x32x64xbf16> to vector<32x64xbf16>
    %cst_206 = arith.constant dense<0.000000e+00> : vector<32x64xf32>
    %342 = tpu.matmul %339, %341, %cst_206 {dimension_numbers = #tpu.dot_dimension_numbers<[1], [0], [0], [1], [0, 0, 1, 1], [], []>} : vector<32x32xbf16>, vector<32x64xbf16>, vector<32x64xf32> -> vector<32x64xf32>
    %343 = arith.addf %336, %342 : vector<32x64xf32>
    %344 = arith.truncf %330 : vector<32x32xf32> to vector<32x32xbf16>
    %c1_207 = arith.constant 1 : index
    %c2_208 = arith.constant 2 : index
    %c0_209 = arith.constant 0 : index
    %c0_210 = arith.constant 0 : index
    %345 = vector.load %arg4[%c1_207, %c2_208, %c0_209, %c0_210] : memref<4x25x32x64xbf16, #tpu.memory_space<vmem>>, vector<1x1x32x64xbf16>
    %346 = vector.shape_cast %345 : vector<1x1x32x64xbf16> to vector<32x64xbf16>
    %cst_211 = arith.constant dense<0.000000e+00> : vector<32x64xf32>
    %347 = tpu.matmul %344, %346, %cst_211 {dimension_numbers = #tpu.dot_dimension_numbers<[1], [0], [0], [1], [0, 0, 1, 1], [], []>} : vector<32x32xbf16>, vector<32x64xbf16>, vector<32x64xf32> -> vector<32x64xf32>
    %348 = arith.addf %343, %347 : vector<32x64xf32>
    %c31_i32_212 = arith.constant 31 : i32
    %349 = tpu.dynamic_rotate %330 by %c31_i32_212 dim 0 : vector<32x32xf32>, i32 -> vector<32x32xf32>
    %350 = arith.mulf %349, %59 : vector<32x32xf32>
    %351 = arith.truncf %350 : vector<32x32xf32> to vector<32x32xbf16>
    %c1_213 = arith.constant 1 : index
    %c3_214 = arith.constant 3 : index
    %c0_215 = arith.constant 0 : index
    %c0_216 = arith.constant 0 : index
    %352 = vector.load %arg4[%c1_213, %c3_214, %c0_215, %c0_216] : memref<4x25x32x64xbf16, #tpu.memory_space<vmem>>, vector<1x1x32x64xbf16>
    %353 = vector.shape_cast %352 : vector<1x1x32x64xbf16> to vector<32x64xbf16>
    %cst_217 = arith.constant dense<0.000000e+00> : vector<32x64xf32>
    %354 = tpu.matmul %351, %353, %cst_217 {dimension_numbers = #tpu.dot_dimension_numbers<[1], [0], [0], [1], [0, 0, 1, 1], [], []>} : vector<32x32xbf16>, vector<32x64xbf16>, vector<32x64xf32> -> vector<32x64xf32>
    %355 = arith.addf %348, %354 : vector<32x64xf32>
    %c30_i32_218 = arith.constant 30 : i32
    %356 = tpu.dynamic_rotate %330 by %c30_i32_218 dim 0 : vector<32x32xf32>, i32 -> vector<32x32xf32>
    %357 = arith.mulf %356, %70 : vector<32x32xf32>
    %358 = arith.truncf %357 : vector<32x32xf32> to vector<32x32xbf16>
    %c1_219 = arith.constant 1 : index
    %c4_220 = arith.constant 4 : index
    %c0_221 = arith.constant 0 : index
    %c0_222 = arith.constant 0 : index
    %359 = vector.load %arg4[%c1_219, %c4_220, %c0_221, %c0_222] : memref<4x25x32x64xbf16, #tpu.memory_space<vmem>>, vector<1x1x32x64xbf16>
    %360 = vector.shape_cast %359 : vector<1x1x32x64xbf16> to vector<32x64xbf16>
    %cst_223 = arith.constant dense<0.000000e+00> : vector<32x64xf32>
    %361 = tpu.matmul %358, %360, %cst_223 {dimension_numbers = #tpu.dot_dimension_numbers<[1], [0], [0], [1], [0, 0, 1, 1], [], []>} : vector<32x32xbf16>, vector<32x64xbf16>, vector<32x64xf32> -> vector<32x64xf32>
    %362 = arith.addf %355, %361 : vector<32x64xf32>
    %c1_224 = arith.constant 1 : index
    %c1_225 = arith.constant 1 : index
    %c0_226 = arith.constant 0 : index
    %c0_227 = arith.constant 0 : index
    %363 = vector.load %arg5[%c1_224, %c1_225, %c0_226, %c0_227] : memref<4x10x1x64xf32, #tpu.memory_space<vmem>>, vector<1x1x1x64xf32>
    %364 = vector.shape_cast %363 : vector<1x1x1x64xf32> to vector<1x64xf32>
    %365 = vector.broadcast %364 : vector<1x64xf32> to vector<32x64xf32>
    %366 = arith.addf %362, %365 : vector<32x64xf32>
    %367 = math.tanh %366 : vector<32x64xf32>
    %368 = vector.extract_strided_slice %367 {offsets = [0, 0], sizes = [32, 32], strides = [1, 1]} : vector<32x64xf32> to vector<32x32xf32>
    %369 = vector.extract_strided_slice %367 {offsets = [0, 32], sizes = [32, 32], strides = [1, 1]} : vector<32x64xf32> to vector<32x32xf32>
    %cst_228 = arith.constant 5.000000e-01 : f32
    %370 = vector.broadcast %cst_228 : f32 to vector<32x32xf32>
    %371 = arith.mulf %369, %370 : vector<32x32xf32>
    %cst_229 = arith.constant 5.000000e-01 : f32
    %372 = vector.broadcast %cst_229 : f32 to vector<32x32xf32>
    %373 = arith.addf %371, %372 : vector<32x32xf32>
    %374 = arith.mulf %368, %373 : vector<32x32xf32>
    %375 = arith.truncf %374 : vector<32x32xf32> to vector<32x32xbf16>
    %c1_230 = arith.constant 1 : index
    %c20_231 = arith.constant 20 : index
    %c0_232 = arith.constant 0 : index
    %c0_233 = arith.constant 0 : index
    %376 = vector.load %arg4[%c1_230, %c20_231, %c0_232, %c0_233] : memref<4x25x32x64xbf16, #tpu.memory_space<vmem>>, vector<1x1x32x64xbf16>
    %377 = vector.shape_cast %376 : vector<1x1x32x64xbf16> to vector<32x64xbf16>
    %cst_234 = arith.constant dense<0.000000e+00> : vector<32x64xf32>
    %378 = tpu.matmul %375, %377, %cst_234 {dimension_numbers = #tpu.dot_dimension_numbers<[1], [0], [0], [1], [0, 0, 1, 1], [], []>} : vector<32x32xbf16>, vector<32x64xbf16>, vector<32x64xf32> -> vector<32x64xf32>
    %c1_235 = arith.constant 1 : index
    %c5_236 = arith.constant 5 : index
    %c0_237 = arith.constant 0 : index
    %c0_238 = arith.constant 0 : index
    %379 = vector.load %arg5[%c1_235, %c5_236, %c0_237, %c0_238] : memref<4x10x1x64xf32, #tpu.memory_space<vmem>>, vector<1x1x1x64xf32>
    %380 = vector.shape_cast %379 : vector<1x1x1x64xf32> to vector<1x64xf32>
    %381 = vector.broadcast %380 : vector<1x64xf32> to vector<32x64xf32>
    %382 = arith.addf %378, %381 : vector<32x64xf32>
    %383 = vector.extract_strided_slice %382 {offsets = [0, 0], sizes = [32, 32], strides = [1, 1]} : vector<32x64xf32> to vector<32x32xf32>
    %384 = arith.addf %330, %383 : vector<32x32xf32>
    %385 = arith.mulf %384, %5 : vector<32x32xf32>
    %386 = vector.extract_strided_slice %382 {offsets = [0, 32], sizes = [32, 32], strides = [1, 1]} : vector<32x64xf32> to vector<32x32xf32>
    %c2_i32_239 = arith.constant 2 : i32
    %387 = tpu.dynamic_rotate %385 by %c2_i32_239 dim 0 : vector<32x32xf32>, i32 -> vector<32x32xf32>
    %388 = arith.mulf %387, %37 : vector<32x32xf32>
    %389 = arith.truncf %388 : vector<32x32xf32> to vector<32x32xbf16>
    %c1_240 = arith.constant 1 : index
    %c5_241 = arith.constant 5 : index
    %c0_242 = arith.constant 0 : index
    %c0_243 = arith.constant 0 : index
    %390 = vector.load %arg4[%c1_240, %c5_241, %c0_242, %c0_243] : memref<4x25x32x64xbf16, #tpu.memory_space<vmem>>, vector<1x1x32x64xbf16>
    %391 = vector.shape_cast %390 : vector<1x1x32x64xbf16> to vector<32x64xbf16>
    %cst_244 = arith.constant dense<0.000000e+00> : vector<32x64xf32>
    %392 = tpu.matmul %389, %391, %cst_244 {dimension_numbers = #tpu.dot_dimension_numbers<[1], [0], [0], [1], [0, 0, 1, 1], [], []>} : vector<32x32xbf16>, vector<32x64xbf16>, vector<32x64xf32> -> vector<32x64xf32>
    %c1_i32_245 = arith.constant 1 : i32
    %393 = tpu.dynamic_rotate %385 by %c1_i32_245 dim 0 : vector<32x32xf32>, i32 -> vector<32x32xf32>
    %394 = arith.mulf %393, %48 : vector<32x32xf32>
    %395 = arith.truncf %394 : vector<32x32xf32> to vector<32x32xbf16>
    %c1_246 = arith.constant 1 : index
    %c6_247 = arith.constant 6 : index
    %c0_248 = arith.constant 0 : index
    %c0_249 = arith.constant 0 : index
    %396 = vector.load %arg4[%c1_246, %c6_247, %c0_248, %c0_249] : memref<4x25x32x64xbf16, #tpu.memory_space<vmem>>, vector<1x1x32x64xbf16>
    %397 = vector.shape_cast %396 : vector<1x1x32x64xbf16> to vector<32x64xbf16>
    %cst_250 = arith.constant dense<0.000000e+00> : vector<32x64xf32>
    %398 = tpu.matmul %395, %397, %cst_250 {dimension_numbers = #tpu.dot_dimension_numbers<[1], [0], [0], [1], [0, 0, 1, 1], [], []>} : vector<32x32xbf16>, vector<32x64xbf16>, vector<32x64xf32> -> vector<32x64xf32>
    %399 = arith.addf %392, %398 : vector<32x64xf32>
    %400 = arith.truncf %385 : vector<32x32xf32> to vector<32x32xbf16>
    %c1_251 = arith.constant 1 : index
    %c7_252 = arith.constant 7 : index
    %c0_253 = arith.constant 0 : index
    %c0_254 = arith.constant 0 : index
    %401 = vector.load %arg4[%c1_251, %c7_252, %c0_253, %c0_254] : memref<4x25x32x64xbf16, #tpu.memory_space<vmem>>, vector<1x1x32x64xbf16>
    %402 = vector.shape_cast %401 : vector<1x1x32x64xbf16> to vector<32x64xbf16>
    %cst_255 = arith.constant dense<0.000000e+00> : vector<32x64xf32>
    %403 = tpu.matmul %400, %402, %cst_255 {dimension_numbers = #tpu.dot_dimension_numbers<[1], [0], [0], [1], [0, 0, 1, 1], [], []>} : vector<32x32xbf16>, vector<32x64xbf16>, vector<32x64xf32> -> vector<32x64xf32>
    %404 = arith.addf %399, %403 : vector<32x64xf32>
    %c31_i32_256 = arith.constant 31 : i32
    %405 = tpu.dynamic_rotate %385 by %c31_i32_256 dim 0 : vector<32x32xf32>, i32 -> vector<32x32xf32>
    %406 = arith.mulf %405, %59 : vector<32x32xf32>
    %407 = arith.truncf %406 : vector<32x32xf32> to vector<32x32xbf16>
    %c1_257 = arith.constant 1 : index
    %c8_258 = arith.constant 8 : index
    %c0_259 = arith.constant 0 : index
    %c0_260 = arith.constant 0 : index
    %408 = vector.load %arg4[%c1_257, %c8_258, %c0_259, %c0_260] : memref<4x25x32x64xbf16, #tpu.memory_space<vmem>>, vector<1x1x32x64xbf16>
    %409 = vector.shape_cast %408 : vector<1x1x32x64xbf16> to vector<32x64xbf16>
    %cst_261 = arith.constant dense<0.000000e+00> : vector<32x64xf32>
    %410 = tpu.matmul %407, %409, %cst_261 {dimension_numbers = #tpu.dot_dimension_numbers<[1], [0], [0], [1], [0, 0, 1, 1], [], []>} : vector<32x32xbf16>, vector<32x64xbf16>, vector<32x64xf32> -> vector<32x64xf32>
    %411 = arith.addf %404, %410 : vector<32x64xf32>
    %c30_i32_262 = arith.constant 30 : i32
    %412 = tpu.dynamic_rotate %385 by %c30_i32_262 dim 0 : vector<32x32xf32>, i32 -> vector<32x32xf32>
    %413 = arith.mulf %412, %70 : vector<32x32xf32>
    %414 = arith.truncf %413 : vector<32x32xf32> to vector<32x32xbf16>
    %c1_263 = arith.constant 1 : index
    %c9_264 = arith.constant 9 : index
    %c0_265 = arith.constant 0 : index
    %c0_266 = arith.constant 0 : index
    %415 = vector.load %arg4[%c1_263, %c9_264, %c0_265, %c0_266] : memref<4x25x32x64xbf16, #tpu.memory_space<vmem>>, vector<1x1x32x64xbf16>
    %416 = vector.shape_cast %415 : vector<1x1x32x64xbf16> to vector<32x64xbf16>
    %cst_267 = arith.constant dense<0.000000e+00> : vector<32x64xf32>
    %417 = tpu.matmul %414, %416, %cst_267 {dimension_numbers = #tpu.dot_dimension_numbers<[1], [0], [0], [1], [0, 0, 1, 1], [], []>} : vector<32x32xbf16>, vector<32x64xbf16>, vector<32x64xf32> -> vector<32x64xf32>
    %418 = arith.addf %411, %417 : vector<32x64xf32>
    %c1_268 = arith.constant 1 : index
    %c2_269 = arith.constant 2 : index
    %c0_270 = arith.constant 0 : index
    %c0_271 = arith.constant 0 : index
    %419 = vector.load %arg5[%c1_268, %c2_269, %c0_270, %c0_271] : memref<4x10x1x64xf32, #tpu.memory_space<vmem>>, vector<1x1x1x64xf32>
    %420 = vector.shape_cast %419 : vector<1x1x1x64xf32> to vector<1x64xf32>
    %421 = vector.broadcast %420 : vector<1x64xf32> to vector<32x64xf32>
    %422 = arith.addf %418, %421 : vector<32x64xf32>
    %423 = math.tanh %422 : vector<32x64xf32>
    %424 = vector.extract_strided_slice %423 {offsets = [0, 0], sizes = [32, 32], strides = [1, 1]} : vector<32x64xf32> to vector<32x32xf32>
    %425 = vector.extract_strided_slice %423 {offsets = [0, 32], sizes = [32, 32], strides = [1, 1]} : vector<32x64xf32> to vector<32x32xf32>
    %cst_272 = arith.constant 5.000000e-01 : f32
    %426 = vector.broadcast %cst_272 : f32 to vector<32x32xf32>
    %427 = arith.mulf %425, %426 : vector<32x32xf32>
    %cst_273 = arith.constant 5.000000e-01 : f32
    %428 = vector.broadcast %cst_273 : f32 to vector<32x32xf32>
    %429 = arith.addf %427, %428 : vector<32x32xf32>
    %430 = arith.mulf %424, %429 : vector<32x32xf32>
    %431 = arith.truncf %430 : vector<32x32xf32> to vector<32x32xbf16>
    %c1_274 = arith.constant 1 : index
    %c21_275 = arith.constant 21 : index
    %c0_276 = arith.constant 0 : index
    %c0_277 = arith.constant 0 : index
    %432 = vector.load %arg4[%c1_274, %c21_275, %c0_276, %c0_277] : memref<4x25x32x64xbf16, #tpu.memory_space<vmem>>, vector<1x1x32x64xbf16>
    %433 = vector.shape_cast %432 : vector<1x1x32x64xbf16> to vector<32x64xbf16>
    %cst_278 = arith.constant dense<0.000000e+00> : vector<32x64xf32>
    %434 = tpu.matmul %431, %433, %cst_278 {dimension_numbers = #tpu.dot_dimension_numbers<[1], [0], [0], [1], [0, 0, 1, 1], [], []>} : vector<32x32xbf16>, vector<32x64xbf16>, vector<32x64xf32> -> vector<32x64xf32>
    %c1_279 = arith.constant 1 : index
    %c6_280 = arith.constant 6 : index
    %c0_281 = arith.constant 0 : index
    %c0_282 = arith.constant 0 : index
    %435 = vector.load %arg5[%c1_279, %c6_280, %c0_281, %c0_282] : memref<4x10x1x64xf32, #tpu.memory_space<vmem>>, vector<1x1x1x64xf32>
    %436 = vector.shape_cast %435 : vector<1x1x1x64xf32> to vector<1x64xf32>
    %437 = vector.broadcast %436 : vector<1x64xf32> to vector<32x64xf32>
    %438 = arith.addf %434, %437 : vector<32x64xf32>
    %439 = vector.extract_strided_slice %438 {offsets = [0, 0], sizes = [32, 32], strides = [1, 1]} : vector<32x64xf32> to vector<32x32xf32>
    %440 = arith.addf %385, %439 : vector<32x32xf32>
    %441 = arith.mulf %440, %5 : vector<32x32xf32>
    %442 = vector.extract_strided_slice %438 {offsets = [0, 32], sizes = [32, 32], strides = [1, 1]} : vector<32x64xf32> to vector<32x32xf32>
    %443 = arith.addf %386, %442 : vector<32x32xf32>
    %c2_i32_283 = arith.constant 2 : i32
    %444 = tpu.dynamic_rotate %441 by %c2_i32_283 dim 0 : vector<32x32xf32>, i32 -> vector<32x32xf32>
    %445 = arith.mulf %444, %37 : vector<32x32xf32>
    %446 = arith.truncf %445 : vector<32x32xf32> to vector<32x32xbf16>
    %c1_284 = arith.constant 1 : index
    %c10_285 = arith.constant 10 : index
    %c0_286 = arith.constant 0 : index
    %c0_287 = arith.constant 0 : index
    %447 = vector.load %arg4[%c1_284, %c10_285, %c0_286, %c0_287] : memref<4x25x32x64xbf16, #tpu.memory_space<vmem>>, vector<1x1x32x64xbf16>
    %448 = vector.shape_cast %447 : vector<1x1x32x64xbf16> to vector<32x64xbf16>
    %cst_288 = arith.constant dense<0.000000e+00> : vector<32x64xf32>
    %449 = tpu.matmul %446, %448, %cst_288 {dimension_numbers = #tpu.dot_dimension_numbers<[1], [0], [0], [1], [0, 0, 1, 1], [], []>} : vector<32x32xbf16>, vector<32x64xbf16>, vector<32x64xf32> -> vector<32x64xf32>
    %c1_i32_289 = arith.constant 1 : i32
    %450 = tpu.dynamic_rotate %441 by %c1_i32_289 dim 0 : vector<32x32xf32>, i32 -> vector<32x32xf32>
    %451 = arith.mulf %450, %48 : vector<32x32xf32>
    %452 = arith.truncf %451 : vector<32x32xf32> to vector<32x32xbf16>
    %c1_290 = arith.constant 1 : index
    %c11_291 = arith.constant 11 : index
    %c0_292 = arith.constant 0 : index
    %c0_293 = arith.constant 0 : index
    %453 = vector.load %arg4[%c1_290, %c11_291, %c0_292, %c0_293] : memref<4x25x32x64xbf16, #tpu.memory_space<vmem>>, vector<1x1x32x64xbf16>
    %454 = vector.shape_cast %453 : vector<1x1x32x64xbf16> to vector<32x64xbf16>
    %cst_294 = arith.constant dense<0.000000e+00> : vector<32x64xf32>
    %455 = tpu.matmul %452, %454, %cst_294 {dimension_numbers = #tpu.dot_dimension_numbers<[1], [0], [0], [1], [0, 0, 1, 1], [], []>} : vector<32x32xbf16>, vector<32x64xbf16>, vector<32x64xf32> -> vector<32x64xf32>
    %456 = arith.addf %449, %455 : vector<32x64xf32>
    %457 = arith.truncf %441 : vector<32x32xf32> to vector<32x32xbf16>
    %c1_295 = arith.constant 1 : index
    %c12_296 = arith.constant 12 : index
    %c0_297 = arith.constant 0 : index
    %c0_298 = arith.constant 0 : index
    %458 = vector.load %arg4[%c1_295, %c12_296, %c0_297, %c0_298] : memref<4x25x32x64xbf16, #tpu.memory_space<vmem>>, vector<1x1x32x64xbf16>
    %459 = vector.shape_cast %458 : vector<1x1x32x64xbf16> to vector<32x64xbf16>
    %cst_299 = arith.constant dense<0.000000e+00> : vector<32x64xf32>
    %460 = tpu.matmul %457, %459, %cst_299 {dimension_numbers = #tpu.dot_dimension_numbers<[1], [0], [0], [1], [0, 0, 1, 1], [], []>} : vector<32x32xbf16>, vector<32x64xbf16>, vector<32x64xf32> -> vector<32x64xf32>
    %461 = arith.addf %456, %460 : vector<32x64xf32>
    %c31_i32_300 = arith.constant 31 : i32
    %462 = tpu.dynamic_rotate %441 by %c31_i32_300 dim 0 : vector<32x32xf32>, i32 -> vector<32x32xf32>
    %463 = arith.mulf %462, %59 : vector<32x32xf32>
    %464 = arith.truncf %463 : vector<32x32xf32> to vector<32x32xbf16>
    %c1_301 = arith.constant 1 : index
    %c13_302 = arith.constant 13 : index
    %c0_303 = arith.constant 0 : index
    %c0_304 = arith.constant 0 : index
    %465 = vector.load %arg4[%c1_301, %c13_302, %c0_303, %c0_304] : memref<4x25x32x64xbf16, #tpu.memory_space<vmem>>, vector<1x1x32x64xbf16>
    %466 = vector.shape_cast %465 : vector<1x1x32x64xbf16> to vector<32x64xbf16>
    %cst_305 = arith.constant dense<0.000000e+00> : vector<32x64xf32>
    %467 = tpu.matmul %464, %466, %cst_305 {dimension_numbers = #tpu.dot_dimension_numbers<[1], [0], [0], [1], [0, 0, 1, 1], [], []>} : vector<32x32xbf16>, vector<32x64xbf16>, vector<32x64xf32> -> vector<32x64xf32>
    %468 = arith.addf %461, %467 : vector<32x64xf32>
    %c30_i32_306 = arith.constant 30 : i32
    %469 = tpu.dynamic_rotate %441 by %c30_i32_306 dim 0 : vector<32x32xf32>, i32 -> vector<32x32xf32>
    %470 = arith.mulf %469, %70 : vector<32x32xf32>
    %471 = arith.truncf %470 : vector<32x32xf32> to vector<32x32xbf16>
    %c1_307 = arith.constant 1 : index
    %c14_308 = arith.constant 14 : index
    %c0_309 = arith.constant 0 : index
    %c0_310 = arith.constant 0 : index
    %472 = vector.load %arg4[%c1_307, %c14_308, %c0_309, %c0_310] : memref<4x25x32x64xbf16, #tpu.memory_space<vmem>>, vector<1x1x32x64xbf16>
    %473 = vector.shape_cast %472 : vector<1x1x32x64xbf16> to vector<32x64xbf16>
    %cst_311 = arith.constant dense<0.000000e+00> : vector<32x64xf32>
    %474 = tpu.matmul %471, %473, %cst_311 {dimension_numbers = #tpu.dot_dimension_numbers<[1], [0], [0], [1], [0, 0, 1, 1], [], []>} : vector<32x32xbf16>, vector<32x64xbf16>, vector<32x64xf32> -> vector<32x64xf32>
    %475 = arith.addf %468, %474 : vector<32x64xf32>
    %c1_312 = arith.constant 1 : index
    %c3_313 = arith.constant 3 : index
    %c0_314 = arith.constant 0 : index
    %c0_315 = arith.constant 0 : index
    %476 = vector.load %arg5[%c1_312, %c3_313, %c0_314, %c0_315] : memref<4x10x1x64xf32, #tpu.memory_space<vmem>>, vector<1x1x1x64xf32>
    %477 = vector.shape_cast %476 : vector<1x1x1x64xf32> to vector<1x64xf32>
    %478 = vector.broadcast %477 : vector<1x64xf32> to vector<32x64xf32>
    %479 = arith.addf %475, %478 : vector<32x64xf32>
    %480 = math.tanh %479 : vector<32x64xf32>
    %481 = vector.extract_strided_slice %480 {offsets = [0, 0], sizes = [32, 32], strides = [1, 1]} : vector<32x64xf32> to vector<32x32xf32>
    %482 = vector.extract_strided_slice %480 {offsets = [0, 32], sizes = [32, 32], strides = [1, 1]} : vector<32x64xf32> to vector<32x32xf32>
    %cst_316 = arith.constant 5.000000e-01 : f32
    %483 = vector.broadcast %cst_316 : f32 to vector<32x32xf32>
    %484 = arith.mulf %482, %483 : vector<32x32xf32>
    %cst_317 = arith.constant 5.000000e-01 : f32
    %485 = vector.broadcast %cst_317 : f32 to vector<32x32xf32>
    %486 = arith.addf %484, %485 : vector<32x32xf32>
    %487 = arith.mulf %481, %486 : vector<32x32xf32>
    %488 = arith.truncf %487 : vector<32x32xf32> to vector<32x32xbf16>
    %c1_318 = arith.constant 1 : index
    %c22_319 = arith.constant 22 : index
    %c0_320 = arith.constant 0 : index
    %c0_321 = arith.constant 0 : index
    %489 = vector.load %arg4[%c1_318, %c22_319, %c0_320, %c0_321] : memref<4x25x32x64xbf16, #tpu.memory_space<vmem>>, vector<1x1x32x64xbf16>
    %490 = vector.shape_cast %489 : vector<1x1x32x64xbf16> to vector<32x64xbf16>
    %cst_322 = arith.constant dense<0.000000e+00> : vector<32x64xf32>
    %491 = tpu.matmul %488, %490, %cst_322 {dimension_numbers = #tpu.dot_dimension_numbers<[1], [0], [0], [1], [0, 0, 1, 1], [], []>} : vector<32x32xbf16>, vector<32x64xbf16>, vector<32x64xf32> -> vector<32x64xf32>
    %c1_323 = arith.constant 1 : index
    %c7_324 = arith.constant 7 : index
    %c0_325 = arith.constant 0 : index
    %c0_326 = arith.constant 0 : index
    %492 = vector.load %arg5[%c1_323, %c7_324, %c0_325, %c0_326] : memref<4x10x1x64xf32, #tpu.memory_space<vmem>>, vector<1x1x1x64xf32>
    %493 = vector.shape_cast %492 : vector<1x1x1x64xf32> to vector<1x64xf32>
    %494 = vector.broadcast %493 : vector<1x64xf32> to vector<32x64xf32>
    %495 = arith.addf %491, %494 : vector<32x64xf32>
    %496 = vector.extract_strided_slice %495 {offsets = [0, 0], sizes = [32, 32], strides = [1, 1]} : vector<32x64xf32> to vector<32x32xf32>
    %497 = arith.addf %441, %496 : vector<32x32xf32>
    %498 = arith.mulf %497, %5 : vector<32x32xf32>
    %499 = vector.extract_strided_slice %495 {offsets = [0, 32], sizes = [32, 32], strides = [1, 1]} : vector<32x64xf32> to vector<32x32xf32>
    %500 = arith.addf %443, %499 : vector<32x32xf32>
    %c2_i32_327 = arith.constant 2 : i32
    %501 = tpu.dynamic_rotate %498 by %c2_i32_327 dim 0 : vector<32x32xf32>, i32 -> vector<32x32xf32>
    %502 = arith.mulf %501, %37 : vector<32x32xf32>
    %503 = arith.truncf %502 : vector<32x32xf32> to vector<32x32xbf16>
    %c1_328 = arith.constant 1 : index
    %c15_329 = arith.constant 15 : index
    %c0_330 = arith.constant 0 : index
    %c0_331 = arith.constant 0 : index
    %504 = vector.load %arg4[%c1_328, %c15_329, %c0_330, %c0_331] : memref<4x25x32x64xbf16, #tpu.memory_space<vmem>>, vector<1x1x32x64xbf16>
    %505 = vector.shape_cast %504 : vector<1x1x32x64xbf16> to vector<32x64xbf16>
    %cst_332 = arith.constant dense<0.000000e+00> : vector<32x64xf32>
    %506 = tpu.matmul %503, %505, %cst_332 {dimension_numbers = #tpu.dot_dimension_numbers<[1], [0], [0], [1], [0, 0, 1, 1], [], []>} : vector<32x32xbf16>, vector<32x64xbf16>, vector<32x64xf32> -> vector<32x64xf32>
    %c1_i32_333 = arith.constant 1 : i32
    %507 = tpu.dynamic_rotate %498 by %c1_i32_333 dim 0 : vector<32x32xf32>, i32 -> vector<32x32xf32>
    %508 = arith.mulf %507, %48 : vector<32x32xf32>
    %509 = arith.truncf %508 : vector<32x32xf32> to vector<32x32xbf16>
    %c1_334 = arith.constant 1 : index
    %c16_335 = arith.constant 16 : index
    %c0_336 = arith.constant 0 : index
    %c0_337 = arith.constant 0 : index
    %510 = vector.load %arg4[%c1_334, %c16_335, %c0_336, %c0_337] : memref<4x25x32x64xbf16, #tpu.memory_space<vmem>>, vector<1x1x32x64xbf16>
    %511 = vector.shape_cast %510 : vector<1x1x32x64xbf16> to vector<32x64xbf16>
    %cst_338 = arith.constant dense<0.000000e+00> : vector<32x64xf32>
    %512 = tpu.matmul %509, %511, %cst_338 {dimension_numbers = #tpu.dot_dimension_numbers<[1], [0], [0], [1], [0, 0, 1, 1], [], []>} : vector<32x32xbf16>, vector<32x64xbf16>, vector<32x64xf32> -> vector<32x64xf32>
    %513 = arith.addf %506, %512 : vector<32x64xf32>
    %514 = arith.truncf %498 : vector<32x32xf32> to vector<32x32xbf16>
    %c1_339 = arith.constant 1 : index
    %c17_340 = arith.constant 17 : index
    %c0_341 = arith.constant 0 : index
    %c0_342 = arith.constant 0 : index
    %515 = vector.load %arg4[%c1_339, %c17_340, %c0_341, %c0_342] : memref<4x25x32x64xbf16, #tpu.memory_space<vmem>>, vector<1x1x32x64xbf16>
    %516 = vector.shape_cast %515 : vector<1x1x32x64xbf16> to vector<32x64xbf16>
    %cst_343 = arith.constant dense<0.000000e+00> : vector<32x64xf32>
    %517 = tpu.matmul %514, %516, %cst_343 {dimension_numbers = #tpu.dot_dimension_numbers<[1], [0], [0], [1], [0, 0, 1, 1], [], []>} : vector<32x32xbf16>, vector<32x64xbf16>, vector<32x64xf32> -> vector<32x64xf32>
    %518 = arith.addf %513, %517 : vector<32x64xf32>
    %c31_i32_344 = arith.constant 31 : i32
    %519 = tpu.dynamic_rotate %498 by %c31_i32_344 dim 0 : vector<32x32xf32>, i32 -> vector<32x32xf32>
    %520 = arith.mulf %519, %59 : vector<32x32xf32>
    %521 = arith.truncf %520 : vector<32x32xf32> to vector<32x32xbf16>
    %c1_345 = arith.constant 1 : index
    %c18_346 = arith.constant 18 : index
    %c0_347 = arith.constant 0 : index
    %c0_348 = arith.constant 0 : index
    %522 = vector.load %arg4[%c1_345, %c18_346, %c0_347, %c0_348] : memref<4x25x32x64xbf16, #tpu.memory_space<vmem>>, vector<1x1x32x64xbf16>
    %523 = vector.shape_cast %522 : vector<1x1x32x64xbf16> to vector<32x64xbf16>
    %cst_349 = arith.constant dense<0.000000e+00> : vector<32x64xf32>
    %524 = tpu.matmul %521, %523, %cst_349 {dimension_numbers = #tpu.dot_dimension_numbers<[1], [0], [0], [1], [0, 0, 1, 1], [], []>} : vector<32x32xbf16>, vector<32x64xbf16>, vector<32x64xf32> -> vector<32x64xf32>
    %525 = arith.addf %518, %524 : vector<32x64xf32>
    %c30_i32_350 = arith.constant 30 : i32
    %526 = tpu.dynamic_rotate %498 by %c30_i32_350 dim 0 : vector<32x32xf32>, i32 -> vector<32x32xf32>
    %527 = arith.mulf %526, %70 : vector<32x32xf32>
    %528 = arith.truncf %527 : vector<32x32xf32> to vector<32x32xbf16>
    %c1_351 = arith.constant 1 : index
    %c19_352 = arith.constant 19 : index
    %c0_353 = arith.constant 0 : index
    %c0_354 = arith.constant 0 : index
    %529 = vector.load %arg4[%c1_351, %c19_352, %c0_353, %c0_354] : memref<4x25x32x64xbf16, #tpu.memory_space<vmem>>, vector<1x1x32x64xbf16>
    %530 = vector.shape_cast %529 : vector<1x1x32x64xbf16> to vector<32x64xbf16>
    %cst_355 = arith.constant dense<0.000000e+00> : vector<32x64xf32>
    %531 = tpu.matmul %528, %530, %cst_355 {dimension_numbers = #tpu.dot_dimension_numbers<[1], [0], [0], [1], [0, 0, 1, 1], [], []>} : vector<32x32xbf16>, vector<32x64xbf16>, vector<32x64xf32> -> vector<32x64xf32>
    %532 = arith.addf %525, %531 : vector<32x64xf32>
    %c1_356 = arith.constant 1 : index
    %c4_357 = arith.constant 4 : index
    %c0_358 = arith.constant 0 : index
    %c0_359 = arith.constant 0 : index
    %533 = vector.load %arg5[%c1_356, %c4_357, %c0_358, %c0_359] : memref<4x10x1x64xf32, #tpu.memory_space<vmem>>, vector<1x1x1x64xf32>
    %534 = vector.shape_cast %533 : vector<1x1x1x64xf32> to vector<1x64xf32>
    %535 = vector.broadcast %534 : vector<1x64xf32> to vector<32x64xf32>
    %536 = arith.addf %532, %535 : vector<32x64xf32>
    %537 = math.tanh %536 : vector<32x64xf32>
    %538 = vector.extract_strided_slice %537 {offsets = [0, 0], sizes = [32, 32], strides = [1, 1]} : vector<32x64xf32> to vector<32x32xf32>
    %539 = vector.extract_strided_slice %537 {offsets = [0, 32], sizes = [32, 32], strides = [1, 1]} : vector<32x64xf32> to vector<32x32xf32>
    %cst_360 = arith.constant 5.000000e-01 : f32
    %540 = vector.broadcast %cst_360 : f32 to vector<32x32xf32>
    %541 = arith.mulf %539, %540 : vector<32x32xf32>
    %cst_361 = arith.constant 5.000000e-01 : f32
    %542 = vector.broadcast %cst_361 : f32 to vector<32x32xf32>
    %543 = arith.addf %541, %542 : vector<32x32xf32>
    %544 = arith.mulf %538, %543 : vector<32x32xf32>
    %545 = arith.truncf %544 : vector<32x32xf32> to vector<32x32xbf16>
    %c1_362 = arith.constant 1 : index
    %c23_363 = arith.constant 23 : index
    %c0_364 = arith.constant 0 : index
    %c0_365 = arith.constant 0 : index
    %546 = vector.load %arg4[%c1_362, %c23_363, %c0_364, %c0_365] : memref<4x25x32x64xbf16, #tpu.memory_space<vmem>>, vector<1x1x32x64xbf16>
    %547 = vector.shape_cast %546 : vector<1x1x32x64xbf16> to vector<32x64xbf16>
    %cst_366 = arith.constant dense<0.000000e+00> : vector<32x64xf32>
    %548 = tpu.matmul %545, %547, %cst_366 {dimension_numbers = #tpu.dot_dimension_numbers<[1], [0], [0], [1], [0, 0, 1, 1], [], []>} : vector<32x32xbf16>, vector<32x64xbf16>, vector<32x64xf32> -> vector<32x64xf32>
    %c1_367 = arith.constant 1 : index
    %c8_368 = arith.constant 8 : index
    %c0_369 = arith.constant 0 : index
    %c0_370 = arith.constant 0 : index
    %549 = vector.load %arg5[%c1_367, %c8_368, %c0_369, %c0_370] : memref<4x10x1x64xf32, #tpu.memory_space<vmem>>, vector<1x1x1x64xf32>
    %550 = vector.shape_cast %549 : vector<1x1x1x64xf32> to vector<1x64xf32>
    %551 = vector.broadcast %550 : vector<1x64xf32> to vector<32x64xf32>
    %552 = arith.addf %548, %551 : vector<32x64xf32>
    %553 = vector.extract_strided_slice %552 {offsets = [0, 32], sizes = [32, 32], strides = [1, 1]} : vector<32x64xf32> to vector<32x32xf32>
    %554 = arith.addf %500, %553 : vector<32x32xf32>
    %555 = arith.mulf %554, %5 : vector<32x32xf32>
    %556 = arith.truncf %555 : vector<32x32xf32> to vector<32x32xbf16>
    %c1_371 = arith.constant 1 : index
    %c24_372 = arith.constant 24 : index
    %c0_373 = arith.constant 0 : index
    %c0_374 = arith.constant 0 : index
    %557 = vector.load %arg4[%c1_371, %c24_372, %c0_373, %c0_374] : memref<4x25x32x64xbf16, #tpu.memory_space<vmem>>, vector<1x1x32x64xbf16>
    %558 = vector.shape_cast %557 : vector<1x1x32x64xbf16> to vector<32x64xbf16>
    %cst_375 = arith.constant dense<0.000000e+00> : vector<32x64xf32>
    %559 = tpu.matmul %556, %558, %cst_375 {dimension_numbers = #tpu.dot_dimension_numbers<[1], [0], [0], [1], [0, 0, 1, 1], [], []>} : vector<32x32xbf16>, vector<32x64xbf16>, vector<32x64xf32> -> vector<32x64xf32>
    %560 = vector.extract_strided_slice %559 {offsets = [0, 0], sizes = [32, 4], strides = [1, 1]} : vector<32x64xf32> to vector<32x4xf32>
    %c1_376 = arith.constant 1 : index
    %c9_377 = arith.constant 9 : index
    %c0_378 = arith.constant 0 : index
    %c0_379 = arith.constant 0 : index
    %561 = vector.load %arg5[%c1_376, %c9_377, %c0_378, %c0_379] : memref<4x10x1x64xf32, #tpu.memory_space<vmem>>, vector<1x1x1x64xf32>
    %562 = vector.shape_cast %561 : vector<1x1x1x64xf32> to vector<1x64xf32>
    %563 = vector.extract_strided_slice %562 {offsets = [0, 0], sizes = [1, 4], strides = [1, 1]} : vector<1x64xf32> to vector<1x4xf32>
    %564 = vector.broadcast %563 : vector<1x4xf32> to vector<32x4xf32>
    %565 = arith.addf %560, %564 : vector<32x4xf32>
    %566 = arith.mulf %565, %7 : vector<32x4xf32>
    %567 = arith.subf %72, %566 : vector<32x4xf32>
    %568 = arith.mulf %567, %7 : vector<32x4xf32>
    %c2_380 = arith.constant 2 : index
    %c0_381 = arith.constant 0 : index
    %c0_382 = arith.constant 0 : index
    %c0_383 = arith.constant 0 : index
    %569 = vector.load %arg5[%c2_380, %c0_381, %c0_382, %c0_383] : memref<4x10x1x64xf32, #tpu.memory_space<vmem>>, vector<1x1x1x64xf32>
    %570 = vector.shape_cast %569 : vector<1x1x1x64xf32> to vector<1x64xf32>
    %571 = vector.extract_strided_slice %570 {offsets = [0, 0], sizes = [1, 32], strides = [1, 1]} : vector<1x64xf32> to vector<1x32xf32>
    %572 = arith.truncf %568 : vector<32x4xf32> to vector<32x4xbf16>
    %c2_384 = arith.constant 2 : index
    %c0_385 = arith.constant 0 : index
    %c0_386 = arith.constant 0 : index
    %573 = vector.load %arg3[%c2_384, %c0_385, %c0_386] : memref<4x4x32xbf16, #tpu.memory_space<vmem>>, vector<1x4x32xbf16>
    %574 = vector.shape_cast %573 : vector<1x4x32xbf16> to vector<4x32xbf16>
    %cst_387 = arith.constant dense<0.000000e+00> : vector<32x32xf32>
    %575 = tpu.matmul %572, %574, %cst_387 {dimension_numbers = #tpu.dot_dimension_numbers<[1], [0], [0], [1], [0, 0, 1, 1], [], []>} : vector<32x4xbf16>, vector<4x32xbf16>, vector<32x32xf32> -> vector<32x32xf32>
    %576 = vector.broadcast %571 : vector<1x32xf32> to vector<32x32xf32>
    %577 = arith.addf %575, %576 : vector<32x32xf32>
    %578 = arith.mulf %577, %5 : vector<32x32xf32>
    %c2_i32_388 = arith.constant 2 : i32
    %579 = tpu.dynamic_rotate %578 by %c2_i32_388 dim 0 : vector<32x32xf32>, i32 -> vector<32x32xf32>
    %580 = arith.mulf %579, %37 : vector<32x32xf32>
    %581 = arith.truncf %580 : vector<32x32xf32> to vector<32x32xbf16>
    %c2_389 = arith.constant 2 : index
    %c0_390 = arith.constant 0 : index
    %c0_391 = arith.constant 0 : index
    %c0_392 = arith.constant 0 : index
    %582 = vector.load %arg4[%c2_389, %c0_390, %c0_391, %c0_392] : memref<4x25x32x64xbf16, #tpu.memory_space<vmem>>, vector<1x1x32x64xbf16>
    %583 = vector.shape_cast %582 : vector<1x1x32x64xbf16> to vector<32x64xbf16>
    %cst_393 = arith.constant dense<0.000000e+00> : vector<32x64xf32>
    %584 = tpu.matmul %581, %583, %cst_393 {dimension_numbers = #tpu.dot_dimension_numbers<[1], [0], [0], [1], [0, 0, 1, 1], [], []>} : vector<32x32xbf16>, vector<32x64xbf16>, vector<32x64xf32> -> vector<32x64xf32>
    %c1_i32_394 = arith.constant 1 : i32
    %585 = tpu.dynamic_rotate %578 by %c1_i32_394 dim 0 : vector<32x32xf32>, i32 -> vector<32x32xf32>
    %586 = arith.mulf %585, %48 : vector<32x32xf32>
    %587 = arith.truncf %586 : vector<32x32xf32> to vector<32x32xbf16>
    %c2_395 = arith.constant 2 : index
    %c1_396 = arith.constant 1 : index
    %c0_397 = arith.constant 0 : index
    %c0_398 = arith.constant 0 : index
    %588 = vector.load %arg4[%c2_395, %c1_396, %c0_397, %c0_398] : memref<4x25x32x64xbf16, #tpu.memory_space<vmem>>, vector<1x1x32x64xbf16>
    %589 = vector.shape_cast %588 : vector<1x1x32x64xbf16> to vector<32x64xbf16>
    %cst_399 = arith.constant dense<0.000000e+00> : vector<32x64xf32>
    %590 = tpu.matmul %587, %589, %cst_399 {dimension_numbers = #tpu.dot_dimension_numbers<[1], [0], [0], [1], [0, 0, 1, 1], [], []>} : vector<32x32xbf16>, vector<32x64xbf16>, vector<32x64xf32> -> vector<32x64xf32>
    %591 = arith.addf %584, %590 : vector<32x64xf32>
    %592 = arith.truncf %578 : vector<32x32xf32> to vector<32x32xbf16>
    %c2_400 = arith.constant 2 : index
    %c2_401 = arith.constant 2 : index
    %c0_402 = arith.constant 0 : index
    %c0_403 = arith.constant 0 : index
    %593 = vector.load %arg4[%c2_400, %c2_401, %c0_402, %c0_403] : memref<4x25x32x64xbf16, #tpu.memory_space<vmem>>, vector<1x1x32x64xbf16>
    %594 = vector.shape_cast %593 : vector<1x1x32x64xbf16> to vector<32x64xbf16>
    %cst_404 = arith.constant dense<0.000000e+00> : vector<32x64xf32>
    %595 = tpu.matmul %592, %594, %cst_404 {dimension_numbers = #tpu.dot_dimension_numbers<[1], [0], [0], [1], [0, 0, 1, 1], [], []>} : vector<32x32xbf16>, vector<32x64xbf16>, vector<32x64xf32> -> vector<32x64xf32>
    %596 = arith.addf %591, %595 : vector<32x64xf32>
    %c31_i32_405 = arith.constant 31 : i32
    %597 = tpu.dynamic_rotate %578 by %c31_i32_405 dim 0 : vector<32x32xf32>, i32 -> vector<32x32xf32>
    %598 = arith.mulf %597, %59 : vector<32x32xf32>
    %599 = arith.truncf %598 : vector<32x32xf32> to vector<32x32xbf16>
    %c2_406 = arith.constant 2 : index
    %c3_407 = arith.constant 3 : index
    %c0_408 = arith.constant 0 : index
    %c0_409 = arith.constant 0 : index
    %600 = vector.load %arg4[%c2_406, %c3_407, %c0_408, %c0_409] : memref<4x25x32x64xbf16, #tpu.memory_space<vmem>>, vector<1x1x32x64xbf16>
    %601 = vector.shape_cast %600 : vector<1x1x32x64xbf16> to vector<32x64xbf16>
    %cst_410 = arith.constant dense<0.000000e+00> : vector<32x64xf32>
    %602 = tpu.matmul %599, %601, %cst_410 {dimension_numbers = #tpu.dot_dimension_numbers<[1], [0], [0], [1], [0, 0, 1, 1], [], []>} : vector<32x32xbf16>, vector<32x64xbf16>, vector<32x64xf32> -> vector<32x64xf32>
    %603 = arith.addf %596, %602 : vector<32x64xf32>
    %c30_i32_411 = arith.constant 30 : i32
    %604 = tpu.dynamic_rotate %578 by %c30_i32_411 dim 0 : vector<32x32xf32>, i32 -> vector<32x32xf32>
    %605 = arith.mulf %604, %70 : vector<32x32xf32>
    %606 = arith.truncf %605 : vector<32x32xf32> to vector<32x32xbf16>
    %c2_412 = arith.constant 2 : index
    %c4_413 = arith.constant 4 : index
    %c0_414 = arith.constant 0 : index
    %c0_415 = arith.constant 0 : index
    %607 = vector.load %arg4[%c2_412, %c4_413, %c0_414, %c0_415] : memref<4x25x32x64xbf16, #tpu.memory_space<vmem>>, vector<1x1x32x64xbf16>
    %608 = vector.shape_cast %607 : vector<1x1x32x64xbf16> to vector<32x64xbf16>
    %cst_416 = arith.constant dense<0.000000e+00> : vector<32x64xf32>
    %609 = tpu.matmul %606, %608, %cst_416 {dimension_numbers = #tpu.dot_dimension_numbers<[1], [0], [0], [1], [0, 0, 1, 1], [], []>} : vector<32x32xbf16>, vector<32x64xbf16>, vector<32x64xf32> -> vector<32x64xf32>
    %610 = arith.addf %603, %609 : vector<32x64xf32>
    %c2_417 = arith.constant 2 : index
    %c1_418 = arith.constant 1 : index
    %c0_419 = arith.constant 0 : index
    %c0_420 = arith.constant 0 : index
    %611 = vector.load %arg5[%c2_417, %c1_418, %c0_419, %c0_420] : memref<4x10x1x64xf32, #tpu.memory_space<vmem>>, vector<1x1x1x64xf32>
    %612 = vector.shape_cast %611 : vector<1x1x1x64xf32> to vector<1x64xf32>
    %613 = vector.broadcast %612 : vector<1x64xf32> to vector<32x64xf32>
    %614 = arith.addf %610, %613 : vector<32x64xf32>
    %615 = math.tanh %614 : vector<32x64xf32>
    %616 = vector.extract_strided_slice %615 {offsets = [0, 0], sizes = [32, 32], strides = [1, 1]} : vector<32x64xf32> to vector<32x32xf32>
    %617 = vector.extract_strided_slice %615 {offsets = [0, 32], sizes = [32, 32], strides = [1, 1]} : vector<32x64xf32> to vector<32x32xf32>
    %cst_421 = arith.constant 5.000000e-01 : f32
    %618 = vector.broadcast %cst_421 : f32 to vector<32x32xf32>
    %619 = arith.mulf %617, %618 : vector<32x32xf32>
    %cst_422 = arith.constant 5.000000e-01 : f32
    %620 = vector.broadcast %cst_422 : f32 to vector<32x32xf32>
    %621 = arith.addf %619, %620 : vector<32x32xf32>
    %622 = arith.mulf %616, %621 : vector<32x32xf32>
    %623 = arith.truncf %622 : vector<32x32xf32> to vector<32x32xbf16>
    %c2_423 = arith.constant 2 : index
    %c20_424 = arith.constant 20 : index
    %c0_425 = arith.constant 0 : index
    %c0_426 = arith.constant 0 : index
    %624 = vector.load %arg4[%c2_423, %c20_424, %c0_425, %c0_426] : memref<4x25x32x64xbf16, #tpu.memory_space<vmem>>, vector<1x1x32x64xbf16>
    %625 = vector.shape_cast %624 : vector<1x1x32x64xbf16> to vector<32x64xbf16>
    %cst_427 = arith.constant dense<0.000000e+00> : vector<32x64xf32>
    %626 = tpu.matmul %623, %625, %cst_427 {dimension_numbers = #tpu.dot_dimension_numbers<[1], [0], [0], [1], [0, 0, 1, 1], [], []>} : vector<32x32xbf16>, vector<32x64xbf16>, vector<32x64xf32> -> vector<32x64xf32>
    %c2_428 = arith.constant 2 : index
    %c5_429 = arith.constant 5 : index
    %c0_430 = arith.constant 0 : index
    %c0_431 = arith.constant 0 : index
    %627 = vector.load %arg5[%c2_428, %c5_429, %c0_430, %c0_431] : memref<4x10x1x64xf32, #tpu.memory_space<vmem>>, vector<1x1x1x64xf32>
    %628 = vector.shape_cast %627 : vector<1x1x1x64xf32> to vector<1x64xf32>
    %629 = vector.broadcast %628 : vector<1x64xf32> to vector<32x64xf32>
    %630 = arith.addf %626, %629 : vector<32x64xf32>
    %631 = vector.extract_strided_slice %630 {offsets = [0, 0], sizes = [32, 32], strides = [1, 1]} : vector<32x64xf32> to vector<32x32xf32>
    %632 = arith.addf %578, %631 : vector<32x32xf32>
    %633 = arith.mulf %632, %5 : vector<32x32xf32>
    %634 = vector.extract_strided_slice %630 {offsets = [0, 32], sizes = [32, 32], strides = [1, 1]} : vector<32x64xf32> to vector<32x32xf32>
    %c2_i32_432 = arith.constant 2 : i32
    %635 = tpu.dynamic_rotate %633 by %c2_i32_432 dim 0 : vector<32x32xf32>, i32 -> vector<32x32xf32>
    %636 = arith.mulf %635, %37 : vector<32x32xf32>
    %637 = arith.truncf %636 : vector<32x32xf32> to vector<32x32xbf16>
    %c2_433 = arith.constant 2 : index
    %c5_434 = arith.constant 5 : index
    %c0_435 = arith.constant 0 : index
    %c0_436 = arith.constant 0 : index
    %638 = vector.load %arg4[%c2_433, %c5_434, %c0_435, %c0_436] : memref<4x25x32x64xbf16, #tpu.memory_space<vmem>>, vector<1x1x32x64xbf16>
    %639 = vector.shape_cast %638 : vector<1x1x32x64xbf16> to vector<32x64xbf16>
    %cst_437 = arith.constant dense<0.000000e+00> : vector<32x64xf32>
    %640 = tpu.matmul %637, %639, %cst_437 {dimension_numbers = #tpu.dot_dimension_numbers<[1], [0], [0], [1], [0, 0, 1, 1], [], []>} : vector<32x32xbf16>, vector<32x64xbf16>, vector<32x64xf32> -> vector<32x64xf32>
    %c1_i32_438 = arith.constant 1 : i32
    %641 = tpu.dynamic_rotate %633 by %c1_i32_438 dim 0 : vector<32x32xf32>, i32 -> vector<32x32xf32>
    %642 = arith.mulf %641, %48 : vector<32x32xf32>
    %643 = arith.truncf %642 : vector<32x32xf32> to vector<32x32xbf16>
    %c2_439 = arith.constant 2 : index
    %c6_440 = arith.constant 6 : index
    %c0_441 = arith.constant 0 : index
    %c0_442 = arith.constant 0 : index
    %644 = vector.load %arg4[%c2_439, %c6_440, %c0_441, %c0_442] : memref<4x25x32x64xbf16, #tpu.memory_space<vmem>>, vector<1x1x32x64xbf16>
    %645 = vector.shape_cast %644 : vector<1x1x32x64xbf16> to vector<32x64xbf16>
    %cst_443 = arith.constant dense<0.000000e+00> : vector<32x64xf32>
    %646 = tpu.matmul %643, %645, %cst_443 {dimension_numbers = #tpu.dot_dimension_numbers<[1], [0], [0], [1], [0, 0, 1, 1], [], []>} : vector<32x32xbf16>, vector<32x64xbf16>, vector<32x64xf32> -> vector<32x64xf32>
    %647 = arith.addf %640, %646 : vector<32x64xf32>
    %648 = arith.truncf %633 : vector<32x32xf32> to vector<32x32xbf16>
    %c2_444 = arith.constant 2 : index
    %c7_445 = arith.constant 7 : index
    %c0_446 = arith.constant 0 : index
    %c0_447 = arith.constant 0 : index
    %649 = vector.load %arg4[%c2_444, %c7_445, %c0_446, %c0_447] : memref<4x25x32x64xbf16, #tpu.memory_space<vmem>>, vector<1x1x32x64xbf16>
    %650 = vector.shape_cast %649 : vector<1x1x32x64xbf16> to vector<32x64xbf16>
    %cst_448 = arith.constant dense<0.000000e+00> : vector<32x64xf32>
    %651 = tpu.matmul %648, %650, %cst_448 {dimension_numbers = #tpu.dot_dimension_numbers<[1], [0], [0], [1], [0, 0, 1, 1], [], []>} : vector<32x32xbf16>, vector<32x64xbf16>, vector<32x64xf32> -> vector<32x64xf32>
    %652 = arith.addf %647, %651 : vector<32x64xf32>
    %c31_i32_449 = arith.constant 31 : i32
    %653 = tpu.dynamic_rotate %633 by %c31_i32_449 dim 0 : vector<32x32xf32>, i32 -> vector<32x32xf32>
    %654 = arith.mulf %653, %59 : vector<32x32xf32>
    %655 = arith.truncf %654 : vector<32x32xf32> to vector<32x32xbf16>
    %c2_450 = arith.constant 2 : index
    %c8_451 = arith.constant 8 : index
    %c0_452 = arith.constant 0 : index
    %c0_453 = arith.constant 0 : index
    %656 = vector.load %arg4[%c2_450, %c8_451, %c0_452, %c0_453] : memref<4x25x32x64xbf16, #tpu.memory_space<vmem>>, vector<1x1x32x64xbf16>
    %657 = vector.shape_cast %656 : vector<1x1x32x64xbf16> to vector<32x64xbf16>
    %cst_454 = arith.constant dense<0.000000e+00> : vector<32x64xf32>
    %658 = tpu.matmul %655, %657, %cst_454 {dimension_numbers = #tpu.dot_dimension_numbers<[1], [0], [0], [1], [0, 0, 1, 1], [], []>} : vector<32x32xbf16>, vector<32x64xbf16>, vector<32x64xf32> -> vector<32x64xf32>
    %659 = arith.addf %652, %658 : vector<32x64xf32>
    %c30_i32_455 = arith.constant 30 : i32
    %660 = tpu.dynamic_rotate %633 by %c30_i32_455 dim 0 : vector<32x32xf32>, i32 -> vector<32x32xf32>
    %661 = arith.mulf %660, %70 : vector<32x32xf32>
    %662 = arith.truncf %661 : vector<32x32xf32> to vector<32x32xbf16>
    %c2_456 = arith.constant 2 : index
    %c9_457 = arith.constant 9 : index
    %c0_458 = arith.constant 0 : index
    %c0_459 = arith.constant 0 : index
    %663 = vector.load %arg4[%c2_456, %c9_457, %c0_458, %c0_459] : memref<4x25x32x64xbf16, #tpu.memory_space<vmem>>, vector<1x1x32x64xbf16>
    %664 = vector.shape_cast %663 : vector<1x1x32x64xbf16> to vector<32x64xbf16>
    %cst_460 = arith.constant dense<0.000000e+00> : vector<32x64xf32>
    %665 = tpu.matmul %662, %664, %cst_460 {dimension_numbers = #tpu.dot_dimension_numbers<[1], [0], [0], [1], [0, 0, 1, 1], [], []>} : vector<32x32xbf16>, vector<32x64xbf16>, vector<32x64xf32> -> vector<32x64xf32>
    %666 = arith.addf %659, %665 : vector<32x64xf32>
    %c2_461 = arith.constant 2 : index
    %c2_462 = arith.constant 2 : index
    %c0_463 = arith.constant 0 : index
    %c0_464 = arith.constant 0 : index
    %667 = vector.load %arg5[%c2_461, %c2_462, %c0_463, %c0_464] : memref<4x10x1x64xf32, #tpu.memory_space<vmem>>, vector<1x1x1x64xf32>
    %668 = vector.shape_cast %667 : vector<1x1x1x64xf32> to vector<1x64xf32>
    %669 = vector.broadcast %668 : vector<1x64xf32> to vector<32x64xf32>
    %670 = arith.addf %666, %669 : vector<32x64xf32>
    %671 = math.tanh %670 : vector<32x64xf32>
    %672 = vector.extract_strided_slice %671 {offsets = [0, 0], sizes = [32, 32], strides = [1, 1]} : vector<32x64xf32> to vector<32x32xf32>
    %673 = vector.extract_strided_slice %671 {offsets = [0, 32], sizes = [32, 32], strides = [1, 1]} : vector<32x64xf32> to vector<32x32xf32>
    %cst_465 = arith.constant 5.000000e-01 : f32
    %674 = vector.broadcast %cst_465 : f32 to vector<32x32xf32>
    %675 = arith.mulf %673, %674 : vector<32x32xf32>
    %cst_466 = arith.constant 5.000000e-01 : f32
    %676 = vector.broadcast %cst_466 : f32 to vector<32x32xf32>
    %677 = arith.addf %675, %676 : vector<32x32xf32>
    %678 = arith.mulf %672, %677 : vector<32x32xf32>
    %679 = arith.truncf %678 : vector<32x32xf32> to vector<32x32xbf16>
    %c2_467 = arith.constant 2 : index
    %c21_468 = arith.constant 21 : index
    %c0_469 = arith.constant 0 : index
    %c0_470 = arith.constant 0 : index
    %680 = vector.load %arg4[%c2_467, %c21_468, %c0_469, %c0_470] : memref<4x25x32x64xbf16, #tpu.memory_space<vmem>>, vector<1x1x32x64xbf16>
    %681 = vector.shape_cast %680 : vector<1x1x32x64xbf16> to vector<32x64xbf16>
    %cst_471 = arith.constant dense<0.000000e+00> : vector<32x64xf32>
    %682 = tpu.matmul %679, %681, %cst_471 {dimension_numbers = #tpu.dot_dimension_numbers<[1], [0], [0], [1], [0, 0, 1, 1], [], []>} : vector<32x32xbf16>, vector<32x64xbf16>, vector<32x64xf32> -> vector<32x64xf32>
    %c2_472 = arith.constant 2 : index
    %c6_473 = arith.constant 6 : index
    %c0_474 = arith.constant 0 : index
    %c0_475 = arith.constant 0 : index
    %683 = vector.load %arg5[%c2_472, %c6_473, %c0_474, %c0_475] : memref<4x10x1x64xf32, #tpu.memory_space<vmem>>, vector<1x1x1x64xf32>
    %684 = vector.shape_cast %683 : vector<1x1x1x64xf32> to vector<1x64xf32>
    %685 = vector.broadcast %684 : vector<1x64xf32> to vector<32x64xf32>
    %686 = arith.addf %682, %685 : vector<32x64xf32>
    %687 = vector.extract_strided_slice %686 {offsets = [0, 0], sizes = [32, 32], strides = [1, 1]} : vector<32x64xf32> to vector<32x32xf32>
    %688 = arith.addf %633, %687 : vector<32x32xf32>
    %689 = arith.mulf %688, %5 : vector<32x32xf32>
    %690 = vector.extract_strided_slice %686 {offsets = [0, 32], sizes = [32, 32], strides = [1, 1]} : vector<32x64xf32> to vector<32x32xf32>
    %691 = arith.addf %634, %690 : vector<32x32xf32>
    %c2_i32_476 = arith.constant 2 : i32
    %692 = tpu.dynamic_rotate %689 by %c2_i32_476 dim 0 : vector<32x32xf32>, i32 -> vector<32x32xf32>
    %693 = arith.mulf %692, %37 : vector<32x32xf32>
    %694 = arith.truncf %693 : vector<32x32xf32> to vector<32x32xbf16>
    %c2_477 = arith.constant 2 : index
    %c10_478 = arith.constant 10 : index
    %c0_479 = arith.constant 0 : index
    %c0_480 = arith.constant 0 : index
    %695 = vector.load %arg4[%c2_477, %c10_478, %c0_479, %c0_480] : memref<4x25x32x64xbf16, #tpu.memory_space<vmem>>, vector<1x1x32x64xbf16>
    %696 = vector.shape_cast %695 : vector<1x1x32x64xbf16> to vector<32x64xbf16>
    %cst_481 = arith.constant dense<0.000000e+00> : vector<32x64xf32>
    %697 = tpu.matmul %694, %696, %cst_481 {dimension_numbers = #tpu.dot_dimension_numbers<[1], [0], [0], [1], [0, 0, 1, 1], [], []>} : vector<32x32xbf16>, vector<32x64xbf16>, vector<32x64xf32> -> vector<32x64xf32>
    %c1_i32_482 = arith.constant 1 : i32
    %698 = tpu.dynamic_rotate %689 by %c1_i32_482 dim 0 : vector<32x32xf32>, i32 -> vector<32x32xf32>
    %699 = arith.mulf %698, %48 : vector<32x32xf32>
    %700 = arith.truncf %699 : vector<32x32xf32> to vector<32x32xbf16>
    %c2_483 = arith.constant 2 : index
    %c11_484 = arith.constant 11 : index
    %c0_485 = arith.constant 0 : index
    %c0_486 = arith.constant 0 : index
    %701 = vector.load %arg4[%c2_483, %c11_484, %c0_485, %c0_486] : memref<4x25x32x64xbf16, #tpu.memory_space<vmem>>, vector<1x1x32x64xbf16>
    %702 = vector.shape_cast %701 : vector<1x1x32x64xbf16> to vector<32x64xbf16>
    %cst_487 = arith.constant dense<0.000000e+00> : vector<32x64xf32>
    %703 = tpu.matmul %700, %702, %cst_487 {dimension_numbers = #tpu.dot_dimension_numbers<[1], [0], [0], [1], [0, 0, 1, 1], [], []>} : vector<32x32xbf16>, vector<32x64xbf16>, vector<32x64xf32> -> vector<32x64xf32>
    %704 = arith.addf %697, %703 : vector<32x64xf32>
    %705 = arith.truncf %689 : vector<32x32xf32> to vector<32x32xbf16>
    %c2_488 = arith.constant 2 : index
    %c12_489 = arith.constant 12 : index
    %c0_490 = arith.constant 0 : index
    %c0_491 = arith.constant 0 : index
    %706 = vector.load %arg4[%c2_488, %c12_489, %c0_490, %c0_491] : memref<4x25x32x64xbf16, #tpu.memory_space<vmem>>, vector<1x1x32x64xbf16>
    %707 = vector.shape_cast %706 : vector<1x1x32x64xbf16> to vector<32x64xbf16>
    %cst_492 = arith.constant dense<0.000000e+00> : vector<32x64xf32>
    %708 = tpu.matmul %705, %707, %cst_492 {dimension_numbers = #tpu.dot_dimension_numbers<[1], [0], [0], [1], [0, 0, 1, 1], [], []>} : vector<32x32xbf16>, vector<32x64xbf16>, vector<32x64xf32> -> vector<32x64xf32>
    %709 = arith.addf %704, %708 : vector<32x64xf32>
    %c31_i32_493 = arith.constant 31 : i32
    %710 = tpu.dynamic_rotate %689 by %c31_i32_493 dim 0 : vector<32x32xf32>, i32 -> vector<32x32xf32>
    %711 = arith.mulf %710, %59 : vector<32x32xf32>
    %712 = arith.truncf %711 : vector<32x32xf32> to vector<32x32xbf16>
    %c2_494 = arith.constant 2 : index
    %c13_495 = arith.constant 13 : index
    %c0_496 = arith.constant 0 : index
    %c0_497 = arith.constant 0 : index
    %713 = vector.load %arg4[%c2_494, %c13_495, %c0_496, %c0_497] : memref<4x25x32x64xbf16, #tpu.memory_space<vmem>>, vector<1x1x32x64xbf16>
    %714 = vector.shape_cast %713 : vector<1x1x32x64xbf16> to vector<32x64xbf16>
    %cst_498 = arith.constant dense<0.000000e+00> : vector<32x64xf32>
    %715 = tpu.matmul %712, %714, %cst_498 {dimension_numbers = #tpu.dot_dimension_numbers<[1], [0], [0], [1], [0, 0, 1, 1], [], []>} : vector<32x32xbf16>, vector<32x64xbf16>, vector<32x64xf32> -> vector<32x64xf32>
    %716 = arith.addf %709, %715 : vector<32x64xf32>
    %c30_i32_499 = arith.constant 30 : i32
    %717 = tpu.dynamic_rotate %689 by %c30_i32_499 dim 0 : vector<32x32xf32>, i32 -> vector<32x32xf32>
    %718 = arith.mulf %717, %70 : vector<32x32xf32>
    %719 = arith.truncf %718 : vector<32x32xf32> to vector<32x32xbf16>
    %c2_500 = arith.constant 2 : index
    %c14_501 = arith.constant 14 : index
    %c0_502 = arith.constant 0 : index
    %c0_503 = arith.constant 0 : index
    %720 = vector.load %arg4[%c2_500, %c14_501, %c0_502, %c0_503] : memref<4x25x32x64xbf16, #tpu.memory_space<vmem>>, vector<1x1x32x64xbf16>
    %721 = vector.shape_cast %720 : vector<1x1x32x64xbf16> to vector<32x64xbf16>
    %cst_504 = arith.constant dense<0.000000e+00> : vector<32x64xf32>
    %722 = tpu.matmul %719, %721, %cst_504 {dimension_numbers = #tpu.dot_dimension_numbers<[1], [0], [0], [1], [0, 0, 1, 1], [], []>} : vector<32x32xbf16>, vector<32x64xbf16>, vector<32x64xf32> -> vector<32x64xf32>
    %723 = arith.addf %716, %722 : vector<32x64xf32>
    %c2_505 = arith.constant 2 : index
    %c3_506 = arith.constant 3 : index
    %c0_507 = arith.constant 0 : index
    %c0_508 = arith.constant 0 : index
    %724 = vector.load %arg5[%c2_505, %c3_506, %c0_507, %c0_508] : memref<4x10x1x64xf32, #tpu.memory_space<vmem>>, vector<1x1x1x64xf32>
    %725 = vector.shape_cast %724 : vector<1x1x1x64xf32> to vector<1x64xf32>
    %726 = vector.broadcast %725 : vector<1x64xf32> to vector<32x64xf32>
    %727 = arith.addf %723, %726 : vector<32x64xf32>
    %728 = math.tanh %727 : vector<32x64xf32>
    %729 = vector.extract_strided_slice %728 {offsets = [0, 0], sizes = [32, 32], strides = [1, 1]} : vector<32x64xf32> to vector<32x32xf32>
    %730 = vector.extract_strided_slice %728 {offsets = [0, 32], sizes = [32, 32], strides = [1, 1]} : vector<32x64xf32> to vector<32x32xf32>
    %cst_509 = arith.constant 5.000000e-01 : f32
    %731 = vector.broadcast %cst_509 : f32 to vector<32x32xf32>
    %732 = arith.mulf %730, %731 : vector<32x32xf32>
    %cst_510 = arith.constant 5.000000e-01 : f32
    %733 = vector.broadcast %cst_510 : f32 to vector<32x32xf32>
    %734 = arith.addf %732, %733 : vector<32x32xf32>
    %735 = arith.mulf %729, %734 : vector<32x32xf32>
    %736 = arith.truncf %735 : vector<32x32xf32> to vector<32x32xbf16>
    %c2_511 = arith.constant 2 : index
    %c22_512 = arith.constant 22 : index
    %c0_513 = arith.constant 0 : index
    %c0_514 = arith.constant 0 : index
    %737 = vector.load %arg4[%c2_511, %c22_512, %c0_513, %c0_514] : memref<4x25x32x64xbf16, #tpu.memory_space<vmem>>, vector<1x1x32x64xbf16>
    %738 = vector.shape_cast %737 : vector<1x1x32x64xbf16> to vector<32x64xbf16>
    %cst_515 = arith.constant dense<0.000000e+00> : vector<32x64xf32>
    %739 = tpu.matmul %736, %738, %cst_515 {dimension_numbers = #tpu.dot_dimension_numbers<[1], [0], [0], [1], [0, 0, 1, 1], [], []>} : vector<32x32xbf16>, vector<32x64xbf16>, vector<32x64xf32> -> vector<32x64xf32>
    %c2_516 = arith.constant 2 : index
    %c7_517 = arith.constant 7 : index
    %c0_518 = arith.constant 0 : index
    %c0_519 = arith.constant 0 : index
    %740 = vector.load %arg5[%c2_516, %c7_517, %c0_518, %c0_519] : memref<4x10x1x64xf32, #tpu.memory_space<vmem>>, vector<1x1x1x64xf32>
    %741 = vector.shape_cast %740 : vector<1x1x1x64xf32> to vector<1x64xf32>
    %742 = vector.broadcast %741 : vector<1x64xf32> to vector<32x64xf32>
    %743 = arith.addf %739, %742 : vector<32x64xf32>
    %744 = vector.extract_strided_slice %743 {offsets = [0, 0], sizes = [32, 32], strides = [1, 1]} : vector<32x64xf32> to vector<32x32xf32>
    %745 = arith.addf %689, %744 : vector<32x32xf32>
    %746 = arith.mulf %745, %5 : vector<32x32xf32>
    %747 = vector.extract_strided_slice %743 {offsets = [0, 32], sizes = [32, 32], strides = [1, 1]} : vector<32x64xf32> to vector<32x32xf32>
    %748 = arith.addf %691, %747 : vector<32x32xf32>
    %c2_i32_520 = arith.constant 2 : i32
    %749 = tpu.dynamic_rotate %746 by %c2_i32_520 dim 0 : vector<32x32xf32>, i32 -> vector<32x32xf32>
    %750 = arith.mulf %749, %37 : vector<32x32xf32>
    %751 = arith.truncf %750 : vector<32x32xf32> to vector<32x32xbf16>
    %c2_521 = arith.constant 2 : index
    %c15_522 = arith.constant 15 : index
    %c0_523 = arith.constant 0 : index
    %c0_524 = arith.constant 0 : index
    %752 = vector.load %arg4[%c2_521, %c15_522, %c0_523, %c0_524] : memref<4x25x32x64xbf16, #tpu.memory_space<vmem>>, vector<1x1x32x64xbf16>
    %753 = vector.shape_cast %752 : vector<1x1x32x64xbf16> to vector<32x64xbf16>
    %cst_525 = arith.constant dense<0.000000e+00> : vector<32x64xf32>
    %754 = tpu.matmul %751, %753, %cst_525 {dimension_numbers = #tpu.dot_dimension_numbers<[1], [0], [0], [1], [0, 0, 1, 1], [], []>} : vector<32x32xbf16>, vector<32x64xbf16>, vector<32x64xf32> -> vector<32x64xf32>
    %c1_i32_526 = arith.constant 1 : i32
    %755 = tpu.dynamic_rotate %746 by %c1_i32_526 dim 0 : vector<32x32xf32>, i32 -> vector<32x32xf32>
    %756 = arith.mulf %755, %48 : vector<32x32xf32>
    %757 = arith.truncf %756 : vector<32x32xf32> to vector<32x32xbf16>
    %c2_527 = arith.constant 2 : index
    %c16_528 = arith.constant 16 : index
    %c0_529 = arith.constant 0 : index
    %c0_530 = arith.constant 0 : index
    %758 = vector.load %arg4[%c2_527, %c16_528, %c0_529, %c0_530] : memref<4x25x32x64xbf16, #tpu.memory_space<vmem>>, vector<1x1x32x64xbf16>
    %759 = vector.shape_cast %758 : vector<1x1x32x64xbf16> to vector<32x64xbf16>
    %cst_531 = arith.constant dense<0.000000e+00> : vector<32x64xf32>
    %760 = tpu.matmul %757, %759, %cst_531 {dimension_numbers = #tpu.dot_dimension_numbers<[1], [0], [0], [1], [0, 0, 1, 1], [], []>} : vector<32x32xbf16>, vector<32x64xbf16>, vector<32x64xf32> -> vector<32x64xf32>
    %761 = arith.addf %754, %760 : vector<32x64xf32>
    %762 = arith.truncf %746 : vector<32x32xf32> to vector<32x32xbf16>
    %c2_532 = arith.constant 2 : index
    %c17_533 = arith.constant 17 : index
    %c0_534 = arith.constant 0 : index
    %c0_535 = arith.constant 0 : index
    %763 = vector.load %arg4[%c2_532, %c17_533, %c0_534, %c0_535] : memref<4x25x32x64xbf16, #tpu.memory_space<vmem>>, vector<1x1x32x64xbf16>
    %764 = vector.shape_cast %763 : vector<1x1x32x64xbf16> to vector<32x64xbf16>
    %cst_536 = arith.constant dense<0.000000e+00> : vector<32x64xf32>
    %765 = tpu.matmul %762, %764, %cst_536 {dimension_numbers = #tpu.dot_dimension_numbers<[1], [0], [0], [1], [0, 0, 1, 1], [], []>} : vector<32x32xbf16>, vector<32x64xbf16>, vector<32x64xf32> -> vector<32x64xf32>
    %766 = arith.addf %761, %765 : vector<32x64xf32>
    %c31_i32_537 = arith.constant 31 : i32
    %767 = tpu.dynamic_rotate %746 by %c31_i32_537 dim 0 : vector<32x32xf32>, i32 -> vector<32x32xf32>
    %768 = arith.mulf %767, %59 : vector<32x32xf32>
    %769 = arith.truncf %768 : vector<32x32xf32> to vector<32x32xbf16>
    %c2_538 = arith.constant 2 : index
    %c18_539 = arith.constant 18 : index
    %c0_540 = arith.constant 0 : index
    %c0_541 = arith.constant 0 : index
    %770 = vector.load %arg4[%c2_538, %c18_539, %c0_540, %c0_541] : memref<4x25x32x64xbf16, #tpu.memory_space<vmem>>, vector<1x1x32x64xbf16>
    %771 = vector.shape_cast %770 : vector<1x1x32x64xbf16> to vector<32x64xbf16>
    %cst_542 = arith.constant dense<0.000000e+00> : vector<32x64xf32>
    %772 = tpu.matmul %769, %771, %cst_542 {dimension_numbers = #tpu.dot_dimension_numbers<[1], [0], [0], [1], [0, 0, 1, 1], [], []>} : vector<32x32xbf16>, vector<32x64xbf16>, vector<32x64xf32> -> vector<32x64xf32>
    %773 = arith.addf %766, %772 : vector<32x64xf32>
    %c30_i32_543 = arith.constant 30 : i32
    %774 = tpu.dynamic_rotate %746 by %c30_i32_543 dim 0 : vector<32x32xf32>, i32 -> vector<32x32xf32>
    %775 = arith.mulf %774, %70 : vector<32x32xf32>
    %776 = arith.truncf %775 : vector<32x32xf32> to vector<32x32xbf16>
    %c2_544 = arith.constant 2 : index
    %c19_545 = arith.constant 19 : index
    %c0_546 = arith.constant 0 : index
    %c0_547 = arith.constant 0 : index
    %777 = vector.load %arg4[%c2_544, %c19_545, %c0_546, %c0_547] : memref<4x25x32x64xbf16, #tpu.memory_space<vmem>>, vector<1x1x32x64xbf16>
    %778 = vector.shape_cast %777 : vector<1x1x32x64xbf16> to vector<32x64xbf16>
    %cst_548 = arith.constant dense<0.000000e+00> : vector<32x64xf32>
    %779 = tpu.matmul %776, %778, %cst_548 {dimension_numbers = #tpu.dot_dimension_numbers<[1], [0], [0], [1], [0, 0, 1, 1], [], []>} : vector<32x32xbf16>, vector<32x64xbf16>, vector<32x64xf32> -> vector<32x64xf32>
    %780 = arith.addf %773, %779 : vector<32x64xf32>
    %c2_549 = arith.constant 2 : index
    %c4_550 = arith.constant 4 : index
    %c0_551 = arith.constant 0 : index
    %c0_552 = arith.constant 0 : index
    %781 = vector.load %arg5[%c2_549, %c4_550, %c0_551, %c0_552] : memref<4x10x1x64xf32, #tpu.memory_space<vmem>>, vector<1x1x1x64xf32>
    %782 = vector.shape_cast %781 : vector<1x1x1x64xf32> to vector<1x64xf32>
    %783 = vector.broadcast %782 : vector<1x64xf32> to vector<32x64xf32>
    %784 = arith.addf %780, %783 : vector<32x64xf32>
    %785 = math.tanh %784 : vector<32x64xf32>
    %786 = vector.extract_strided_slice %785 {offsets = [0, 0], sizes = [32, 32], strides = [1, 1]} : vector<32x64xf32> to vector<32x32xf32>
    %787 = vector.extract_strided_slice %785 {offsets = [0, 32], sizes = [32, 32], strides = [1, 1]} : vector<32x64xf32> to vector<32x32xf32>
    %cst_553 = arith.constant 5.000000e-01 : f32
    %788 = vector.broadcast %cst_553 : f32 to vector<32x32xf32>
    %789 = arith.mulf %787, %788 : vector<32x32xf32>
    %cst_554 = arith.constant 5.000000e-01 : f32
    %790 = vector.broadcast %cst_554 : f32 to vector<32x32xf32>
    %791 = arith.addf %789, %790 : vector<32x32xf32>
    %792 = arith.mulf %786, %791 : vector<32x32xf32>
    %793 = arith.truncf %792 : vector<32x32xf32> to vector<32x32xbf16>
    %c2_555 = arith.constant 2 : index
    %c23_556 = arith.constant 23 : index
    %c0_557 = arith.constant 0 : index
    %c0_558 = arith.constant 0 : index
    %794 = vector.load %arg4[%c2_555, %c23_556, %c0_557, %c0_558] : memref<4x25x32x64xbf16, #tpu.memory_space<vmem>>, vector<1x1x32x64xbf16>
    %795 = vector.shape_cast %794 : vector<1x1x32x64xbf16> to vector<32x64xbf16>
    %cst_559 = arith.constant dense<0.000000e+00> : vector<32x64xf32>
    %796 = tpu.matmul %793, %795, %cst_559 {dimension_numbers = #tpu.dot_dimension_numbers<[1], [0], [0], [1], [0, 0, 1, 1], [], []>} : vector<32x32xbf16>, vector<32x64xbf16>, vector<32x64xf32> -> vector<32x64xf32>
    %c2_560 = arith.constant 2 : index
    %c8_561 = arith.constant 8 : index
    %c0_562 = arith.constant 0 : index
    %c0_563 = arith.constant 0 : index
    %797 = vector.load %arg5[%c2_560, %c8_561, %c0_562, %c0_563] : memref<4x10x1x64xf32, #tpu.memory_space<vmem>>, vector<1x1x1x64xf32>
    %798 = vector.shape_cast %797 : vector<1x1x1x64xf32> to vector<1x64xf32>
    %799 = vector.broadcast %798 : vector<1x64xf32> to vector<32x64xf32>
    %800 = arith.addf %796, %799 : vector<32x64xf32>
    %801 = vector.extract_strided_slice %800 {offsets = [0, 32], sizes = [32, 32], strides = [1, 1]} : vector<32x64xf32> to vector<32x32xf32>
    %802 = arith.addf %748, %801 : vector<32x32xf32>
    %803 = arith.mulf %802, %5 : vector<32x32xf32>
    %804 = arith.truncf %803 : vector<32x32xf32> to vector<32x32xbf16>
    %c2_564 = arith.constant 2 : index
    %c24_565 = arith.constant 24 : index
    %c0_566 = arith.constant 0 : index
    %c0_567 = arith.constant 0 : index
    %805 = vector.load %arg4[%c2_564, %c24_565, %c0_566, %c0_567] : memref<4x25x32x64xbf16, #tpu.memory_space<vmem>>, vector<1x1x32x64xbf16>
    %806 = vector.shape_cast %805 : vector<1x1x32x64xbf16> to vector<32x64xbf16>
    %cst_568 = arith.constant dense<0.000000e+00> : vector<32x64xf32>
    %807 = tpu.matmul %804, %806, %cst_568 {dimension_numbers = #tpu.dot_dimension_numbers<[1], [0], [0], [1], [0, 0, 1, 1], [], []>} : vector<32x32xbf16>, vector<32x64xbf16>, vector<32x64xf32> -> vector<32x64xf32>
    %808 = vector.extract_strided_slice %807 {offsets = [0, 0], sizes = [32, 4], strides = [1, 1]} : vector<32x64xf32> to vector<32x4xf32>
    %c2_569 = arith.constant 2 : index
    %c9_570 = arith.constant 9 : index
    %c0_571 = arith.constant 0 : index
    %c0_572 = arith.constant 0 : index
    %809 = vector.load %arg5[%c2_569, %c9_570, %c0_571, %c0_572] : memref<4x10x1x64xf32, #tpu.memory_space<vmem>>, vector<1x1x1x64xf32>
    %810 = vector.shape_cast %809 : vector<1x1x1x64xf32> to vector<1x64xf32>
    %811 = vector.extract_strided_slice %810 {offsets = [0, 0], sizes = [1, 4], strides = [1, 1]} : vector<1x64xf32> to vector<1x4xf32>
    %812 = vector.broadcast %811 : vector<1x4xf32> to vector<32x4xf32>
    %813 = arith.addf %808, %812 : vector<32x4xf32>
    %814 = arith.mulf %813, %7 : vector<32x4xf32>
    %815 = arith.subf %320, %814 : vector<32x4xf32>
    %816 = arith.mulf %815, %7 : vector<32x4xf32>
    %c3_573 = arith.constant 3 : index
    %c0_574 = arith.constant 0 : index
    %c0_575 = arith.constant 0 : index
    %c0_576 = arith.constant 0 : index
    %817 = vector.load %arg5[%c3_573, %c0_574, %c0_575, %c0_576] : memref<4x10x1x64xf32, #tpu.memory_space<vmem>>, vector<1x1x1x64xf32>
    %818 = vector.shape_cast %817 : vector<1x1x1x64xf32> to vector<1x64xf32>
    %819 = vector.extract_strided_slice %818 {offsets = [0, 0], sizes = [1, 32], strides = [1, 1]} : vector<1x64xf32> to vector<1x32xf32>
    %820 = arith.truncf %816 : vector<32x4xf32> to vector<32x4xbf16>
    %c3_577 = arith.constant 3 : index
    %c0_578 = arith.constant 0 : index
    %c0_579 = arith.constant 0 : index
    %821 = vector.load %arg3[%c3_577, %c0_578, %c0_579] : memref<4x4x32xbf16, #tpu.memory_space<vmem>>, vector<1x4x32xbf16>
    %822 = vector.shape_cast %821 : vector<1x4x32xbf16> to vector<4x32xbf16>
    %cst_580 = arith.constant dense<0.000000e+00> : vector<32x32xf32>
    %823 = tpu.matmul %820, %822, %cst_580 {dimension_numbers = #tpu.dot_dimension_numbers<[1], [0], [0], [1], [0, 0, 1, 1], [], []>} : vector<32x4xbf16>, vector<4x32xbf16>, vector<32x32xf32> -> vector<32x32xf32>
    %824 = vector.broadcast %819 : vector<1x32xf32> to vector<32x32xf32>
    %825 = arith.addf %823, %824 : vector<32x32xf32>
    %826 = arith.mulf %825, %5 : vector<32x32xf32>
    %c2_i32_581 = arith.constant 2 : i32
    %827 = tpu.dynamic_rotate %826 by %c2_i32_581 dim 0 : vector<32x32xf32>, i32 -> vector<32x32xf32>
    %828 = arith.mulf %827, %37 : vector<32x32xf32>
    %829 = arith.truncf %828 : vector<32x32xf32> to vector<32x32xbf16>
    %c3_582 = arith.constant 3 : index
    %c0_583 = arith.constant 0 : index
    %c0_584 = arith.constant 0 : index
    %c0_585 = arith.constant 0 : index
    %830 = vector.load %arg4[%c3_582, %c0_583, %c0_584, %c0_585] : memref<4x25x32x64xbf16, #tpu.memory_space<vmem>>, vector<1x1x32x64xbf16>
    %831 = vector.shape_cast %830 : vector<1x1x32x64xbf16> to vector<32x64xbf16>
    %cst_586 = arith.constant dense<0.000000e+00> : vector<32x64xf32>
    %832 = tpu.matmul %829, %831, %cst_586 {dimension_numbers = #tpu.dot_dimension_numbers<[1], [0], [0], [1], [0, 0, 1, 1], [], []>} : vector<32x32xbf16>, vector<32x64xbf16>, vector<32x64xf32> -> vector<32x64xf32>
    %c1_i32_587 = arith.constant 1 : i32
    %833 = tpu.dynamic_rotate %826 by %c1_i32_587 dim 0 : vector<32x32xf32>, i32 -> vector<32x32xf32>
    %834 = arith.mulf %833, %48 : vector<32x32xf32>
    %835 = arith.truncf %834 : vector<32x32xf32> to vector<32x32xbf16>
    %c3_588 = arith.constant 3 : index
    %c1_589 = arith.constant 1 : index
    %c0_590 = arith.constant 0 : index
    %c0_591 = arith.constant 0 : index
    %836 = vector.load %arg4[%c3_588, %c1_589, %c0_590, %c0_591] : memref<4x25x32x64xbf16, #tpu.memory_space<vmem>>, vector<1x1x32x64xbf16>
    %837 = vector.shape_cast %836 : vector<1x1x32x64xbf16> to vector<32x64xbf16>
    %cst_592 = arith.constant dense<0.000000e+00> : vector<32x64xf32>
    %838 = tpu.matmul %835, %837, %cst_592 {dimension_numbers = #tpu.dot_dimension_numbers<[1], [0], [0], [1], [0, 0, 1, 1], [], []>} : vector<32x32xbf16>, vector<32x64xbf16>, vector<32x64xf32> -> vector<32x64xf32>
    %839 = arith.addf %832, %838 : vector<32x64xf32>
    %840 = arith.truncf %826 : vector<32x32xf32> to vector<32x32xbf16>
    %c3_593 = arith.constant 3 : index
    %c2_594 = arith.constant 2 : index
    %c0_595 = arith.constant 0 : index
    %c0_596 = arith.constant 0 : index
    %841 = vector.load %arg4[%c3_593, %c2_594, %c0_595, %c0_596] : memref<4x25x32x64xbf16, #tpu.memory_space<vmem>>, vector<1x1x32x64xbf16>
    %842 = vector.shape_cast %841 : vector<1x1x32x64xbf16> to vector<32x64xbf16>
    %cst_597 = arith.constant dense<0.000000e+00> : vector<32x64xf32>
    %843 = tpu.matmul %840, %842, %cst_597 {dimension_numbers = #tpu.dot_dimension_numbers<[1], [0], [0], [1], [0, 0, 1, 1], [], []>} : vector<32x32xbf16>, vector<32x64xbf16>, vector<32x64xf32> -> vector<32x64xf32>
    %844 = arith.addf %839, %843 : vector<32x64xf32>
    %c31_i32_598 = arith.constant 31 : i32
    %845 = tpu.dynamic_rotate %826 by %c31_i32_598 dim 0 : vector<32x32xf32>, i32 -> vector<32x32xf32>
    %846 = arith.mulf %845, %59 : vector<32x32xf32>
    %847 = arith.truncf %846 : vector<32x32xf32> to vector<32x32xbf16>
    %c3_599 = arith.constant 3 : index
    %c3_600 = arith.constant 3 : index
    %c0_601 = arith.constant 0 : index
    %c0_602 = arith.constant 0 : index
    %848 = vector.load %arg4[%c3_599, %c3_600, %c0_601, %c0_602] : memref<4x25x32x64xbf16, #tpu.memory_space<vmem>>, vector<1x1x32x64xbf16>
    %849 = vector.shape_cast %848 : vector<1x1x32x64xbf16> to vector<32x64xbf16>
    %cst_603 = arith.constant dense<0.000000e+00> : vector<32x64xf32>
    %850 = tpu.matmul %847, %849, %cst_603 {dimension_numbers = #tpu.dot_dimension_numbers<[1], [0], [0], [1], [0, 0, 1, 1], [], []>} : vector<32x32xbf16>, vector<32x64xbf16>, vector<32x64xf32> -> vector<32x64xf32>
    %851 = arith.addf %844, %850 : vector<32x64xf32>
    %c30_i32_604 = arith.constant 30 : i32
    %852 = tpu.dynamic_rotate %826 by %c30_i32_604 dim 0 : vector<32x32xf32>, i32 -> vector<32x32xf32>
    %853 = arith.mulf %852, %70 : vector<32x32xf32>
    %854 = arith.truncf %853 : vector<32x32xf32> to vector<32x32xbf16>
    %c3_605 = arith.constant 3 : index
    %c4_606 = arith.constant 4 : index
    %c0_607 = arith.constant 0 : index
    %c0_608 = arith.constant 0 : index
    %855 = vector.load %arg4[%c3_605, %c4_606, %c0_607, %c0_608] : memref<4x25x32x64xbf16, #tpu.memory_space<vmem>>, vector<1x1x32x64xbf16>
    %856 = vector.shape_cast %855 : vector<1x1x32x64xbf16> to vector<32x64xbf16>
    %cst_609 = arith.constant dense<0.000000e+00> : vector<32x64xf32>
    %857 = tpu.matmul %854, %856, %cst_609 {dimension_numbers = #tpu.dot_dimension_numbers<[1], [0], [0], [1], [0, 0, 1, 1], [], []>} : vector<32x32xbf16>, vector<32x64xbf16>, vector<32x64xf32> -> vector<32x64xf32>
    %858 = arith.addf %851, %857 : vector<32x64xf32>
    %c3_610 = arith.constant 3 : index
    %c1_611 = arith.constant 1 : index
    %c0_612 = arith.constant 0 : index
    %c0_613 = arith.constant 0 : index
    %859 = vector.load %arg5[%c3_610, %c1_611, %c0_612, %c0_613] : memref<4x10x1x64xf32, #tpu.memory_space<vmem>>, vector<1x1x1x64xf32>
    %860 = vector.shape_cast %859 : vector<1x1x1x64xf32> to vector<1x64xf32>
    %861 = vector.broadcast %860 : vector<1x64xf32> to vector<32x64xf32>
    %862 = arith.addf %858, %861 : vector<32x64xf32>
    %863 = math.tanh %862 : vector<32x64xf32>
    %864 = vector.extract_strided_slice %863 {offsets = [0, 0], sizes = [32, 32], strides = [1, 1]} : vector<32x64xf32> to vector<32x32xf32>
    %865 = vector.extract_strided_slice %863 {offsets = [0, 32], sizes = [32, 32], strides = [1, 1]} : vector<32x64xf32> to vector<32x32xf32>
    %cst_614 = arith.constant 5.000000e-01 : f32
    %866 = vector.broadcast %cst_614 : f32 to vector<32x32xf32>
    %867 = arith.mulf %865, %866 : vector<32x32xf32>
    %cst_615 = arith.constant 5.000000e-01 : f32
    %868 = vector.broadcast %cst_615 : f32 to vector<32x32xf32>
    %869 = arith.addf %867, %868 : vector<32x32xf32>
    %870 = arith.mulf %864, %869 : vector<32x32xf32>
    %871 = arith.truncf %870 : vector<32x32xf32> to vector<32x32xbf16>
    %c3_616 = arith.constant 3 : index
    %c20_617 = arith.constant 20 : index
    %c0_618 = arith.constant 0 : index
    %c0_619 = arith.constant 0 : index
    %872 = vector.load %arg4[%c3_616, %c20_617, %c0_618, %c0_619] : memref<4x25x32x64xbf16, #tpu.memory_space<vmem>>, vector<1x1x32x64xbf16>
    %873 = vector.shape_cast %872 : vector<1x1x32x64xbf16> to vector<32x64xbf16>
    %cst_620 = arith.constant dense<0.000000e+00> : vector<32x64xf32>
    %874 = tpu.matmul %871, %873, %cst_620 {dimension_numbers = #tpu.dot_dimension_numbers<[1], [0], [0], [1], [0, 0, 1, 1], [], []>} : vector<32x32xbf16>, vector<32x64xbf16>, vector<32x64xf32> -> vector<32x64xf32>
    %c3_621 = arith.constant 3 : index
    %c5_622 = arith.constant 5 : index
    %c0_623 = arith.constant 0 : index
    %c0_624 = arith.constant 0 : index
    %875 = vector.load %arg5[%c3_621, %c5_622, %c0_623, %c0_624] : memref<4x10x1x64xf32, #tpu.memory_space<vmem>>, vector<1x1x1x64xf32>
    %876 = vector.shape_cast %875 : vector<1x1x1x64xf32> to vector<1x64xf32>
    %877 = vector.broadcast %876 : vector<1x64xf32> to vector<32x64xf32>
    %878 = arith.addf %874, %877 : vector<32x64xf32>
    %879 = vector.extract_strided_slice %878 {offsets = [0, 0], sizes = [32, 32], strides = [1, 1]} : vector<32x64xf32> to vector<32x32xf32>
    %880 = arith.addf %826, %879 : vector<32x32xf32>
    %881 = arith.mulf %880, %5 : vector<32x32xf32>
    %882 = vector.extract_strided_slice %878 {offsets = [0, 32], sizes = [32, 32], strides = [1, 1]} : vector<32x64xf32> to vector<32x32xf32>
    %c2_i32_625 = arith.constant 2 : i32
    %883 = tpu.dynamic_rotate %881 by %c2_i32_625 dim 0 : vector<32x32xf32>, i32 -> vector<32x32xf32>
    %884 = arith.mulf %883, %37 : vector<32x32xf32>
    %885 = arith.truncf %884 : vector<32x32xf32> to vector<32x32xbf16>
    %c3_626 = arith.constant 3 : index
    %c5_627 = arith.constant 5 : index
    %c0_628 = arith.constant 0 : index
    %c0_629 = arith.constant 0 : index
    %886 = vector.load %arg4[%c3_626, %c5_627, %c0_628, %c0_629] : memref<4x25x32x64xbf16, #tpu.memory_space<vmem>>, vector<1x1x32x64xbf16>
    %887 = vector.shape_cast %886 : vector<1x1x32x64xbf16> to vector<32x64xbf16>
    %cst_630 = arith.constant dense<0.000000e+00> : vector<32x64xf32>
    %888 = tpu.matmul %885, %887, %cst_630 {dimension_numbers = #tpu.dot_dimension_numbers<[1], [0], [0], [1], [0, 0, 1, 1], [], []>} : vector<32x32xbf16>, vector<32x64xbf16>, vector<32x64xf32> -> vector<32x64xf32>
    %c1_i32_631 = arith.constant 1 : i32
    %889 = tpu.dynamic_rotate %881 by %c1_i32_631 dim 0 : vector<32x32xf32>, i32 -> vector<32x32xf32>
    %890 = arith.mulf %889, %48 : vector<32x32xf32>
    %891 = arith.truncf %890 : vector<32x32xf32> to vector<32x32xbf16>
    %c3_632 = arith.constant 3 : index
    %c6_633 = arith.constant 6 : index
    %c0_634 = arith.constant 0 : index
    %c0_635 = arith.constant 0 : index
    %892 = vector.load %arg4[%c3_632, %c6_633, %c0_634, %c0_635] : memref<4x25x32x64xbf16, #tpu.memory_space<vmem>>, vector<1x1x32x64xbf16>
    %893 = vector.shape_cast %892 : vector<1x1x32x64xbf16> to vector<32x64xbf16>
    %cst_636 = arith.constant dense<0.000000e+00> : vector<32x64xf32>
    %894 = tpu.matmul %891, %893, %cst_636 {dimension_numbers = #tpu.dot_dimension_numbers<[1], [0], [0], [1], [0, 0, 1, 1], [], []>} : vector<32x32xbf16>, vector<32x64xbf16>, vector<32x64xf32> -> vector<32x64xf32>
    %895 = arith.addf %888, %894 : vector<32x64xf32>
    %896 = arith.truncf %881 : vector<32x32xf32> to vector<32x32xbf16>
    %c3_637 = arith.constant 3 : index
    %c7_638 = arith.constant 7 : index
    %c0_639 = arith.constant 0 : index
    %c0_640 = arith.constant 0 : index
    %897 = vector.load %arg4[%c3_637, %c7_638, %c0_639, %c0_640] : memref<4x25x32x64xbf16, #tpu.memory_space<vmem>>, vector<1x1x32x64xbf16>
    %898 = vector.shape_cast %897 : vector<1x1x32x64xbf16> to vector<32x64xbf16>
    %cst_641 = arith.constant dense<0.000000e+00> : vector<32x64xf32>
    %899 = tpu.matmul %896, %898, %cst_641 {dimension_numbers = #tpu.dot_dimension_numbers<[1], [0], [0], [1], [0, 0, 1, 1], [], []>} : vector<32x32xbf16>, vector<32x64xbf16>, vector<32x64xf32> -> vector<32x64xf32>
    %900 = arith.addf %895, %899 : vector<32x64xf32>
    %c31_i32_642 = arith.constant 31 : i32
    %901 = tpu.dynamic_rotate %881 by %c31_i32_642 dim 0 : vector<32x32xf32>, i32 -> vector<32x32xf32>
    %902 = arith.mulf %901, %59 : vector<32x32xf32>
    %903 = arith.truncf %902 : vector<32x32xf32> to vector<32x32xbf16>
    %c3_643 = arith.constant 3 : index
    %c8_644 = arith.constant 8 : index
    %c0_645 = arith.constant 0 : index
    %c0_646 = arith.constant 0 : index
    %904 = vector.load %arg4[%c3_643, %c8_644, %c0_645, %c0_646] : memref<4x25x32x64xbf16, #tpu.memory_space<vmem>>, vector<1x1x32x64xbf16>
    %905 = vector.shape_cast %904 : vector<1x1x32x64xbf16> to vector<32x64xbf16>
    %cst_647 = arith.constant dense<0.000000e+00> : vector<32x64xf32>
    %906 = tpu.matmul %903, %905, %cst_647 {dimension_numbers = #tpu.dot_dimension_numbers<[1], [0], [0], [1], [0, 0, 1, 1], [], []>} : vector<32x32xbf16>, vector<32x64xbf16>, vector<32x64xf32> -> vector<32x64xf32>
    %907 = arith.addf %900, %906 : vector<32x64xf32>
    %c30_i32_648 = arith.constant 30 : i32
    %908 = tpu.dynamic_rotate %881 by %c30_i32_648 dim 0 : vector<32x32xf32>, i32 -> vector<32x32xf32>
    %909 = arith.mulf %908, %70 : vector<32x32xf32>
    %910 = arith.truncf %909 : vector<32x32xf32> to vector<32x32xbf16>
    %c3_649 = arith.constant 3 : index
    %c9_650 = arith.constant 9 : index
    %c0_651 = arith.constant 0 : index
    %c0_652 = arith.constant 0 : index
    %911 = vector.load %arg4[%c3_649, %c9_650, %c0_651, %c0_652] : memref<4x25x32x64xbf16, #tpu.memory_space<vmem>>, vector<1x1x32x64xbf16>
    %912 = vector.shape_cast %911 : vector<1x1x32x64xbf16> to vector<32x64xbf16>
    %cst_653 = arith.constant dense<0.000000e+00> : vector<32x64xf32>
    %913 = tpu.matmul %910, %912, %cst_653 {dimension_numbers = #tpu.dot_dimension_numbers<[1], [0], [0], [1], [0, 0, 1, 1], [], []>} : vector<32x32xbf16>, vector<32x64xbf16>, vector<32x64xf32> -> vector<32x64xf32>
    %914 = arith.addf %907, %913 : vector<32x64xf32>
    %c3_654 = arith.constant 3 : index
    %c2_655 = arith.constant 2 : index
    %c0_656 = arith.constant 0 : index
    %c0_657 = arith.constant 0 : index
    %915 = vector.load %arg5[%c3_654, %c2_655, %c0_656, %c0_657] : memref<4x10x1x64xf32, #tpu.memory_space<vmem>>, vector<1x1x1x64xf32>
    %916 = vector.shape_cast %915 : vector<1x1x1x64xf32> to vector<1x64xf32>
    %917 = vector.broadcast %916 : vector<1x64xf32> to vector<32x64xf32>
    %918 = arith.addf %914, %917 : vector<32x64xf32>
    %919 = math.tanh %918 : vector<32x64xf32>
    %920 = vector.extract_strided_slice %919 {offsets = [0, 0], sizes = [32, 32], strides = [1, 1]} : vector<32x64xf32> to vector<32x32xf32>
    %921 = vector.extract_strided_slice %919 {offsets = [0, 32], sizes = [32, 32], strides = [1, 1]} : vector<32x64xf32> to vector<32x32xf32>
    %cst_658 = arith.constant 5.000000e-01 : f32
    %922 = vector.broadcast %cst_658 : f32 to vector<32x32xf32>
    %923 = arith.mulf %921, %922 : vector<32x32xf32>
    %cst_659 = arith.constant 5.000000e-01 : f32
    %924 = vector.broadcast %cst_659 : f32 to vector<32x32xf32>
    %925 = arith.addf %923, %924 : vector<32x32xf32>
    %926 = arith.mulf %920, %925 : vector<32x32xf32>
    %927 = arith.truncf %926 : vector<32x32xf32> to vector<32x32xbf16>
    %c3_660 = arith.constant 3 : index
    %c21_661 = arith.constant 21 : index
    %c0_662 = arith.constant 0 : index
    %c0_663 = arith.constant 0 : index
    %928 = vector.load %arg4[%c3_660, %c21_661, %c0_662, %c0_663] : memref<4x25x32x64xbf16, #tpu.memory_space<vmem>>, vector<1x1x32x64xbf16>
    %929 = vector.shape_cast %928 : vector<1x1x32x64xbf16> to vector<32x64xbf16>
    %cst_664 = arith.constant dense<0.000000e+00> : vector<32x64xf32>
    %930 = tpu.matmul %927, %929, %cst_664 {dimension_numbers = #tpu.dot_dimension_numbers<[1], [0], [0], [1], [0, 0, 1, 1], [], []>} : vector<32x32xbf16>, vector<32x64xbf16>, vector<32x64xf32> -> vector<32x64xf32>
    %c3_665 = arith.constant 3 : index
    %c6_666 = arith.constant 6 : index
    %c0_667 = arith.constant 0 : index
    %c0_668 = arith.constant 0 : index
    %931 = vector.load %arg5[%c3_665, %c6_666, %c0_667, %c0_668] : memref<4x10x1x64xf32, #tpu.memory_space<vmem>>, vector<1x1x1x64xf32>
    %932 = vector.shape_cast %931 : vector<1x1x1x64xf32> to vector<1x64xf32>
    %933 = vector.broadcast %932 : vector<1x64xf32> to vector<32x64xf32>
    %934 = arith.addf %930, %933 : vector<32x64xf32>
    %935 = vector.extract_strided_slice %934 {offsets = [0, 0], sizes = [32, 32], strides = [1, 1]} : vector<32x64xf32> to vector<32x32xf32>
    %936 = arith.addf %881, %935 : vector<32x32xf32>
    %937 = arith.mulf %936, %5 : vector<32x32xf32>
    %938 = vector.extract_strided_slice %934 {offsets = [0, 32], sizes = [32, 32], strides = [1, 1]} : vector<32x64xf32> to vector<32x32xf32>
    %939 = arith.addf %882, %938 : vector<32x32xf32>
    %c2_i32_669 = arith.constant 2 : i32
    %940 = tpu.dynamic_rotate %937 by %c2_i32_669 dim 0 : vector<32x32xf32>, i32 -> vector<32x32xf32>
    %941 = arith.mulf %940, %37 : vector<32x32xf32>
    %942 = arith.truncf %941 : vector<32x32xf32> to vector<32x32xbf16>
    %c3_670 = arith.constant 3 : index
    %c10_671 = arith.constant 10 : index
    %c0_672 = arith.constant 0 : index
    %c0_673 = arith.constant 0 : index
    %943 = vector.load %arg4[%c3_670, %c10_671, %c0_672, %c0_673] : memref<4x25x32x64xbf16, #tpu.memory_space<vmem>>, vector<1x1x32x64xbf16>
    %944 = vector.shape_cast %943 : vector<1x1x32x64xbf16> to vector<32x64xbf16>
    %cst_674 = arith.constant dense<0.000000e+00> : vector<32x64xf32>
    %945 = tpu.matmul %942, %944, %cst_674 {dimension_numbers = #tpu.dot_dimension_numbers<[1], [0], [0], [1], [0, 0, 1, 1], [], []>} : vector<32x32xbf16>, vector<32x64xbf16>, vector<32x64xf32> -> vector<32x64xf32>
    %c1_i32_675 = arith.constant 1 : i32
    %946 = tpu.dynamic_rotate %937 by %c1_i32_675 dim 0 : vector<32x32xf32>, i32 -> vector<32x32xf32>
    %947 = arith.mulf %946, %48 : vector<32x32xf32>
    %948 = arith.truncf %947 : vector<32x32xf32> to vector<32x32xbf16>
    %c3_676 = arith.constant 3 : index
    %c11_677 = arith.constant 11 : index
    %c0_678 = arith.constant 0 : index
    %c0_679 = arith.constant 0 : index
    %949 = vector.load %arg4[%c3_676, %c11_677, %c0_678, %c0_679] : memref<4x25x32x64xbf16, #tpu.memory_space<vmem>>, vector<1x1x32x64xbf16>
    %950 = vector.shape_cast %949 : vector<1x1x32x64xbf16> to vector<32x64xbf16>
    %cst_680 = arith.constant dense<0.000000e+00> : vector<32x64xf32>
    %951 = tpu.matmul %948, %950, %cst_680 {dimension_numbers = #tpu.dot_dimension_numbers<[1], [0], [0], [1], [0, 0, 1, 1], [], []>} : vector<32x32xbf16>, vector<32x64xbf16>, vector<32x64xf32> -> vector<32x64xf32>
    %952 = arith.addf %945, %951 : vector<32x64xf32>
    %953 = arith.truncf %937 : vector<32x32xf32> to vector<32x32xbf16>
    %c3_681 = arith.constant 3 : index
    %c12_682 = arith.constant 12 : index
    %c0_683 = arith.constant 0 : index
    %c0_684 = arith.constant 0 : index
    %954 = vector.load %arg4[%c3_681, %c12_682, %c0_683, %c0_684] : memref<4x25x32x64xbf16, #tpu.memory_space<vmem>>, vector<1x1x32x64xbf16>
    %955 = vector.shape_cast %954 : vector<1x1x32x64xbf16> to vector<32x64xbf16>
    %cst_685 = arith.constant dense<0.000000e+00> : vector<32x64xf32>
    %956 = tpu.matmul %953, %955, %cst_685 {dimension_numbers = #tpu.dot_dimension_numbers<[1], [0], [0], [1], [0, 0, 1, 1], [], []>} : vector<32x32xbf16>, vector<32x64xbf16>, vector<32x64xf32> -> vector<32x64xf32>
    %957 = arith.addf %952, %956 : vector<32x64xf32>
    %c31_i32_686 = arith.constant 31 : i32
    %958 = tpu.dynamic_rotate %937 by %c31_i32_686 dim 0 : vector<32x32xf32>, i32 -> vector<32x32xf32>
    %959 = arith.mulf %958, %59 : vector<32x32xf32>
    %960 = arith.truncf %959 : vector<32x32xf32> to vector<32x32xbf16>
    %c3_687 = arith.constant 3 : index
    %c13_688 = arith.constant 13 : index
    %c0_689 = arith.constant 0 : index
    %c0_690 = arith.constant 0 : index
    %961 = vector.load %arg4[%c3_687, %c13_688, %c0_689, %c0_690] : memref<4x25x32x64xbf16, #tpu.memory_space<vmem>>, vector<1x1x32x64xbf16>
    %962 = vector.shape_cast %961 : vector<1x1x32x64xbf16> to vector<32x64xbf16>
    %cst_691 = arith.constant dense<0.000000e+00> : vector<32x64xf32>
    %963 = tpu.matmul %960, %962, %cst_691 {dimension_numbers = #tpu.dot_dimension_numbers<[1], [0], [0], [1], [0, 0, 1, 1], [], []>} : vector<32x32xbf16>, vector<32x64xbf16>, vector<32x64xf32> -> vector<32x64xf32>
    %964 = arith.addf %957, %963 : vector<32x64xf32>
    %c30_i32_692 = arith.constant 30 : i32
    %965 = tpu.dynamic_rotate %937 by %c30_i32_692 dim 0 : vector<32x32xf32>, i32 -> vector<32x32xf32>
    %966 = arith.mulf %965, %70 : vector<32x32xf32>
    %967 = arith.truncf %966 : vector<32x32xf32> to vector<32x32xbf16>
    %c3_693 = arith.constant 3 : index
    %c14_694 = arith.constant 14 : index
    %c0_695 = arith.constant 0 : index
    %c0_696 = arith.constant 0 : index
    %968 = vector.load %arg4[%c3_693, %c14_694, %c0_695, %c0_696] : memref<4x25x32x64xbf16, #tpu.memory_space<vmem>>, vector<1x1x32x64xbf16>
    %969 = vector.shape_cast %968 : vector<1x1x32x64xbf16> to vector<32x64xbf16>
    %cst_697 = arith.constant dense<0.000000e+00> : vector<32x64xf32>
    %970 = tpu.matmul %967, %969, %cst_697 {dimension_numbers = #tpu.dot_dimension_numbers<[1], [0], [0], [1], [0, 0, 1, 1], [], []>} : vector<32x32xbf16>, vector<32x64xbf16>, vector<32x64xf32> -> vector<32x64xf32>
    %971 = arith.addf %964, %970 : vector<32x64xf32>
    %c3_698 = arith.constant 3 : index
    %c3_699 = arith.constant 3 : index
    %c0_700 = arith.constant 0 : index
    %c0_701 = arith.constant 0 : index
    %972 = vector.load %arg5[%c3_698, %c3_699, %c0_700, %c0_701] : memref<4x10x1x64xf32, #tpu.memory_space<vmem>>, vector<1x1x1x64xf32>
    %973 = vector.shape_cast %972 : vector<1x1x1x64xf32> to vector<1x64xf32>
    %974 = vector.broadcast %973 : vector<1x64xf32> to vector<32x64xf32>
    %975 = arith.addf %971, %974 : vector<32x64xf32>
    %976 = math.tanh %975 : vector<32x64xf32>
    %977 = vector.extract_strided_slice %976 {offsets = [0, 0], sizes = [32, 32], strides = [1, 1]} : vector<32x64xf32> to vector<32x32xf32>
    %978 = vector.extract_strided_slice %976 {offsets = [0, 32], sizes = [32, 32], strides = [1, 1]} : vector<32x64xf32> to vector<32x32xf32>
    %cst_702 = arith.constant 5.000000e-01 : f32
    %979 = vector.broadcast %cst_702 : f32 to vector<32x32xf32>
    %980 = arith.mulf %978, %979 : vector<32x32xf32>
    %cst_703 = arith.constant 5.000000e-01 : f32
    %981 = vector.broadcast %cst_703 : f32 to vector<32x32xf32>
    %982 = arith.addf %980, %981 : vector<32x32xf32>
    %983 = arith.mulf %977, %982 : vector<32x32xf32>
    %984 = arith.truncf %983 : vector<32x32xf32> to vector<32x32xbf16>
    %c3_704 = arith.constant 3 : index
    %c22_705 = arith.constant 22 : index
    %c0_706 = arith.constant 0 : index
    %c0_707 = arith.constant 0 : index
    %985 = vector.load %arg4[%c3_704, %c22_705, %c0_706, %c0_707] : memref<4x25x32x64xbf16, #tpu.memory_space<vmem>>, vector<1x1x32x64xbf16>
    %986 = vector.shape_cast %985 : vector<1x1x32x64xbf16> to vector<32x64xbf16>
    %cst_708 = arith.constant dense<0.000000e+00> : vector<32x64xf32>
    %987 = tpu.matmul %984, %986, %cst_708 {dimension_numbers = #tpu.dot_dimension_numbers<[1], [0], [0], [1], [0, 0, 1, 1], [], []>} : vector<32x32xbf16>, vector<32x64xbf16>, vector<32x64xf32> -> vector<32x64xf32>
    %c3_709 = arith.constant 3 : index
    %c7_710 = arith.constant 7 : index
    %c0_711 = arith.constant 0 : index
    %c0_712 = arith.constant 0 : index
    %988 = vector.load %arg5[%c3_709, %c7_710, %c0_711, %c0_712] : memref<4x10x1x64xf32, #tpu.memory_space<vmem>>, vector<1x1x1x64xf32>
    %989 = vector.shape_cast %988 : vector<1x1x1x64xf32> to vector<1x64xf32>
    %990 = vector.broadcast %989 : vector<1x64xf32> to vector<32x64xf32>
    %991 = arith.addf %987, %990 : vector<32x64xf32>
    %992 = vector.extract_strided_slice %991 {offsets = [0, 0], sizes = [32, 32], strides = [1, 1]} : vector<32x64xf32> to vector<32x32xf32>
    %993 = arith.addf %937, %992 : vector<32x32xf32>
    %994 = arith.mulf %993, %5 : vector<32x32xf32>
    %995 = vector.extract_strided_slice %991 {offsets = [0, 32], sizes = [32, 32], strides = [1, 1]} : vector<32x64xf32> to vector<32x32xf32>
    %996 = arith.addf %939, %995 : vector<32x32xf32>
    %c2_i32_713 = arith.constant 2 : i32
    %997 = tpu.dynamic_rotate %994 by %c2_i32_713 dim 0 : vector<32x32xf32>, i32 -> vector<32x32xf32>
    %998 = arith.mulf %997, %37 : vector<32x32xf32>
    %999 = arith.truncf %998 : vector<32x32xf32> to vector<32x32xbf16>
    %c3_714 = arith.constant 3 : index
    %c15_715 = arith.constant 15 : index
    %c0_716 = arith.constant 0 : index
    %c0_717 = arith.constant 0 : index
    %1000 = vector.load %arg4[%c3_714, %c15_715, %c0_716, %c0_717] : memref<4x25x32x64xbf16, #tpu.memory_space<vmem>>, vector<1x1x32x64xbf16>
    %1001 = vector.shape_cast %1000 : vector<1x1x32x64xbf16> to vector<32x64xbf16>
    %cst_718 = arith.constant dense<0.000000e+00> : vector<32x64xf32>
    %1002 = tpu.matmul %999, %1001, %cst_718 {dimension_numbers = #tpu.dot_dimension_numbers<[1], [0], [0], [1], [0, 0, 1, 1], [], []>} : vector<32x32xbf16>, vector<32x64xbf16>, vector<32x64xf32> -> vector<32x64xf32>
    %c1_i32_719 = arith.constant 1 : i32
    %1003 = tpu.dynamic_rotate %994 by %c1_i32_719 dim 0 : vector<32x32xf32>, i32 -> vector<32x32xf32>
    %1004 = arith.mulf %1003, %48 : vector<32x32xf32>
    %1005 = arith.truncf %1004 : vector<32x32xf32> to vector<32x32xbf16>
    %c3_720 = arith.constant 3 : index
    %c16_721 = arith.constant 16 : index
    %c0_722 = arith.constant 0 : index
    %c0_723 = arith.constant 0 : index
    %1006 = vector.load %arg4[%c3_720, %c16_721, %c0_722, %c0_723] : memref<4x25x32x64xbf16, #tpu.memory_space<vmem>>, vector<1x1x32x64xbf16>
    %1007 = vector.shape_cast %1006 : vector<1x1x32x64xbf16> to vector<32x64xbf16>
    %cst_724 = arith.constant dense<0.000000e+00> : vector<32x64xf32>
    %1008 = tpu.matmul %1005, %1007, %cst_724 {dimension_numbers = #tpu.dot_dimension_numbers<[1], [0], [0], [1], [0, 0, 1, 1], [], []>} : vector<32x32xbf16>, vector<32x64xbf16>, vector<32x64xf32> -> vector<32x64xf32>
    %1009 = arith.addf %1002, %1008 : vector<32x64xf32>
    %1010 = arith.truncf %994 : vector<32x32xf32> to vector<32x32xbf16>
    %c3_725 = arith.constant 3 : index
    %c17_726 = arith.constant 17 : index
    %c0_727 = arith.constant 0 : index
    %c0_728 = arith.constant 0 : index
    %1011 = vector.load %arg4[%c3_725, %c17_726, %c0_727, %c0_728] : memref<4x25x32x64xbf16, #tpu.memory_space<vmem>>, vector<1x1x32x64xbf16>
    %1012 = vector.shape_cast %1011 : vector<1x1x32x64xbf16> to vector<32x64xbf16>
    %cst_729 = arith.constant dense<0.000000e+00> : vector<32x64xf32>
    %1013 = tpu.matmul %1010, %1012, %cst_729 {dimension_numbers = #tpu.dot_dimension_numbers<[1], [0], [0], [1], [0, 0, 1, 1], [], []>} : vector<32x32xbf16>, vector<32x64xbf16>, vector<32x64xf32> -> vector<32x64xf32>
    %1014 = arith.addf %1009, %1013 : vector<32x64xf32>
    %c31_i32_730 = arith.constant 31 : i32
    %1015 = tpu.dynamic_rotate %994 by %c31_i32_730 dim 0 : vector<32x32xf32>, i32 -> vector<32x32xf32>
    %1016 = arith.mulf %1015, %59 : vector<32x32xf32>
    %1017 = arith.truncf %1016 : vector<32x32xf32> to vector<32x32xbf16>
    %c3_731 = arith.constant 3 : index
    %c18_732 = arith.constant 18 : index
    %c0_733 = arith.constant 0 : index
    %c0_734 = arith.constant 0 : index
    %1018 = vector.load %arg4[%c3_731, %c18_732, %c0_733, %c0_734] : memref<4x25x32x64xbf16, #tpu.memory_space<vmem>>, vector<1x1x32x64xbf16>
    %1019 = vector.shape_cast %1018 : vector<1x1x32x64xbf16> to vector<32x64xbf16>
    %cst_735 = arith.constant dense<0.000000e+00> : vector<32x64xf32>
    %1020 = tpu.matmul %1017, %1019, %cst_735 {dimension_numbers = #tpu.dot_dimension_numbers<[1], [0], [0], [1], [0, 0, 1, 1], [], []>} : vector<32x32xbf16>, vector<32x64xbf16>, vector<32x64xf32> -> vector<32x64xf32>
    %1021 = arith.addf %1014, %1020 : vector<32x64xf32>
    %c30_i32_736 = arith.constant 30 : i32
    %1022 = tpu.dynamic_rotate %994 by %c30_i32_736 dim 0 : vector<32x32xf32>, i32 -> vector<32x32xf32>
    %1023 = arith.mulf %1022, %70 : vector<32x32xf32>
    %1024 = arith.truncf %1023 : vector<32x32xf32> to vector<32x32xbf16>
    %c3_737 = arith.constant 3 : index
    %c19_738 = arith.constant 19 : index
    %c0_739 = arith.constant 0 : index
    %c0_740 = arith.constant 0 : index
    %1025 = vector.load %arg4[%c3_737, %c19_738, %c0_739, %c0_740] : memref<4x25x32x64xbf16, #tpu.memory_space<vmem>>, vector<1x1x32x64xbf16>
    %1026 = vector.shape_cast %1025 : vector<1x1x32x64xbf16> to vector<32x64xbf16>
    %cst_741 = arith.constant dense<0.000000e+00> : vector<32x64xf32>
    %1027 = tpu.matmul %1024, %1026, %cst_741 {dimension_numbers = #tpu.dot_dimension_numbers<[1], [0], [0], [1], [0, 0, 1, 1], [], []>} : vector<32x32xbf16>, vector<32x64xbf16>, vector<32x64xf32> -> vector<32x64xf32>
    %1028 = arith.addf %1021, %1027 : vector<32x64xf32>
    %c3_742 = arith.constant 3 : index
    %c4_743 = arith.constant 4 : index
    %c0_744 = arith.constant 0 : index
    %c0_745 = arith.constant 0 : index
    %1029 = vector.load %arg5[%c3_742, %c4_743, %c0_744, %c0_745] : memref<4x10x1x64xf32, #tpu.memory_space<vmem>>, vector<1x1x1x64xf32>
    %1030 = vector.shape_cast %1029 : vector<1x1x1x64xf32> to vector<1x64xf32>
    %1031 = vector.broadcast %1030 : vector<1x64xf32> to vector<32x64xf32>
    %1032 = arith.addf %1028, %1031 : vector<32x64xf32>
    %1033 = math.tanh %1032 : vector<32x64xf32>
    %1034 = vector.extract_strided_slice %1033 {offsets = [0, 0], sizes = [32, 32], strides = [1, 1]} : vector<32x64xf32> to vector<32x32xf32>
    %1035 = vector.extract_strided_slice %1033 {offsets = [0, 32], sizes = [32, 32], strides = [1, 1]} : vector<32x64xf32> to vector<32x32xf32>
    %cst_746 = arith.constant 5.000000e-01 : f32
    %1036 = vector.broadcast %cst_746 : f32 to vector<32x32xf32>
    %1037 = arith.mulf %1035, %1036 : vector<32x32xf32>
    %cst_747 = arith.constant 5.000000e-01 : f32
    %1038 = vector.broadcast %cst_747 : f32 to vector<32x32xf32>
    %1039 = arith.addf %1037, %1038 : vector<32x32xf32>
    %1040 = arith.mulf %1034, %1039 : vector<32x32xf32>
    %1041 = arith.truncf %1040 : vector<32x32xf32> to vector<32x32xbf16>
    %c3_748 = arith.constant 3 : index
    %c23_749 = arith.constant 23 : index
    %c0_750 = arith.constant 0 : index
    %c0_751 = arith.constant 0 : index
    %1042 = vector.load %arg4[%c3_748, %c23_749, %c0_750, %c0_751] : memref<4x25x32x64xbf16, #tpu.memory_space<vmem>>, vector<1x1x32x64xbf16>
    %1043 = vector.shape_cast %1042 : vector<1x1x32x64xbf16> to vector<32x64xbf16>
    %cst_752 = arith.constant dense<0.000000e+00> : vector<32x64xf32>
    %1044 = tpu.matmul %1041, %1043, %cst_752 {dimension_numbers = #tpu.dot_dimension_numbers<[1], [0], [0], [1], [0, 0, 1, 1], [], []>} : vector<32x32xbf16>, vector<32x64xbf16>, vector<32x64xf32> -> vector<32x64xf32>
    %c3_753 = arith.constant 3 : index
    %c8_754 = arith.constant 8 : index
    %c0_755 = arith.constant 0 : index
    %c0_756 = arith.constant 0 : index
    %1045 = vector.load %arg5[%c3_753, %c8_754, %c0_755, %c0_756] : memref<4x10x1x64xf32, #tpu.memory_space<vmem>>, vector<1x1x1x64xf32>
    %1046 = vector.shape_cast %1045 : vector<1x1x1x64xf32> to vector<1x64xf32>
    %1047 = vector.broadcast %1046 : vector<1x64xf32> to vector<32x64xf32>
    %1048 = arith.addf %1044, %1047 : vector<32x64xf32>
    %1049 = vector.extract_strided_slice %1048 {offsets = [0, 32], sizes = [32, 32], strides = [1, 1]} : vector<32x64xf32> to vector<32x32xf32>
    %1050 = arith.addf %996, %1049 : vector<32x32xf32>
    %1051 = arith.mulf %1050, %5 : vector<32x32xf32>
    %1052 = arith.truncf %1051 : vector<32x32xf32> to vector<32x32xbf16>
    %c3_757 = arith.constant 3 : index
    %c24_758 = arith.constant 24 : index
    %c0_759 = arith.constant 0 : index
    %c0_760 = arith.constant 0 : index
    %1053 = vector.load %arg4[%c3_757, %c24_758, %c0_759, %c0_760] : memref<4x25x32x64xbf16, #tpu.memory_space<vmem>>, vector<1x1x32x64xbf16>
    %1054 = vector.shape_cast %1053 : vector<1x1x32x64xbf16> to vector<32x64xbf16>
    %cst_761 = arith.constant dense<0.000000e+00> : vector<32x64xf32>
    %1055 = tpu.matmul %1052, %1054, %cst_761 {dimension_numbers = #tpu.dot_dimension_numbers<[1], [0], [0], [1], [0, 0, 1, 1], [], []>} : vector<32x32xbf16>, vector<32x64xbf16>, vector<32x64xf32> -> vector<32x64xf32>
    %1056 = vector.extract_strided_slice %1055 {offsets = [0, 0], sizes = [32, 4], strides = [1, 1]} : vector<32x64xf32> to vector<32x4xf32>
    %c3_762 = arith.constant 3 : index
    %c9_763 = arith.constant 9 : index
    %c0_764 = arith.constant 0 : index
    %c0_765 = arith.constant 0 : index
    %1057 = vector.load %arg5[%c3_762, %c9_763, %c0_764, %c0_765] : memref<4x10x1x64xf32, #tpu.memory_space<vmem>>, vector<1x1x1x64xf32>
    %1058 = vector.shape_cast %1057 : vector<1x1x1x64xf32> to vector<1x64xf32>
    %1059 = vector.extract_strided_slice %1058 {offsets = [0, 0], sizes = [1, 4], strides = [1, 1]} : vector<1x64xf32> to vector<1x4xf32>
    %1060 = vector.broadcast %1059 : vector<1x4xf32> to vector<32x4xf32>
    %1061 = arith.addf %1056, %1060 : vector<32x4xf32>
    %1062 = arith.mulf %1061, %7 : vector<32x4xf32>
    %1063 = arith.subf %568, %1062 : vector<32x4xf32>
    %1064 = arith.mulf %1063, %7 : vector<32x4xf32>
    %1065 = vector.extract_strided_slice %1064 {offsets = [0, 1], sizes = [32, 2], strides = [1, 1]} : vector<32x4xf32> to vector<32x2xf32>
    %1066 = tpu.concatenate %816, %1065 in 1 : vector<32x4xf32>, vector<32x2xf32> -> vector<32x6xf32>
    %1067 = arith.mulf %1066, %9 : vector<32x6xf32>
    %1068 = vector.shape_cast %1067 : vector<32x6xf32> to vector<2x16x6xf32>
    %c0_766 = arith.constant 0 : index
    %c0_767 = arith.constant 0 : index
    %c0_768 = arith.constant 0 : index
    %1069 = vector.load %arg6[%c0_766, %c0_767, %c0_768] : memref<2x16x6xf32, #tpu.memory_space<vmem>>, vector<2x16x6xf32>
    tpu.vector_store %arg6[%c0_766, %c0_767, %c0_768], %1068 {strides = array<i32>} : memref<2x16x6xf32, #tpu.memory_space<vmem>>, vector<2x16x6xf32>,
    return
  }
  func.func @transform_0(%arg0: i32) -> (i32, i32, i32) {
    %c0_i32 = arith.constant 0 : i32
    %c0_i32_0 = arith.constant 0 : i32
    %c0_i32_1 = arith.constant 0 : i32
    %c0_i32_2 = arith.constant 0 : i32
    return %c0_i32, %c0_i32_0, %c0_i32_1 : i32, i32, i32
  }
  func.func @transform_1(%arg0: i32) -> (i32, i32, i32) {
    %c0_i32 = arith.constant 0 : i32
    %c0_i32_0 = arith.constant 0 : i32
    %c0_i32_1 = arith.constant 0 : i32
    %c0_i32_2 = arith.constant 0 : i32
    return %c0_i32, %c0_i32_0, %c0_i32_1 : i32, i32, i32
  }
  func.func @transform_2(%arg0: i32) -> (i32, i32, i32) {
    %c0_i32 = arith.constant 0 : i32
    %c0_i32_0 = arith.constant 0 : i32
    %c0_i32_1 = arith.constant 0 : i32
    %c0_i32_2 = arith.constant 0 : i32
    return %c0_i32, %c0_i32_0, %c0_i32_1 : i32, i32, i32
  }
  func.func @transform_3(%arg0: i32) -> (i32, i32, i32, i32) {
    %c0_i32 = arith.constant 0 : i32
    %c0_i32_0 = arith.constant 0 : i32
    %c0_i32_1 = arith.constant 0 : i32
    %c0_i32_2 = arith.constant 0 : i32
    %c0_i32_3 = arith.constant 0 : i32
    return %c0_i32, %c0_i32_0, %c0_i32_1, %c0_i32_2 : i32, i32, i32, i32
  }
  func.func @transform_4(%arg0: i32) -> (i32, i32, i32, i32) {
    %c0_i32 = arith.constant 0 : i32
    %c0_i32_0 = arith.constant 0 : i32
    %c0_i32_1 = arith.constant 0 : i32
    %c0_i32_2 = arith.constant 0 : i32
    %c0_i32_3 = arith.constant 0 : i32
    return %c0_i32, %c0_i32_0, %c0_i32_1, %c0_i32_2 : i32, i32, i32, i32
  }
  func.func @transform_5(%arg0: i32) -> (i32, i32, i32) {
    %c0_i32 = arith.constant 0 : i32
    %c0_i32_0 = arith.constant 0 : i32
    %c0_i32_1 = arith.constant 0 : i32
    %c0_i32_2 = arith.constant 0 : i32
    return %c0_i32, %c0_i32_0, %c0_i32_1 : i32, i32, i32
  }
}

</mosaic_0001>

<llo_original>
// kernel: run.1
$region0: #{run.1}
  #allocation0 [shape = 'u32[]', space=smem, size = 0x4, offset = 0x4, fixed_abs, tag = 'smem constant byte address 0x4 - core index']
  #allocation1 [shape = 'u32[144,128]{1,0:T(1,128)}', space=vmem, size = 0x12000, scoped, tag = 'internal scratch']
  %s0 = inlined_call_operand.vmem [shape: f32[2,16,8], index: 0, kind: input, shape index: {}]
  %s1 = inlined_call_operand.vmem [shape: f32[2,16,1], index: 1, kind: input, shape index: {}]
  %s2 = inlined_call_operand.vmem [shape: bf16[4,4,32], index: 2, kind: input, shape index: {}]
  %s3 = inlined_call_operand.hbm [shape: bf16[4,25,32,64], index: 3, kind: input, shape index: {}]
  %s4 = inlined_call_operand.vmem [shape: f32[4,10,1,64], index: 4, kind: input, shape index: {}]
  %s5 = inlined_call_operand.vmem [shape: f32[2,16,6], index: 5, kind: output, shape index: {}]
  %s6 = sld [smem:[#allocation0]]
  $region34: #{run.1} parent=0
    _
  %s8 = ssub.s32 1, %s6
  %s9 = scalar_select 0, %s8, %s6
  $region1: #{run.1} parent=0
    #allocation2 [shape = 'u8[819200]{0}', space=vmem, size = 0xc8000, scoped, tag = 'input window, operand 3, single buffered']
    #allocation3 [shape = 's32[1]{0}', space=sflag, size = 0x4, scoped, tag = 'scoped memory for run.1']
    %10 = vsyncpa [#allocation3], 0
    // Predicated region
    $region2: #{run.1} parent=1 // pred_check
      _
    $region3: #{run.1} parent=1 // pred_check_branch
      %12 = sbr.rel (0) target = $region5
    $region4: #{run.1} parent=1 // pred_region
      _
    $region5: #{run.1} parent=1 // pred_fallthru
      _
    // Predicated region
    $region6: #{run.1} parent=1 // pred_check
      _
    $region7: #{run.1} parent=1 // pred_check_branch
      %14 = sbr.rel (0) target = $region9
    $region8: #{run.1} parent=1 // pred_region
      _
    $region9: #{run.1} parent=1 // pred_fallthru
      _
    // Predicated region
    $region10: #{run.1} parent=1 // pred_check
      _
    $region11: #{run.1} parent=1 // pred_check_branch
      %16 = sbr.rel (0) target = $region13
    $region12: #{run.1} parent=1 // pred_region
      _
    $region13: #{run.1} parent=1 // pred_fallthru
      _
    // Predicated region
    $region14: #{run.1} parent=1 // pred_check
      _
    $region15: #{run.1} parent=1 // pred_check_branch
      %18 = sbr.rel (0) target = $region17
    $region16: #{run.1} parent=1 // pred_region
      %s20 = ssub.s32 25600, 25600
      %21 = vsyncadd [#allocation3], %s20
      %s22 = sshll.u32 [#allocation2], 4
      %s23 = int_to_ptr.vmem [resolvable:$true] %s22
      %28 = dma.hbm_to_vmem [thread:$0]  %s3, 25600, %s23, [#allocation3], 64, 64, 4
    $region17: #{run.1} parent=1 // pred_fallthru
      _
    // Predicated region
    $region18: #{run.1} parent=1 // pred_check
      _
    $region19: #{run.1} parent=1 // pred_check_branch
      %30 = sbr.rel (0) target = $region21
    $region20: #{run.1} parent=1 // pred_region
      _
    $region21: #{run.1} parent=1 // pred_fallthru
      _
    // Predicated region
    $region22: #{run.1} parent=1 // pred_check
      _
    $region23: #{run.1} parent=1 // pred_check_branch
      %32 = sbr.rel (0) target = $region25
    $region24: #{run.1} parent=1 // pred_region
      %33 = dma.done [#allocation3], 25600
    $region25: #{run.1} parent=1 // pred_fallthru
      _
    %v35 = vld [vmem:[%s0] sm:$0xff]
    %v36 = vld [vmem:[%s0 + $0x8] sm:$0xff]
    %v37 = vld [vmem:[%s0 + $0x10] sm:$0xff]
    %v38 = vld [vmem:[%s0 + $0x18] sm:$0xff]
    %v39 = vld [vmem:[%s1] sm:$0xff]
    %v40 = vld [vmem:[%s1 + $0x8] sm:$0xff]
    %v41 = vld [vmem:[%s1 + $0x10] sm:$0xff]
    %v42 = vld [vmem:[%s1 + $0x18] sm:$0xff]
    %44 = vset.pattern.permute.xlu0 0
    %45 = vperm.xlu0 %44, %v39
    %v46 = vpop.permute.xlu0 %45
    %49 = vset.pattern.permute.xlu0 0
    %50 = vperm.xlu0 %49, %v40
    %v51 = vpop.permute.xlu0 %50
    %54 = vset.pattern.permute.xlu0 0
    %55 = vperm.xlu0 %54, %v41
    %v56 = vpop.permute.xlu0 %55
    %59 = vset.pattern.permute.xlu0 0
    %60 = vperm.xlu0 %59, %v42
    %v61 = vpop.permute.xlu0 %60
    %v63 = vlaneseq
    %v64 = vshrl.u32 %v63, 7
    %v65 = vadd.s32 %v64, 8
    %v66 = vadd.s32 %v64, 16
    %v67 = vadd.s32 %v64, 24
    %vm68 = vcmp.lt.s32.totalorder %v64, 0
    %v69 = vsub.s32 0, %v64
    %v70 = vsel %vm68, %v69, %v64
    %v71 = vshrl.u32 %v70, 4
    %v72 = vand.u32 %v70, 15
    %v73 = vsub.s32 0, %v72
    %v74 = vsel %vm68, %v73, %v72
    %vm75 = vcmp.lt.s32.totalorder %v65, 0
    %v76 = vsub.s32 0, %v65
    %v77 = vsel %vm75, %v76, %v65
    %v78 = vshrl.u32 %v77, 4
    %v79 = vand.u32 %v77, 15
    %v80 = vsub.s32 0, %v79
    %v81 = vsel %vm75, %v80, %v79
    %vm82 = vcmp.lt.s32.totalorder %v66, 0
    %v83 = vsub.s32 0, %v66
    %v84 = vsel %vm82, %v83, %v66
    %v85 = vshrl.u32 %v84, 4
    %v86 = vand.u32 %v84, 15
    %v87 = vsub.s32 0, %v86
    %v88 = vsel %vm82, %v87, %v86
    %vm89 = vcmp.lt.s32.totalorder %v67, 0
    %v90 = vsub.s32 0, %v67
    %v91 = vsel %vm89, %v90, %v67
    %v92 = vshrl.u32 %v91, 4
    %v93 = vand.u32 %v91, 15
    %v94 = vsub.s32 0, %v93
    %v95 = vsel %vm89, %v94, %v93
    %vm96 = vcmp.ne.s32.totalorder %v74, 0
    %vm97 = vcmp.ne.s32.totalorder %v81, 0
    %vm98 = vcmp.ne.s32.totalorder %v88, 0
    %vm99 = vcmp.ne.s32.totalorder %v95, 0
    %vm100 = vcmp.lt.s32.totalorder %v74, 0
    %vm101 = vcmp.lt.s32.totalorder %v81, 0
    %vm102 = vcmp.lt.s32.totalorder %v88, 0
    %vm103 = vcmp.lt.s32.totalorder %v95, 0
    %vm104 = vmand %vm100, %vm96
    %vm105 = vmand %vm101, %vm97
    %vm106 = vmand %vm102, %vm98
    %vm107 = vmand %vm103, %vm99
    %v108 = vadd.s32 %v74, 16
    %v109 = vadd.s32 %v81, 16
    %v110 = vadd.s32 %v88, 16
    %v111 = vadd.s32 %v95, 16
    %v112 = vsel %vm104, %v108, %v74
    %v113 = vsel %vm105, %v109, %v81
    %v114 = vsel %vm106, %v110, %v88
    %v115 = vsel %vm107, %v111, %v95
    %v116 = vadd.s32 %v112, 4294967294
    %v117 = vadd.s32 %v113, 4294967294
    %v118 = vadd.s32 %v114, 4294967294
    %v119 = vadd.s32 %v115, 4294967294
    %vm120 = vcmp.ge.s32.totalorder %v116, 0
    %vm121 = vcmp.ge.s32.totalorder %v117, 0
    %vm122 = vcmp.ge.s32.totalorder %v118, 0
    %vm123 = vcmp.ge.s32.totalorder %v119, 0
    %vm124 = vcmp.lt.s32.totalorder %v116, 16
    %vm125 = vcmp.lt.s32.totalorder %v117, 16
    %vm126 = vcmp.lt.s32.totalorder %v118, 16
    %vm127 = vcmp.lt.s32.totalorder %v119, 16
    %vm128 = vmand %vm120, %vm124
    %vm129 = vmand %vm121, %vm125
    %vm130 = vmand %vm122, %vm126
    %vm131 = vmand %vm123, %vm127
    %v132 = vsel %vm128, 1, 0
    %v133 = vsel %vm129, 1, 0
    %v134 = vsel %vm130, 1, 0
    %v135 = vsel %vm131, 1, 0
    %v136 = vcvt.s32.f32 %v132
    %v137 = vcvt.s32.f32 %v133
    %v138 = vcvt.s32.f32 %v134
    %v139 = vcvt.s32.f32 %v135
    %v140 = vadd.s32 %v112, 4294967295
    %v141 = vadd.s32 %v113, 4294967295
    %v142 = vadd.s32 %v114, 4294967295
    %v143 = vadd.s32 %v115, 4294967295
    %vm144 = vcmp.ge.s32.totalorder %v140, 0
    %vm145 = vcmp.ge.s32.totalorder %v141, 0
    %vm146 = vcmp.ge.s32.totalorder %v142, 0
    %vm147 = vcmp.ge.s32.totalorder %v143, 0
    %vm148 = vcmp.lt.s32.totalorder %v140, 16
    %vm149 = vcmp.lt.s32.totalorder %v141, 16
    %vm150 = vcmp.lt.s32.totalorder %v142, 16
    %vm151 = vcmp.lt.s32.totalorder %v143, 16
    %vm152 = vmand %vm144, %vm148
    %vm153 = vmand %vm145, %vm149
    %vm154 = vmand %vm146, %vm150
    %vm155 = vmand %vm147, %vm151
    %v156 = vsel %vm152, 1, 0
    %v157 = vsel %vm153, 1, 0
    %v158 = vsel %vm154, 1, 0
    %v159 = vsel %vm155, 1, 0
    %v160 = vcvt.s32.f32 %v156
    %v161 = vcvt.s32.f32 %v157
    %v162 = vcvt.s32.f32 %v158
    %v163 = vcvt.s32.f32 %v159
    %v164 = vadd.s32 %v112, 1
    %v165 = vadd.s32 %v113, 1
    %v166 = vadd.s32 %v114, 1
    %v167 = vadd.s32 %v115, 1
    %vm168 = vcmp.ge.s32.totalorder %v164, 0
    %vm169 = vcmp.ge.s32.totalorder %v165, 0
    %vm170 = vcmp.ge.s32.totalorder %v166, 0
    %vm171 = vcmp.ge.s32.totalorder %v167, 0
    %vm172 = vcmp.lt.s32.totalorder %v164, 16
    %vm173 = vcmp.lt.s32.totalorder %v165, 16
    %vm174 = vcmp.lt.s32.totalorder %v166, 16
    %vm175 = vcmp.lt.s32.totalorder %v167, 16
    %vm176 = vmand %vm168, %vm172
    %vm177 = vmand %vm169, %vm173
    %vm178 = vmand %vm170, %vm174
    %vm179 = vmand %vm171, %vm175
    %v180 = vsel %vm176, 1, 0
    %v181 = vsel %vm177, 1, 0
    %v182 = vsel %vm178, 1, 0
    %v183 = vsel %vm179, 1, 0
    %v184 = vcvt.s32.f32 %v180
    %v185 = vcvt.s32.f32 %v181
    %v186 = vcvt.s32.f32 %v182
    %v187 = vcvt.s32.f32 %v183
    %v188 = vadd.s32 %v112, 2
    %v189 = vadd.s32 %v113, 2
    %v190 = vadd.s32 %v114, 2
    %v191 = vadd.s32 %v115, 2
    %vm192 = vcmp.ge.s32.totalorder %v188, 0
    %vm193 = vcmp.ge.s32.totalorder %v189, 0
    %vm194 = vcmp.ge.s32.totalorder %v190, 0
    %vm195 = vcmp.ge.s32.totalorder %v191, 0
    %vm196 = vcmp.lt.s32.totalorder %v188, 16
    %vm197 = vcmp.lt.s32.totalorder %v189, 16
    %vm198 = vcmp.lt.s32.totalorder %v190, 16
    %vm199 = vcmp.lt.s32.totalorder %v191, 16
    %vm200 = vmand %vm192, %vm196
    %vm201 = vmand %vm193, %vm197
    %vm202 = vmand %vm194, %vm198
    %vm203 = vmand %vm195, %vm199
    %v204 = vsel %vm200, 1, 0
    %v205 = vsel %vm201, 1, 0
    %v206 = vsel %vm202, 1, 0
    %v207 = vsel %vm203, 1, 0
    %v208 = vcvt.s32.f32 %v204
    %v209 = vcvt.s32.f32 %v205
    %v210 = vcvt.s32.f32 %v206
    %v211 = vcvt.s32.f32 %v207
    %v212 = vld [vmem:[%s4] sm:$0x1]
    %v213 = vpack.c.bf16 %v36, %v35
    %v214 = vpack.c.bf16 %v38, %v37
    %v215 = vld [vmem:[%s2] sm:$0x3]
    %v217 = vlaneseq
    %v218 = vshrl.u32 %v217, 7
    %v219 = vsub.s32 0, %v218
    %v220 = vrot.slane %v212, %v219
    %224 = vrot.lane.b32.xlu0 %v213, 124
    %v225 = vpop.permute.xlu0 %224
    %226 = vrot.lane.b32.xlu0 %v214, 124
    %v227 = vpop.permute.xlu0 %226
    %vm228 = vcmask 31744
    %v230 = vsel %vm228, %v225, 0
    %v233 = vsel %vm228, %v227, 0
    %vm235 = vcmask 1041408
    %v237 = vsel %vm235, %v215, 0
    %239 = vmatprep.subr.bf16.mxu0 0
    %240 = vmatpush1.bf16.msra.mxu0 %v237
    %241 = vmatprep.subr.bf16.mxu0 0
    %242 = vmatpush1.bf16.msra.mxu0 0
    %243 = vmatprep.subr.bf16.mxu0 0
    %244 = vmatpush1.bf16.msra.mxu0 0
    %245 = vmatprep.subr.bf16.mxu0 0
    %246 = vmatpush1.bf16.msra.mxu0 0
    %247 = vmatprep.subr.bf16.mxu0 0
    %248 = vmatpush1.bf16.msra.mxu0 0
    %249 = vmatprep.subr.bf16.mxu0 0
    %250 = vmatpush1.bf16.msra.mxu0 0
    %251 = vmatprep.subr.bf16.mxu0 0
    %252 = vmatpush1.bf16.msra.mxu0 0
    %253 = vmatprep.subr.bf16.mxu0 0
    %254 = vmatpush1.bf16.msra.mxu0 0
    %255 = vmatprep.subr.bf16.mxu0 0
    %256 = vmatpush1.bf16.msra.mxu0 0
    %257 = vmatprep.subr.bf16.mxu0 0
    %258 = vmatpush1.bf16.msra.mxu0 0
    %259 = vmatprep.subr.bf16.mxu0 0
    %260 = vmatpush1.bf16.msra.mxu0 0
    %261 = vmatprep.subr.bf16.mxu0 0
    %262 = vmatpush1.bf16.msra.mxu0 0
    %263 = vmatprep.subr.bf16.mxu0 0
    %264 = vmatpush1.bf16.msra.mxu0 0
    %265 = vmatprep.subr.bf16.mxu0 0
    %266 = vmatpush1.bf16.msra.mxu0 0
    %267 = vmatprep.subr.bf16.mxu0 0
    %268 = vmatpush1.bf16.msra.mxu0 0
    %269 = vmatprep.subr.bf16.mxu0 0
    %270 = vmatpush1.bf16.msra.mxu0 0
    %271 = vmatprep.mubr.bf16.mxu0 0
    %272 = vmatmul.mubr.bf16.gmra.mrb[0].mxu0 %v230
    %v273 = vpop.f32.mrb[0].mxu0
    %v274 = vadd.f32 %v220, %v273
    %v275 = vpop.f32.mrb[0].mxu0
    %v276 = vpop.f32.mrb[0].mxu0
    %v277 = vadd.f32 %v220, %v276
    %v278 = vpop.f32.mrb[0].mxu0
    %279 = vmatprep.mubr.bf16.mxu0 0
    %280 = vmatmul.mubr.bf16.gmra.mrb[0].mxu0 %v233
    %v281 = vpop.f32.mrb[0].mxu0
    %v282 = vadd.f32 %v220, %v281
    %v283 = vpop.f32.mrb[0].mxu0
    %v284 = vpop.f32.mrb[0].mxu0
    %v285 = vadd.f32 %v220, %v284
    %v286 = vpop.f32.mrb[0].mxu0
    %287 = vdwg.mxu0
    %v288 = vmul.f32 %v274, %v46
    %v289 = vmul.f32 %v277, %v51
    %v290 = vmul.f32 %v282, %v56
    %v291 = vmul.f32 %v285, %v61
    %v292 = vrot.slane %v288, 6
    %v293 = vrot.slane %v289, 6
    %v294 = vrot.slane %v290, 6
    %v295 = vrot.slane %v291, 6
    %vm296 = vcmp.lt.s32.totalorder %v64, 2
    %v297 = vsel %vm296, %v294, %v295
    %v298 = vsel %vm296, %v293, %v294
    %v299 = vsel %vm296, %v292, %v293
    %v300 = vsel %vm296, %v295, %v292
    %v301 = vmul.f32 %v300, %v136
    %v302 = vmul.f32 %v299, %v137
    %v303 = vmul.f32 %v298, %v138
    %v304 = vmul.f32 %v297, %v139
    %v305 = vpack.c.bf16 %v302, %v301
    %v306 = vpack.c.bf16 %v304, %v303
    %v307 = vld [vmem:[#allocation2] sm:$0xf]
    %v308 = vld [vmem:[#allocation2 + $0x4] sm:$0xf]
    %v309 = vld [vmem:[#allocation2 + $0x8] sm:$0xf]
    %v310 = vld [vmem:[#allocation2 + $0xc] sm:$0xf]
    %v311 = vrot.slane %v288, 7
    %v312 = vrot.slane %v289, 7
    %v313 = vrot.slane %v290, 7
    %v314 = vrot.slane %v291, 7
    %vm315 = vcmp.lt.s32.totalorder %v64, 1
    %v316 = vsel %vm315, %v313, %v314
    %v317 = vsel %vm315, %v312, %v313
    %v318 = vsel %vm315, %v311, %v312
    %v319 = vsel %vm315, %v314, %v311
    %v320 = vmul.f32 %v319, %v160
    %v321 = vmul.f32 %v318, %v161
    %v322 = vmul.f32 %v317, %v162
    %v323 = vmul.f32 %v316, %v163
    %v324 = vpack.c.bf16 %v321, %v320
    %v325 = vpack.c.bf16 %v323, %v322
    %s326 = scalar_lea.vmem [#allocation2], 16
    %v327 = vld [vmem:[%s326] sm:$0xf]
    %v328 = vld [vmem:[%s326 + $0x4] sm:$0xf]
    %v329 = vld [vmem:[%s326 + $0x8] sm:$0xf]
    %v330 = vld [vmem:[%s326 + $0xc] sm:$0xf]
    %v335 = vunpack.c.l.b16 %v327
    %v336 = vunpack.c.l.b16 %v328
    %v337 = vunpack.c.l.b16 %v329
    %v338 = vunpack.c.l.b16 %v330
    %v339 = vpack.c.b16 %v336, %v335
    %v340 = vpack.c.b16 %v338, %v337
    %vm343 = vcmask 261120
    %v345 = vsel %vm343, %v324, 0
    %v348 = vsel %vm343, %v325, 0
    %350 = vmatprep.subr.bf16.mxu0 0
    %351 = vmatpush1.bf16.msra.mxu0 %v339
    %352 = vmatprep.subr.bf16.mxu0 0
    %353 = vmatpush1.bf16.msra.mxu0 %v340
    %354 = vmatprep.subr.bf16.mxu0 0
    %355 = vmatpush1.bf16.msra.mxu0 0
    %356 = vmatprep.subr.bf16.mxu0 0
    %357 = vmatpush1.bf16.msra.mxu0 0
    %358 = vmatprep.subr.bf16.mxu0 0
    %359 = vmatpush1.bf16.msra.mxu0 0
    %360 = vmatprep.subr.bf16.mxu0 0
    %361 = vmatpush1.bf16.msra.mxu0 0
    %362 = vmatprep.subr.bf16.mxu0 0
    %363 = vmatpush1.bf16.msra.mxu0 0
    %364 = vmatprep.subr.bf16.mxu0 0
    %365 = vmatpush1.bf16.msra.mxu0 0
    %366 = vmatprep.subr.bf16.mxu0 0
    %367 = vmatpush1.bf16.msra.mxu0 0
    %368 = vmatprep.subr.bf16.mxu0 0
    %369 = vmatpush1.bf16.msra.mxu0 0
    %370 = vmatprep.subr.bf16.mxu0 0
    %371 = vmatpush1.bf16.msra.mxu0 0
    %372 = vmatprep.subr.bf16.mxu0 0
    %373 = vmatpush1.bf16.msra.mxu0 0
    %374 = vmatprep.subr.bf16.mxu0 0
    %375 = vmatpush1.bf16.msra.mxu0 0
    %376 = vmatprep.subr.bf16.mxu0 0
    %377 = vmatpush1.bf16.msra.mxu0 0
    %378 = vmatprep.subr.bf16.mxu0 0
    %379 = vmatpush1.bf16.msra.mxu0 0
    %380 = vmatprep.subr.bf16.mxu0 0
    %381 = vmatpush1.bf16.msra.mxu0 0
    %382 = vmatprep.mubr.bf16.mxu0 0
    %383 = vmatmul.mubr.bf16.gmra.mrb[0].mxu0 %v345
    %v384 = vpop.f32.mrb[0].mxu0
    %v385 = vadd.f32 0.0, %v384
    %v386 = vpop.f32.mrb[0].mxu0
    %v387 = vpop.f32.mrb[0].mxu0
    %v388 = vadd.f32 0.0, %v387
    %v389 = vpop.f32.mrb[0].mxu0
    %390 = vmatprep.mubr.bf16.mxu0 0
    %391 = vmatmul.mubr.bf16.gmra.mrb[0].mxu0 %v348
    %v392 = vpop.f32.mrb[0].mxu0
    %v393 = vadd.f32 0.0, %v392
    %v394 = vpop.f32.mrb[0].mxu0
    %v395 = vpop.f32.mrb[0].mxu0
    %v396 = vadd.f32 0.0, %v395
    %v397 = vpop.f32.mrb[0].mxu0
    %398 = vdwg.mxu0
    %v403 = vunpack.c.l.b16 %v307
    %v404 = vunpack.c.l.b16 %v308
    %v405 = vunpack.c.l.b16 %v309
    %v406 = vunpack.c.l.b16 %v310
    %v407 = vpack.c.b16 %v404, %v403
    %v408 = vpack.c.b16 %v406, %v405
    %v412 = vsel %vm343, %v305, 0
    %v415 = vsel %vm343, %v306, 0
    %417 = vmatprep.subr.bf16.mxu0 0
    %418 = vmatpush1.bf16.msra.mxu0 %v407
    %419 = vmatprep.subr.bf16.mxu0 0
    %420 = vmatpush1.bf16.msra.mxu0 %v408
    %421 = vmatprep.subr.bf16.mxu0 0
    %422 = vmatpush1.bf16.msra.mxu0 0
    %423 = vmatprep.subr.bf16.mxu0 0
    %424 = vmatpush1.bf16.msra.mxu0 0
    %425 = vmatprep.subr.bf16.mxu0 0
    %426 = vmatpush1.bf16.msra.mxu0 0
    %427 = vmatprep.subr.bf16.mxu0 0
    %428 = vmatpush1.bf16.msra.mxu0 0
    %429 = vmatprep.subr.bf16.mxu0 0
    %430 = vmatpush1.bf16.msra.mxu0 0
    %431 = vmatprep.subr.bf16.mxu0 0
    %432 = vmatpush1.bf16.msra.mxu0 0
    %433 = vmatprep.subr.bf16.mxu0 0
    %434 = vmatpush1.bf16.msra.mxu0 0
    %435 = vmatprep.subr.bf16.mxu0 0
    %436 = vmatpush1.bf16.msra.mxu0 0
    %437 = vmatprep.subr.bf16.mxu0 0
    %438 = vmatpush1.bf16.msra.mxu0 0
    %439 = vmatprep.subr.bf16.mxu0 0
    %440 = vmatpush1.bf16.msra.mxu0 0
    %441 = vmatprep.subr.bf16.mxu0 0
    %442 = vmatpush1.bf16.msra.mxu0 0
    %443 = vmatprep.subr.bf16.mxu0 0
    %444 = vmatpush1.bf16.msra.mxu0 0
    %445 = vmatprep.subr.bf16.mxu0 0
    %446 = vmatpush1.bf16.msra.mxu0 0
    %447 = vmatprep.subr.bf16.mxu0 0
    %448 = vmatpush1.bf16.msra.mxu0 0
    %449 = vmatprep.mubr.bf16.mxu0 0
    %450 = vmatmul.mubr.bf16.gmra.mrb[0].mxu0 %v412
    %v451 = vpop.f32.mrb[0].mxu0
    %v452 = vadd.f32 %v385, %v451
    %v453 = vpop.f32.mrb[0].mxu0
    %v454 = vpop.f32.mrb[0].mxu0
    %v455 = vadd.f32 %v388, %v454
    %v456 = vpop.f32.mrb[0].mxu0
    %457 = vmatprep.mubr.bf16.mxu0 0
    %458 = vmatmul.mubr.bf16.gmra.mrb[0].mxu0 %v415
    %v459 = vpop.f32.mrb[0].mxu0
    %v460 = vadd.f32 %v393, %v459
    %v461 = vpop.f32.mrb[0].mxu0
    %v462 = vpop.f32.mrb[0].mxu0
    %v463 = vadd.f32 %v396, %v462
    %v464 = vpop.f32.mrb[0].mxu0
    %465 = vdwg.mxu0
    %v466 = vpack.c.bf16 %v289, %v288
    %v467 = vpack.c.bf16 %v291, %v290
    %s468 = scalar_lea.vmem [#allocation2], 32
    %v469 = vld [vmem:[%s468] sm:$0xf]
    %v470 = vld [vmem:[%s468 + $0x4] sm:$0xf]
    %v471 = vld [vmem:[%s468 + $0x8] sm:$0xf]
    %v472 = vld [vmem:[%s468 + $0xc] sm:$0xf]
    %v477 = vunpack.c.l.b16 %v469
    %v478 = vunpack.c.l.b16 %v470
    %v479 = vunpack.c.l.b16 %v471
    %v480 = vunpack.c.l.b16 %v472
    %v481 = vpack.c.b16 %v478, %v477
    %v482 = vpack.c.b16 %v480, %v479
    %v486 = vsel %vm343, %v466, 0
    %v489 = vsel %vm343, %v467, 0
    %491 = vmatprep.subr.bf16.mxu0 0
    %492 = vmatpush1.bf16.msra.mxu0 %v481
    %493 = vmatprep.subr.bf16.mxu0 0
    %494 = vmatpush1.bf16.msra.mxu0 %v482
    %495 = vmatprep.subr.bf16.mxu0 0
    %496 = vmatpush1.bf16.msra.mxu0 0
    %497 = vmatprep.subr.bf16.mxu0 0
    %498 = vmatpush1.bf16.msra.mxu0 0
    %499 = vmatprep.subr.bf16.mxu0 0
    %500 = vmatpush1.bf16.msra.mxu0 0
    %501 = vmatprep.subr.bf16.mxu0 0
    %502 = vmatpush1.bf16.msra.mxu0 0
    %503 = vmatprep.subr.bf16.mxu0 0
    %504 = vmatpush1.bf16.msra.mxu0 0
    %505 = vmatprep.subr.bf16.mxu0 0
    %506 = vmatpush1.bf16.msra.mxu0 0
    %507 = vmatprep.subr.bf16.mxu0 0
    %508 = vmatpush1.bf16.msra.mxu0 0
    %509 = vmatprep.subr.bf16.mxu0 0
    %510 = vmatpush1.bf16.msra.mxu0 0
    %511 = vmatprep.subr.bf16.mxu0 0
    %512 = vmatpush1.bf16.msra.mxu0 0
    %513 = vmatprep.subr.bf16.mxu0 0
    %514 = vmatpush1.bf16.msra.mxu0 0
    %515 = vmatprep.subr.bf16.mxu0 0
    %516 = vmatpush1.bf16.msra.mxu0 0
    %517 = vmatprep.subr.bf16.mxu0 0
    %518 = vmatpush1.bf16.msra.mxu0 0
    %519 = vmatprep.subr.bf16.mxu0 0
    %520 = vmatpush1.bf16.msra.mxu0 0
    %521 = vmatprep.subr.bf16.mxu0 0
    %522 = vmatpush1.bf16.msra.mxu0 0
    %523 = vmatprep.mubr.bf16.mxu0 0
    %524 = vmatmul.mubr.bf16.gmra.mrb[0].mxu0 %v486
    %v525 = vpop.f32.mrb[0].mxu0
    %v526 = vadd.f32 0.0, %v525
    %v527 = vpop.f32.mrb[0].mxu0
    %v528 = vpop.f32.mrb[0].mxu0
    %v529 = vadd.f32 0.0, %v528
    %v530 = vpop.f32.mrb[0].mxu0
    %531 = vmatprep.mubr.bf16.mxu0 0
    %532 = vmatmul.mubr.bf16.gmra.mrb[0].mxu0 %v489
    %v533 = vpop.f32.mrb[0].mxu0
    %v534 = vadd.f32 0.0, %v533
    %v535 = vpop.f32.mrb[0].mxu0
    %v536 = vpop.f32.mrb[0].mxu0
    %v537 = vadd.f32 0.0, %v536
    %v538 = vpop.f32.mrb[0].mxu0
    %539 = vdwg.mxu0
    %v540 = vadd.f32 %v452, %v526
    %v541 = vadd.f32 %v455, %v529
    %v542 = vadd.f32 %v460, %v534
    %v543 = vadd.f32 %v463, %v537
    %v544 = vrot.slane %v288, 1
    %v545 = vrot.slane %v289, 1
    %v546 = vrot.slane %v290, 1
    %v547 = vrot.slane %v291, 1
    %vm548 = vcmp.lt.s32.totalorder %v64, 7
    %v549 = vsel %vm548, %v546, %v547
    %v550 = vsel %vm548, %v545, %v546
    %v551 = vsel %vm548, %v544, %v545
    %v552 = vsel %vm548, %v547, %v544
    %v553 = vmul.f32 %v551, %v184
    %v554 = vmul.f32 %v550, %v185
    %v555 = vmul.f32 %v549, %v186
    %v556 = vmul.f32 %v552, %v187
    %v557 = vpack.c.bf16 %v554, %v553
    %v558 = vpack.c.bf16 %v556, %v555
    %s559 = scalar_lea.vmem [#allocation2], 48
    %v560 = vld [vmem:[%s559] sm:$0xf]
    %v561 = vld [vmem:[%s559 + $0x4] sm:$0xf]
    %v562 = vld [vmem:[%s559 + $0x8] sm:$0xf]
    %v563 = vld [vmem:[%s559 + $0xc] sm:$0xf]
    %v568 = vunpack.c.l.b16 %v560
    %v569 = vunpack.c.l.b16 %v561
    %v570 = vunpack.c.l.b16 %v562
    %v571 = vunpack.c.l.b16 %v563
    %v572 = vpack.c.b16 %v569, %v568
    %v573 = vpack.c.b16 %v571, %v570
    %v577 = vsel %vm343, %v557, 0
    %v580 = vsel %vm343, %v558, 0
    %582 = vmatprep.subr.bf16.mxu0 0
    %583 = vmatpush1.bf16.msra.mxu0 %v572
    %584 = vmatprep.subr.bf16.mxu0 0
    %585 = vmatpush1.bf16.msra.mxu0 %v573
    %586 = vmatprep.subr.bf16.mxu0 0
    %587 = vmatpush1.bf16.msra.mxu0 0
    %588 = vmatprep.subr.bf16.mxu0 0
    %589 = vmatpush1.bf16.msra.mxu0 0
    %590 = vmatprep.subr.bf16.mxu0 0
    %591 = vmatpush1.bf16.msra.mxu0 0
    %592 = vmatprep.subr.bf16.mxu0 0
    %593 = vmatpush1.bf16.msra.mxu0 0
    %594 = vmatprep.subr.bf16.mxu0 0
    %595 = vmatpush1.bf16.msra.mxu0 0
    %596 = vmatprep.subr.bf16.mxu0 0
    %597 = vmatpush1.bf16.msra.mxu0 0
    %598 = vmatprep.subr.bf16.mxu0 0
    %599 = vmatpush1.bf16.msra.mxu0 0
    %600 = vmatprep.subr.bf16.mxu0 0
    %601 = vmatpush1.bf16.msra.mxu0 0
    %602 = vmatprep.subr.bf16.mxu0 0
    %603 = vmatpush1.bf16.msra.mxu0 0
    %604 = vmatprep.subr.bf16.mxu0 0
    %605 = vmatpush1.bf16.msra.mxu0 0
    %606 = vmatprep.subr.bf16.mxu0 0
    %607 = vmatpush1.bf16.msra.mxu0 0
    %608 = vmatprep.subr.bf16.mxu0 0
    %609 = vmatpush1.bf16.msra.mxu0 0
    %610 = vmatprep.subr.bf16.mxu0 0
    %611 = vmatpush1.bf16.msra.mxu0 0
    %612 = vmatprep.subr.bf16.mxu0 0
    %613 = vmatpush1.bf16.msra.mxu0 0
    %614 = vmatprep.mubr.bf16.mxu0 0
    %615 = vmatmul.mubr.bf16.gmra.mrb[0].mxu0 %v577
    %v616 = vpop.f32.mrb[0].mxu0
    %v617 = vadd.f32 0.0, %v616
    %v618 = vpop.f32.mrb[0].mxu0
    %v619 = vpop.f32.mrb[0].mxu0
    %v620 = vadd.f32 0.0, %v619
    %v621 = vpop.f32.mrb[0].mxu0
    %622 = vmatprep.mubr.bf16.mxu0 0
    %623 = vmatmul.mubr.bf16.gmra.mrb[0].mxu0 %v580
    %v624 = vpop.f32.mrb[0].mxu0
    %v625 = vadd.f32 0.0, %v624
    %v626 = vpop.f32.mrb[0].mxu0
    %v627 = vpop.f32.mrb[0].mxu0
    %v628 = vadd.f32 0.0, %v627
    %v629 = vpop.f32.mrb[0].mxu0
    %630 = vdwg.mxu0
    %v631 = vadd.f32 %v540, %v617
    %v632 = vadd.f32 %v541, %v620
    %v633 = vadd.f32 %v542, %v625
    %v634 = vadd.f32 %v543, %v628
    %v635 = vrot.slane %v288, 2
    %v636 = vrot.slane %v289, 2
    %v637 = vrot.slane %v290, 2
    %v638 = vrot.slane %v291, 2
    %vm639 = vcmp.lt.s32.totalorder %v64, 6
    %v640 = vsel %vm639, %v637, %v638
    %v641 = vsel %vm639, %v636, %v637
    %v642 = vsel %vm639, %v635, %v636
    %v643 = vsel %vm639, %v638, %v635
    %v644 = vmul.f32 %v642, %v208
    %v645 = vmul.f32 %v641, %v209
    %v646 = vmul.f32 %v640, %v210
    %v647 = vmul.f32 %v643, %v211
    %v648 = vpack.c.bf16 %v645, %v644
    %v649 = vpack.c.bf16 %v647, %v646
    %s650 = scalar_lea.vmem [#allocation2], 64
    %v651 = vld [vmem:[%s650] sm:$0xf]
    %v652 = vld [vmem:[%s650 + $0x4] sm:$0xf]
    %v653 = vld [vmem:[%s650 + $0x8] sm:$0xf]
    %v654 = vld [vmem:[%s650 + $0xc] sm:$0xf]
    %v659 = vunpack.c.l.b16 %v651
    %v660 = vunpack.c.l.b16 %v652
    %v661 = vunpack.c.l.b16 %v653
    %v662 = vunpack.c.l.b16 %v654
    %v663 = vpack.c.b16 %v660, %v659
    %v664 = vpack.c.b16 %v662, %v661
    %v668 = vsel %vm343, %v648, 0
    %v671 = vsel %vm343, %v649, 0
    %673 = vmatprep.subr.bf16.mxu0 0
    %674 = vmatpush1.bf16.msra.mxu0 %v663
    %675 = vmatprep.subr.bf16.mxu0 0
    %676 = vmatpush1.bf16.msra.mxu0 %v664
    %677 = vmatprep.subr.bf16.mxu0 0
    %678 = vmatpush1.bf16.msra.mxu0 0
    %679 = vmatprep.subr.bf16.mxu0 0
    %680 = vmatpush1.bf16.msra.mxu0 0
    %681 = vmatprep.subr.bf16.mxu0 0
    %682 = vmatpush1.bf16.msra.mxu0 0
    %683 = vmatprep.subr.bf16.mxu0 0
    %684 = vmatpush1.bf16.msra.mxu0 0
    %685 = vmatprep.subr.bf16.mxu0 0
    %686 = vmatpush1.bf16.msra.mxu0 0
    %687 = vmatprep.subr.bf16.mxu0 0
    %688 = vmatpush1.bf16.msra.mxu0 0
    %689 = vmatprep.subr.bf16.mxu0 0
    %690 = vmatpush1.bf16.msra.mxu0 0
    %691 = vmatprep.subr.bf16.mxu0 0
    %692 = vmatpush1.bf16.msra.mxu0 0
    %693 = vmatprep.subr.bf16.mxu0 0
    %694 = vmatpush1.bf16.msra.mxu0 0
    %695 = vmatprep.subr.bf16.mxu0 0
    %696 = vmatpush1.bf16.msra.mxu0 0
    %697 = vmatprep.subr.bf16.mxu0 0
    %698 = vmatpush1.bf16.msra.mxu0 0
    %699 = vmatprep.subr.bf16.mxu0 0
    %700 = vmatpush1.bf16.msra.mxu0 0
    %701 = vmatprep.subr.bf16.mxu0 0
    %702 = vmatpush1.bf16.msra.mxu0 0
    %703 = vmatprep.subr.bf16.mxu0 0
    %704 = vmatpush1.bf16.msra.mxu0 0
    %705 = vmatprep.mubr.bf16.mxu0 0
    %706 = vmatmul.mubr.bf16.gmra.mrb[0].mxu0 %v668
    %v707 = vpop.f32.mrb[0].mxu0
    %v708 = vadd.f32 0.0, %v707
    %v709 = vpop.f32.mrb[0].mxu0
    %v710 = vpop.f32.mrb[0].mxu0
    %v711 = vadd.f32 0.0, %v710
    %v712 = vpop.f32.mrb[0].mxu0
    %713 = vmatprep.mubr.bf16.mxu0 0
    %714 = vmatmul.mubr.bf16.gmra.mrb[0].mxu0 %v671
    %v715 = vpop.f32.mrb[0].mxu0
    %v716 = vadd.f32 0.0, %v715
    %v717 = vpop.f32.mrb[0].mxu0
    %v718 = vpop.f32.mrb[0].mxu0
    %v719 = vadd.f32 0.0, %v718
    %v720 = vpop.f32.mrb[0].mxu0
    %721 = vdwg.mxu0
    %v722 = vadd.f32 %v631, %v708
    %v723 = vadd.f32 %v632, %v711
    %v724 = vadd.f32 %v633, %v716
    %v725 = vadd.f32 %v634, %v719
    %s726 = scalar_lea.vmem %s4, 1
    %v727 = vld [vmem:[%s726] sm:$0x1]
    %v729 = vlaneseq
    %v730 = vshrl.u32 %v729, 7
    %v731 = vsub.s32 0, %v730
    %v732 = vrot.slane %v727, %v731
    %v734 = vadd.f32 %v722, %v732
    %v735 = vadd.f32 %v723, %v732
    %v736 = vadd.f32 %v724, %v732
    %v737 = vadd.f32 %v725, %v732
    %v738 = vtanh.pop %v734
    %v739 = vtanh.pop %v735
    %v740 = vtanh.pop %v736
    %v741 = vtanh.pop %v737
    %v742 = vmul.f32 %v738, 0.5
    %v743 = vmul.f32 %v739, 0.5
    %v744 = vmul.f32 %v740, 0.5
    %v745 = vmul.f32 %v741, 0.5
    %v746 = vadd.f32 %v742, 0.5
    %v747 = vadd.f32 %v743, 0.5
    %v748 = vadd.f32 %v744, 0.5
    %v749 = vadd.f32 %v745, 0.5
    %754 = vrot.lane.b32.xlu0 %v746, 96
    %v755 = vpop.permute.xlu0 %754
    %756 = vrot.lane.b32.xlu0 %v747, 96
    %v757 = vpop.permute.xlu0 %756
    %758 = vrot.lane.b32.xlu0 %v748, 96
    %v759 = vpop.permute.xlu0 %758
    %760 = vrot.lane.b32.xlu0 %v749, 96
    %v761 = vpop.permute.xlu0 %760
    %v766 = vmul.f32 %v738, %v755
    %v767 = vmul.f32 %v739, %v757
    %v768 = vmul.f32 %v740, %v759
    %v769 = vmul.f32 %v741, %v761
    %v770 = vpack.c.bf16 %v767, %v766
    %v771 = vpack.c.bf16 %v769, %v768
    %s772 = scalar_lea.vmem [#allocation2], 320
    %v773 = vld [vmem:[%s772] sm:$0xf]
    %v774 = vld [vmem:[%s772 + $0x4] sm:$0xf]
    %v775 = vld [vmem:[%s772 + $0x8] sm:$0xf]
    %v776 = vld [vmem:[%s772 + $0xc] sm:$0xf]
    %s777 = scalar_lea.vmem %s4, 5
    %v778 = vld [vmem:[%s777] sm:$0x1]
    %v780 = vlaneseq
    %v781 = vshrl.u32 %v780, 7
    %v782 = vsub.s32 0, %v781
    %v783 = vrot.slane %v778, %v782
    %v789 = vunpack.c.l.b16 %v773
    %v790 = vunpack.c.l.b16 %v774
    %v791 = vunpack.c.l.b16 %v775
    %v792 = vunpack.c.l.b16 %v776
    %v793 = vpack.c.b16 %v790, %v789
    %v794 = vpack.c.b16 %v792, %v791
    %v798 = vsel %vm343, %v770, 0
    %v801 = vsel %vm343, %v771, 0
    %803 = vmatprep.subr.bf16.mxu0 0
    %804 = vmatpush1.bf16.msra.mxu0 %v793
    %805 = vmatprep.subr.bf16.mxu0 0
    %806 = vmatpush1.bf16.msra.mxu0 %v794
    %807 = vmatprep.subr.bf16.mxu0 0
    %808 = vmatpush1.bf16.msra.mxu0 0
    %809 = vmatprep.subr.bf16.mxu0 0
    %810 = vmatpush1.bf16.msra.mxu0 0
    %811 = vmatprep.subr.bf16.mxu0 0
    %812 = vmatpush1.bf16.msra.mxu0 0
    %813 = vmatprep.subr.bf16.mxu0 0
    %814 = vmatpush1.bf16.msra.mxu0 0
    %815 = vmatprep.subr.bf16.mxu0 0
    %816 = vmatpush1.bf16.msra.mxu0 0
    %817 = vmatprep.subr.bf16.mxu0 0
    %818 = vmatpush1.bf16.msra.mxu0 0
    %819 = vmatprep.subr.bf16.mxu0 0
    %820 = vmatpush1.bf16.msra.mxu0 0
    %821 = vmatprep.subr.bf16.mxu0 0
    %822 = vmatpush1.bf16.msra.mxu0 0
    %823 = vmatprep.subr.bf16.mxu0 0
    %824 = vmatpush1.bf16.msra.mxu0 0
    %825 = vmatprep.subr.bf16.mxu0 0
    %826 = vmatpush1.bf16.msra.mxu0 0
    %827 = vmatprep.subr.bf16.mxu0 0
    %828 = vmatpush1.bf16.msra.mxu0 0
    %829 = vmatprep.subr.bf16.mxu0 0
    %830 = vmatpush1.bf16.msra.mxu0 0
    %831 = vmatprep.subr.bf16.mxu0 0
    %832 = vmatpush1.bf16.msra.mxu0 0
    %833 = vmatprep.subr.bf16.mxu0 0
    %834 = vmatpush1.bf16.msra.mxu0 0
    %835 = vmatprep.mubr.bf16.mxu0 0
    %836 = vmatmul.mubr.bf16.gmra.mrb[0].mxu0 %v798
    %v837 = vpop.f32.mrb[0].mxu0
    %v838 = vadd.f32 %v783, %v837
    %v839 = vpop.f32.mrb[0].mxu0
    %v840 = vpop.f32.mrb[0].mxu0
    %v841 = vadd.f32 %v783, %v840
    %v842 = vpop.f32.mrb[0].mxu0
    %843 = vmatprep.mubr.bf16.mxu0 0
    %844 = vmatmul.mubr.bf16.gmra.mrb[0].mxu0 %v801
    %v845 = vpop.f32.mrb[0].mxu0
    %v846 = vadd.f32 %v783, %v845
    %v847 = vpop.f32.mrb[0].mxu0
    %v848 = vpop.f32.mrb[0].mxu0
    %v849 = vadd.f32 %v783, %v848
    %v850 = vpop.f32.mrb[0].mxu0
    %851 = vdwg.mxu0
    %v852 = vadd.f32 %v288, %v838
    %v853 = vadd.f32 %v289, %v841
    %v854 = vadd.f32 %v290, %v846
    %v855 = vadd.f32 %v291, %v849
    %v856 = vmul.f32 %v852, %v46
    %v857 = vmul.f32 %v853, %v51
    %v858 = vmul.f32 %v854, %v56
    %v859 = vmul.f32 %v855, %v61
    %v860 = vrot.slane %v856, 6
    %v861 = vrot.slane %v857, 6
    %v862 = vrot.slane %v858, 6
    %v863 = vrot.slane %v859, 6
    %v864 = vsel %vm296, %v862, %v863
    %v865 = vsel %vm296, %v861, %v862
    %v866 = vsel %vm296, %v860, %v861
    %v867 = vsel %vm296, %v863, %v860
    %v868 = vmul.f32 %v867, %v136
    %v869 = vmul.f32 %v866, %v137
    %v870 = vmul.f32 %v865, %v138
    %v871 = vmul.f32 %v864, %v139
    %v872 = vpack.c.bf16 %v869, %v868
    %v873 = vpack.c.bf16 %v871, %v870
    %s874 = scalar_lea.vmem [#allocation2], 80
    %v875 = vld [vmem:[%s874] sm:$0xf]
    %v876 = vld [vmem:[%s874 + $0x4] sm:$0xf]
    %v877 = vld [vmem:[%s874 + $0x8] sm:$0xf]
    %v878 = vld [vmem:[%s874 + $0xc] sm:$0xf]
    %v879 = vrot.slane %v856, 7
    %v880 = vrot.slane %v857, 7
    %v881 = vrot.slane %v858, 7
    %v882 = vrot.slane %v859, 7
    %v883 = vsel %vm315, %v881, %v882
    %v884 = vsel %vm315, %v880, %v881
    %v885 = vsel %vm315, %v879, %v880
    %v886 = vsel %vm315, %v882, %v879
    %v887 = vmul.f32 %v886, %v160
    %v888 = vmul.f32 %v885, %v161
    %v889 = vmul.f32 %v884, %v162
    %v890 = vmul.f32 %v883, %v163
    %v891 = vpack.c.bf16 %v888, %v887
    %v892 = vpack.c.bf16 %v890, %v889
    %s893 = scalar_lea.vmem [#allocation2], 96
    %v894 = vld [vmem:[%s893] sm:$0xf]
    %v895 = vld [vmem:[%s893 + $0x4] sm:$0xf]
    %v896 = vld [vmem:[%s893 + $0x8] sm:$0xf]
    %v897 = vld [vmem:[%s893 + $0xc] sm:$0xf]
    %v902 = vunpack.c.l.b16 %v894
    %v903 = vunpack.c.l.b16 %v895
    %v904 = vunpack.c.l.b16 %v896
    %v905 = vunpack.c.l.b16 %v897
    %v906 = vpack.c.b16 %v903, %v902
    %v907 = vpack.c.b16 %v905, %v904
    %v911 = vsel %vm343, %v891, 0
    %v914 = vsel %vm343, %v892, 0
    %916 = vmatprep.subr.bf16.mxu0 0
    %917 = vmatpush1.bf16.msra.mxu0 %v906
    %918 = vmatprep.subr.bf16.mxu0 0
    %919 = vmatpush1.bf16.msra.mxu0 %v907
    %920 = vmatprep.subr.bf16.mxu0 0
    %921 = vmatpush1.bf16.msra.mxu0 0
    %922 = vmatprep.subr.bf16.mxu0 0
    %923 = vmatpush1.bf16.msra.mxu0 0
    %924 = vmatprep.subr.bf16.mxu0 0
    %925 = vmatpush1.bf16.msra.mxu0 0
    %926 = vmatprep.subr.bf16.mxu0 0
    %927 = vmatpush1.bf16.msra.mxu0 0
    %928 = vmatprep.subr.bf16.mxu0 0
    %929 = vmatpush1.bf16.msra.mxu0 0
    %930 = vmatprep.subr.bf16.mxu0 0
    %931 = vmatpush1.bf16.msra.mxu0 0
    %932 = vmatprep.subr.bf16.mxu0 0
    %933 = vmatpush1.bf16.msra.mxu0 0
    %934 = vmatprep.subr.bf16.mxu0 0
    %935 = vmatpush1.bf16.msra.mxu0 0
    %936 = vmatprep.subr.bf16.mxu0 0
    %937 = vmatpush1.bf16.msra.mxu0 0
    %938 = vmatprep.subr.bf16.mxu0 0
    %939 = vmatpush1.bf16.msra.mxu0 0
    %940 = vmatprep.subr.bf16.mxu0 0
    %941 = vmatpush1.bf16.msra.mxu0 0
    %942 = vmatprep.subr.bf16.mxu0 0
    %943 = vmatpush1.bf16.msra.mxu0 0
    %944 = vmatprep.subr.bf16.mxu0 0
    %945 = vmatpush1.bf16.msra.mxu0 0
    %946 = vmatprep.subr.bf16.mxu0 0
    %947 = vmatpush1.bf16.msra.mxu0 0
    %948 = vmatprep.mubr.bf16.mxu0 0
    %949 = vmatmul.mubr.bf16.gmra.mrb[0].mxu0 %v911
    %v950 = vpop.f32.mrb[0].mxu0
    %v951 = vadd.f32 0.0, %v950
    %v952 = vpop.f32.mrb[0].mxu0
    %v953 = vpop.f32.mrb[0].mxu0
    %v954 = vadd.f32 0.0, %v953
    %v955 = vpop.f32.mrb[0].mxu0
    %956 = vmatprep.mubr.bf16.mxu0 0
    %957 = vmatmul.mubr.bf16.gmra.mrb[0].mxu0 %v914
    %v958 = vpop.f32.mrb[0].mxu0
    %v959 = vadd.f32 0.0, %v958
    %v960 = vpop.f32.mrb[0].mxu0
    %v961 = vpop.f32.mrb[0].mxu0
    %v962 = vadd.f32 0.0, %v961
    %v963 = vpop.f32.mrb[0].mxu0
    %964 = vdwg.mxu0
    %v969 = vunpack.c.l.b16 %v875
    %v970 = vunpack.c.l.b16 %v876
    %v971 = vunpack.c.l.b16 %v877
    %v972 = vunpack.c.l.b16 %v878
    %v973 = vpack.c.b16 %v970, %v969
    %v974 = vpack.c.b16 %v972, %v971
    %v978 = vsel %vm343, %v872, 0
    %v981 = vsel %vm343, %v873, 0
    %983 = vmatprep.subr.bf16.mxu0 0
    %984 = vmatpush1.bf16.msra.mxu0 %v973
    %985 = vmatprep.subr.bf16.mxu0 0
    %986 = vmatpush1.bf16.msra.mxu0 %v974
    %987 = vmatprep.subr.bf16.mxu0 0
    %988 = vmatpush1.bf16.msra.mxu0 0
    %989 = vmatprep.subr.bf16.mxu0 0
    %990 = vmatpush1.bf16.msra.mxu0 0
    %991 = vmatprep.subr.bf16.mxu0 0
    %992 = vmatpush1.bf16.msra.mxu0 0
    %993 = vmatprep.subr.bf16.mxu0 0
    %994 = vmatpush1.bf16.msra.mxu0 0
    %995 = vmatprep.subr.bf16.mxu0 0
    %996 = vmatpush1.bf16.msra.mxu0 0
    %997 = vmatprep.subr.bf16.mxu0 0
    %998 = vmatpush1.bf16.msra.mxu0 0
    %999 = vmatprep.subr.bf16.mxu0 0
    %1000 = vmatpush1.bf16.msra.mxu0 0
    %1001 = vmatprep.subr.bf16.mxu0 0
    %1002 = vmatpush1.bf16.msra.mxu0 0
    %1003 = vmatprep.subr.bf16.mxu0 0
    %1004 = vmatpush1.bf16.msra.mxu0 0
    %1005 = vmatprep.subr.bf16.mxu0 0
    %1006 = vmatpush1.bf16.msra.mxu0 0
    %1007 = vmatprep.subr.bf16.mxu0 0
    %1008 = vmatpush1.bf16.msra.mxu0 0
    %1009 = vmatprep.subr.bf16.mxu0 0
    %1010 = vmatpush1.bf16.msra.mxu0 0
    %1011 = vmatprep.subr.bf16.mxu0 0
    %1012 = vmatpush1.bf16.msra.mxu0 0
    %1013 = vmatprep.subr.bf16.mxu0 0
    %1014 = vmatpush1.bf16.msra.mxu0 0
    %1015 = vmatprep.mubr.bf16.mxu0 0
    %1016 = vmatmul.mubr.bf16.gmra.mrb[0].mxu0 %v978
    %v1017 = vpop.f32.mrb[0].mxu0
    %v1018 = vadd.f32 %v951, %v1017
    %v1019 = vpop.f32.mrb[0].mxu0
    %v1020 = vpop.f32.mrb[0].mxu0
    %v1021 = vadd.f32 %v954, %v1020
    %v1022 = vpop.f32.mrb[0].mxu0
    %1023 = vmatprep.mubr.bf16.mxu0 0
    %1024 = vmatmul.mubr.bf16.gmra.mrb[0].mxu0 %v981
    %v1025 = vpop.f32.mrb[0].mxu0
    %v1026 = vadd.f32 %v959, %v1025
    %v1027 = vpop.f32.mrb[0].mxu0
    %v1028 = vpop.f32.mrb[0].mxu0
    %v1029 = vadd.f32 %v962, %v1028
    %v1030 = vpop.f32.mrb[0].mxu0
    %1031 = vdwg.mxu0
    %v1032 = vpack.c.bf16 %v857, %v856
    %v1033 = vpack.c.bf16 %v859, %v858
    %s1034 = scalar_lea.vmem [#allocation2], 112
    %v1035 = vld [vmem:[%s1034] sm:$0xf]
    %v1036 = vld [vmem:[%s1034 + $0x4] sm:$0xf]
    %v1037 = vld [vmem:[%s1034 + $0x8] sm:$0xf]
    %v1038 = vld [vmem:[%s1034 + $0xc] sm:$0xf]
    %v1043 = vunpack.c.l.b16 %v1035
    %v1044 = vunpack.c.l.b16 %v1036
    %v1045 = vunpack.c.l.b16 %v1037
    %v1046 = vunpack.c.l.b16 %v1038
    %v1047 = vpack.c.b16 %v1044, %v1043
    %v1048 = vpack.c.b16 %v1046, %v1045
    %v1052 = vsel %vm343, %v1032, 0
    %v1055 = vsel %vm343, %v1033, 0
    %1057 = vmatprep.subr.bf16.mxu0 0
    %1058 = vmatpush1.bf16.msra.mxu0 %v1047
    %1059 = vmatprep.subr.bf16.mxu0 0
    %1060 = vmatpush1.bf16.msra.mxu0 %v1048
    %1061 = vmatprep.subr.bf16.mxu0 0
    %1062 = vmatpush1.bf16.msra.mxu0 0
    %1063 = vmatprep.subr.bf16.mxu0 0
    %1064 = vmatpush1.bf16.msra.mxu0 0
    %1065 = vmatprep.subr.bf16.mxu0 0
    %1066 = vmatpush1.bf16.msra.mxu0 0
    %1067 = vmatprep.subr.bf16.mxu0 0
    %1068 = vmatpush1.bf16.msra.mxu0 0
    %1069 = vmatprep.subr.bf16.mxu0 0
    %1070 = vmatpush1.bf16.msra.mxu0 0
    %1071 = vmatprep.subr.bf16.mxu0 0
    %1072 = vmatpush1.bf16.msra.mxu0 0
    %1073 = vmatprep.subr.bf16.mxu0 0
    %1074 = vmatpush1.bf16.msra.mxu0 0
    %1075 = vmatprep.subr.bf16.mxu0 0
    %1076 = vmatpush1.bf16.msra.mxu0 0
    %1077 = vmatprep.subr.bf16.mxu0 0
    %1078 = vmatpush1.bf16.msra.mxu0 0
    %1079 = vmatprep.subr.bf16.mxu0 0
    %1080 = vmatpush1.bf16.msra.mxu0 0
    %1081 = vmatprep.subr.bf16.mxu0 0
    %1082 = vmatpush1.bf16.msra.mxu0 0
    %1083 = vmatprep.subr.bf16.mxu0 0
    %1084 = vmatpush1.bf16.msra.mxu0 0
    %1085 = vmatprep.subr.bf16.mxu0 0
    %1086 = vmatpush1.bf16.msra.mxu0 0
    %1087 = vmatprep.subr.bf16.mxu0 0
    %1088 = vmatpush1.bf16.msra.mxu0 0
    %1089 = vmatprep.mubr.bf16.mxu0 0
    %1090 = vmatmul.mubr.bf16.gmra.mrb[0].mxu0 %v1052
    %v1091 = vpop.f32.mrb[0].mxu0
    %v1092 = vadd.f32 0.0, %v1091
    %v1093 = vpop.f32.mrb[0].mxu0
    %v1094 = vpop.f32.mrb[0].mxu0
    %v1095 = vadd.f32 0.0, %v1094
    %v1096 = vpop.f32.mrb[0].mxu0
    %1097 = vmatprep.mubr.bf16.mxu0 0
    %1098 = vmatmul.mubr.bf16.gmra.mrb[0].mxu0 %v1055
    %v1099 = vpop.f32.mrb[0].mxu0
    %v1100 = vadd.f32 0.0, %v1099
    %v1101 = vpop.f32.mrb[0].mxu0
    %v1102 = vpop.f32.mrb[0].mxu0
    %v1103 = vadd.f32 0.0, %v1102
    %v1104 = vpop.f32.mrb[0].mxu0
    %1105 = vdwg.mxu0
    %v1106 = vadd.f32 %v1018, %v1092
    %v1107 = vadd.f32 %v1021, %v1095
    %v1108 = vadd.f32 %v1026, %v1100
    %v1109 = vadd.f32 %v1029, %v1103
    %v1110 = vrot.slane %v856, 1
    %v1111 = vrot.slane %v857, 1
    %v1112 = vrot.slane %v858, 1
    %v1113 = vrot.slane %v859, 1
    %v1114 = vsel %vm548, %v1112, %v1113
    %v1115 = vsel %vm548, %v1111, %v1112
    %v1116 = vsel %vm548, %v1110, %v1111
    %v1117 = vsel %vm548, %v1113, %v1110
    %v1118 = vmul.f32 %v1116, %v184
    %v1119 = vmul.f32 %v1115, %v185
    %v1120 = vmul.f32 %v1114, %v186
    %v1121 = vmul.f32 %v1117, %v187
    %v1122 = vpack.c.bf16 %v1119, %v1118
    %v1123 = vpack.c.bf16 %v1121, %v1120
    %s1124 = scalar_lea.vmem [#allocation2], 128
    %v1125 = vld [vmem:[%s1124] sm:$0xf]
    %v1126 = vld [vmem:[%s1124 + $0x4] sm:$0xf]
    %v1127 = vld [vmem:[%s1124 + $0x8] sm:$0xf]
    %v1128 = vld [vmem:[%s1124 + $0xc] sm:$0xf]
    %v1133 = vunpack.c.l.b16 %v1125
    %v1134 = vunpack.c.l.b16 %v1126
    %v1135 = vunpack.c.l.b16 %v1127
    %v1136 = vunpack.c.l.b16 %v1128
    %v1137 = vpack.c.b16 %v1134, %v1133
    %v1138 = vpack.c.b16 %v1136, %v1135
    %v1142 = vsel %vm343, %v1122, 0
    %v1145 = vsel %vm343, %v1123, 0
    %1147 = vmatprep.subr.bf16.mxu0 0
    %1148 = vmatpush1.bf16.msra.mxu0 %v1137
    %1149 = vmatprep.subr.bf16.mxu0 0
    %1150 = vmatpush1.bf16.msra.mxu0 %v1138
    %1151 = vmatprep.subr.bf16.mxu0 0
    %1152 = vmatpush1.bf16.msra.mxu0 0
    %1153 = vmatprep.subr.bf16.mxu0 0
    %1154 = vmatpush1.bf16.msra.mxu0 0
    %1155 = vmatprep.subr.bf16.mxu0 0
    %1156 = vmatpush1.bf16.msra.mxu0 0
    %1157 = vmatprep.subr.bf16.mxu0 0
    %1158 = vmatpush1.bf16.msra.mxu0 0
    %1159 = vmatprep.subr.bf16.mxu0 0
    %1160 = vmatpush1.bf16.msra.mxu0 0
    %1161 = vmatprep.subr.bf16.mxu0 0
    %1162 = vmatpush1.bf16.msra.mxu0 0
    %1163 = vmatprep.subr.bf16.mxu0 0
    %1164 = vmatpush1.bf16.msra.mxu0 0
    %1165 = vmatprep.subr.bf16.mxu0 0
    %1166 = vmatpush1.bf16.msra.mxu0 0
    %1167 = vmatprep.subr.bf16.mxu0 0
    %1168 = vmatpush1.bf16.msra.mxu0 0
    %1169 = vmatprep.subr.bf16.mxu0 0
    %1170 = vmatpush1.bf16.msra.mxu0 0
    %1171 = vmatprep.subr.bf16.mxu0 0
    %1172 = vmatpush1.bf16.msra.mxu0 0
    %1173 = vmatprep.subr.bf16.mxu0 0
    %1174 = vmatpush1.bf16.msra.mxu0 0
    %1175 = vmatprep.subr.bf16.mxu0 0
    %1176 = vmatpush1.bf16.msra.mxu0 0
    %1177 = vmatprep.subr.bf16.mxu0 0
    %1178 = vmatpush1.bf16.msra.mxu0 0
    %1179 = vmatprep.mubr.bf16.mxu0 0
    %1180 = vmatmul.mubr.bf16.gmra.mrb[0].mxu0 %v1142
    %v1181 = vpop.f32.mrb[0].mxu0
    %v1182 = vadd.f32 0.0, %v1181
    %v1183 = vpop.f32.mrb[0].mxu0
    %v1184 = vpop.f32.mrb[0].mxu0
    %v1185 = vadd.f32 0.0, %v1184
    %v1186 = vpop.f32.mrb[0].mxu0
    %1187 = vmatprep.mubr.bf16.mxu0 0
    %1188 = vmatmul.mubr.bf16.gmra.mrb[0].mxu0 %v1145
    %v1189 = vpop.f32.mrb[0].mxu0
    %v1190 = vadd.f32 0.0, %v1189
    %v1191 = vpop.f32.mrb[0].mxu0
    %v1192 = vpop.f32.mrb[0].mxu0
    %v1193 = vadd.f32 0.0, %v1192
    %v1194 = vpop.f32.mrb[0].mxu0
    %1195 = vdwg.mxu0
    %v1196 = vadd.f32 %v1106, %v1182
    %v1197 = vadd.f32 %v1107, %v1185
    %v1198 = vadd.f32 %v1108, %v1190
    %v1199 = vadd.f32 %v1109, %v1193
    %v1200 = vrot.slane %v856, 2
    %v1201 = vrot.slane %v857, 2
    %v1202 = vrot.slane %v858, 2
    %v1203 = vrot.slane %v859, 2
    %v1204 = vsel %vm639, %v1202, %v1203
    %v1205 = vsel %vm639, %v1201, %v1202
    %v1206 = vsel %vm639, %v1200, %v1201
    %v1207 = vsel %vm639, %v1203, %v1200
    %v1208 = vmul.f32 %v1206, %v208
    %v1209 = vmul.f32 %v1205, %v209
    %v1210 = vmul.f32 %v1204, %v210
    %v1211 = vmul.f32 %v1207, %v211
    %v1212 = vpack.c.bf16 %v1209, %v1208
    %v1213 = vpack.c.bf16 %v1211, %v1210
    %s1214 = scalar_lea.vmem [#allocation2], 144
    %v1215 = vld [vmem:[%s1214] sm:$0xf]
    %v1216 = vld [vmem:[%s1214 + $0x4] sm:$0xf]
    %v1217 = vld [vmem:[%s1214 + $0x8] sm:$0xf]
    %v1218 = vld [vmem:[%s1214 + $0xc] sm:$0xf]
    %v1223 = vunpack.c.l.b16 %v1215
    %v1224 = vunpack.c.l.b16 %v1216
    %v1225 = vunpack.c.l.b16 %v1217
    %v1226 = vunpack.c.l.b16 %v1218
    %v1227 = vpack.c.b16 %v1224, %v1223
    %v1228 = vpack.c.b16 %v1226, %v1225
    %v1232 = vsel %vm343, %v1212, 0
    %v1235 = vsel %vm343, %v1213, 0
    %1237 = vmatprep.subr.bf16.mxu0 0
    %1238 = vmatpush1.bf16.msra.mxu0 %v1227
    %1239 = vmatprep.subr.bf16.mxu0 0
    %1240 = vmatpush1.bf16.msra.mxu0 %v1228
    %1241 = vmatprep.subr.bf16.mxu0 0
    %1242 = vmatpush1.bf16.msra.mxu0 0
    %1243 = vmatprep.subr.bf16.mxu0 0
    %1244 = vmatpush1.bf16.msra.mxu0 0
    %1245 = vmatprep.subr.bf16.mxu0 0
    %1246 = vmatpush1.bf16.msra.mxu0 0
    %1247 = vmatprep.subr.bf16.mxu0 0
    %1248 = vmatpush1.bf16.msra.mxu0 0
    %1249 = vmatprep.subr.bf16.mxu0 0
    %1250 = vmatpush1.bf16.msra.mxu0 0
    %1251 = vmatprep.subr.bf16.mxu0 0
    %1252 = vmatpush1.bf16.msra.mxu0 0
    %1253 = vmatprep.subr.bf16.mxu0 0
    %1254 = vmatpush1.bf16.msra.mxu0 0
    %1255 = vmatprep.subr.bf16.mxu0 0
    %1256 = vmatpush1.bf16.msra.mxu0 0
    %1257 = vmatprep.subr.bf16.mxu0 0
    %1258 = vmatpush1.bf16.msra.mxu0 0
    %1259 = vmatprep.subr.bf16.mxu0 0
    %1260 = vmatpush1.bf16.msra.mxu0 0
    %1261 = vmatprep.subr.bf16.mxu0 0
    %1262 = vmatpush1.bf16.msra.mxu0 0
    %1263 = vmatprep.subr.bf16.mxu0 0
    %1264 = vmatpush1.bf16.msra.mxu0 0
    %1265 = vmatprep.subr.bf16.mxu0 0
    %1266 = vmatpush1.bf16.msra.mxu0 0
    %1267 = vmatprep.subr.bf16.mxu0 0
    %1268 = vmatpush1.bf16.msra.mxu0 0
    %1269 = vmatprep.mubr.bf16.mxu0 0
    %1270 = vmatmul.mubr.bf16.gmra.mrb[0].mxu0 %v1232
    %v1271 = vpop.f32.mrb[0].mxu0
    %v1272 = vadd.f32 0.0, %v1271
    %v1273 = vpop.f32.mrb[0].mxu0
    %v1274 = vpop.f32.mrb[0].mxu0
    %v1275 = vadd.f32 0.0, %v1274
    %v1276 = vpop.f32.mrb[0].mxu0
    %1277 = vmatprep.mubr.bf16.mxu0 0
    %1278 = vmatmul.mubr.bf16.gmra.mrb[0].mxu0 %v1235
    %v1279 = vpop.f32.mrb[0].mxu0
    %v1280 = vadd.f32 0.0, %v1279
    %v1281 = vpop.f32.mrb[0].mxu0
    %v1282 = vpop.f32.mrb[0].mxu0
    %v1283 = vadd.f32 0.0, %v1282
    %v1284 = vpop.f32.mrb[0].mxu0
    %1285 = vdwg.mxu0
    %v1286 = vadd.f32 %v1196, %v1272
    %v1287 = vadd.f32 %v1197, %v1275
    %v1288 = vadd.f32 %v1198, %v1280
    %v1289 = vadd.f32 %v1199, %v1283
    %s1290 = scalar_lea.vmem %s4, 2
    %v1291 = vld [vmem:[%s1290] sm:$0x1]
    %v1293 = vlaneseq
    %v1294 = vshrl.u32 %v1293, 7
    %v1295 = vsub.s32 0, %v1294
    %v1296 = vrot.slane %v1291, %v1295
    %v1298 = vadd.f32 %v1286, %v1296
    %v1299 = vadd.f32 %v1287, %v1296
    %v1300 = vadd.f32 %v1288, %v1296
    %v1301 = vadd.f32 %v1289, %v1296
    %v1302 = vtanh.pop %v1298
    %v1303 = vtanh.pop %v1299
    %v1304 = vtanh.pop %v1300
    %v1305 = vtanh.pop %v1301
    %v1306 = vmul.f32 %v1302, 0.5
    %v1307 = vmul.f32 %v1303, 0.5
    %v1308 = vmul.f32 %v1304, 0.5
    %v1309 = vmul.f32 %v1305, 0.5
    %v1310 = vadd.f32 %v1306, 0.5
    %v1311 = vadd.f32 %v1307, 0.5
    %v1312 = vadd.f32 %v1308, 0.5
    %v1313 = vadd.f32 %v1309, 0.5
    %1318 = vrot.lane.b32.xlu0 %v1310, 96
    %v1319 = vpop.permute.xlu0 %1318
    %1320 = vrot.lane.b32.xlu0 %v1311, 96
    %v1321 = vpop.permute.xlu0 %1320
    %1322 = vrot.lane.b32.xlu0 %v1312, 96
    %v1323 = vpop.permute.xlu0 %1322
    %1324 = vrot.lane.b32.xlu0 %v1313, 96
    %v1325 = vpop.permute.xlu0 %1324
    %v1330 = vmul.f32 %v1302, %v1319
    %v1331 = vmul.f32 %v1303, %v1321
    %v1332 = vmul.f32 %v1304, %v1323
    %v1333 = vmul.f32 %v1305, %v1325
    %v1334 = vpack.c.bf16 %v1331, %v1330
    %v1335 = vpack.c.bf16 %v1333, %v1332
    %s1336 = scalar_lea.vmem [#allocation2], 336
    %v1337 = vld [vmem:[%s1336] sm:$0xf]
    %v1338 = vld [vmem:[%s1336 + $0x4] sm:$0xf]
    %v1339 = vld [vmem:[%s1336 + $0x8] sm:$0xf]
    %v1340 = vld [vmem:[%s1336 + $0xc] sm:$0xf]
    %s1341 = scalar_lea.vmem %s4, 6
    %v1342 = vld [vmem:[%s1341] sm:$0x1]
    %v1344 = vlaneseq
    %v1345 = vshrl.u32 %v1344, 7
    %v1346 = vsub.s32 0, %v1345
    %v1347 = vrot.slane %v1342, %v1346
    %v1353 = vunpack.c.l.b16 %v1337
    %v1354 = vunpack.c.l.b16 %v1338
    %v1355 = vunpack.c.l.b16 %v1339
    %v1356 = vunpack.c.l.b16 %v1340
    %v1357 = vpack.c.b16 %v1354, %v1353
    %v1358 = vpack.c.b16 %v1356, %v1355
    %v1362 = vsel %vm343, %v1334, 0
    %v1365 = vsel %vm343, %v1335, 0
    %1367 = vmatprep.subr.bf16.mxu0 0
    %1368 = vmatpush1.bf16.msra.mxu0 %v1357
    %1369 = vmatprep.subr.bf16.mxu0 0
    %1370 = vmatpush1.bf16.msra.mxu0 %v1358
    %1371 = vmatprep.subr.bf16.mxu0 0
    %1372 = vmatpush1.bf16.msra.mxu0 0
    %1373 = vmatprep.subr.bf16.mxu0 0
    %1374 = vmatpush1.bf16.msra.mxu0 0
    %1375 = vmatprep.subr.bf16.mxu0 0
    %1376 = vmatpush1.bf16.msra.mxu0 0
    %1377 = vmatprep.subr.bf16.mxu0 0
    %1378 = vmatpush1.bf16.msra.mxu0 0
    %1379 = vmatprep.subr.bf16.mxu0 0
    %1380 = vmatpush1.bf16.msra.mxu0 0
    %1381 = vmatprep.subr.bf16.mxu0 0
    %1382 = vmatpush1.bf16.msra.mxu0 0
    %1383 = vmatprep.subr.bf16.mxu0 0
    %1384 = vmatpush1.bf16.msra.mxu0 0
    %1385 = vmatprep.subr.bf16.mxu0 0
    %1386 = vmatpush1.bf16.msra.mxu0 0
    %1387 = vmatprep.subr.bf16.mxu0 0
    %1388 = vmatpush1.bf16.msra.mxu0 0
    %1389 = vmatprep.subr.bf16.mxu0 0
    %1390 = vmatpush1.bf16.msra.mxu0 0
    %1391 = vmatprep.subr.bf16.mxu0 0
    %1392 = vmatpush1.bf16.msra.mxu0 0
    %1393 = vmatprep.subr.bf16.mxu0 0
    %1394 = vmatpush1.bf16.msra.mxu0 0
    %1395 = vmatprep.subr.bf16.mxu0 0
    %1396 = vmatpush1.bf16.msra.mxu0 0
    %1397 = vmatprep.subr.bf16.mxu0 0
    %1398 = vmatpush1.bf16.msra.mxu0 0
    %1399 = vmatprep.mubr.bf16.mxu0 0
    %1400 = vmatmul.mubr.bf16.gmra.mrb[0].mxu0 %v1362
    %v1401 = vpop.f32.mrb[0].mxu0
    %v1402 = vadd.f32 %v1347, %v1401
    %v1403 = vpop.f32.mrb[0].mxu0
    %v1404 = vpop.f32.mrb[0].mxu0
    %v1405 = vadd.f32 %v1347, %v1404
    %v1406 = vpop.f32.mrb[0].mxu0
    %1407 = vmatprep.mubr.bf16.mxu0 0
    %1408 = vmatmul.mubr.bf16.gmra.mrb[0].mxu0 %v1365
    %v1409 = vpop.f32.mrb[0].mxu0
    %v1410 = vadd.f32 %v1347, %v1409
    %v1411 = vpop.f32.mrb[0].mxu0
    %v1412 = vpop.f32.mrb[0].mxu0
    %v1413 = vadd.f32 %v1347, %v1412
    %v1414 = vpop.f32.mrb[0].mxu0
    %1415 = vdwg.mxu0
    %v1416 = vadd.f32 %v856, %v1402
    %v1417 = vadd.f32 %v857, %v1405
    %v1418 = vadd.f32 %v858, %v1410
    %v1419 = vadd.f32 %v859, %v1413
    %v1420 = vmul.f32 %v1416, %v46
    %v1421 = vmul.f32 %v1417, %v51
    %v1422 = vmul.f32 %v1418, %v56
    %v1423 = vmul.f32 %v1419, %v61
    %v1424 = vadd.f32 %v838, %v1402
    %v1425 = vadd.f32 %v841, %v1405
    %v1426 = vadd.f32 %v846, %v1410
    %v1427 = vadd.f32 %v849, %v1413
    %v1428 = vrot.slane %v1420, 6
    %v1429 = vrot.slane %v1421, 6
    %v1430 = vrot.slane %v1422, 6
    %v1431 = vrot.slane %v1423, 6
    %v1432 = vsel %vm296, %v1430, %v1431
    %v1433 = vsel %vm296, %v1429, %v1430
    %v1434 = vsel %vm296, %v1428, %v1429
    %v1435 = vsel %vm296, %v1431, %v1428
    %v1436 = vmul.f32 %v1435, %v136
    %v1437 = vmul.f32 %v1434, %v137
    %v1438 = vmul.f32 %v1433, %v138
    %v1439 = vmul.f32 %v1432, %v139
    %v1440 = vpack.c.bf16 %v1437, %v1436
    %v1441 = vpack.c.bf16 %v1439, %v1438
    %s1442 = scalar_lea.vmem [#allocation2], 160
    %v1443 = vld [vmem:[%s1442] sm:$0xf]
    %v1444 = vld [vmem:[%s1442 + $0x4] sm:$0xf]
    %v1445 = vld [vmem:[%s1442 + $0x8] sm:$0xf]
    %v1446 = vld [vmem:[%s1442 + $0xc] sm:$0xf]
    %v1447 = vrot.slane %v1420, 7
    %v1448 = vrot.slane %v1421, 7
    %v1449 = vrot.slane %v1422, 7
    %v1450 = vrot.slane %v1423, 7
    %v1451 = vsel %vm315, %v1449, %v1450
    %v1452 = vsel %vm315, %v1448, %v1449
    %v1453 = vsel %vm315, %v1447, %v1448
    %v1454 = vsel %vm315, %v1450, %v1447
    %v1455 = vmul.f32 %v1454, %v160
    %v1456 = vmul.f32 %v1453, %v161
    %v1457 = vmul.f32 %v1452, %v162
    %v1458 = vmul.f32 %v1451, %v163
    %v1459 = vpack.c.bf16 %v1456, %v1455
    %v1460 = vpack.c.bf16 %v1458, %v1457
    %s1461 = scalar_lea.vmem [#allocation2], 176
    %v1462 = vld [vmem:[%s1461] sm:$0xf]
    %v1463 = vld [vmem:[%s1461 + $0x4] sm:$0xf]
    %v1464 = vld [vmem:[%s1461 + $0x8] sm:$0xf]
    %v1465 = vld [vmem:[%s1461 + $0xc] sm:$0xf]
    %v1470 = vunpack.c.l.b16 %v1462
    %v1471 = vunpack.c.l.b16 %v1463
    %v1472 = vunpack.c.l.b16 %v1464
    %v1473 = vunpack.c.l.b16 %v1465
    %v1474 = vpack.c.b16 %v1471, %v1470
    %v1475 = vpack.c.b16 %v1473, %v1472
    %v1479 = vsel %vm343, %v1459, 0
    %v1482 = vsel %vm343, %v1460, 0
    %1484 = vmatprep.subr.bf16.mxu0 0
    %1485 = vmatpush1.bf16.msra.mxu0 %v1474
    %1486 = vmatprep.subr.bf16.mxu0 0
    %1487 = vmatpush1.bf16.msra.mxu0 %v1475
    %1488 = vmatprep.subr.bf16.mxu0 0
    %1489 = vmatpush1.bf16.msra.mxu0 0
    %1490 = vmatprep.subr.bf16.mxu0 0
    %1491 = vmatpush1.bf16.msra.mxu0 0
    %1492 = vmatprep.subr.bf16.mxu0 0
    %1493 = vmatpush1.bf16.msra.mxu0 0
    %1494 = vmatprep.subr.bf16.mxu0 0
    %1495 = vmatpush1.bf16.msra.mxu0 0
    %1496 = vmatprep.subr.bf16.mxu0 0
    %1497 = vmatpush1.bf16.msra.mxu0 0
    %1498 = vmatprep.subr.bf16.mxu0 0
    %1499 = vmatpush1.bf16.msra.mxu0 0
    %1500 = vmatprep.subr.bf16.mxu0 0
    %1501 = vmatpush1.bf16.msra.mxu0 0
    %1502 = vmatprep.subr.bf16.mxu0 0
    %1503 = vmatpush1.bf16.msra.mxu0 0
    %1504 = vmatprep.subr.bf16.mxu0 0
    %1505 = vmatpush1.bf16.msra.mxu0 0
    %1506 = vmatprep.subr.bf16.mxu0 0
    %1507 = vmatpush1.bf16.msra.mxu0 0
    %1508 = vmatprep.subr.bf16.mxu0 0
    %1509 = vmatpush1.bf16.msra.mxu0 0
    %1510 = vmatprep.subr.bf16.mxu0 0
    %1511 = vmatpush1.bf16.msra.mxu0 0
    %1512 = vmatprep.subr.bf16.mxu0 0
    %1513 = vmatpush1.bf16.msra.mxu0 0
    %1514 = vmatprep.subr.bf16.mxu0 0
    %1515 = vmatpush1.bf16.msra.mxu0 0
    %1516 = vmatprep.mubr.bf16.mxu0 0
    %1517 = vmatmul.mubr.bf16.gmra.mrb[0].mxu0 %v1479
    %v1518 = vpop.f32.mrb[0].mxu0
    %v1519 = vadd.f32 0.0, %v1518
    %v1520 = vpop.f32.mrb[0].mxu0
    %v1521 = vpop.f32.mrb[0].mxu0
    %v1522 = vadd.f32 0.0, %v1521
    %v1523 = vpop.f32.mrb[0].mxu0
    %1524 = vmatprep.mubr.bf16.mxu0 0
    %1525 = vmatmul.mubr.bf16.gmra.mrb[0].mxu0 %v1482
    %v1526 = vpop.f32.mrb[0].mxu0
    %v1527 = vadd.f32 0.0, %v1526
    %v1528 = vpop.f32.mrb[0].mxu0
    %v1529 = vpop.f32.mrb[0].mxu0
    %v1530 = vadd.f32 0.0, %v1529
    %v1531 = vpop.f32.mrb[0].mxu0
    %1532 = vdwg.mxu0
    %v1537 = vunpack.c.l.b16 %v1443
    %v1538 = vunpack.c.l.b16 %v1444
    %v1539 = vunpack.c.l.b16 %v1445
    %v1540 = vunpack.c.l.b16 %v1446
    %v1541 = vpack.c.b16 %v1538, %v1537
    %v1542 = vpack.c.b16 %v1540, %v1539
    %v1546 = vsel %vm343, %v1440, 0
    %v1549 = vsel %vm343, %v1441, 0
    %1551 = vmatprep.subr.bf16.mxu0 0
    %1552 = vmatpush1.bf16.msra.mxu0 %v1541
    %1553 = vmatprep.subr.bf16.mxu0 0
    %1554 = vmatpush1.bf16.msra.mxu0 %v1542
    %1555 = vmatprep.subr.bf16.mxu0 0
    %1556 = vmatpush1.bf16.msra.mxu0 0
    %1557 = vmatprep.subr.bf16.mxu0 0
    %1558 = vmatpush1.bf16.msra.mxu0 0
    %1559 = vmatprep.subr.bf16.mxu0 0
    %1560 = vmatpush1.bf16.msra.mxu0 0
    %1561 = vmatprep.subr.bf16.mxu0 0
    %1562 = vmatpush1.bf16.msra.mxu0 0
    %1563 = vmatprep.subr.bf16.mxu0 0
    %1564 = vmatpush1.bf16.msra.mxu0 0
    %1565 = vmatprep.subr.bf16.mxu0 0
    %1566 = vmatpush1.bf16.msra.mxu0 0
    %1567 = vmatprep.subr.bf16.mxu0 0
    %1568 = vmatpush1.bf16.msra.mxu0 0
    %1569 = vmatprep.subr.bf16.mxu0 0
    %1570 = vmatpush1.bf16.msra.mxu0 0
    %1571 = vmatprep.subr.bf16.mxu0 0
    %1572 = vmatpush1.bf16.msra.mxu0 0
    %1573 = vmatprep.subr.bf16.mxu0 0
    %1574 = vmatpush1.bf16.msra.mxu0 0
    %1575 = vmatprep.subr.bf16.mxu0 0
    %1576 = vmatpush1.bf16.msra.mxu0 0
    %1577 = vmatprep.subr.bf16.mxu0 0
    %1578 = vmatpush1.bf16.msra.mxu0 0
    %1579 = vmatprep.subr.bf16.mxu0 0
    %1580 = vmatpush1.bf16.msra.mxu0 0
    %1581 = vmatprep.subr.bf16.mxu0 0
    %1582 = vmatpush1.bf16.msra.mxu0 0
    %1583 = vmatprep.mubr.bf16.mxu0 0
    %1584 = vmatmul.mubr.bf16.gmra.mrb[0].mxu0 %v1546
    %v1585 = vpop.f32.mrb[0].mxu0
    %v1586 = vadd.f32 %v1519, %v1585
    %v1587 = vpop.f32.mrb[0].mxu0
    %v1588 = vpop.f32.mrb[0].mxu0
    %v1589 = vadd.f32 %v1522, %v1588
    %v1590 = vpop.f32.mrb[0].mxu0
    %1591 = vmatprep.mubr.bf16.mxu0 0
    %1592 = vmatmul.mubr.bf16.gmra.mrb[0].mxu0 %v1549
    %v1593 = vpop.f32.mrb[0].mxu0
    %v1594 = vadd.f32 %v1527, %v1593
    %v1595 = vpop.f32.mrb[0].mxu0
    %v1596 = vpop.f32.mrb[0].mxu0
    %v1597 = vadd.f32 %v1530, %v1596
    %v1598 = vpop.f32.mrb[0].mxu0
    %1599 = vdwg.mxu0
    %v1600 = vpack.c.bf16 %v1421, %v1420
    %v1601 = vpack.c.bf16 %v1423, %v1422
    %s1602 = scalar_lea.vmem [#allocation2], 192
    %v1603 = vld [vmem:[%s1602] sm:$0xf]
    %v1604 = vld [vmem:[%s1602 + $0x4] sm:$0xf]
    %v1605 = vld [vmem:[%s1602 + $0x8] sm:$0xf]
    %v1606 = vld [vmem:[%s1602 + $0xc] sm:$0xf]
    %v1611 = vunpack.c.l.b16 %v1603
    %v1612 = vunpack.c.l.b16 %v1604
    %v1613 = vunpack.c.l.b16 %v1605
    %v1614 = vunpack.c.l.b16 %v1606
    %v1615 = vpack.c.b16 %v1612, %v1611
    %v1616 = vpack.c.b16 %v1614, %v1613
    %v1620 = vsel %vm343, %v1600, 0
    %v1623 = vsel %vm343, %v1601, 0
    %1625 = vmatprep.subr.bf16.mxu0 0
    %1626 = vmatpush1.bf16.msra.mxu0 %v1615
    %1627 = vmatprep.subr.bf16.mxu0 0
    %1628 = vmatpush1.bf16.msra.mxu0 %v1616
    %1629 = vmatprep.subr.bf16.mxu0 0
    %1630 = vmatpush1.bf16.msra.mxu0 0
    %1631 = vmatprep.subr.bf16.mxu0 0
    %1632 = vmatpush1.bf16.msra.mxu0 0
    %1633 = vmatprep.subr.bf16.mxu0 0
    %1634 = vmatpush1.bf16.msra.mxu0 0
    %1635 = vmatprep.subr.bf16.mxu0 0
    %1636 = vmatpush1.bf16.msra.mxu0 0
    %1637 = vmatprep.subr.bf16.mxu0 0
    %1638 = vmatpush1.bf16.msra.mxu0 0
    %1639 = vmatprep.subr.bf16.mxu0 0
    %1640 = vmatpush1.bf16.msra.mxu0 0
    %1641 = vmatprep.subr.bf16.mxu0 0
    %1642 = vmatpush1.bf16.msra.mxu0 0
    %1643 = vmatprep.subr.bf16.mxu0 0
    %1644 = vmatpush1.bf16.msra.mxu0 0
    %1645 = vmatprep.subr.bf16.mxu0 0
    %1646 = vmatpush1.bf16.msra.mxu0 0
    %1647 = vmatprep.subr.bf16.mxu0 0
    %1648 = vmatpush1.bf16.msra.mxu0 0
    %1649 = vmatprep.subr.bf16.mxu0 0
    %1650 = vmatpush1.bf16.msra.mxu0 0
    %1651 = vmatprep.subr.bf16.mxu0 0
    %1652 = vmatpush1.bf16.msra.mxu0 0
    %1653 = vmatprep.subr.bf16.mxu0 0
    %1654 = vmatpush1.bf16.msra.mxu0 0
    %1655 = vmatprep.subr.bf16.mxu0 0
    %1656 = vmatpush1.bf16.msra.mxu0 0
    %1657 = vmatprep.mubr.bf16.mxu0 0
    %1658 = vmatmul.mubr.bf16.gmra.mrb[0].mxu0 %v1620
    %v1659 = vpop.f32.mrb[0].mxu0
    %v1660 = vadd.f32 0.0, %v1659
    %v1661 = vpop.f32.mrb[0].mxu0
    %v1662 = vpop.f32.mrb[0].mxu0
    %v1663 = vadd.f32 0.0, %v1662
    %v1664 = vpop.f32.mrb[0].mxu0
    %1665 = vmatprep.mubr.bf16.mxu0 0
    %1666 = vmatmul.mubr.bf16.gmra.mrb[0].mxu0 %v1623
    %v1667 = vpop.f32.mrb[0].mxu0
    %v1668 = vadd.f32 0.0, %v1667
    %v1669 = vpop.f32.mrb[0].mxu0
    %v1670 = vpop.f32.mrb[0].mxu0
    %v1671 = vadd.f32 0.0, %v1670
    %v1672 = vpop.f32.mrb[0].mxu0
    %1673 = vdwg.mxu0
    %v1674 = vadd.f32 %v1586, %v1660
    %v1675 = vadd.f32 %v1589, %v1663
    %v1676 = vadd.f32 %v1594, %v1668
    %v1677 = vadd.f32 %v1597, %v1671
    %v1678 = vrot.slane %v1420, 1
    %v1679 = vrot.slane %v1421, 1
    %v1680 = vrot.slane %v1422, 1
    %v1681 = vrot.slane %v1423, 1
    %v1682 = vsel %vm548, %v1680, %v1681
    %v1683 = vsel %vm548, %v1679, %v1680
    %v1684 = vsel %vm548, %v1678, %v1679
    %v1685 = vsel %vm548, %v1681, %v1678
    %v1686 = vmul.f32 %v1684, %v184
    %v1687 = vmul.f32 %v1683, %v185
    %v1688 = vmul.f32 %v1682, %v186
    %v1689 = vmul.f32 %v1685, %v187
    %v1690 = vpack.c.bf16 %v1687, %v1686
    %v1691 = vpack.c.bf16 %v1689, %v1688
    %s1692 = scalar_lea.vmem [#allocation2], 208
    %v1693 = vld [vmem:[%s1692] sm:$0xf]
    %v1694 = vld [vmem:[%s1692 + $0x4] sm:$0xf]
    %v1695 = vld [vmem:[%s1692 + $0x8] sm:$0xf]
    %v1696 = vld [vmem:[%s1692 + $0xc] sm:$0xf]
    %v1701 = vunpack.c.l.b16 %v1693
    %v1702 = vunpack.c.l.b16 %v1694
    %v1703 = vunpack.c.l.b16 %v1695
    %v1704 = vunpack.c.l.b16 %v1696
    %v1705 = vpack.c.b16 %v1702, %v1701
    %v1706 = vpack.c.b16 %v1704, %v1703
    %v1710 = vsel %vm343, %v1690, 0
    %v1713 = vsel %vm343, %v1691, 0
    %1715 = vmatprep.subr.bf16.mxu0 0
    %1716 = vmatpush1.bf16.msra.mxu0 %v1705
    %1717 = vmatprep.subr.bf16.mxu0 0
    %1718 = vmatpush1.bf16.msra.mxu0 %v1706
    %1719 = vmatprep.subr.bf16.mxu0 0
    %1720 = vmatpush1.bf16.msra.mxu0 0
    %1721 = vmatprep.subr.bf16.mxu0 0
    %1722 = vmatpush1.bf16.msra.mxu0 0
    %1723 = vmatprep.subr.bf16.mxu0 0
    %1724 = vmatpush1.bf16.msra.mxu0 0
    %1725 = vmatprep.subr.bf16.mxu0 0
    %1726 = vmatpush1.bf16.msra.mxu0 0
    %1727 = vmatprep.subr.bf16.mxu0 0
    %1728 = vmatpush1.bf16.msra.mxu0 0
    %1729 = vmatprep.subr.bf16.mxu0 0
    %1730 = vmatpush1.bf16.msra.mxu0 0
    %1731 = vmatprep.subr.bf16.mxu0 0
    %1732 = vmatpush1.bf16.msra.mxu0 0
    %1733 = vmatprep.subr.bf16.mxu0 0
    %1734 = vmatpush1.bf16.msra.mxu0 0
    %1735 = vmatprep.subr.bf16.mxu0 0
    %1736 = vmatpush1.bf16.msra.mxu0 0
    %1737 = vmatprep.subr.bf16.mxu0 0
    %1738 = vmatpush1.bf16.msra.mxu0 0
    %1739 = vmatprep.subr.bf16.mxu0 0
    %1740 = vmatpush1.bf16.msra.mxu0 0
    %1741 = vmatprep.subr.bf16.mxu0 0
    %1742 = vmatpush1.bf16.msra.mxu0 0
    %1743 = vmatprep.subr.bf16.mxu0 0
    %1744 = vmatpush1.bf16.msra.mxu0 0
    %1745 = vmatprep.subr.bf16.mxu0 0
    %1746 = vmatpush1.bf16.msra.mxu0 0
    %1747 = vmatprep.mubr.bf16.mxu0 0
    %1748 = vmatmul.mubr.bf16.gmra.mrb[0].mxu0 %v1710
    %v1749 = vpop.f32.mrb[0].mxu0
    %v1750 = vadd.f32 0.0, %v1749
    %v1751 = vpop.f32.mrb[0].mxu0
    %v1752 = vpop.f32.mrb[0].mxu0
    %v1753 = vadd.f32 0.0, %v1752
    %v1754 = vpop.f32.mrb[0].mxu0
    %1755 = vmatprep.mubr.bf16.mxu0 0
    %1756 = vmatmul.mubr.bf16.gmra.mrb[0].mxu0 %v1713
    %v1757 = vpop.f32.mrb[0].mxu0
    %v1758 = vadd.f32 0.0, %v1757
    %v1759 = vpop.f32.mrb[0].mxu0
    %v1760 = vpop.f32.mrb[0].mxu0
    %v1761 = vadd.f32 0.0, %v1760
    %v1762 = vpop.f32.mrb[0].mxu0
    %1763 = vdwg.mxu0
    %v1764 = vadd.f32 %v1674, %v1750
    %v1765 = vadd.f32 %v1675, %v1753
    %v1766 = vadd.f32 %v1676, %v1758
    %v1767 = vadd.f32 %v1677, %v1761
    %v1768 = vrot.slane %v1420, 2
    %v1769 = vrot.slane %v1421, 2
    %v1770 = vrot.slane %v1422, 2
    %v1771 = vrot.slane %v1423, 2
    %v1772 = vsel %vm639, %v1770, %v1771
    %v1773 = vsel %vm639, %v1769, %v1770
    %v1774 = vsel %vm639, %v1768, %v1769
    %v1775 = vsel %vm639, %v1771, %v1768
    %v1776 = vmul.f32 %v1774, %v208
    %v1777 = vmul.f32 %v1773, %v209
    %v1778 = vmul.f32 %v1772, %v210
    %v1779 = vmul.f32 %v1775, %v211
    %v1780 = vpack.c.bf16 %v1777, %v1776
    %v1781 = vpack.c.bf16 %v1779, %v1778
    %s1782 = scalar_lea.vmem [#allocation2], 224
    %v1783 = vld [vmem:[%s1782] sm:$0xf]
    %v1784 = vld [vmem:[%s1782 + $0x4] sm:$0xf]
    %v1785 = vld [vmem:[%s1782 + $0x8] sm:$0xf]
    %v1786 = vld [vmem:[%s1782 + $0xc] sm:$0xf]
    %v1791 = vunpack.c.l.b16 %v1783
    %v1792 = vunpack.c.l.b16 %v1784
    %v1793 = vunpack.c.l.b16 %v1785
    %v1794 = vunpack.c.l.b16 %v1786
    %v1795 = vpack.c.b16 %v1792, %v1791
    %v1796 = vpack.c.b16 %v1794, %v1793
    %v1800 = vsel %vm343, %v1780, 0
    %v1803 = vsel %vm343, %v1781, 0
    %1805 = vmatprep.subr.bf16.mxu0 0
    %1806 = vmatpush1.bf16.msra.mxu0 %v1795
    %1807 = vmatprep.subr.bf16.mxu0 0
    %1808 = vmatpush1.bf16.msra.mxu0 %v1796
    %1809 = vmatprep.subr.bf16.mxu0 0
    %1810 = vmatpush1.bf16.msra.mxu0 0
    %1811 = vmatprep.subr.bf16.mxu0 0
    %1812 = vmatpush1.bf16.msra.mxu0 0
    %1813 = vmatprep.subr.bf16.mxu0 0
    %1814 = vmatpush1.bf16.msra.mxu0 0
    %1815 = vmatprep.subr.bf16.mxu0 0
    %1816 = vmatpush1.bf16.msra.mxu0 0
    %1817 = vmatprep.subr.bf16.mxu0 0
    %1818 = vmatpush1.bf16.msra.mxu0 0
    %1819 = vmatprep.subr.bf16.mxu0 0
    %1820 = vmatpush1.bf16.msra.mxu0 0
    %1821 = vmatprep.subr.bf16.mxu0 0
    %1822 = vmatpush1.bf16.msra.mxu0 0
    %1823 = vmatprep.subr.bf16.mxu0 0
    %1824 = vmatpush1.bf16.msra.mxu0 0
    %1825 = vmatprep.subr.bf16.mxu0 0
    %1826 = vmatpush1.bf16.msra.mxu0 0
    %1827 = vmatprep.subr.bf16.mxu0 0
    %1828 = vmatpush1.bf16.msra.mxu0 0
    %1829 = vmatprep.subr.bf16.mxu0 0
    %1830 = vmatpush1.bf16.msra.mxu0 0
    %1831 = vmatprep.subr.bf16.mxu0 0
    %1832 = vmatpush1.bf16.msra.mxu0 0
    %1833 = vmatprep.subr.bf16.mxu0 0
    %1834 = vmatpush1.bf16.msra.mxu0 0
    %1835 = vmatprep.subr.bf16.mxu0 0
    %1836 = vmatpush1.bf16.msra.mxu0 0
    %1837 = vmatprep.mubr.bf16.mxu0 0
    %1838 = vmatmul.mubr.bf16.gmra.mrb[0].mxu0 %v1800
    %v1839 = vpop.f32.mrb[0].mxu0
    %v1840 = vadd.f32 0.0, %v1839
    %v1841 = vpop.f32.mrb[0].mxu0
    %v1842 = vpop.f32.mrb[0].mxu0
    %v1843 = vadd.f32 0.0, %v1842
    %v1844 = vpop.f32.mrb[0].mxu0
    %1845 = vmatprep.mubr.bf16.mxu0 0
    %1846 = vmatmul.mubr.bf16.gmra.mrb[0].mxu0 %v1803
    %v1847 = vpop.f32.mrb[0].mxu0
    %v1848 = vadd.f32 0.0, %v1847
    %v1849 = vpop.f32.mrb[0].mxu0
    %v1850 = vpop.f32.mrb[0].mxu0
    %v1851 = vadd.f32 0.0, %v1850
    %v1852 = vpop.f32.mrb[0].mxu0
    %1853 = vdwg.mxu0
    %v1854 = vadd.f32 %v1764, %v1840
    %v1855 = vadd.f32 %v1765, %v1843
    %v1856 = vadd.f32 %v1766, %v1848
    %v1857 = vadd.f32 %v1767, %v1851
    %s1858 = scalar_lea.vmem %s4, 3
    %v1859 = vld [vmem:[%s1858] sm:$0x1]
    %v1861 = vlaneseq
    %v1862 = vshrl.u32 %v1861, 7
    %v1863 = vsub.s32 0, %v1862
    %v1864 = vrot.slane %v1859, %v1863
    %v1866 = vadd.f32 %v1854, %v1864
    %v1867 = vadd.f32 %v1855, %v1864
    %v1868 = vadd.f32 %v1856, %v1864
    %v1869 = vadd.f32 %v1857, %v1864
    %v1870 = vtanh.pop %v1866
    %v1871 = vtanh.pop %v1867
    %v1872 = vtanh.pop %v1868
    %v1873 = vtanh.pop %v1869
    %v1874 = vmul.f32 %v1870, 0.5
    %v1875 = vmul.f32 %v1871, 0.5
    %v1876 = vmul.f32 %v1872, 0.5
    %v1877 = vmul.f32 %v1873, 0.5
    %v1878 = vadd.f32 %v1874, 0.5
    %v1879 = vadd.f32 %v1875, 0.5
    %v1880 = vadd.f32 %v1876, 0.5
    %v1881 = vadd.f32 %v1877, 0.5
    %1886 = vrot.lane.b32.xlu0 %v1878, 96
    %v1887 = vpop.permute.xlu0 %1886
    %1888 = vrot.lane.b32.xlu0 %v1879, 96
    %v1889 = vpop.permute.xlu0 %1888
    %1890 = vrot.lane.b32.xlu0 %v1880, 96
    %v1891 = vpop.permute.xlu0 %1890
    %1892 = vrot.lane.b32.xlu0 %v1881, 96
    %v1893 = vpop.permute.xlu0 %1892
    %v1898 = vmul.f32 %v1870, %v1887
    %v1899 = vmul.f32 %v1871, %v1889
    %v1900 = vmul.f32 %v1872, %v1891
    %v1901 = vmul.f32 %v1873, %v1893
    %v1902 = vpack.c.bf16 %v1899, %v1898
    %v1903 = vpack.c.bf16 %v1901, %v1900
    %s1904 = scalar_lea.vmem [#allocation2], 352
    %v1905 = vld [vmem:[%s1904] sm:$0xf]
    %v1906 = vld [vmem:[%s1904 + $0x4] sm:$0xf]
    %v1907 = vld [vmem:[%s1904 + $0x8] sm:$0xf]
    %v1908 = vld [vmem:[%s1904 + $0xc] sm:$0xf]
    %s1909 = scalar_lea.vmem %s4, 7
    %v1910 = vld [vmem:[%s1909] sm:$0x1]
    %v1912 = vlaneseq
    %v1913 = vshrl.u32 %v1912, 7
    %v1914 = vsub.s32 0, %v1913
    %v1915 = vrot.slane %v1910, %v1914
    %v1921 = vunpack.c.l.b16 %v1905
    %v1922 = vunpack.c.l.b16 %v1906
    %v1923 = vunpack.c.l.b16 %v1907
    %v1924 = vunpack.c.l.b16 %v1908
    %v1925 = vpack.c.b16 %v1922, %v1921
    %v1926 = vpack.c.b16 %v1924, %v1923
    %v1930 = vsel %vm343, %v1902, 0
    %v1933 = vsel %vm343, %v1903, 0
    %1935 = vmatprep.subr.bf16.mxu0 0
    %1936 = vmatpush1.bf16.msra.mxu0 %v1925
    %1937 = vmatprep.subr.bf16.mxu0 0
    %1938 = vmatpush1.bf16.msra.mxu0 %v1926
    %1939 = vmatprep.subr.bf16.mxu0 0
    %1940 = vmatpush1.bf16.msra.mxu0 0
    %1941 = vmatprep.subr.bf16.mxu0 0
    %1942 = vmatpush1.bf16.msra.mxu0 0
    %1943 = vmatprep.subr.bf16.mxu0 0
    %1944 = vmatpush1.bf16.msra.mxu0 0
    %1945 = vmatprep.subr.bf16.mxu0 0
    %1946 = vmatpush1.bf16.msra.mxu0 0
    %1947 = vmatprep.subr.bf16.mxu0 0
    %1948 = vmatpush1.bf16.msra.mxu0 0
    %1949 = vmatprep.subr.bf16.mxu0 0
    %1950 = vmatpush1.bf16.msra.mxu0 0
    %1951 = vmatprep.subr.bf16.mxu0 0
    %1952 = vmatpush1.bf16.msra.mxu0 0
    %1953 = vmatprep.subr.bf16.mxu0 0
    %1954 = vmatpush1.bf16.msra.mxu0 0
    %1955 = vmatprep.subr.bf16.mxu0 0
    %1956 = vmatpush1.bf16.msra.mxu0 0
    %1957 = vmatprep.subr.bf16.mxu0 0
    %1958 = vmatpush1.bf16.msra.mxu0 0
    %1959 = vmatprep.subr.bf16.mxu0 0
    %1960 = vmatpush1.bf16.msra.mxu0 0
    %1961 = vmatprep.subr.bf16.mxu0 0
    %1962 = vmatpush1.bf16.msra.mxu0 0
    %1963 = vmatprep.subr.bf16.mxu0 0
    %1964 = vmatpush1.bf16.msra.mxu0 0
    %1965 = vmatprep.subr.bf16.mxu0 0
    %1966 = vmatpush1.bf16.msra.mxu0 0
    %1967 = vmatprep.mubr.bf16.mxu0 0
    %1968 = vmatmul.mubr.bf16.gmra.mrb[0].mxu0 %v1930
    %v1969 = vpop.f32.mrb[0].mxu0
    %v1970 = vadd.f32 %v1915, %v1969
    %v1971 = vpop.f32.mrb[0].mxu0
    %v1972 = vpop.f32.mrb[0].mxu0
    %v1973 = vadd.f32 %v1915, %v1972
    %v1974 = vpop.f32.mrb[0].mxu0
    %1975 = vmatprep.mubr.bf16.mxu0 0
    %1976 = vmatmul.mubr.bf16.gmra.mrb[0].mxu0 %v1933
    %v1977 = vpop.f32.mrb[0].mxu0
    %v1978 = vadd.f32 %v1915, %v1977
    %v1979 = vpop.f32.mrb[0].mxu0
    %v1980 = vpop.f32.mrb[0].mxu0
    %v1981 = vadd.f32 %v1915, %v1980
    %v1982 = vpop.f32.mrb[0].mxu0
    %1983 = vdwg.mxu0
    %v1984 = vadd.f32 %v1420, %v1970
    %v1985 = vadd.f32 %v1421, %v1973
    %v1986 = vadd.f32 %v1422, %v1978
    %v1987 = vadd.f32 %v1423, %v1981
    %v1988 = vmul.f32 %v1984, %v46
    %v1989 = vmul.f32 %v1985, %v51
    %v1990 = vmul.f32 %v1986, %v56
    %v1991 = vmul.f32 %v1987, %v61
    %v1992 = vadd.f32 %v1424, %v1970
    %v1993 = vadd.f32 %v1425, %v1973
    %v1994 = vadd.f32 %v1426, %v1978
    %v1995 = vadd.f32 %v1427, %v1981
    %v1996 = vrot.slane %v1988, 6
    %v1997 = vrot.slane %v1989, 6
    %v1998 = vrot.slane %v1990, 6
    %v1999 = vrot.slane %v1991, 6
    %v2000 = vsel %vm296, %v1998, %v1999
    %v2001 = vsel %vm296, %v1997, %v1998
    %v2002 = vsel %vm296, %v1996, %v1997
    %v2003 = vsel %vm296, %v1999, %v1996
    %v2004 = vmul.f32 %v2003, %v136
    %v2005 = vmul.f32 %v2002, %v137
    %v2006 = vmul.f32 %v2001, %v138
    %v2007 = vmul.f32 %v2000, %v139
    %v2008 = vpack.c.bf16 %v2005, %v2004
    %v2009 = vpack.c.bf16 %v2007, %v2006
    %s2010 = scalar_lea.vmem [#allocation2], 240
    %v2011 = vld [vmem:[%s2010] sm:$0xf]
    %v2012 = vld [vmem:[%s2010 + $0x4] sm:$0xf]
    %v2013 = vld [vmem:[%s2010 + $0x8] sm:$0xf]
    %v2014 = vld [vmem:[%s2010 + $0xc] sm:$0xf]
    %v2015 = vrot.slane %v1988, 7
    %v2016 = vrot.slane %v1989, 7
    %v2017 = vrot.slane %v1990, 7
    %v2018 = vrot.slane %v1991, 7
    %v2019 = vsel %vm315, %v2017, %v2018
    %v2020 = vsel %vm315, %v2016, %v2017
    %v2021 = vsel %vm315, %v2015, %v2016
    %v2022 = vsel %vm315, %v2018, %v2015
    %v2023 = vmul.f32 %v2022, %v160
    %v2024 = vmul.f32 %v2021, %v161
    %v2025 = vmul.f32 %v2020, %v162
    %v2026 = vmul.f32 %v2019, %v163
    %v2027 = vpack.c.bf16 %v2024, %v2023
    %v2028 = vpack.c.bf16 %v2026, %v2025
    %s2029 = scalar_lea.vmem [#allocation2], 256
    %v2030 = vld [vmem:[%s2029] sm:$0xf]
    %v2031 = vld [vmem:[%s2029 + $0x4] sm:$0xf]
    %v2032 = vld [vmem:[%s2029 + $0x8] sm:$0xf]
    %v2033 = vld [vmem:[%s2029 + $0xc] sm:$0xf]
    %v2038 = vunpack.c.l.b16 %v2030
    %v2039 = vunpack.c.l.b16 %v2031
    %v2040 = vunpack.c.l.b16 %v2032
    %v2041 = vunpack.c.l.b16 %v2033
    %v2042 = vpack.c.b16 %v2039, %v2038
    %v2043 = vpack.c.b16 %v2041, %v2040
    %v2047 = vsel %vm343, %v2027, 0
    %v2050 = vsel %vm343, %v2028, 0
    %2052 = vmatprep.subr.bf16.mxu0 0
    %2053 = vmatpush1.bf16.msra.mxu0 %v2042
    %2054 = vmatprep.subr.bf16.mxu0 0
    %2055 = vmatpush1.bf16.msra.mxu0 %v2043
    %2056 = vmatprep.subr.bf16.mxu0 0
    %2057 = vmatpush1.bf16.msra.mxu0 0
    %2058 = vmatprep.subr.bf16.mxu0 0
    %2059 = vmatpush1.bf16.msra.mxu0 0
    %2060 = vmatprep.subr.bf16.mxu0 0
    %2061 = vmatpush1.bf16.msra.mxu0 0
    %2062 = vmatprep.subr.bf16.mxu0 0
    %2063 = vmatpush1.bf16.msra.mxu0 0
    %2064 = vmatprep.subr.bf16.mxu0 0
    %2065 = vmatpush1.bf16.msra.mxu0 0
    %2066 = vmatprep.subr.bf16.mxu0 0
    %2067 = vmatpush1.bf16.msra.mxu0 0
    %2068 = vmatprep.subr.bf16.mxu0 0
    %2069 = vmatpush1.bf16.msra.mxu0 0
    %2070 = vmatprep.subr.bf16.mxu0 0
    %2071 = vmatpush1.bf16.msra.mxu0 0
    %2072 = vmatprep.subr.bf16.mxu0 0
    %2073 = vmatpush1.bf16.msra.mxu0 0
    %2074 = vmatprep.subr.bf16.mxu0 0
    %2075 = vmatpush1.bf16.msra.mxu0 0
    %2076 = vmatprep.subr.bf16.mxu0 0
    %2077 = vmatpush1.bf16.msra.mxu0 0
    %2078 = vmatprep.subr.bf16.mxu0 0
    %2079 = vmatpush1.bf16.msra.mxu0 0
    %2080 = vmatprep.subr.bf16.mxu0 0
    %2081 = vmatpush1.bf16.msra.mxu0 0
    %2082 = vmatprep.subr.bf16.mxu0 0
    %2083 = vmatpush1.bf16.msra.mxu0 0
    %2084 = vmatprep.mubr.bf16.mxu0 0
    %2085 = vmatmul.mubr.bf16.gmra.mrb[0].mxu0 %v2047
    %v2086 = vpop.f32.mrb[0].mxu0
    %v2087 = vadd.f32 0.0, %v2086
    %v2088 = vpop.f32.mrb[0].mxu0
    %v2089 = vpop.f32.mrb[0].mxu0
    %v2090 = vadd.f32 0.0, %v2089
    %v2091 = vpop.f32.mrb[0].mxu0
    %2092 = vmatprep.mubr.bf16.mxu0 0
    %2093 = vmatmul.mubr.bf16.gmra.mrb[0].mxu0 %v2050
    %v2094 = vpop.f32.mrb[0].mxu0
    %v2095 = vadd.f32 0.0, %v2094
    %v2096 = vpop.f32.mrb[0].mxu0
    %v2097 = vpop.f32.mrb[0].mxu0
    %v2098 = vadd.f32 0.0, %v2097
    %v2099 = vpop.f32.mrb[0].mxu0
    %2100 = vdwg.mxu0
    %v2105 = vunpack.c.l.b16 %v2011
    %v2106 = vunpack.c.l.b16 %v2012
    %v2107 = vunpack.c.l.b16 %v2013
    %v2108 = vunpack.c.l.b16 %v2014
    %v2109 = vpack.c.b16 %v2106, %v2105
    %v2110 = vpack.c.b16 %v2108, %v2107
    %v2114 = vsel %vm343, %v2008, 0
    %v2117 = vsel %vm343, %v2009, 0
    %2119 = vmatprep.subr.bf16.mxu0 0
    %2120 = vmatpush1.bf16.msra.mxu0 %v2109
    %2121 = vmatprep.subr.bf16.mxu0 0
    %2122 = vmatpush1.bf16.msra.mxu0 %v2110
    %2123 = vmatprep.subr.bf16.mxu0 0
    %2124 = vmatpush1.bf16.msra.mxu0 0
    %2125 = vmatprep.subr.bf16.mxu0 0
    %2126 = vmatpush1.bf16.msra.mxu0 0
    %2127 = vmatprep.subr.bf16.mxu0 0
    %2128 = vmatpush1.bf16.msra.mxu0 0
    %2129 = vmatprep.subr.bf16.mxu0 0
    %2130 = vmatpush1.bf16.msra.mxu0 0
    %2131 = vmatprep.subr.bf16.mxu0 0
    %2132 = vmatpush1.bf16.msra.mxu0 0
    %2133 = vmatprep.subr.bf16.mxu0 0
    %2134 = vmatpush1.bf16.msra.mxu0 0
    %2135 = vmatprep.subr.bf16.mxu0 0
    %2136 = vmatpush1.bf16.msra.mxu0 0
    %2137 = vmatprep.subr.bf16.mxu0 0
    %2138 = vmatpush1.bf16.msra.mxu0 0
    %2139 = vmatprep.subr.bf16.mxu0 0
    %2140 = vmatpush1.bf16.msra.mxu0 0
    %2141 = vmatprep.subr.bf16.mxu0 0
    %2142 = vmatpush1.bf16.msra.mxu0 0
    %2143 = vmatprep.subr.bf16.mxu0 0
    %2144 = vmatpush1.bf16.msra.mxu0 0
    %2145 = vmatprep.subr.bf16.mxu0 0
    %2146 = vmatpush1.bf16.msra.mxu0 0
    %2147 = vmatprep.subr.bf16.mxu0 0
    %2148 = vmatpush1.bf16.msra.mxu0 0
    %2149 = vmatprep.subr.bf16.mxu0 0
    %2150 = vmatpush1.bf16.msra.mxu0 0
    %2151 = vmatprep.mubr.bf16.mxu0 0
    %2152 = vmatmul.mubr.bf16.gmra.mrb[0].mxu0 %v2114
    %v2153 = vpop.f32.mrb[0].mxu0
    %v2154 = vadd.f32 %v2087, %v2153
    %v2155 = vpop.f32.mrb[0].mxu0
    %v2156 = vpop.f32.mrb[0].mxu0
    %v2157 = vadd.f32 %v2090, %v2156
    %v2158 = vpop.f32.mrb[0].mxu0
    %2159 = vmatprep.mubr.bf16.mxu0 0
    %2160 = vmatmul.mubr.bf16.gmra.mrb[0].mxu0 %v2117
    %v2161 = vpop.f32.mrb[0].mxu0
    %v2162 = vadd.f32 %v2095, %v2161
    %v2163 = vpop.f32.mrb[0].mxu0
    %v2164 = vpop.f32.mrb[0].mxu0
    %v2165 = vadd.f32 %v2098, %v2164
    %v2166 = vpop.f32.mrb[0].mxu0
    %2167 = vdwg.mxu0
    %v2168 = vpack.c.bf16 %v1989, %v1988
    %v2169 = vpack.c.bf16 %v1991, %v1990
    %s2170 = scalar_lea.vmem [#allocation2], 272
    %v2171 = vld [vmem:[%s2170] sm:$0xf]
    %v2172 = vld [vmem:[%s2170 + $0x4] sm:$0xf]
    %v2173 = vld [vmem:[%s2170 + $0x8] sm:$0xf]
    %v2174 = vld [vmem:[%s2170 + $0xc] sm:$0xf]
    %v2179 = vunpack.c.l.b16 %v2171
    %v2180 = vunpack.c.l.b16 %v2172
    %v2181 = vunpack.c.l.b16 %v2173
    %v2182 = vunpack.c.l.b16 %v2174
    %v2183 = vpack.c.b16 %v2180, %v2179
    %v2184 = vpack.c.b16 %v2182, %v2181
    %v2188 = vsel %vm343, %v2168, 0
    %v2191 = vsel %vm343, %v2169, 0
    %2193 = vmatprep.subr.bf16.mxu0 0
    %2194 = vmatpush1.bf16.msra.mxu0 %v2183
    %2195 = vmatprep.subr.bf16.mxu0 0
    %2196 = vmatpush1.bf16.msra.mxu0 %v2184
    %2197 = vmatprep.subr.bf16.mxu0 0
    %2198 = vmatpush1.bf16.msra.mxu0 0
    %2199 = vmatprep.subr.bf16.mxu0 0
    %2200 = vmatpush1.bf16.msra.mxu0 0
    %2201 = vmatprep.subr.bf16.mxu0 0
    %2202 = vmatpush1.bf16.msra.mxu0 0
    %2203 = vmatprep.subr.bf16.mxu0 0
    %2204 = vmatpush1.bf16.msra.mxu0 0
    %2205 = vmatprep.subr.bf16.mxu0 0
    %2206 = vmatpush1.bf16.msra.mxu0 0
    %2207 = vmatprep.subr.bf16.mxu0 0
    %2208 = vmatpush1.bf16.msra.mxu0 0
    %2209 = vmatprep.subr.bf16.mxu0 0
    %2210 = vmatpush1.bf16.msra.mxu0 0
    %2211 = vmatprep.subr.bf16.mxu0 0
    %2212 = vmatpush1.bf16.msra.mxu0 0
    %2213 = vmatprep.subr.bf16.mxu0 0
    %2214 = vmatpush1.bf16.msra.mxu0 0
    %2215 = vmatprep.subr.bf16.mxu0 0
    %2216 = vmatpush1.bf16.msra.mxu0 0
    %2217 = vmatprep.subr.bf16.mxu0 0
    %2218 = vmatpush1.bf16.msra.mxu0 0
    %2219 = vmatprep.subr.bf16.mxu0 0
    %2220 = vmatpush1.bf16.msra.mxu0 0
    %2221 = vmatprep.subr.bf16.mxu0 0
    %2222 = vmatpush1.bf16.msra.mxu0 0
    %2223 = vmatprep.subr.bf16.mxu0 0
    %2224 = vmatpush1.bf16.msra.mxu0 0
    %2225 = vmatprep.mubr.bf16.mxu0 0
    %2226 = vmatmul.mubr.bf16.gmra.mrb[0].mxu0 %v2188
    %v2227 = vpop.f32.mrb[0].mxu0
    %v2228 = vadd.f32 0.0, %v2227
    %v2229 = vpop.f32.mrb[0].mxu0
    %v2230 = vpop.f32.mrb[0].mxu0
    %v2231 = vadd.f32 0.0, %v2230
    %v2232 = vpop.f32.mrb[0].mxu0
    %2233 = vmatprep.mubr.bf16.mxu0 0
    %2234 = vmatmul.mubr.bf16.gmra.mrb[0].mxu0 %v2191
    %v2235 = vpop.f32.mrb[0].mxu0
    %v2236 = vadd.f32 0.0, %v2235
    %v2237 = vpop.f32.mrb[0].mxu0
    %v2238 = vpop.f32.mrb[0].mxu0
    %v2239 = vadd.f32 0.0, %v2238
    %v2240 = vpop.f32.mrb[0].mxu0
    %2241 = vdwg.mxu0
    %v2242 = vadd.f32 %v2154, %v2228
    %v2243 = vadd.f32 %v2157, %v2231
    %v2244 = vadd.f32 %v2162, %v2236
    %v2245 = vadd.f32 %v2165, %v2239
    %v2246 = vrot.slane %v1988, 1
    %v2247 = vrot.slane %v1989, 1
    %v2248 = vrot.slane %v1990, 1
    %v2249 = vrot.slane %v1991, 1
    %v2250 = vsel %vm548, %v2248, %v2249
    %v2251 = vsel %vm548, %v2247, %v2248
    %v2252 = vsel %vm548, %v2246, %v2247
    %v2253 = vsel %vm548, %v2249, %v2246
    %v2254 = vmul.f32 %v2252, %v184
    %v2255 = vmul.f32 %v2251, %v185
    %v2256 = vmul.f32 %v2250, %v186
    %v2257 = vmul.f32 %v2253, %v187
    %v2258 = vpack.c.bf16 %v2255, %v2254
    %v2259 = vpack.c.bf16 %v2257, %v2256
    %s2260 = scalar_lea.vmem [#allocation2], 288
    %v2261 = vld [vmem:[%s2260] sm:$0xf]
    %v2262 = vld [vmem:[%s2260 + $0x4] sm:$0xf]
    %v2263 = vld [vmem:[%s2260 + $0x8] sm:$0xf]
    %v2264 = vld [vmem:[%s2260 + $0xc] sm:$0xf]
    %v2269 = vunpack.c.l.b16 %v2261
    %v2270 = vunpack.c.l.b16 %v2262
    %v2271 = vunpack.c.l.b16 %v2263
    %v2272 = vunpack.c.l.b16 %v2264
    %v2273 = vpack.c.b16 %v2270, %v2269
    %v2274 = vpack.c.b16 %v2272, %v2271
    %v2278 = vsel %vm343, %v2258, 0
    %v2281 = vsel %vm343, %v2259, 0
    %2283 = vmatprep.subr.bf16.mxu0 0
    %2284 = vmatpush1.bf16.msra.mxu0 %v2273
    %2285 = vmatprep.subr.bf16.mxu0 0
    %2286 = vmatpush1.bf16.msra.mxu0 %v2274
    %2287 = vmatprep.subr.bf16.mxu0 0
    %2288 = vmatpush1.bf16.msra.mxu0 0
    %2289 = vmatprep.subr.bf16.mxu0 0
    %2290 = vmatpush1.bf16.msra.mxu0 0
    %2291 = vmatprep.subr.bf16.mxu0 0
    %2292 = vmatpush1.bf16.msra.mxu0 0
    %2293 = vmatprep.subr.bf16.mxu0 0
    %2294 = vmatpush1.bf16.msra.mxu0 0
    %2295 = vmatprep.subr.bf16.mxu0 0
    %2296 = vmatpush1.bf16.msra.mxu0 0
    %2297 = vmatprep.subr.bf16.mxu0 0
    %2298 = vmatpush1.bf16.msra.mxu0 0
    %2299 = vmatprep.subr.bf16.mxu0 0
    %2300 = vmatpush1.bf16.msra.mxu0 0
    %2301 = vmatprep.subr.bf16.mxu0 0
    %2302 = vmatpush1.bf16.msra.mxu0 0
    %2303 = vmatprep.subr.bf16.mxu0 0
    %2304 = vmatpush1.bf16.msra.mxu0 0
    %2305 = vmatprep.subr.bf16.mxu0 0
    %2306 = vmatpush1.bf16.msra.mxu0 0
    %2307 = vmatprep.subr.bf16.mxu0 0
    %2308 = vmatpush1.bf16.msra.mxu0 0
    %2309 = vmatprep.subr.bf16.mxu0 0
    %2310 = vmatpush1.bf16.msra.mxu0 0
    %2311 = vmatprep.subr.bf16.mxu0 0
    %2312 = vmatpush1.bf16.msra.mxu0 0
    %2313 = vmatprep.subr.bf16.mxu0 0
    %2314 = vmatpush1.bf16.msra.mxu0 0
    %2315 = vmatprep.mubr.bf16.mxu0 0
    %2316 = vmatmul.mubr.bf16.gmra.mrb[0].mxu0 %v2278
    %v2317 = vpop.f32.mrb[0].mxu0
    %v2318 = vadd.f32 0.0, %v2317
    %v2319 = vpop.f32.mrb[0].mxu0
    %v2320 = vpop.f32.mrb[0].mxu0
    %v2321 = vadd.f32 0.0, %v2320
    %v2322 = vpop.f32.mrb[0].mxu0
    %2323 = vmatprep.mubr.bf16.mxu0 0
    %2324 = vmatmul.mubr.bf16.gmra.mrb[0].mxu0 %v2281
    %v2325 = vpop.f32.mrb[0].mxu0
    %v2326 = vadd.f32 0.0, %v2325
    %v2327 = vpop.f32.mrb[0].mxu0
    %v2328 = vpop.f32.mrb[0].mxu0
    %v2329 = vadd.f32 0.0, %v2328
    %v2330 = vpop.f32.mrb[0].mxu0
    %2331 = vdwg.mxu0
    %v2332 = vadd.f32 %v2242, %v2318
    %v2333 = vadd.f32 %v2243, %v2321
    %v2334 = vadd.f32 %v2244, %v2326
    %v2335 = vadd.f32 %v2245, %v2329
    %v2336 = vrot.slane %v1988, 2
    %v2337 = vrot.slane %v1989, 2
    %v2338 = vrot.slane %v1990, 2
    %v2339 = vrot.slane %v1991, 2
    %v2340 = vsel %vm639, %v2338, %v2339
    %v2341 = vsel %vm639, %v2337, %v2338
    %v2342 = vsel %vm639, %v2336, %v2337
    %v2343 = vsel %vm639, %v2339, %v2336
    %v2344 = vmul.f32 %v2342, %v208
    %v2345 = vmul.f32 %v2341, %v209
    %v2346 = vmul.f32 %v2340, %v210
    %v2347 = vmul.f32 %v2343, %v211
    %v2348 = vpack.c.bf16 %v2345, %v2344
    %v2349 = vpack.c.bf16 %v2347, %v2346
    %s2350 = scalar_lea.vmem [#allocation2], 304
    %v2351 = vld [vmem:[%s2350] sm:$0xf]
    %v2352 = vld [vmem:[%s2350 + $0x4] sm:$0xf]
    %v2353 = vld [vmem:[%s2350 + $0x8] sm:$0xf]
    %v2354 = vld [vmem:[%s2350 + $0xc] sm:$0xf]
    %v2359 = vunpack.c.l.b16 %v2351
    %v2360 = vunpack.c.l.b16 %v2352
    %v2361 = vunpack.c.l.b16 %v2353
    %v2362 = vunpack.c.l.b16 %v2354
    %v2363 = vpack.c.b16 %v2360, %v2359
    %v2364 = vpack.c.b16 %v2362, %v2361
    %v2368 = vsel %vm343, %v2348, 0
    %v2371 = vsel %vm343, %v2349, 0
    %2373 = vmatprep.subr.bf16.mxu0 0
    %2374 = vmatpush1.bf16.msra.mxu0 %v2363
    %2375 = vmatprep.subr.bf16.mxu0 0
    %2376 = vmatpush1.bf16.msra.mxu0 %v2364
    %2377 = vmatprep.subr.bf16.mxu0 0
    %2378 = vmatpush1.bf16.msra.mxu0 0
    %2379 = vmatprep.subr.bf16.mxu0 0
    %2380 = vmatpush1.bf16.msra.mxu0 0
    %2381 = vmatprep.subr.bf16.mxu0 0
    %2382 = vmatpush1.bf16.msra.mxu0 0
    %2383 = vmatprep.subr.bf16.mxu0 0
    %2384 = vmatpush1.bf16.msra.mxu0 0
    %2385 = vmatprep.subr.bf16.mxu0 0
    %2386 = vmatpush1.bf16.msra.mxu0 0
    %2387 = vmatprep.subr.bf16.mxu0 0
    %2388 = vmatpush1.bf16.msra.mxu0 0
    %2389 = vmatprep.subr.bf16.mxu0 0
    %2390 = vmatpush1.bf16.msra.mxu0 0
    %2391 = vmatprep.subr.bf16.mxu0 0
    %2392 = vmatpush1.bf16.msra.mxu0 0
    %2393 = vmatprep.subr.bf16.mxu0 0
    %2394 = vmatpush1.bf16.msra.mxu0 0
    %2395 = vmatprep.subr.bf16.mxu0 0
    %2396 = vmatpush1.bf16.msra.mxu0 0
    %2397 = vmatprep.subr.bf16.mxu0 0
    %2398 = vmatpush1.bf16.msra.mxu0 0
    %2399 = vmatprep.subr.bf16.mxu0 0
    %2400 = vmatpush1.bf16.msra.mxu0 0
    %2401 = vmatprep.subr.bf16.mxu0 0
    %2402 = vmatpush1.bf16.msra.mxu0 0
    %2403 = vmatprep.subr.bf16.mxu0 0
    %2404 = vmatpush1.bf16.msra.mxu0 0
    %2405 = vmatprep.mubr.bf16.mxu0 0
    %2406 = vmatmul.mubr.bf16.gmra.mrb[0].mxu0 %v2368
    %v2407 = vpop.f32.mrb[0].mxu0
    %v2408 = vadd.f32 0.0, %v2407
    %v2409 = vpop.f32.mrb[0].mxu0
    %v2410 = vpop.f32.mrb[0].mxu0
    %v2411 = vadd.f32 0.0, %v2410
    %v2412 = vpop.f32.mrb[0].mxu0
    %2413 = vmatprep.mubr.bf16.mxu0 0
    %2414 = vmatmul.mubr.bf16.gmra.mrb[0].mxu0 %v2371
    %v2415 = vpop.f32.mrb[0].mxu0
    %v2416 = vadd.f32 0.0, %v2415
    %v2417 = vpop.f32.mrb[0].mxu0
    %v2418 = vpop.f32.mrb[0].mxu0
    %v2419 = vadd.f32 0.0, %v2418
    %v2420 = vpop.f32.mrb[0].mxu0
    %2421 = vdwg.mxu0
    %v2422 = vadd.f32 %v2332, %v2408
    %v2423 = vadd.f32 %v2333, %v2411
    %v2424 = vadd.f32 %v2334, %v2416
    %v2425 = vadd.f32 %v2335, %v2419
    %s2426 = scalar_lea.vmem %s4, 4
    %v2427 = vld [vmem:[%s2426] sm:$0x1]
    %v2429 = vlaneseq
    %v2430 = vshrl.u32 %v2429, 7
    %v2431 = vsub.s32 0, %v2430
    %v2432 = vrot.slane %v2427, %v2431
    %v2434 = vadd.f32 %v2422, %v2432
    %v2435 = vadd.f32 %v2423, %v2432
    %v2436 = vadd.f32 %v2424, %v2432
    %v2437 = vadd.f32 %v2425, %v2432
    %v2438 = vtanh.pop %v2434
    %v2439 = vtanh.pop %v2435
    %v2440 = vtanh.pop %v2436
    %v2441 = vtanh.pop %v2437
    %v2442 = vmul.f32 %v2438, 0.5
    %v2443 = vmul.f32 %v2439, 0.5
    %v2444 = vmul.f32 %v2440, 0.5
    %v2445 = vmul.f32 %v2441, 0.5
    %v2446 = vadd.f32 %v2442, 0.5
    %v2447 = vadd.f32 %v2443, 0.5
    %v2448 = vadd.f32 %v2444, 0.5
    %v2449 = vadd.f32 %v2445, 0.5
    %2454 = vrot.lane.b32.xlu0 %v2446, 96
    %v2455 = vpop.permute.xlu0 %2454
    %2456 = vrot.lane.b32.xlu0 %v2447, 96
    %v2457 = vpop.permute.xlu0 %2456
    %2458 = vrot.lane.b32.xlu0 %v2448, 96
    %v2459 = vpop.permute.xlu0 %2458
    %2460 = vrot.lane.b32.xlu0 %v2449, 96
    %v2461 = vpop.permute.xlu0 %2460
    %v2466 = vmul.f32 %v2438, %v2455
    %v2467 = vmul.f32 %v2439, %v2457
    %v2468 = vmul.f32 %v2440, %v2459
    %v2469 = vmul.f32 %v2441, %v2461
    %v2470 = vpack.c.bf16 %v2467, %v2466
    %v2471 = vpack.c.bf16 %v2469, %v2468
    %s2472 = scalar_lea.vmem [#allocation2], 368
    %v2473 = vld [vmem:[%s2472] sm:$0xf]
    %v2474 = vld [vmem:[%s2472 + $0x4] sm:$0xf]
    %v2475 = vld [vmem:[%s2472 + $0x8] sm:$0xf]
    %v2476 = vld [vmem:[%s2472 + $0xc] sm:$0xf]
    %s2477 = scalar_lea.vmem %s4, 8
    %v2478 = vld [vmem:[%s2477] sm:$0x1]
    %v2480 = vlaneseq
    %v2481 = vshrl.u32 %v2480, 7
    %v2482 = vsub.s32 0, %v2481
    %v2483 = vrot.slane %v2478, %v2482
    %v2489 = vunpack.c.l.b16 %v2473
    %v2490 = vunpack.c.l.b16 %v2474
    %v2491 = vunpack.c.l.b16 %v2475
    %v2492 = vunpack.c.l.b16 %v2476
    %v2493 = vpack.c.b16 %v2490, %v2489
    %v2494 = vpack.c.b16 %v2492, %v2491
    %v2498 = vsel %vm343, %v2470, 0
    %v2501 = vsel %vm343, %v2471, 0
    %2503 = vmatprep.subr.bf16.mxu0 0
    %2504 = vmatpush1.bf16.msra.mxu0 %v2493
    %2505 = vmatprep.subr.bf16.mxu0 0
    %2506 = vmatpush1.bf16.msra.mxu0 %v2494
    %2507 = vmatprep.subr.bf16.mxu0 0
    %2508 = vmatpush1.bf16.msra.mxu0 0
    %2509 = vmatprep.subr.bf16.mxu0 0
    %2510 = vmatpush1.bf16.msra.mxu0 0
    %2511 = vmatprep.subr.bf16.mxu0 0
    %2512 = vmatpush1.bf16.msra.mxu0 0
    %2513 = vmatprep.subr.bf16.mxu0 0
    %2514 = vmatpush1.bf16.msra.mxu0 0
    %2515 = vmatprep.subr.bf16.mxu0 0
    %2516 = vmatpush1.bf16.msra.mxu0 0
    %2517 = vmatprep.subr.bf16.mxu0 0
    %2518 = vmatpush1.bf16.msra.mxu0 0
    %2519 = vmatprep.subr.bf16.mxu0 0
    %2520 = vmatpush1.bf16.msra.mxu0 0
    %2521 = vmatprep.subr.bf16.mxu0 0
    %2522 = vmatpush1.bf16.msra.mxu0 0
    %2523 = vmatprep.subr.bf16.mxu0 0
    %2524 = vmatpush1.bf16.msra.mxu0 0
    %2525 = vmatprep.subr.bf16.mxu0 0
    %2526 = vmatpush1.bf16.msra.mxu0 0
    %2527 = vmatprep.subr.bf16.mxu0 0
    %2528 = vmatpush1.bf16.msra.mxu0 0
    %2529 = vmatprep.subr.bf16.mxu0 0
    %2530 = vmatpush1.bf16.msra.mxu0 0
    %2531 = vmatprep.subr.bf16.mxu0 0
    %2532 = vmatpush1.bf16.msra.mxu0 0
    %2533 = vmatprep.subr.bf16.mxu0 0
    %2534 = vmatpush1.bf16.msra.mxu0 0
    %2535 = vmatprep.mubr.bf16.mxu0 0
    %2536 = vmatmul.mubr.bf16.gmra.mrb[0].mxu0 %v2498
    %v2537 = vpop.f32.mrb[0].mxu0
    %v2538 = vadd.f32 %v2483, %v2537
    %v2539 = vpop.f32.mrb[0].mxu0
    %v2540 = vpop.f32.mrb[0].mxu0
    %v2541 = vadd.f32 %v2483, %v2540
    %v2542 = vpop.f32.mrb[0].mxu0
    %2543 = vmatprep.mubr.bf16.mxu0 0
    %2544 = vmatmul.mubr.bf16.gmra.mrb[0].mxu0 %v2501
    %v2545 = vpop.f32.mrb[0].mxu0
    %v2546 = vadd.f32 %v2483, %v2545
    %v2547 = vpop.f32.mrb[0].mxu0
    %v2548 = vpop.f32.mrb[0].mxu0
    %v2549 = vadd.f32 %v2483, %v2548
    %v2550 = vpop.f32.mrb[0].mxu0
    %2551 = vdwg.mxu0
    %v2552 = vadd.f32 %v1992, %v2538
    %v2553 = vadd.f32 %v1993, %v2541
    %v2554 = vadd.f32 %v1994, %v2546
    %v2555 = vadd.f32 %v1995, %v2549
    %v2556 = vmul.f32 %v2552, %v46
    %v2557 = vmul.f32 %v2553, %v51
    %v2558 = vmul.f32 %v2554, %v56
    %v2559 = vmul.f32 %v2555, %v61
    %v2560 = vpack.c.bf16 %v2557, %v2556
    %v2561 = vpack.c.bf16 %v2559, %v2558
    %s2562 = scalar_lea.vmem [#allocation2], 384
    %v2563 = vld [vmem:[%s2562] sm:$0xf]
    %v2564 = vld [vmem:[%s2562 + $0x4] sm:$0xf]
    %v2565 = vld [vmem:[%s2562 + $0x8] sm:$0xf]
    %v2566 = vld [vmem:[%s2562 + $0xc] sm:$0xf]
    %2569 = vrot.lane.b32.xlu0 %v2560, 96
    %v2570 = vpop.permute.xlu0 %2569
    %2571 = vrot.lane.b32.xlu0 %v2561, 96
    %v2572 = vpop.permute.xlu0 %2571
    %v2577 = vunpack.c.l.b16 %v2563
    %v2578 = vunpack.c.l.b16 %v2564
    %v2579 = vunpack.c.l.b16 %v2565
    %v2580 = vunpack.c.l.b16 %v2566
    %v2581 = vpack.c.b16 %v2578, %v2577
    %v2582 = vpack.c.b16 %v2580, %v2579
    %v2586 = vsel %vm343, %v2570, 0
    %v2589 = vsel %vm343, %v2572, 0
    %2591 = vmatprep.subr.bf16.mxu0 0
    %2592 = vmatpush1.bf16.msra.mxu0 %v2581
    %2593 = vmatprep.subr.bf16.mxu0 0
    %2594 = vmatpush1.bf16.msra.mxu0 %v2582
    %2595 = vmatprep.subr.bf16.mxu0 0
    %2596 = vmatpush1.bf16.msra.mxu0 0
    %2597 = vmatprep.subr.bf16.mxu0 0
    %2598 = vmatpush1.bf16.msra.mxu0 0
    %2599 = vmatprep.subr.bf16.mxu0 0
    %2600 = vmatpush1.bf16.msra.mxu0 0
    %2601 = vmatprep.subr.bf16.mxu0 0
    %2602 = vmatpush1.bf16.msra.mxu0 0
    %2603 = vmatprep.subr.bf16.mxu0 0
    %2604 = vmatpush1.bf16.msra.mxu0 0
    %2605 = vmatprep.subr.bf16.mxu0 0
    %2606 = vmatpush1.bf16.msra.mxu0 0
    %2607 = vmatprep.subr.bf16.mxu0 0
    %2608 = vmatpush1.bf16.msra.mxu0 0
    %2609 = vmatprep.subr.bf16.mxu0 0
    %2610 = vmatpush1.bf16.msra.mxu0 0
    %2611 = vmatprep.subr.bf16.mxu0 0
    %2612 = vmatpush1.bf16.msra.mxu0 0
    %2613 = vmatprep.subr.bf16.mxu0 0
    %2614 = vmatpush1.bf16.msra.mxu0 0
    %2615 = vmatprep.subr.bf16.mxu0 0
    %2616 = vmatpush1.bf16.msra.mxu0 0
    %2617 = vmatprep.subr.bf16.mxu0 0
    %2618 = vmatpush1.bf16.msra.mxu0 0
    %2619 = vmatprep.subr.bf16.mxu0 0
    %2620 = vmatpush1.bf16.msra.mxu0 0
    %2621 = vmatprep.subr.bf16.mxu0 0
    %2622 = vmatpush1.bf16.msra.mxu0 0
    %2623 = vmatprep.mubr.bf16.mxu0 0
    %2624 = vmatmul.mubr.bf16.gmra.mrb[0].mxu0 %v2586
    %v2625 = vpop.f32.mrb[0].mxu0
    %v2626 = vadd.f32 0.0, %v2625
    %v2627 = vpop.f32.mrb[0].mxu0
    %v2628 = vpop.f32.mrb[0].mxu0
    %v2629 = vadd.f32 0.0, %v2628
    %v2630 = vpop.f32.mrb[0].mxu0
    %2631 = vmatprep.mubr.bf16.mxu0 0
    %2632 = vmatmul.mubr.bf16.gmra.mrb[0].mxu0 %v2589
    %v2633 = vpop.f32.mrb[0].mxu0
    %v2634 = vadd.f32 0.0, %v2633
    %v2635 = vpop.f32.mrb[0].mxu0
    %v2636 = vpop.f32.mrb[0].mxu0
    %v2637 = vadd.f32 0.0, %v2636
    %v2638 = vpop.f32.mrb[0].mxu0
    %2639 = vdwg.mxu0
    %s2640 = scalar_lea.vmem %s4, 9
    %v2641 = vld [vmem:[%s2640] sm:$0x1]
    %v2643 = vlaneseq
    %v2644 = vshrl.u32 %v2643, 7
    %v2645 = vsub.s32 0, %v2644
    %v2646 = vrot.slane %v2641, %v2645
    %v2648 = vadd.f32 %v2626, %v2646
    %v2649 = vadd.f32 %v2629, %v2646
    %v2650 = vadd.f32 %v2634, %v2646
    %v2651 = vadd.f32 %v2637, %v2646
    %v2652 = vmul.f32 %v2648, %v46
    %v2653 = vmul.f32 %v2649, %v51
    %v2654 = vmul.f32 %v2650, %v56
    %v2655 = vmul.f32 %v2651, %v61
    %v2656 = vsub.f32 %v35, %v2652
    %v2657 = vsub.f32 %v36, %v2653
    %v2658 = vsub.f32 %v37, %v2654
    %v2659 = vsub.f32 %v38, %v2655
    %v2660 = vmul.f32 %v2656, %v46
    %v2661 = vmul.f32 %v2657, %v51
    %v2662 = vmul.f32 %v2658, %v56
    %v2663 = vmul.f32 %v2659, %v61
    %s2664 = scalar_lea.vmem %s4, 10
    %v2665 = vld [vmem:[%s2664] sm:$0x1]
    %v2666 = vpack.c.bf16 %v2661, %v2660
    %v2667 = vpack.c.bf16 %v2663, %v2662
    %s2668 = scalar_lea.vmem %s2, 2
    %v2669 = vld [vmem:[%s2668] sm:$0x3]
    %v2671 = vlaneseq
    %v2672 = vshrl.u32 %v2671, 7
    %v2673 = vsub.s32 0, %v2672
    %v2674 = vrot.slane %v2665, %v2673
    %v2677 = vsel %vm228, %v2666, 0
    %v2680 = vsel %vm228, %v2667, 0
    %v2683 = vsel %vm235, %v2669, 0
    %2685 = vmatprep.subr.bf16.mxu0 0
    %2686 = vmatpush1.bf16.msra.mxu0 %v2683
    %2687 = vmatprep.subr.bf16.mxu0 0
    %2688 = vmatpush1.bf16.msra.mxu0 0
    %2689 = vmatprep.subr.bf16.mxu0 0
    %2690 = vmatpush1.bf16.msra.mxu0 0
    %2691 = vmatprep.subr.bf16.mxu0 0
    %2692 = vmatpush1.bf16.msra.mxu0 0
    %2693 = vmatprep.subr.bf16.mxu0 0
    %2694 = vmatpush1.bf16.msra.mxu0 0
    %2695 = vmatprep.subr.bf16.mxu0 0
    %2696 = vmatpush1.bf16.msra.mxu0 0
    %2697 = vmatprep.subr.bf16.mxu0 0
    %2698 = vmatpush1.bf16.msra.mxu0 0
    %2699 = vmatprep.subr.bf16.mxu0 0
    %2700 = vmatpush1.bf16.msra.mxu0 0
    %2701 = vmatprep.subr.bf16.mxu0 0
    %2702 = vmatpush1.bf16.msra.mxu0 0
    %2703 = vmatprep.subr.bf16.mxu0 0
    %2704 = vmatpush1.bf16.msra.mxu0 0
    %2705 = vmatprep.subr.bf16.mxu0 0
    %2706 = vmatpush1.bf16.msra.mxu0 0
    %2707 = vmatprep.subr.bf16.mxu0 0
    %2708 = vmatpush1.bf16.msra.mxu0 0
    %2709 = vmatprep.subr.bf16.mxu0 0
    %2710 = vmatpush1.bf16.msra.mxu0 0
    %2711 = vmatprep.subr.bf16.mxu0 0
    %2712 = vmatpush1.bf16.msra.mxu0 0
    %2713 = vmatprep.subr.bf16.mxu0 0
    %2714 = vmatpush1.bf16.msra.mxu0 0
    %2715 = vmatprep.subr.bf16.mxu0 0
    %2716 = vmatpush1.bf16.msra.mxu0 0
    %2717 = vmatprep.mubr.bf16.mxu0 0
    %2718 = vmatmul.mubr.bf16.gmra.mrb[0].mxu0 %v2677
    %v2719 = vpop.f32.mrb[0].mxu0
    %v2720 = vadd.f32 %v2674, %v2719
    %v2721 = vpop.f32.mrb[0].mxu0
    %v2722 = vpop.f32.mrb[0].mxu0
    %v2723 = vadd.f32 %v2674, %v2722
    %v2724 = vpop.f32.mrb[0].mxu0
    %2725 = vmatprep.mubr.bf16.mxu0 0
    %2726 = vmatmul.mubr.bf16.gmra.mrb[0].mxu0 %v2680
    %v2727 = vpop.f32.mrb[0].mxu0
    %v2728 = vadd.f32 %v2674, %v2727
    %v2729 = vpop.f32.mrb[0].mxu0
    %v2730 = vpop.f32.mrb[0].mxu0
    %v2731 = vadd.f32 %v2674, %v2730
    %v2732 = vpop.f32.mrb[0].mxu0
    %2733 = vdwg.mxu0
    %v2734 = vmul.f32 %v2720, %v46
    %v2735 = vmul.f32 %v2723, %v51
    %v2736 = vmul.f32 %v2728, %v56
    %v2737 = vmul.f32 %v2731, %v61
    %v2738 = vrot.slane %v2734, 6
    %v2739 = vrot.slane %v2735, 6
    %v2740 = vrot.slane %v2736, 6
    %v2741 = vrot.slane %v2737, 6
    %v2742 = vsel %vm296, %v2740, %v2741
    %v2743 = vsel %vm296, %v2739, %v2740
    %v2744 = vsel %vm296, %v2738, %v2739
    %v2745 = vsel %vm296, %v2741, %v2738
    %v2746 = vmul.f32 %v2745, %v136
    %v2747 = vmul.f32 %v2744, %v137
    %v2748 = vmul.f32 %v2743, %v138
    %v2749 = vmul.f32 %v2742, %v139
    %v2750 = vpack.c.bf16 %v2747, %v2746
    %v2751 = vpack.c.bf16 %v2749, %v2748
    %s2752 = scalar_lea.vmem [#allocation2], 400
    %v2753 = vld [vmem:[%s2752] sm:$0xf]
    %v2754 = vld [vmem:[%s2752 + $0x4] sm:$0xf]
    %v2755 = vld [vmem:[%s2752 + $0x8] sm:$0xf]
    %v2756 = vld [vmem:[%s2752 + $0xc] sm:$0xf]
    %v2757 = vrot.slane %v2734, 7
    %v2758 = vrot.slane %v2735, 7
    %v2759 = vrot.slane %v2736, 7
    %v2760 = vrot.slane %v2737, 7
    %v2761 = vsel %vm315, %v2759, %v2760
    %v2762 = vsel %vm315, %v2758, %v2759
    %v2763 = vsel %vm315, %v2757, %v2758
    %v2764 = vsel %vm315, %v2760, %v2757
    %v2765 = vmul.f32 %v2764, %v160
    %v2766 = vmul.f32 %v2763, %v161
    %v2767 = vmul.f32 %v2762, %v162
    %v2768 = vmul.f32 %v2761, %v163
    %v2769 = vpack.c.bf16 %v2766, %v2765
    %v2770 = vpack.c.bf16 %v2768, %v2767
    %s2771 = scalar_lea.vmem [#allocation2], 416
    %v2772 = vld [vmem:[%s2771] sm:$0xf]
    %v2773 = vld [vmem:[%s2771 + $0x4] sm:$0xf]
    %v2774 = vld [vmem:[%s2771 + $0x8] sm:$0xf]
    %v2775 = vld [vmem:[%s2771 + $0xc] sm:$0xf]
    %v2780 = vunpack.c.l.b16 %v2772
    %v2781 = vunpack.c.l.b16 %v2773
    %v2782 = vunpack.c.l.b16 %v2774
    %v2783 = vunpack.c.l.b16 %v2775
    %v2784 = vpack.c.b16 %v2781, %v2780
    %v2785 = vpack.c.b16 %v2783, %v2782
    %v2789 = vsel %vm343, %v2769, 0
    %v2792 = vsel %vm343, %v2770, 0
    %2794 = vmatprep.subr.bf16.mxu0 0
    %2795 = vmatpush1.bf16.msra.mxu0 %v2784
    %2796 = vmatprep.subr.bf16.mxu0 0
    %2797 = vmatpush1.bf16.msra.mxu0 %v2785
    %2798 = vmatprep.subr.bf16.mxu0 0
    %2799 = vmatpush1.bf16.msra.mxu0 0
    %2800 = vmatprep.subr.bf16.mxu0 0
    %2801 = vmatpush1.bf16.msra.mxu0 0
    %2802 = vmatprep.subr.bf16.mxu0 0
    %2803 = vmatpush1.bf16.msra.mxu0 0
    %2804 = vmatprep.subr.bf16.mxu0 0
    %2805 = vmatpush1.bf16.msra.mxu0 0
    %2806 = vmatprep.subr.bf16.mxu0 0
    %2807 = vmatpush1.bf16.msra.mxu0 0
    %2808 = vmatprep.subr.bf16.mxu0 0
    %2809 = vmatpush1.bf16.msra.mxu0 0
    %2810 = vmatprep.subr.bf16.mxu0 0
    %2811 = vmatpush1.bf16.msra.mxu0 0
    %2812 = vmatprep.subr.bf16.mxu0 0
    %2813 = vmatpush1.bf16.msra.mxu0 0
    %2814 = vmatprep.subr.bf16.mxu0 0
    %2815 = vmatpush1.bf16.msra.mxu0 0
    %2816 = vmatprep.subr.bf16.mxu0 0
    %2817 = vmatpush1.bf16.msra.mxu0 0
    %2818 = vmatprep.subr.bf16.mxu0 0
    %2819 = vmatpush1.bf16.msra.mxu0 0
    %2820 = vmatprep.subr.bf16.mxu0 0
    %2821 = vmatpush1.bf16.msra.mxu0 0
    %2822 = vmatprep.subr.bf16.mxu0 0
    %2823 = vmatpush1.bf16.msra.mxu0 0
    %2824 = vmatprep.subr.bf16.mxu0 0
    %2825 = vmatpush1.bf16.msra.mxu0 0
    %2826 = vmatprep.mubr.bf16.mxu0 0
    %2827 = vmatmul.mubr.bf16.gmra.mrb[0].mxu0 %v2789
    %v2828 = vpop.f32.mrb[0].mxu0
    %v2829 = vadd.f32 0.0, %v2828
    %v2830 = vpop.f32.mrb[0].mxu0
    %v2831 = vpop.f32.mrb[0].mxu0
    %v2832 = vadd.f32 0.0, %v2831
    %v2833 = vpop.f32.mrb[0].mxu0
    %2834 = vmatprep.mubr.bf16.mxu0 0
    %2835 = vmatmul.mubr.bf16.gmra.mrb[0].mxu0 %v2792
    %v2836 = vpop.f32.mrb[0].mxu0
    %v2837 = vadd.f32 0.0, %v2836
    %v2838 = vpop.f32.mrb[0].mxu0
    %v2839 = vpop.f32.mrb[0].mxu0
    %v2840 = vadd.f32 0.0, %v2839
    %v2841 = vpop.f32.mrb[0].mxu0
    %2842 = vdwg.mxu0
    %v2847 = vunpack.c.l.b16 %v2753
    %v2848 = vunpack.c.l.b16 %v2754
    %v2849 = vunpack.c.l.b16 %v2755
    %v2850 = vunpack.c.l.b16 %v2756
    %v2851 = vpack.c.b16 %v2848, %v2847
    %v2852 = vpack.c.b16 %v2850, %v2849
    %v2856 = vsel %vm343, %v2750, 0
    %v2859 = vsel %vm343, %v2751, 0
    %2861 = vmatprep.subr.bf16.mxu0 0
    %2862 = vmatpush1.bf16.msra.mxu0 %v2851
    %2863 = vmatprep.subr.bf16.mxu0 0
    %2864 = vmatpush1.bf16.msra.mxu0 %v2852
    %2865 = vmatprep.subr.bf16.mxu0 0
    %2866 = vmatpush1.bf16.msra.mxu0 0
    %2867 = vmatprep.subr.bf16.mxu0 0
    %2868 = vmatpush1.bf16.msra.mxu0 0
    %2869 = vmatprep.subr.bf16.mxu0 0
    %2870 = vmatpush1.bf16.msra.mxu0 0
    %2871 = vmatprep.subr.bf16.mxu0 0
    %2872 = vmatpush1.bf16.msra.mxu0 0
    %2873 = vmatprep.subr.bf16.mxu0 0
    %2874 = vmatpush1.bf16.msra.mxu0 0
    %2875 = vmatprep.subr.bf16.mxu0 0
    %2876 = vmatpush1.bf16.msra.mxu0 0
    %2877 = vmatprep.subr.bf16.mxu0 0
    %2878 = vmatpush1.bf16.msra.mxu0 0
    %2879 = vmatprep.subr.bf16.mxu0 0
    %2880 = vmatpush1.bf16.msra.mxu0 0
    %2881 = vmatprep.subr.bf16.mxu0 0
    %2882 = vmatpush1.bf16.msra.mxu0 0
    %2883 = vmatprep.subr.bf16.mxu0 0
    %2884 = vmatpush1.bf16.msra.mxu0 0
    %2885 = vmatprep.subr.bf16.mxu0 0
    %2886 = vmatpush1.bf16.msra.mxu0 0
    %2887 = vmatprep.subr.bf16.mxu0 0
    %2888 = vmatpush1.bf16.msra.mxu0 0
    %2889 = vmatprep.subr.bf16.mxu0 0
    %2890 = vmatpush1.bf16.msra.mxu0 0
    %2891 = vmatprep.subr.bf16.mxu0 0
    %2892 = vmatpush1.bf16.msra.mxu0 0
    %2893 = vmatprep.mubr.bf16.mxu0 0
    %2894 = vmatmul.mubr.bf16.gmra.mrb[0].mxu0 %v2856
    %v2895 = vpop.f32.mrb[0].mxu0
    %v2896 = vadd.f32 %v2829, %v2895
    %v2897 = vpop.f32.mrb[0].mxu0
    %v2898 = vpop.f32.mrb[0].mxu0
    %v2899 = vadd.f32 %v2832, %v2898
    %v2900 = vpop.f32.mrb[0].mxu0
    %2901 = vmatprep.mubr.bf16.mxu0 0
    %2902 = vmatmul.mubr.bf16.gmra.mrb[0].mxu0 %v2859
    %v2903 = vpop.f32.mrb[0].mxu0
    %v2904 = vadd.f32 %v2837, %v2903
    %v2905 = vpop.f32.mrb[0].mxu0
    %v2906 = vpop.f32.mrb[0].mxu0
    %v2907 = vadd.f32 %v2840, %v2906
    %v2908 = vpop.f32.mrb[0].mxu0
    %2909 = vdwg.mxu0
    %v2910 = vpack.c.bf16 %v2735, %v2734
    %v2911 = vpack.c.bf16 %v2737, %v2736
    %s2912 = scalar_lea.vmem [#allocation2], 432
    %v2913 = vld [vmem:[%s2912] sm:$0xf]
    %v2914 = vld [vmem:[%s2912 + $0x4] sm:$0xf]
    %v2915 = vld [vmem:[%s2912 + $0x8] sm:$0xf]
    %v2916 = vld [vmem:[%s2912 + $0xc] sm:$0xf]
    %v2921 = vunpack.c.l.b16 %v2913
    %v2922 = vunpack.c.l.b16 %v2914
    %v2923 = vunpack.c.l.b16 %v2915
    %v2924 = vunpack.c.l.b16 %v2916
    %v2925 = vpack.c.b16 %v2922, %v2921
    %v2926 = vpack.c.b16 %v2924, %v2923
    %v2930 = vsel %vm343, %v2910, 0
    %v2933 = vsel %vm343, %v2911, 0
    %2935 = vmatprep.subr.bf16.mxu0 0
    %2936 = vmatpush1.bf16.msra.mxu0 %v2925
    %2937 = vmatprep.subr.bf16.mxu0 0
    %2938 = vmatpush1.bf16.msra.mxu0 %v2926
    %2939 = vmatprep.subr.bf16.mxu0 0
    %2940 = vmatpush1.bf16.msra.mxu0 0
    %2941 = vmatprep.subr.bf16.mxu0 0
    %2942 = vmatpush1.bf16.msra.mxu0 0
    %2943 = vmatprep.subr.bf16.mxu0 0
    %2944 = vmatpush1.bf16.msra.mxu0 0
    %2945 = vmatprep.subr.bf16.mxu0 0
    %2946 = vmatpush1.bf16.msra.mxu0 0
    %2947 = vmatprep.subr.bf16.mxu0 0
    %2948 = vmatpush1.bf16.msra.mxu0 0
    %2949 = vmatprep.subr.bf16.mxu0 0
    %2950 = vmatpush1.bf16.msra.mxu0 0
    %2951 = vmatprep.subr.bf16.mxu0 0
    %2952 = vmatpush1.bf16.msra.mxu0 0
    %2953 = vmatprep.subr.bf16.mxu0 0
    %2954 = vmatpush1.bf16.msra.mxu0 0
    %2955 = vmatprep.subr.bf16.mxu0 0
    %2956 = vmatpush1.bf16.msra.mxu0 0
    %2957 = vmatprep.subr.bf16.mxu0 0
    %2958 = vmatpush1.bf16.msra.mxu0 0
    %2959 = vmatprep.subr.bf16.mxu0 0
    %2960 = vmatpush1.bf16.msra.mxu0 0
    %2961 = vmatprep.subr.bf16.mxu0 0
    %2962 = vmatpush1.bf16.msra.mxu0 0
    %2963 = vmatprep.subr.bf16.mxu0 0
    %2964 = vmatpush1.bf16.msra.mxu0 0
    %2965 = vmatprep.subr.bf16.mxu0 0
    %2966 = vmatpush1.bf16.msra.mxu0 0
    %2967 = vmatprep.mubr.bf16.mxu0 0
    %2968 = vmatmul.mubr.bf16.gmra.mrb[0].mxu0 %v2930
    %v2969 = vpop.f32.mrb[0].mxu0
    %v2970 = vadd.f32 0.0, %v2969
    %v2971 = vpop.f32.mrb[0].mxu0
    %v2972 = vpop.f32.mrb[0].mxu0
    %v2973 = vadd.f32 0.0, %v2972
    %v2974 = vpop.f32.mrb[0].mxu0
    %2975 = vmatprep.mubr.bf16.mxu0 0
    %2976 = vmatmul.mubr.bf16.gmra.mrb[0].mxu0 %v2933
    %v2977 = vpop.f32.mrb[0].mxu0
    %v2978 = vadd.f32 0.0, %v2977
    %v2979 = vpop.f32.mrb[0].mxu0
    %v2980 = vpop.f32.mrb[0].mxu0
    %v2981 = vadd.f32 0.0, %v2980
    %v2982 = vpop.f32.mrb[0].mxu0
    %2983 = vdwg.mxu0
    %v2984 = vadd.f32 %v2896, %v2970
    %v2985 = vadd.f32 %v2899, %v2973
    %v2986 = vadd.f32 %v2904, %v2978
    %v2987 = vadd.f32 %v2907, %v2981
    %v2988 = vrot.slane %v2734, 1
    %v2989 = vrot.slane %v2735, 1
    %v2990 = vrot.slane %v2736, 1
    %v2991 = vrot.slane %v2737, 1
    %v2992 = vsel %vm548, %v2990, %v2991
    %v2993 = vsel %vm548, %v2989, %v2990
    %v2994 = vsel %vm548, %v2988, %v2989
    %v2995 = vsel %vm548, %v2991, %v2988
    %v2996 = vmul.f32 %v2994, %v184
    %v2997 = vmul.f32 %v2993, %v185
    %v2998 = vmul.f32 %v2992, %v186
    %v2999 = vmul.f32 %v2995, %v187
    %v3000 = vpack.c.bf16 %v2997, %v2996
    %v3001 = vpack.c.bf16 %v2999, %v2998
    %s3002 = scalar_lea.vmem [#allocation2], 448
    %v3003 = vld [vmem:[%s3002] sm:$0xf]
    %v3004 = vld [vmem:[%s3002 + $0x4] sm:$0xf]
    %v3005 = vld [vmem:[%s3002 + $0x8] sm:$0xf]
    %v3006 = vld [vmem:[%s3002 + $0xc] sm:$0xf]
    %v3011 = vunpack.c.l.b16 %v3003
    %v3012 = vunpack.c.l.b16 %v3004
    %v3013 = vunpack.c.l.b16 %v3005
    %v3014 = vunpack.c.l.b16 %v3006
    %v3015 = vpack.c.b16 %v3012, %v3011
    %v3016 = vpack.c.b16 %v3014, %v3013
    %v3020 = vsel %vm343, %v3000, 0
    %v3023 = vsel %vm343, %v3001, 0
    %3025 = vmatprep.subr.bf16.mxu0 0
    %3026 = vmatpush1.bf16.msra.mxu0 %v3015
    %3027 = vmatprep.subr.bf16.mxu0 0
    %3028 = vmatpush1.bf16.msra.mxu0 %v3016
    %3029 = vmatprep.subr.bf16.mxu0 0
    %3030 = vmatpush1.bf16.msra.mxu0 0
    %3031 = vmatprep.subr.bf16.mxu0 0
    %3032 = vmatpush1.bf16.msra.mxu0 0
    %3033 = vmatprep.subr.bf16.mxu0 0
    %3034 = vmatpush1.bf16.msra.mxu0 0
    %3035 = vmatprep.subr.bf16.mxu0 0
    %3036 = vmatpush1.bf16.msra.mxu0 0
    %3037 = vmatprep.subr.bf16.mxu0 0
    %3038 = vmatpush1.bf16.msra.mxu0 0
    %3039 = vmatprep.subr.bf16.mxu0 0
    %3040 = vmatpush1.bf16.msra.mxu0 0
    %3041 = vmatprep.subr.bf16.mxu0 0
    %3042 = vmatpush1.bf16.msra.mxu0 0
    %3043 = vmatprep.subr.bf16.mxu0 0
    %3044 = vmatpush1.bf16.msra.mxu0 0
    %3045 = vmatprep.subr.bf16.mxu0 0
    %3046 = vmatpush1.bf16.msra.mxu0 0
    %3047 = vmatprep.subr.bf16.mxu0 0
    %3048 = vmatpush1.bf16.msra.mxu0 0
    %3049 = vmatprep.subr.bf16.mxu0 0
    %3050 = vmatpush1.bf16.msra.mxu0 0
    %3051 = vmatprep.subr.bf16.mxu0 0
    %3052 = vmatpush1.bf16.msra.mxu0 0
    %3053 = vmatprep.subr.bf16.mxu0 0
    %3054 = vmatpush1.bf16.msra.mxu0 0
    %3055 = vmatprep.subr.bf16.mxu0 0
    %3056 = vmatpush1.bf16.msra.mxu0 0
    %3057 = vmatprep.mubr.bf16.mxu0 0
    %3058 = vmatmul.mubr.bf16.gmra.mrb[0].mxu0 %v3020
    %v3059 = vpop.f32.mrb[0].mxu0
    %v3060 = vadd.f32 0.0, %v3059
    %v3061 = vpop.f32.mrb[0].mxu0
    %v3062 = vpop.f32.mrb[0].mxu0
    %v3063 = vadd.f32 0.0, %v3062
    %v3064 = vpop.f32.mrb[0].mxu0
    %3065 = vmatprep.mubr.bf16.mxu0 0
    %3066 = vmatmul.mubr.bf16.gmra.mrb[0].mxu0 %v3023
    %v3067 = vpop.f32.mrb[0].mxu0
    %v3068 = vadd.f32 0.0, %v3067
    %v3069 = vpop.f32.mrb[0].mxu0
    %v3070 = vpop.f32.mrb[0].mxu0
    %v3071 = vadd.f32 0.0, %v3070
    %v3072 = vpop.f32.mrb[0].mxu0
    %3073 = vdwg.mxu0
    %v3074 = vadd.f32 %v2984, %v3060
    %v3075 = vadd.f32 %v2985, %v3063
    %v3076 = vadd.f32 %v2986, %v3068
    %v3077 = vadd.f32 %v2987, %v3071
    %v3078 = vrot.slane %v2734, 2
    %v3079 = vrot.slane %v2735, 2
    %v3080 = vrot.slane %v2736, 2
    %v3081 = vrot.slane %v2737, 2
    %v3082 = vsel %vm639, %v3080, %v3081
    %v3083 = vsel %vm639, %v3079, %v3080
    %v3084 = vsel %vm639, %v3078, %v3079
    %v3085 = vsel %vm639, %v3081, %v3078
    %v3086 = vmul.f32 %v3084, %v208
    %v3087 = vmul.f32 %v3083, %v209
    %v3088 = vmul.f32 %v3082, %v210
    %v3089 = vmul.f32 %v3085, %v211
    %v3090 = vpack.c.bf16 %v3087, %v3086
    %v3091 = vpack.c.bf16 %v3089, %v3088
    %s3092 = scalar_lea.vmem [#allocation2], 464
    %v3093 = vld [vmem:[%s3092] sm:$0xf]
    %v3094 = vld [vmem:[%s3092 + $0x4] sm:$0xf]
    %v3095 = vld [vmem:[%s3092 + $0x8] sm:$0xf]
    %v3096 = vld [vmem:[%s3092 + $0xc] sm:$0xf]
    %v3101 = vunpack.c.l.b16 %v3093
    %v3102 = vunpack.c.l.b16 %v3094
    %v3103 = vunpack.c.l.b16 %v3095
    %v3104 = vunpack.c.l.b16 %v3096
    %v3105 = vpack.c.b16 %v3102, %v3101
    %v3106 = vpack.c.b16 %v3104, %v3103
    %v3110 = vsel %vm343, %v3090, 0
    %v3113 = vsel %vm343, %v3091, 0
    %3115 = vmatprep.subr.bf16.mxu0 0
    %3116 = vmatpush1.bf16.msra.mxu0 %v3105
    %3117 = vmatprep.subr.bf16.mxu0 0
    %3118 = vmatpush1.bf16.msra.mxu0 %v3106
    %3119 = vmatprep.subr.bf16.mxu0 0
    %3120 = vmatpush1.bf16.msra.mxu0 0
    %3121 = vmatprep.subr.bf16.mxu0 0
    %3122 = vmatpush1.bf16.msra.mxu0 0
    %3123 = vmatprep.subr.bf16.mxu0 0
    %3124 = vmatpush1.bf16.msra.mxu0 0
    %3125 = vmatprep.subr.bf16.mxu0 0
    %3126 = vmatpush1.bf16.msra.mxu0 0
    %3127 = vmatprep.subr.bf16.mxu0 0
    %3128 = vmatpush1.bf16.msra.mxu0 0
    %3129 = vmatprep.subr.bf16.mxu0 0
    %3130 = vmatpush1.bf16.msra.mxu0 0
    %3131 = vmatprep.subr.bf16.mxu0 0
    %3132 = vmatpush1.bf16.msra.mxu0 0
    %3133 = vmatprep.subr.bf16.mxu0 0
    %3134 = vmatpush1.bf16.msra.mxu0 0
    %3135 = vmatprep.subr.bf16.mxu0 0
    %3136 = vmatpush1.bf16.msra.mxu0 0
    %3137 = vmatprep.subr.bf16.mxu0 0
    %3138 = vmatpush1.bf16.msra.mxu0 0
    %3139 = vmatprep.subr.bf16.mxu0 0
    %3140 = vmatpush1.bf16.msra.mxu0 0
    %3141 = vmatprep.subr.bf16.mxu0 0
    %3142 = vmatpush1.bf16.msra.mxu0 0
    %3143 = vmatprep.subr.bf16.mxu0 0
    %3144 = vmatpush1.bf16.msra.mxu0 0
    %3145 = vmatprep.subr.bf16.mxu0 0
    %3146 = vmatpush1.bf16.msra.mxu0 0
    %3147 = vmatprep.mubr.bf16.mxu0 0
    %3148 = vmatmul.mubr.bf16.gmra.mrb[0].mxu0 %v3110
    %v3149 = vpop.f32.mrb[0].mxu0
    %v3150 = vadd.f32 0.0, %v3149
    %v3151 = vpop.f32.mrb[0].mxu0
    %v3152 = vpop.f32.mrb[0].mxu0
    %v3153 = vadd.f32 0.0, %v3152
    %v3154 = vpop.f32.mrb[0].mxu0
    %3155 = vmatprep.mubr.bf16.mxu0 0
    %3156 = vmatmul.mubr.bf16.gmra.mrb[0].mxu0 %v3113
    %v3157 = vpop.f32.mrb[0].mxu0
    %v3158 = vadd.f32 0.0, %v3157
    %v3159 = vpop.f32.mrb[0].mxu0
    %v3160 = vpop.f32.mrb[0].mxu0
    %v3161 = vadd.f32 0.0, %v3160
    %v3162 = vpop.f32.mrb[0].mxu0
    %3163 = vdwg.mxu0
    %v3164 = vadd.f32 %v3074, %v3150
    %v3165 = vadd.f32 %v3075, %v3153
    %v3166 = vadd.f32 %v3076, %v3158
    %v3167 = vadd.f32 %v3077, %v3161
    %s3168 = scalar_lea.vmem %s4, 11
    %v3169 = vld [vmem:[%s3168] sm:$0x1]
    %v3171 = vlaneseq
    %v3172 = vshrl.u32 %v3171, 7
    %v3173 = vsub.s32 0, %v3172
    %v3174 = vrot.slane %v3169, %v3173
    %v3176 = vadd.f32 %v3164, %v3174
    %v3177 = vadd.f32 %v3165, %v3174
    %v3178 = vadd.f32 %v3166, %v3174
    %v3179 = vadd.f32 %v3167, %v3174
    %v3180 = vtanh.pop %v3176
    %v3181 = vtanh.pop %v3177
    %v3182 = vtanh.pop %v3178
    %v3183 = vtanh.pop %v3179
    %v3184 = vmul.f32 %v3180, 0.5
    %v3185 = vmul.f32 %v3181, 0.5
    %v3186 = vmul.f32 %v3182, 0.5
    %v3187 = vmul.f32 %v3183, 0.5
    %v3188 = vadd.f32 %v3184, 0.5
    %v3189 = vadd.f32 %v3185, 0.5
    %v3190 = vadd.f32 %v3186, 0.5
    %v3191 = vadd.f32 %v3187, 0.5
    %3196 = vrot.lane.b32.xlu0 %v3188, 96
    %v3197 = vpop.permute.xlu0 %3196
    %3198 = vrot.lane.b32.xlu0 %v3189, 96
    %v3199 = vpop.permute.xlu0 %3198
    %3200 = vrot.lane.b32.xlu0 %v3190, 96
    %v3201 = vpop.permute.xlu0 %3200
    %3202 = vrot.lane.b32.xlu0 %v3191, 96
    %v3203 = vpop.permute.xlu0 %3202
    %v3208 = vmul.f32 %v3180, %v3197
    %v3209 = vmul.f32 %v3181, %v3199
    %v3210 = vmul.f32 %v3182, %v3201
    %v3211 = vmul.f32 %v3183, %v3203
    %v3212 = vpack.c.bf16 %v3209, %v3208
    %v3213 = vpack.c.bf16 %v3211, %v3210
    %s3214 = scalar_lea.vmem [#allocation2], 720
    %v3215 = vld [vmem:[%s3214] sm:$0xf]
    %v3216 = vld [vmem:[%s3214 + $0x4] sm:$0xf]
    %v3217 = vld [vmem:[%s3214 + $0x8] sm:$0xf]
    %v3218 = vld [vmem:[%s3214 + $0xc] sm:$0xf]
    %s3219 = scalar_lea.vmem %s4, 15
    %v3220 = vld [vmem:[%s3219] sm:$0x1]
    %v3222 = vlaneseq
    %v3223 = vshrl.u32 %v3222, 7
    %v3224 = vsub.s32 0, %v3223
    %v3225 = vrot.slane %v3220, %v3224
    %v3231 = vunpack.c.l.b16 %v3215
    %v3232 = vunpack.c.l.b16 %v3216
    %v3233 = vunpack.c.l.b16 %v3217
    %v3234 = vunpack.c.l.b16 %v3218
    %v3235 = vpack.c.b16 %v3232, %v3231
    %v3236 = vpack.c.b16 %v3234, %v3233
    %v3240 = vsel %vm343, %v3212, 0
    %v3243 = vsel %vm343, %v3213, 0
    %3245 = vmatprep.subr.bf16.mxu0 0
    %3246 = vmatpush1.bf16.msra.mxu0 %v3235
    %3247 = vmatprep.subr.bf16.mxu0 0
    %3248 = vmatpush1.bf16.msra.mxu0 %v3236
    %3249 = vmatprep.subr.bf16.mxu0 0
    %3250 = vmatpush1.bf16.msra.mxu0 0
    %3251 = vmatprep.subr.bf16.mxu0 0
    %3252 = vmatpush1.bf16.msra.mxu0 0
    %3253 = vmatprep.subr.bf16.mxu0 0
    %3254 = vmatpush1.bf16.msra.mxu0 0
    %3255 = vmatprep.subr.bf16.mxu0 0
    %3256 = vmatpush1.bf16.msra.mxu0 0
    %3257 = vmatprep.subr.bf16.mxu0 0
    %3258 = vmatpush1.bf16.msra.mxu0 0
    %3259 = vmatprep.subr.bf16.mxu0 0
    %3260 = vmatpush1.bf16.msra.mxu0 0
    %3261 = vmatprep.subr.bf16.mxu0 0
    %3262 = vmatpush1.bf16.msra.mxu0 0
    %3263 = vmatprep.subr.bf16.mxu0 0
    %3264 = vmatpush1.bf16.msra.mxu0 0
    %3265 = vmatprep.subr.bf16.mxu0 0
    %3266 = vmatpush1.bf16.msra.mxu0 0
    %3267 = vmatprep.subr.bf16.mxu0 0
    %3268 = vmatpush1.bf16.msra.mxu0 0
    %3269 = vmatprep.subr.bf16.mxu0 0
    %3270 = vmatpush1.bf16.msra.mxu0 0
    %3271 = vmatprep.subr.bf16.mxu0 0
    %3272 = vmatpush1.bf16.msra.mxu0 0
    %3273 = vmatprep.subr.bf16.mxu0 0
    %3274 = vmatpush1.bf16.msra.mxu0 0
    %3275 = vmatprep.subr.bf16.mxu0 0
    %3276 = vmatpush1.bf16.msra.mxu0 0
    %3277 = vmatprep.mubr.bf16.mxu0 0
    %3278 = vmatmul.mubr.bf16.gmra.mrb[0].mxu0 %v3240
    %v3279 = vpop.f32.mrb[0].mxu0
    %v3280 = vadd.f32 %v3225, %v3279
    %v3281 = vpop.f32.mrb[0].mxu0
    %v3282 = vpop.f32.mrb[0].mxu0
    %v3283 = vadd.f32 %v3225, %v3282
    %v3284 = vpop.f32.mrb[0].mxu0
    %3285 = vmatprep.mubr.bf16.mxu0 0
    %3286 = vmatmul.mubr.bf16.gmra.mrb[0].mxu0 %v3243
    %v3287 = vpop.f32.mrb[0].mxu0
    %v3288 = vadd.f32 %v3225, %v3287
    %v3289 = vpop.f32.mrb[0].mxu0
    %v3290 = vpop.f32.mrb[0].mxu0
    %v3291 = vadd.f32 %v3225, %v3290
    %v3292 = vpop.f32.mrb[0].mxu0
    %3293 = vdwg.mxu0
    %v3294 = vadd.f32 %v2734, %v3280
    %v3295 = vadd.f32 %v2735, %v3283
    %v3296 = vadd.f32 %v2736, %v3288
    %v3297 = vadd.f32 %v2737, %v3291
    %v3298 = vmul.f32 %v3294, %v46
    %v3299 = vmul.f32 %v3295, %v51
    %v3300 = vmul.f32 %v3296, %v56
    %v3301 = vmul.f32 %v3297, %v61
    %v3302 = vrot.slane %v3298, 6
    %v3303 = vrot.slane %v3299, 6
    %v3304 = vrot.slane %v3300, 6
    %v3305 = vrot.slane %v3301, 6
    %v3306 = vsel %vm296, %v3304, %v3305
    %v3307 = vsel %vm296, %v3303, %v3304
    %v3308 = vsel %vm296, %v3302, %v3303
    %v3309 = vsel %vm296, %v3305, %v3302
    %v3310 = vmul.f32 %v3309, %v136
    %v3311 = vmul.f32 %v3308, %v137
    %v3312 = vmul.f32 %v3307, %v138
    %v3313 = vmul.f32 %v3306, %v139
    %v3314 = vpack.c.bf16 %v3311, %v3310
    %v3315 = vpack.c.bf16 %v3313, %v3312
    %s3316 = scalar_lea.vmem [#allocation2], 480
    %v3317 = vld [vmem:[%s3316] sm:$0xf]
    %v3318 = vld [vmem:[%s3316 + $0x4] sm:$0xf]
    %v3319 = vld [vmem:[%s3316 + $0x8] sm:$0xf]
    %v3320 = vld [vmem:[%s3316 + $0xc] sm:$0xf]
    %v3321 = vrot.slane %v3298, 7
    %v3322 = vrot.slane %v3299, 7
    %v3323 = vrot.slane %v3300, 7
    %v3324 = vrot.slane %v3301, 7
    %v3325 = vsel %vm315, %v3323, %v3324
    %v3326 = vsel %vm315, %v3322, %v3323
    %v3327 = vsel %vm315, %v3321, %v3322
    %v3328 = vsel %vm315, %v3324, %v3321
    %v3329 = vmul.f32 %v3328, %v160
    %v3330 = vmul.f32 %v3327, %v161
    %v3331 = vmul.f32 %v3326, %v162
    %v3332 = vmul.f32 %v3325, %v163
    %v3333 = vpack.c.bf16 %v3330, %v3329
    %v3334 = vpack.c.bf16 %v3332, %v3331
    %s3335 = scalar_lea.vmem [#allocation2], 496
    %v3336 = vld [vmem:[%s3335] sm:$0xf]
    %v3337 = vld [vmem:[%s3335 + $0x4] sm:$0xf]
    %v3338 = vld [vmem:[%s3335 + $0x8] sm:$0xf]
    %v3339 = vld [vmem:[%s3335 + $0xc] sm:$0xf]
    %v3344 = vunpack.c.l.b16 %v3336
    %v3345 = vunpack.c.l.b16 %v3337
    %v3346 = vunpack.c.l.b16 %v3338
    %v3347 = vunpack.c.l.b16 %v3339
    %v3348 = vpack.c.b16 %v3345, %v3344
    %v3349 = vpack.c.b16 %v3347, %v3346
    %v3353 = vsel %vm343, %v3333, 0
    %v3356 = vsel %vm343, %v3334, 0
    %3358 = vmatprep.subr.bf16.mxu0 0
    %3359 = vmatpush1.bf16.msra.mxu0 %v3348
    %3360 = vmatprep.subr.bf16.mxu0 0
    %3361 = vmatpush1.bf16.msra.mxu0 %v3349
    %3362 = vmatprep.subr.bf16.mxu0 0
    %3363 = vmatpush1.bf16.msra.mxu0 0
    %3364 = vmatprep.subr.bf16.mxu0 0
    %3365 = vmatpush1.bf16.msra.mxu0 0
    %3366 = vmatprep.subr.bf16.mxu0 0
    %3367 = vmatpush1.bf16.msra.mxu0 0
    %3368 = vmatprep.subr.bf16.mxu0 0
    %3369 = vmatpush1.bf16.msra.mxu0 0
    %3370 = vmatprep.subr.bf16.mxu0 0
    %3371 = vmatpush1.bf16.msra.mxu0 0
    %3372 = vmatprep.subr.bf16.mxu0 0
    %3373 = vmatpush1.bf16.msra.mxu0 0
    %3374 = vmatprep.subr.bf16.mxu0 0
    %3375 = vmatpush1.bf16.msra.mxu0 0
    %3376 = vmatprep.subr.bf16.mxu0 0
    %3377 = vmatpush1.bf16.msra.mxu0 0
    %3378 = vmatprep.subr.bf16.mxu0 0
    %3379 = vmatpush1.bf16.msra.mxu0 0
    %3380 = vmatprep.subr.bf16.mxu0 0
    %3381 = vmatpush1.bf16.msra.mxu0 0
    %3382 = vmatprep.subr.bf16.mxu0 0
    %3383 = vmatpush1.bf16.msra.mxu0 0
    %3384 = vmatprep.subr.bf16.mxu0 0
    %3385 = vmatpush1.bf16.msra.mxu0 0
    %3386 = vmatprep.subr.bf16.mxu0 0
    %3387 = vmatpush1.bf16.msra.mxu0 0
    %3388 = vmatprep.subr.bf16.mxu0 0
    %3389 = vmatpush1.bf16.msra.mxu0 0
    %3390 = vmatprep.mubr.bf16.mxu0 0
    %3391 = vmatmul.mubr.bf16.gmra.mrb[0].mxu0 %v3353
    %v3392 = vpop.f32.mrb[0].mxu0
    %v3393 = vadd.f32 0.0, %v3392
    %v3394 = vpop.f32.mrb[0].mxu0
    %v3395 = vpop.f32.mrb[0].mxu0
    %v3396 = vadd.f32 0.0, %v3395
    %v3397 = vpop.f32.mrb[0].mxu0
    %3398 = vmatprep.mubr.bf16.mxu0 0
    %3399 = vmatmul.mubr.bf16.gmra.mrb[0].mxu0 %v3356
    %v3400 = vpop.f32.mrb[0].mxu0
    %v3401 = vadd.f32 0.0, %v3400
    %v3402 = vpop.f32.mrb[0].mxu0
    %v3403 = vpop.f32.mrb[0].mxu0
    %v3404 = vadd.f32 0.0, %v3403
    %v3405 = vpop.f32.mrb[0].mxu0
    %3406 = vdwg.mxu0
    %v3411 = vunpack.c.l.b16 %v3317
    %v3412 = vunpack.c.l.b16 %v3318
    %v3413 = vunpack.c.l.b16 %v3319
    %v3414 = vunpack.c.l.b16 %v3320
    %v3415 = vpack.c.b16 %v3412, %v3411
    %v3416 = vpack.c.b16 %v3414, %v3413
    %v3420 = vsel %vm343, %v3314, 0
    %v3423 = vsel %vm343, %v3315, 0
    %3425 = vmatprep.subr.bf16.mxu0 0
    %3426 = vmatpush1.bf16.msra.mxu0 %v3415
    %3427 = vmatprep.subr.bf16.mxu0 0
    %3428 = vmatpush1.bf16.msra.mxu0 %v3416
    %3429 = vmatprep.subr.bf16.mxu0 0
    %3430 = vmatpush1.bf16.msra.mxu0 0
    %3431 = vmatprep.subr.bf16.mxu0 0
    %3432 = vmatpush1.bf16.msra.mxu0 0
    %3433 = vmatprep.subr.bf16.mxu0 0
    %3434 = vmatpush1.bf16.msra.mxu0 0
    %3435 = vmatprep.subr.bf16.mxu0 0
    %3436 = vmatpush1.bf16.msra.mxu0 0
    %3437 = vmatprep.subr.bf16.mxu0 0
    %3438 = vmatpush1.bf16.msra.mxu0 0
    %3439 = vmatprep.subr.bf16.mxu0 0
    %3440 = vmatpush1.bf16.msra.mxu0 0
    %3441 = vmatprep.subr.bf16.mxu0 0
    %3442 = vmatpush1.bf16.msra.mxu0 0
    %3443 = vmatprep.subr.bf16.mxu0 0
    %3444 = vmatpush1.bf16.msra.mxu0 0
    %3445 = vmatprep.subr.bf16.mxu0 0
    %3446 = vmatpush1.bf16.msra.mxu0 0
    %3447 = vmatprep.subr.bf16.mxu0 0
    %3448 = vmatpush1.bf16.msra.mxu0 0
    %3449 = vmatprep.subr.bf16.mxu0 0
    %3450 = vmatpush1.bf16.msra.mxu0 0
    %3451 = vmatprep.subr.bf16.mxu0 0
    %3452 = vmatpush1.bf16.msra.mxu0 0
    %3453 = vmatprep.subr.bf16.mxu0 0
    %3454 = vmatpush1.bf16.msra.mxu0 0
    %3455 = vmatprep.subr.bf16.mxu0 0
    %3456 = vmatpush1.bf16.msra.mxu0 0
    %3457 = vmatprep.mubr.bf16.mxu0 0
    %3458 = vmatmul.mubr.bf16.gmra.mrb[0].mxu0 %v3420
    %v3459 = vpop.f32.mrb[0].mxu0
    %v3460 = vadd.f32 %v3393, %v3459
    %v3461 = vpop.f32.mrb[0].mxu0
    %v3462 = vpop.f32.mrb[0].mxu0
    %v3463 = vadd.f32 %v3396, %v3462
    %v3464 = vpop.f32.mrb[0].mxu0
    %3465 = vmatprep.mubr.bf16.mxu0 0
    %3466 = vmatmul.mubr.bf16.gmra.mrb[0].mxu0 %v3423
    %v3467 = vpop.f32.mrb[0].mxu0
    %v3468 = vadd.f32 %v3401, %v3467
    %v3469 = vpop.f32.mrb[0].mxu0
    %v3470 = vpop.f32.mrb[0].mxu0
    %v3471 = vadd.f32 %v3404, %v3470
    %v3472 = vpop.f32.mrb[0].mxu0
    %3473 = vdwg.mxu0
    %v3474 = vpack.c.bf16 %v3299, %v3298
    %v3475 = vpack.c.bf16 %v3301, %v3300
    %s3476 = scalar_lea.vmem [#allocation2], 512
    %v3477 = vld [vmem:[%s3476] sm:$0xf]
    %v3478 = vld [vmem:[%s3476 + $0x4] sm:$0xf]
    %v3479 = vld [vmem:[%s3476 + $0x8] sm:$0xf]
    %v3480 = vld [vmem:[%s3476 + $0xc] sm:$0xf]
    %v3485 = vunpack.c.l.b16 %v3477
    %v3486 = vunpack.c.l.b16 %v3478
    %v3487 = vunpack.c.l.b16 %v3479
    %v3488 = vunpack.c.l.b16 %v3480
    %v3489 = vpack.c.b16 %v3486, %v3485
    %v3490 = vpack.c.b16 %v3488, %v3487
    %v3494 = vsel %vm343, %v3474, 0
    %v3497 = vsel %vm343, %v3475, 0
    %3499 = vmatprep.subr.bf16.mxu0 0
    %3500 = vmatpush1.bf16.msra.mxu0 %v3489
    %3501 = vmatprep.subr.bf16.mxu0 0
    %3502 = vmatpush1.bf16.msra.mxu0 %v3490
    %3503 = vmatprep.subr.bf16.mxu0 0
    %3504 = vmatpush1.bf16.msra.mxu0 0
    %3505 = vmatprep.subr.bf16.mxu0 0
    %3506 = vmatpush1.bf16.msra.mxu0 0
    %3507 = vmatprep.subr.bf16.mxu0 0
    %3508 = vmatpush1.bf16.msra.mxu0 0
    %3509 = vmatprep.subr.bf16.mxu0 0
    %3510 = vmatpush1.bf16.msra.mxu0 0
    %3511 = vmatprep.subr.bf16.mxu0 0
    %3512 = vmatpush1.bf16.msra.mxu0 0
    %3513 = vmatprep.subr.bf16.mxu0 0
    %3514 = vmatpush1.bf16.msra.mxu0 0
    %3515 = vmatprep.subr.bf16.mxu0 0
    %3516 = vmatpush1.bf16.msra.mxu0 0
    %3517 = vmatprep.subr.bf16.mxu0 0
    %3518 = vmatpush1.bf16.msra.mxu0 0
    %3519 = vmatprep.subr.bf16.mxu0 0
    %3520 = vmatpush1.bf16.msra.mxu0 0
    %3521 = vmatprep.subr.bf16.mxu0 0
    %3522 = vmatpush1.bf16.msra.mxu0 0
    %3523 = vmatprep.subr.bf16.mxu0 0
    %3524 = vmatpush1.bf16.msra.mxu0 0
    %3525 = vmatprep.subr.bf16.mxu0 0
    %3526 = vmatpush1.bf16.msra.mxu0 0
    %3527 = vmatprep.subr.bf16.mxu0 0
    %3528 = vmatpush1.bf16.msra.mxu0 0
    %3529 = vmatprep.subr.bf16.mxu0 0
    %3530 = vmatpush1.bf16.msra.mxu0 0
    %3531 = vmatprep.mubr.bf16.mxu0 0
    %3532 = vmatmul.mubr.bf16.gmra.mrb[0].mxu0 %v3494
    %v3533 = vpop.f32.mrb[0].mxu0
    %v3534 = vadd.f32 0.0, %v3533
    %v3535 = vpop.f32.mrb[0].mxu0
    %v3536 = vpop.f32.mrb[0].mxu0
    %v3537 = vadd.f32 0.0, %v3536
    %v3538 = vpop.f32.mrb[0].mxu0
    %3539 = vmatprep.mubr.bf16.mxu0 0
    %3540 = vmatmul.mubr.bf16.gmra.mrb[0].mxu0 %v3497
    %v3541 = vpop.f32.mrb[0].mxu0
    %v3542 = vadd.f32 0.0, %v3541
    %v3543 = vpop.f32.mrb[0].mxu0
    %v3544 = vpop.f32.mrb[0].mxu0
    %v3545 = vadd.f32 0.0, %v3544
    %v3546 = vpop.f32.mrb[0].mxu0
    %3547 = vdwg.mxu0
    %v3548 = vadd.f32 %v3460, %v3534
    %v3549 = vadd.f32 %v3463, %v3537
    %v3550 = vadd.f32 %v3468, %v3542
    %v3551 = vadd.f32 %v3471, %v3545
    %v3552 = vrot.slane %v3298, 1
    %v3553 = vrot.slane %v3299, 1
    %v3554 = vrot.slane %v3300, 1
    %v3555 = vrot.slane %v3301, 1
    %v3556 = vsel %vm548, %v3554, %v3555
    %v3557 = vsel %vm548, %v3553, %v3554
    %v3558 = vsel %vm548, %v3552, %v3553
    %v3559 = vsel %vm548, %v3555, %v3552
    %v3560 = vmul.f32 %v3558, %v184
    %v3561 = vmul.f32 %v3557, %v185
    %v3562 = vmul.f32 %v3556, %v186
    %v3563 = vmul.f32 %v3559, %v187
    %v3564 = vpack.c.bf16 %v3561, %v3560
    %v3565 = vpack.c.bf16 %v3563, %v3562
    %s3566 = scalar_lea.vmem [#allocation2], 528
    %v3567 = vld [vmem:[%s3566] sm:$0xf]
    %v3568 = vld [vmem:[%s3566 + $0x4] sm:$0xf]
    %v3569 = vld [vmem:[%s3566 + $0x8] sm:$0xf]
    %v3570 = vld [vmem:[%s3566 + $0xc] sm:$0xf]
    %v3575 = vunpack.c.l.b16 %v3567
    %v3576 = vunpack.c.l.b16 %v3568
    %v3577 = vunpack.c.l.b16 %v3569
    %v3578 = vunpack.c.l.b16 %v3570
    %v3579 = vpack.c.b16 %v3576, %v3575
    %v3580 = vpack.c.b16 %v3578, %v3577
    %v3584 = vsel %vm343, %v3564, 0
    %v3587 = vsel %vm343, %v3565, 0
    %3589 = vmatprep.subr.bf16.mxu0 0
    %3590 = vmatpush1.bf16.msra.mxu0 %v3579
    %3591 = vmatprep.subr.bf16.mxu0 0
    %3592 = vmatpush1.bf16.msra.mxu0 %v3580
    %3593 = vmatprep.subr.bf16.mxu0 0
    %3594 = vmatpush1.bf16.msra.mxu0 0
    %3595 = vmatprep.subr.bf16.mxu0 0
    %3596 = vmatpush1.bf16.msra.mxu0 0
    %3597 = vmatprep.subr.bf16.mxu0 0
    %3598 = vmatpush1.bf16.msra.mxu0 0
    %3599 = vmatprep.subr.bf16.mxu0 0
    %3600 = vmatpush1.bf16.msra.mxu0 0
    %3601 = vmatprep.subr.bf16.mxu0 0
    %3602 = vmatpush1.bf16.msra.mxu0 0
    %3603 = vmatprep.subr.bf16.mxu0 0
    %3604 = vmatpush1.bf16.msra.mxu0 0
    %3605 = vmatprep.subr.bf16.mxu0 0
    %3606 = vmatpush1.bf16.msra.mxu0 0
    %3607 = vmatprep.subr.bf16.mxu0 0
    %3608 = vmatpush1.bf16.msra.mxu0 0
    %3609 = vmatprep.subr.bf16.mxu0 0
    %3610 = vmatpush1.bf16.msra.mxu0 0
    %3611 = vmatprep.subr.bf16.mxu0 0
    %3612 = vmatpush1.bf16.msra.mxu0 0
    %3613 = vmatprep.subr.bf16.mxu0 0
    %3614 = vmatpush1.bf16.msra.mxu0 0
    %3615 = vmatprep.subr.bf16.mxu0 0
    %3616 = vmatpush1.bf16.msra.mxu0 0
    %3617 = vmatprep.subr.bf16.mxu0 0
    %3618 = vmatpush1.bf16.msra.mxu0 0
    %3619 = vmatprep.subr.bf16.mxu0 0
    %3620 = vmatpush1.bf16.msra.mxu0 0
    %3621 = vmatprep.mubr.bf16.mxu0 0
    %3622 = vmatmul.mubr.bf16.gmra.mrb[0].mxu0 %v3584
    %v3623 = vpop.f32.mrb[0].mxu0
    %v3624 = vadd.f32 0.0, %v3623
    %v3625 = vpop.f32.mrb[0].mxu0
    %v3626 = vpop.f32.mrb[0].mxu0
    %v3627 = vadd.f32 0.0, %v3626
    %v3628 = vpop.f32.mrb[0].mxu0
    %3629 = vmatprep.mubr.bf16.mxu0 0
    %3630 = vmatmul.mubr.bf16.gmra.mrb[0].mxu0 %v3587
    %v3631 = vpop.f32.mrb[0].mxu0
    %v3632 = vadd.f32 0.0, %v3631
    %v3633 = vpop.f32.mrb[0].mxu0
    %v3634 = vpop.f32.mrb[0].mxu0
    %v3635 = vadd.f32 0.0, %v3634
    %v3636 = vpop.f32.mrb[0].mxu0
    %3637 = vdwg.mxu0
    %v3638 = vadd.f32 %v3548, %v3624
    %v3639 = vadd.f32 %v3549, %v3627
    %v3640 = vadd.f32 %v3550, %v3632
    %v3641 = vadd.f32 %v3551, %v3635
    %v3642 = vrot.slane %v3298, 2
    %v3643 = vrot.slane %v3299, 2
    %v3644 = vrot.slane %v3300, 2
    %v3645 = vrot.slane %v3301, 2
    %v3646 = vsel %vm639, %v3644, %v3645
    %v3647 = vsel %vm639, %v3643, %v3644
    %v3648 = vsel %vm639, %v3642, %v3643
    %v3649 = vsel %vm639, %v3645, %v3642
    %v3650 = vmul.f32 %v3648, %v208
    %v3651 = vmul.f32 %v3647, %v209
    %v3652 = vmul.f32 %v3646, %v210
    %v3653 = vmul.f32 %v3649, %v211
    %v3654 = vpack.c.bf16 %v3651, %v3650
    %v3655 = vpack.c.bf16 %v3653, %v3652
    %s3656 = scalar_lea.vmem [#allocation2], 544
    %v3657 = vld [vmem:[%s3656] sm:$0xf]
    %v3658 = vld [vmem:[%s3656 + $0x4] sm:$0xf]
    %v3659 = vld [vmem:[%s3656 + $0x8] sm:$0xf]
    %v3660 = vld [vmem:[%s3656 + $0xc] sm:$0xf]
    %v3665 = vunpack.c.l.b16 %v3657
    %v3666 = vunpack.c.l.b16 %v3658
    %v3667 = vunpack.c.l.b16 %v3659
    %v3668 = vunpack.c.l.b16 %v3660
    %v3669 = vpack.c.b16 %v3666, %v3665
    %v3670 = vpack.c.b16 %v3668, %v3667
    %v3674 = vsel %vm343, %v3654, 0
    %v3677 = vsel %vm343, %v3655, 0
    %3679 = vmatprep.subr.bf16.mxu0 0
    %3680 = vmatpush1.bf16.msra.mxu0 %v3669
    %3681 = vmatprep.subr.bf16.mxu0 0
    %3682 = vmatpush1.bf16.msra.mxu0 %v3670
    %3683 = vmatprep.subr.bf16.mxu0 0
    %3684 = vmatpush1.bf16.msra.mxu0 0
    %3685 = vmatprep.subr.bf16.mxu0 0
    %3686 = vmatpush1.bf16.msra.mxu0 0
    %3687 = vmatprep.subr.bf16.mxu0 0
    %3688 = vmatpush1.bf16.msra.mxu0 0
    %3689 = vmatprep.subr.bf16.mxu0 0
    %3690 = vmatpush1.bf16.msra.mxu0 0
    %3691 = vmatprep.subr.bf16.mxu0 0
    %3692 = vmatpush1.bf16.msra.mxu0 0
    %3693 = vmatprep.subr.bf16.mxu0 0
    %3694 = vmatpush1.bf16.msra.mxu0 0
    %3695 = vmatprep.subr.bf16.mxu0 0
    %3696 = vmatpush1.bf16.msra.mxu0 0
    %3697 = vmatprep.subr.bf16.mxu0 0
    %3698 = vmatpush1.bf16.msra.mxu0 0
    %3699 = vmatprep.subr.bf16.mxu0 0
    %3700 = vmatpush1.bf16.msra.mxu0 0
    %3701 = vmatprep.subr.bf16.mxu0 0
    %3702 = vmatpush1.bf16.msra.mxu0 0
    %3703 = vmatprep.subr.bf16.mxu0 0
    %3704 = vmatpush1.bf16.msra.mxu0 0
    %3705 = vmatprep.subr.bf16.mxu0 0
    %3706 = vmatpush1.bf16.msra.mxu0 0
    %3707 = vmatprep.subr.bf16.mxu0 0
    %3708 = vmatpush1.bf16.msra.mxu0 0
    %3709 = vmatprep.subr.bf16.mxu0 0
    %3710 = vmatpush1.bf16.msra.mxu0 0
    %3711 = vmatprep.mubr.bf16.mxu0 0
    %3712 = vmatmul.mubr.bf16.gmra.mrb[0].mxu0 %v3674
    %v3713 = vpop.f32.mrb[0].mxu0
    %v3714 = vadd.f32 0.0, %v3713
    %v3715 = vpop.f32.mrb[0].mxu0
    %v3716 = vpop.f32.mrb[0].mxu0
    %v3717 = vadd.f32 0.0, %v3716
    %v3718 = vpop.f32.mrb[0].mxu0
    %3719 = vmatprep.mubr.bf16.mxu0 0
    %3720 = vmatmul.mubr.bf16.gmra.mrb[0].mxu0 %v3677
    %v3721 = vpop.f32.mrb[0].mxu0
    %v3722 = vadd.f32 0.0, %v3721
    %v3723 = vpop.f32.mrb[0].mxu0
    %v3724 = vpop.f32.mrb[0].mxu0
    %v3725 = vadd.f32 0.0, %v3724
    %v3726 = vpop.f32.mrb[0].mxu0
    %3727 = vdwg.mxu0
    %v3728 = vadd.f32 %v3638, %v3714
    %v3729 = vadd.f32 %v3639, %v3717
    %v3730 = vadd.f32 %v3640, %v3722
    %v3731 = vadd.f32 %v3641, %v3725
    %s3732 = scalar_lea.vmem %s4, 12
    %v3733 = vld [vmem:[%s3732] sm:$0x1]
    %v3735 = vlaneseq
    %v3736 = vshrl.u32 %v3735, 7
    %v3737 = vsub.s32 0, %v3736
    %v3738 = vrot.slane %v3733, %v3737
    %v3740 = vadd.f32 %v3728, %v3738
    %v3741 = vadd.f32 %v3729, %v3738
    %v3742 = vadd.f32 %v3730, %v3738
    %v3743 = vadd.f32 %v3731, %v3738
    %v3744 = vtanh.pop %v3740
    %v3745 = vtanh.pop %v3741
    %v3746 = vtanh.pop %v3742
    %v3747 = vtanh.pop %v3743
    %v3748 = vmul.f32 %v3744, 0.5
    %v3749 = vmul.f32 %v3745, 0.5
    %v3750 = vmul.f32 %v3746, 0.5
    %v3751 = vmul.f32 %v3747, 0.5
    %v3752 = vadd.f32 %v3748, 0.5
    %v3753 = vadd.f32 %v3749, 0.5
    %v3754 = vadd.f32 %v3750, 0.5
    %v3755 = vadd.f32 %v3751, 0.5
    %3760 = vrot.lane.b32.xlu0 %v3752, 96
    %v3761 = vpop.permute.xlu0 %3760
    %3762 = vrot.lane.b32.xlu0 %v3753, 96
    %v3763 = vpop.permute.xlu0 %3762
    %3764 = vrot.lane.b32.xlu0 %v3754, 96
    %v3765 = vpop.permute.xlu0 %3764
    %3766 = vrot.lane.b32.xlu0 %v3755, 96
    %v3767 = vpop.permute.xlu0 %3766
    %v3772 = vmul.f32 %v3744, %v3761
    %v3773 = vmul.f32 %v3745, %v3763
    %v3774 = vmul.f32 %v3746, %v3765
    %v3775 = vmul.f32 %v3747, %v3767
    %v3776 = vpack.c.bf16 %v3773, %v3772
    %v3777 = vpack.c.bf16 %v3775, %v3774
    %s3778 = scalar_lea.vmem [#allocation2], 736
    %v3779 = vld [vmem:[%s3778] sm:$0xf]
    %v3780 = vld [vmem:[%s3778 + $0x4] sm:$0xf]
    %v3781 = vld [vmem:[%s3778 + $0x8] sm:$0xf]
    %v3782 = vld [vmem:[%s3778 + $0xc] sm:$0xf]
    %s3783 = scalar_lea.vmem %s4, 16
    %v3784 = vld [vmem:[%s3783] sm:$0x1]
    %v3786 = vlaneseq
    %v3787 = vshrl.u32 %v3786, 7
    %v3788 = vsub.s32 0, %v3787
    %v3789 = vrot.slane %v3784, %v3788
    %v3795 = vunpack.c.l.b16 %v3779
    %v3796 = vunpack.c.l.b16 %v3780
    %v3797 = vunpack.c.l.b16 %v3781
    %v3798 = vunpack.c.l.b16 %v3782
    %v3799 = vpack.c.b16 %v3796, %v3795
    %v3800 = vpack.c.b16 %v3798, %v3797
    %v3804 = vsel %vm343, %v3776, 0
    %v3807 = vsel %vm343, %v3777, 0
    %3809 = vmatprep.subr.bf16.mxu0 0
    %3810 = vmatpush1.bf16.msra.mxu0 %v3799
    %3811 = vmatprep.subr.bf16.mxu0 0
    %3812 = vmatpush1.bf16.msra.mxu0 %v3800
    %3813 = vmatprep.subr.bf16.mxu0 0
    %3814 = vmatpush1.bf16.msra.mxu0 0
    %3815 = vmatprep.subr.bf16.mxu0 0
    %3816 = vmatpush1.bf16.msra.mxu0 0
    %3817 = vmatprep.subr.bf16.mxu0 0
    %3818 = vmatpush1.bf16.msra.mxu0 0
    %3819 = vmatprep.subr.bf16.mxu0 0
    %3820 = vmatpush1.bf16.msra.mxu0 0
    %3821 = vmatprep.subr.bf16.mxu0 0
    %3822 = vmatpush1.bf16.msra.mxu0 0
    %3823 = vmatprep.subr.bf16.mxu0 0
    %3824 = vmatpush1.bf16.msra.mxu0 0
    %3825 = vmatprep.subr.bf16.mxu0 0
    %3826 = vmatpush1.bf16.msra.mxu0 0
    %3827 = vmatprep.subr.bf16.mxu0 0
    %3828 = vmatpush1.bf16.msra.mxu0 0
    %3829 = vmatprep.subr.bf16.mxu0 0
    %3830 = vmatpush1.bf16.msra.mxu0 0
    %3831 = vmatprep.subr.bf16.mxu0 0
    %3832 = vmatpush1.bf16.msra.mxu0 0
    %3833 = vmatprep.subr.bf16.mxu0 0
    %3834 = vmatpush1.bf16.msra.mxu0 0
    %3835 = vmatprep.subr.bf16.mxu0 0
    %3836 = vmatpush1.bf16.msra.mxu0 0
    %3837 = vmatprep.subr.bf16.mxu0 0
    %3838 = vmatpush1.bf16.msra.mxu0 0
    %3839 = vmatprep.subr.bf16.mxu0 0
    %3840 = vmatpush1.bf16.msra.mxu0 0
    %3841 = vmatprep.mubr.bf16.mxu0 0
    %3842 = vmatmul.mubr.bf16.gmra.mrb[0].mxu0 %v3804
    %v3843 = vpop.f32.mrb[0].mxu0
    %v3844 = vadd.f32 %v3789, %v3843
    %v3845 = vpop.f32.mrb[0].mxu0
    %v3846 = vpop.f32.mrb[0].mxu0
    %v3847 = vadd.f32 %v3789, %v3846
    %v3848 = vpop.f32.mrb[0].mxu0
    %3849 = vmatprep.mubr.bf16.mxu0 0
    %3850 = vmatmul.mubr.bf16.gmra.mrb[0].mxu0 %v3807
    %v3851 = vpop.f32.mrb[0].mxu0
    %v3852 = vadd.f32 %v3789, %v3851
    %v3853 = vpop.f32.mrb[0].mxu0
    %v3854 = vpop.f32.mrb[0].mxu0
    %v3855 = vadd.f32 %v3789, %v3854
    %v3856 = vpop.f32.mrb[0].mxu0
    %3857 = vdwg.mxu0
    %v3858 = vadd.f32 %v3298, %v3844
    %v3859 = vadd.f32 %v3299, %v3847
    %v3860 = vadd.f32 %v3300, %v3852
    %v3861 = vadd.f32 %v3301, %v3855
    %v3862 = vmul.f32 %v3858, %v46
    %v3863 = vmul.f32 %v3859, %v51
    %v3864 = vmul.f32 %v3860, %v56
    %v3865 = vmul.f32 %v3861, %v61
    %v3866 = vadd.f32 %v3280, %v3844
    %v3867 = vadd.f32 %v3283, %v3847
    %v3868 = vadd.f32 %v3288, %v3852
    %v3869 = vadd.f32 %v3291, %v3855
    %v3870 = vrot.slane %v3862, 6
    %v3871 = vrot.slane %v3863, 6
    %v3872 = vrot.slane %v3864, 6
    %v3873 = vrot.slane %v3865, 6
    %v3874 = vsel %vm296, %v3872, %v3873
    %v3875 = vsel %vm296, %v3871, %v3872
    %v3876 = vsel %vm296, %v3870, %v3871
    %v3877 = vsel %vm296, %v3873, %v3870
    %v3878 = vmul.f32 %v3877, %v136
    %v3879 = vmul.f32 %v3876, %v137
    %v3880 = vmul.f32 %v3875, %v138
    %v3881 = vmul.f32 %v3874, %v139
    %v3882 = vpack.c.bf16 %v3879, %v3878
    %v3883 = vpack.c.bf16 %v3881, %v3880
    %s3884 = scalar_lea.vmem [#allocation2], 560
    %v3885 = vld [vmem:[%s3884] sm:$0xf]
    %v3886 = vld [vmem:[%s3884 + $0x4] sm:$0xf]
    %v3887 = vld [vmem:[%s3884 + $0x8] sm:$0xf]
    %v3888 = vld [vmem:[%s3884 + $0xc] sm:$0xf]
    %v3889 = vrot.slane %v3862, 7
    %v3890 = vrot.slane %v3863, 7
    %v3891 = vrot.slane %v3864, 7
    %v3892 = vrot.slane %v3865, 7
    %v3893 = vsel %vm315, %v3891, %v3892
    %v3894 = vsel %vm315, %v3890, %v3891
    %v3895 = vsel %vm315, %v3889, %v3890
    %v3896 = vsel %vm315, %v3892, %v3889
    %v3897 = vmul.f32 %v3896, %v160
    %v3898 = vmul.f32 %v3895, %v161
    %v3899 = vmul.f32 %v3894, %v162
    %v3900 = vmul.f32 %v3893, %v163
    %v3901 = vpack.c.bf16 %v3898, %v3897
    %v3902 = vpack.c.bf16 %v3900, %v3899
    %s3903 = scalar_lea.vmem [#allocation2], 576
    %v3904 = vld [vmem:[%s3903] sm:$0xf]
    %v3905 = vld [vmem:[%s3903 + $0x4] sm:$0xf]
    %v3906 = vld [vmem:[%s3903 + $0x8] sm:$0xf]
    %v3907 = vld [vmem:[%s3903 + $0xc] sm:$0xf]
    %v3912 = vunpack.c.l.b16 %v3904
    %v3913 = vunpack.c.l.b16 %v3905
    %v3914 = vunpack.c.l.b16 %v3906
    %v3915 = vunpack.c.l.b16 %v3907
    %v3916 = vpack.c.b16 %v3913, %v3912
    %v3917 = vpack.c.b16 %v3915, %v3914
    %v3921 = vsel %vm343, %v3901, 0
    %v3924 = vsel %vm343, %v3902, 0
    %3926 = vmatprep.subr.bf16.mxu0 0
    %3927 = vmatpush1.bf16.msra.mxu0 %v3916
    %3928 = vmatprep.subr.bf16.mxu0 0
    %3929 = vmatpush1.bf16.msra.mxu0 %v3917
    %3930 = vmatprep.subr.bf16.mxu0 0
    %3931 = vmatpush1.bf16.msra.mxu0 0
    %3932 = vmatprep.subr.bf16.mxu0 0
    %3933 = vmatpush1.bf16.msra.mxu0 0
    %3934 = vmatprep.subr.bf16.mxu0 0
    %3935 = vmatpush1.bf16.msra.mxu0 0
    %3936 = vmatprep.subr.bf16.mxu0 0
    %3937 = vmatpush1.bf16.msra.mxu0 0
    %3938 = vmatprep.subr.bf16.mxu0 0
    %3939 = vmatpush1.bf16.msra.mxu0 0
    %3940 = vmatprep.subr.bf16.mxu0 0
    %3941 = vmatpush1.bf16.msra.mxu0 0
    %3942 = vmatprep.subr.bf16.mxu0 0
    %3943 = vmatpush1.bf16.msra.mxu0 0
    %3944 = vmatprep.subr.bf16.mxu0 0
    %3945 = vmatpush1.bf16.msra.mxu0 0
    %3946 = vmatprep.subr.bf16.mxu0 0
    %3947 = vmatpush1.bf16.msra.mxu0 0
    %3948 = vmatprep.subr.bf16.mxu0 0
    %3949 = vmatpush1.bf16.msra.mxu0 0
    %3950 = vmatprep.subr.bf16.mxu0 0
    %3951 = vmatpush1.bf16.msra.mxu0 0
    %3952 = vmatprep.subr.bf16.mxu0 0
    %3953 = vmatpush1.bf16.msra.mxu0 0
    %3954 = vmatprep.subr.bf16.mxu0 0
    %3955 = vmatpush1.bf16.msra.mxu0 0
    %3956 = vmatprep.subr.bf16.mxu0 0
    %3957 = vmatpush1.bf16.msra.mxu0 0
    %3958 = vmatprep.mubr.bf16.mxu0 0
    %3959 = vmatmul.mubr.bf16.gmra.mrb[0].mxu0 %v3921
    %v3960 = vpop.f32.mrb[0].mxu0
    %v3961 = vadd.f32 0.0, %v3960
    %v3962 = vpop.f32.mrb[0].mxu0
    %v3963 = vpop.f32.mrb[0].mxu0
    %v3964 = vadd.f32 0.0, %v3963
    %v3965 = vpop.f32.mrb[0].mxu0
    %3966 = vmatprep.mubr.bf16.mxu0 0
    %3967 = vmatmul.mubr.bf16.gmra.mrb[0].mxu0 %v3924
    %v3968 = vpop.f32.mrb[0].mxu0
    %v3969 = vadd.f32 0.0, %v3968
    %v3970 = vpop.f32.mrb[0].mxu0
    %v3971 = vpop.f32.mrb[0].mxu0
    %v3972 = vadd.f32 0.0, %v3971
    %v3973 = vpop.f32.mrb[0].mxu0
    %3974 = vdwg.mxu0
    %v3979 = vunpack.c.l.b16 %v3885
    %v3980 = vunpack.c.l.b16 %v3886
    %v3981 = vunpack.c.l.b16 %v3887
    %v3982 = vunpack.c.l.b16 %v3888
    %v3983 = vpack.c.b16 %v3980, %v3979
    %v3984 = vpack.c.b16 %v3982, %v3981
    %v3988 = vsel %vm343, %v3882, 0
    %v3991 = vsel %vm343, %v3883, 0
    %3993 = vmatprep.subr.bf16.mxu0 0
    %3994 = vmatpush1.bf16.msra.mxu0 %v3983
    %3995 = vmatprep.subr.bf16.mxu0 0
    %3996 = vmatpush1.bf16.msra.mxu0 %v3984
    %3997 = vmatprep.subr.bf16.mxu0 0
    %3998 = vmatpush1.bf16.msra.mxu0 0
    %3999 = vmatprep.subr.bf16.mxu0 0
    %4000 = vmatpush1.bf16.msra.mxu0 0
    %4001 = vmatprep.subr.bf16.mxu0 0
    %4002 = vmatpush1.bf16.msra.mxu0 0
    %4003 = vmatprep.subr.bf16.mxu0 0
    %4004 = vmatpush1.bf16.msra.mxu0 0
    %4005 = vmatprep.subr.bf16.mxu0 0
    %4006 = vmatpush1.bf16.msra.mxu0 0
    %4007 = vmatprep.subr.bf16.mxu0 0
    %4008 = vmatpush1.bf16.msra.mxu0 0
    %4009 = vmatprep.subr.bf16.mxu0 0
    %4010 = vmatpush1.bf16.msra.mxu0 0
    %4011 = vmatprep.subr.bf16.mxu0 0
    %4012 = vmatpush1.bf16.msra.mxu0 0
    %4013 = vmatprep.subr.bf16.mxu0 0
    %4014 = vmatpush1.bf16.msra.mxu0 0
    %4015 = vmatprep.subr.bf16.mxu0 0
    %4016 = vmatpush1.bf16.msra.mxu0 0
    %4017 = vmatprep.subr.bf16.mxu0 0
    %4018 = vmatpush1.bf16.msra.mxu0 0
    %4019 = vmatprep.subr.bf16.mxu0 0
    %4020 = vmatpush1.bf16.msra.mxu0 0
    %4021 = vmatprep.subr.bf16.mxu0 0
    %4022 = vmatpush1.bf16.msra.mxu0 0
    %4023 = vmatprep.subr.bf16.mxu0 0
    %4024 = vmatpush1.bf16.msra.mxu0 0
    %4025 = vmatprep.mubr.bf16.mxu0 0
    %4026 = vmatmul.mubr.bf16.gmra.mrb[0].mxu0 %v3988
    %v4027 = vpop.f32.mrb[0].mxu0
    %v4028 = vadd.f32 %v3961, %v4027
    %v4029 = vpop.f32.mrb[0].mxu0
    %v4030 = vpop.f32.mrb[0].mxu0
    %v4031 = vadd.f32 %v3964, %v4030
    %v4032 = vpop.f32.mrb[0].mxu0
    %4033 = vmatprep.mubr.bf16.mxu0 0
    %4034 = vmatmul.mubr.bf16.gmra.mrb[0].mxu0 %v3991
    %v4035 = vpop.f32.mrb[0].mxu0
    %v4036 = vadd.f32 %v3969, %v4035
    %v4037 = vpop.f32.mrb[0].mxu0
    %v4038 = vpop.f32.mrb[0].mxu0
    %v4039 = vadd.f32 %v3972, %v4038
    %v4040 = vpop.f32.mrb[0].mxu0
    %4041 = vdwg.mxu0
    %v4042 = vpack.c.bf16 %v3863, %v3862
    %v4043 = vpack.c.bf16 %v3865, %v3864
    %s4044 = scalar_lea.vmem [#allocation2], 592
    %v4045 = vld [vmem:[%s4044] sm:$0xf]
    %v4046 = vld [vmem:[%s4044 + $0x4] sm:$0xf]
    %v4047 = vld [vmem:[%s4044 + $0x8] sm:$0xf]
    %v4048 = vld [vmem:[%s4044 + $0xc] sm:$0xf]
    %v4053 = vunpack.c.l.b16 %v4045
    %v4054 = vunpack.c.l.b16 %v4046
    %v4055 = vunpack.c.l.b16 %v4047
    %v4056 = vunpack.c.l.b16 %v4048
    %v4057 = vpack.c.b16 %v4054, %v4053
    %v4058 = vpack.c.b16 %v4056, %v4055
    %v4062 = vsel %vm343, %v4042, 0
    %v4065 = vsel %vm343, %v4043, 0
    %4067 = vmatprep.subr.bf16.mxu0 0
    %4068 = vmatpush1.bf16.msra.mxu0 %v4057
    %4069 = vmatprep.subr.bf16.mxu0 0
    %4070 = vmatpush1.bf16.msra.mxu0 %v4058
    %4071 = vmatprep.subr.bf16.mxu0 0
    %4072 = vmatpush1.bf16.msra.mxu0 0
    %4073 = vmatprep.subr.bf16.mxu0 0
    %4074 = vmatpush1.bf16.msra.mxu0 0
    %4075 = vmatprep.subr.bf16.mxu0 0
    %4076 = vmatpush1.bf16.msra.mxu0 0
    %4077 = vmatprep.subr.bf16.mxu0 0
    %4078 = vmatpush1.bf16.msra.mxu0 0
    %4079 = vmatprep.subr.bf16.mxu0 0
    %4080 = vmatpush1.bf16.msra.mxu0 0
    %4081 = vmatprep.subr.bf16.mxu0 0
    %4082 = vmatpush1.bf16.msra.mxu0 0
    %4083 = vmatprep.subr.bf16.mxu0 0
    %4084 = vmatpush1.bf16.msra.mxu0 0
    %4085 = vmatprep.subr.bf16.mxu0 0
    %4086 = vmatpush1.bf16.msra.mxu0 0
    %4087 = vmatprep.subr.bf16.mxu0 0
    %4088 = vmatpush1.bf16.msra.mxu0 0
    %4089 = vmatprep.subr.bf16.mxu0 0
    %4090 = vmatpush1.bf16.msra.mxu0 0
    %4091 = vmatprep.subr.bf16.mxu0 0
    %4092 = vmatpush1.bf16.msra.mxu0 0
    %4093 = vmatprep.subr.bf16.mxu0 0
    %4094 = vmatpush1.bf16.msra.mxu0 0
    %4095 = vmatprep.subr.bf16.mxu0 0
    %4096 = vmatpush1.bf16.msra.mxu0 0
    %4097 = vmatprep.subr.bf16.mxu0 0
    %4098 = vmatpush1.bf16.msra.mxu0 0
    %4099 = vmatprep.mubr.bf16.mxu0 0
    %4100 = vmatmul.mubr.bf16.gmra.mrb[0].mxu0 %v4062
    %v4101 = vpop.f32.mrb[0].mxu0
    %v4102 = vadd.f32 0.0, %v4101
    %v4103 = vpop.f32.mrb[0].mxu0
    %v4104 = vpop.f32.mrb[0].mxu0
    %v4105 = vadd.f32 0.0, %v4104
    %v4106 = vpop.f32.mrb[0].mxu0
    %4107 = vmatprep.mubr.bf16.mxu0 0
    %4108 = vmatmul.mubr.bf16.gmra.mrb[0].mxu0 %v4065
    %v4109 = vpop.f32.mrb[0].mxu0
    %v4110 = vadd.f32 0.0, %v4109
    %v4111 = vpop.f32.mrb[0].mxu0
    %v4112 = vpop.f32.mrb[0].mxu0
    %v4113 = vadd.f32 0.0, %v4112
    %v4114 = vpop.f32.mrb[0].mxu0
    %4115 = vdwg.mxu0
    %v4116 = vadd.f32 %v4028, %v4102
    %v4117 = vadd.f32 %v4031, %v4105
    %v4118 = vadd.f32 %v4036, %v4110
    %v4119 = vadd.f32 %v4039, %v4113
    %v4120 = vrot.slane %v3862, 1
    %v4121 = vrot.slane %v3863, 1
    %v4122 = vrot.slane %v3864, 1
    %v4123 = vrot.slane %v3865, 1
    %v4124 = vsel %vm548, %v4122, %v4123
    %v4125 = vsel %vm548, %v4121, %v4122
    %v4126 = vsel %vm548, %v4120, %v4121
    %v4127 = vsel %vm548, %v4123, %v4120
    %v4128 = vmul.f32 %v4126, %v184
    %v4129 = vmul.f32 %v4125, %v185
    %v4130 = vmul.f32 %v4124, %v186
    %v4131 = vmul.f32 %v4127, %v187
    %v4132 = vpack.c.bf16 %v4129, %v4128
    %v4133 = vpack.c.bf16 %v4131, %v4130
    %s4134 = scalar_lea.vmem [#allocation2], 608
    %v4135 = vld [vmem:[%s4134] sm:$0xf]
    %v4136 = vld [vmem:[%s4134 + $0x4] sm:$0xf]
    %v4137 = vld [vmem:[%s4134 + $0x8] sm:$0xf]
    %v4138 = vld [vmem:[%s4134 + $0xc] sm:$0xf]
    %v4143 = vunpack.c.l.b16 %v4135
    %v4144 = vunpack.c.l.b16 %v4136
    %v4145 = vunpack.c.l.b16 %v4137
    %v4146 = vunpack.c.l.b16 %v4138
    %v4147 = vpack.c.b16 %v4144, %v4143
    %v4148 = vpack.c.b16 %v4146, %v4145
    %v4152 = vsel %vm343, %v4132, 0
    %v4155 = vsel %vm343, %v4133, 0
    %4157 = vmatprep.subr.bf16.mxu0 0
    %4158 = vmatpush1.bf16.msra.mxu0 %v4147
    %4159 = vmatprep.subr.bf16.mxu0 0
    %4160 = vmatpush1.bf16.msra.mxu0 %v4148
    %4161 = vmatprep.subr.bf16.mxu0 0
    %4162 = vmatpush1.bf16.msra.mxu0 0
    %4163 = vmatprep.subr.bf16.mxu0 0
    %4164 = vmatpush1.bf16.msra.mxu0 0
    %4165 = vmatprep.subr.bf16.mxu0 0
    %4166 = vmatpush1.bf16.msra.mxu0 0
    %4167 = vmatprep.subr.bf16.mxu0 0
    %4168 = vmatpush1.bf16.msra.mxu0 0
    %4169 = vmatprep.subr.bf16.mxu0 0
    %4170 = vmatpush1.bf16.msra.mxu0 0
    %4171 = vmatprep.subr.bf16.mxu0 0
    %4172 = vmatpush1.bf16.msra.mxu0 0
    %4173 = vmatprep.subr.bf16.mxu0 0
    %4174 = vmatpush1.bf16.msra.mxu0 0
    %4175 = vmatprep.subr.bf16.mxu0 0
    %4176 = vmatpush1.bf16.msra.mxu0 0
    %4177 = vmatprep.subr.bf16.mxu0 0
    %4178 = vmatpush1.bf16.msra.mxu0 0
    %4179 = vmatprep.subr.bf16.mxu0 0
    %4180 = vmatpush1.bf16.msra.mxu0 0
    %4181 = vmatprep.subr.bf16.mxu0 0
    %4182 = vmatpush1.bf16.msra.mxu0 0
    %4183 = vmatprep.subr.bf16.mxu0 0
    %4184 = vmatpush1.bf16.msra.mxu0 0
    %4185 = vmatprep.subr.bf16.mxu0 0
    %4186 = vmatpush1.bf16.msra.mxu0 0
    %4187 = vmatprep.subr.bf16.mxu0 0
    %4188 = vmatpush1.bf16.msra.mxu0 0
    %4189 = vmatprep.mubr.bf16.mxu0 0
    %4190 = vmatmul.mubr.bf16.gmra.mrb[0].mxu0 %v4152
    %v4191 = vpop.f32.mrb[0].mxu0
    %v4192 = vadd.f32 0.0, %v4191
    %v4193 = vpop.f32.mrb[0].mxu0
    %v4194 = vpop.f32.mrb[0].mxu0
    %v4195 = vadd.f32 0.0, %v4194
    %v4196 = vpop.f32.mrb[0].mxu0
    %4197 = vmatprep.mubr.bf16.mxu0 0
    %4198 = vmatmul.mubr.bf16.gmra.mrb[0].mxu0 %v4155
    %v4199 = vpop.f32.mrb[0].mxu0
    %v4200 = vadd.f32 0.0, %v4199
    %v4201 = vpop.f32.mrb[0].mxu0
    %v4202 = vpop.f32.mrb[0].mxu0
    %v4203 = vadd.f32 0.0, %v4202
    %v4204 = vpop.f32.mrb[0].mxu0
    %4205 = vdwg.mxu0
    %v4206 = vadd.f32 %v4116, %v4192
    %v4207 = vadd.f32 %v4117, %v4195
    %v4208 = vadd.f32 %v4118, %v4200
    %v4209 = vadd.f32 %v4119, %v4203
    %v4210 = vrot.slane %v3862, 2
    %v4211 = vrot.slane %v3863, 2
    %v4212 = vrot.slane %v3864, 2
    %v4213 = vrot.slane %v3865, 2
    %v4214 = vsel %vm639, %v4212, %v4213
    %v4215 = vsel %vm639, %v4211, %v4212
    %v4216 = vsel %vm639, %v4210, %v4211
    %v4217 = vsel %vm639, %v4213, %v4210
    %v4218 = vmul.f32 %v4216, %v208
    %v4219 = vmul.f32 %v4215, %v209
    %v4220 = vmul.f32 %v4214, %v210
    %v4221 = vmul.f32 %v4217, %v211
    %v4222 = vpack.c.bf16 %v4219, %v4218
    %v4223 = vpack.c.bf16 %v4221, %v4220
    %s4224 = scalar_lea.vmem [#allocation2], 624
    %v4225 = vld [vmem:[%s4224] sm:$0xf]
    %v4226 = vld [vmem:[%s4224 + $0x4] sm:$0xf]
    %v4227 = vld [vmem:[%s4224 + $0x8] sm:$0xf]
    %v4228 = vld [vmem:[%s4224 + $0xc] sm:$0xf]
    %v4233 = vunpack.c.l.b16 %v4225
    %v4234 = vunpack.c.l.b16 %v4226
    %v4235 = vunpack.c.l.b16 %v4227
    %v4236 = vunpack.c.l.b16 %v4228
    %v4237 = vpack.c.b16 %v4234, %v4233
    %v4238 = vpack.c.b16 %v4236, %v4235
    %v4242 = vsel %vm343, %v4222, 0
    %v4245 = vsel %vm343, %v4223, 0
    %4247 = vmatprep.subr.bf16.mxu0 0
    %4248 = vmatpush1.bf16.msra.mxu0 %v4237
    %4249 = vmatprep.subr.bf16.mxu0 0
    %4250 = vmatpush1.bf16.msra.mxu0 %v4238
    %4251 = vmatprep.subr.bf16.mxu0 0
    %4252 = vmatpush1.bf16.msra.mxu0 0
    %4253 = vmatprep.subr.bf16.mxu0 0
    %4254 = vmatpush1.bf16.msra.mxu0 0
    %4255 = vmatprep.subr.bf16.mxu0 0
    %4256 = vmatpush1.bf16.msra.mxu0 0
    %4257 = vmatprep.subr.bf16.mxu0 0
    %4258 = vmatpush1.bf16.msra.mxu0 0
    %4259 = vmatprep.subr.bf16.mxu0 0
    %4260 = vmatpush1.bf16.msra.mxu0 0
    %4261 = vmatprep.subr.bf16.mxu0 0
    %4262 = vmatpush1.bf16.msra.mxu0 0
    %4263 = vmatprep.subr.bf16.mxu0 0
    %4264 = vmatpush1.bf16.msra.mxu0 0
    %4265 = vmatprep.subr.bf16.mxu0 0
    %4266 = vmatpush1.bf16.msra.mxu0 0
    %4267 = vmatprep.subr.bf16.mxu0 0
    %4268 = vmatpush1.bf16.msra.mxu0 0
    %4269 = vmatprep.subr.bf16.mxu0 0
    %4270 = vmatpush1.bf16.msra.mxu0 0
    %4271 = vmatprep.subr.bf16.mxu0 0
    %4272 = vmatpush1.bf16.msra.mxu0 0
    %4273 = vmatprep.subr.bf16.mxu0 0
    %4274 = vmatpush1.bf16.msra.mxu0 0
    %4275 = vmatprep.subr.bf16.mxu0 0
    %4276 = vmatpush1.bf16.msra.mxu0 0
    %4277 = vmatprep.subr.bf16.mxu0 0
    %4278 = vmatpush1.bf16.msra.mxu0 0
    %4279 = vmatprep.mubr.bf16.mxu0 0
    %4280 = vmatmul.mubr.bf16.gmra.mrb[0].mxu0 %v4242
    %v4281 = vpop.f32.mrb[0].mxu0
    %v4282 = vadd.f32 0.0, %v4281
    %v4283 = vpop.f32.mrb[0].mxu0
    %v4284 = vpop.f32.mrb[0].mxu0
    %v4285 = vadd.f32 0.0, %v4284
    %v4286 = vpop.f32.mrb[0].mxu0
    %4287 = vmatprep.mubr.bf16.mxu0 0
    %4288 = vmatmul.mubr.bf16.gmra.mrb[0].mxu0 %v4245
    %v4289 = vpop.f32.mrb[0].mxu0
    %v4290 = vadd.f32 0.0, %v4289
    %v4291 = vpop.f32.mrb[0].mxu0
    %v4292 = vpop.f32.mrb[0].mxu0
    %v4293 = vadd.f32 0.0, %v4292
    %v4294 = vpop.f32.mrb[0].mxu0
    %4295 = vdwg.mxu0
    %v4296 = vadd.f32 %v4206, %v4282
    %v4297 = vadd.f32 %v4207, %v4285
    %v4298 = vadd.f32 %v4208, %v4290
    %v4299 = vadd.f32 %v4209, %v4293
    %s4300 = scalar_lea.vmem %s4, 13
    %v4301 = vld [vmem:[%s4300] sm:$0x1]
    %v4303 = vlaneseq
    %v4304 = vshrl.u32 %v4303, 7
    %v4305 = vsub.s32 0, %v4304
    %v4306 = vrot.slane %v4301, %v4305
    %v4308 = vadd.f32 %v4296, %v4306
    %v4309 = vadd.f32 %v4297, %v4306
    %v4310 = vadd.f32 %v4298, %v4306
    %v4311 = vadd.f32 %v4299, %v4306
    %v4312 = vtanh.pop %v4308
    %v4313 = vtanh.pop %v4309
    %v4314 = vtanh.pop %v4310
    %v4315 = vtanh.pop %v4311
    %v4316 = vmul.f32 %v4312, 0.5
    %v4317 = vmul.f32 %v4313, 0.5
    %v4318 = vmul.f32 %v4314, 0.5
    %v4319 = vmul.f32 %v4315, 0.5
    %v4320 = vadd.f32 %v4316, 0.5
    %v4321 = vadd.f32 %v4317, 0.5
    %v4322 = vadd.f32 %v4318, 0.5
    %v4323 = vadd.f32 %v4319, 0.5
    %4328 = vrot.lane.b32.xlu0 %v4320, 96
    %v4329 = vpop.permute.xlu0 %4328
    %4330 = vrot.lane.b32.xlu0 %v4321, 96
    %v4331 = vpop.permute.xlu0 %4330
    %4332 = vrot.lane.b32.xlu0 %v4322, 96
    %v4333 = vpop.permute.xlu0 %4332
    %4334 = vrot.lane.b32.xlu0 %v4323, 96
    %v4335 = vpop.permute.xlu0 %4334
    %v4340 = vmul.f32 %v4312, %v4329
    %v4341 = vmul.f32 %v4313, %v4331
    %v4342 = vmul.f32 %v4314, %v4333
    %v4343 = vmul.f32 %v4315, %v4335
    %v4344 = vpack.c.bf16 %v4341, %v4340
    %v4345 = vpack.c.bf16 %v4343, %v4342
    %s4346 = scalar_lea.vmem [#allocation2], 752
    %v4347 = vld [vmem:[%s4346] sm:$0xf]
    %v4348 = vld [vmem:[%s4346 + $0x4] sm:$0xf]
    %v4349 = vld [vmem:[%s4346 + $0x8] sm:$0xf]
    %v4350 = vld [vmem:[%s4346 + $0xc] sm:$0xf]
    %s4351 = scalar_lea.vmem %s4, 17
    %v4352 = vld [vmem:[%s4351] sm:$0x1]
    %v4354 = vlaneseq
    %v4355 = vshrl.u32 %v4354, 7
    %v4356 = vsub.s32 0, %v4355
    %v4357 = vrot.slane %v4352, %v4356
    %v4363 = vunpack.c.l.b16 %v4347
    %v4364 = vunpack.c.l.b16 %v4348
    %v4365 = vunpack.c.l.b16 %v4349
    %v4366 = vunpack.c.l.b16 %v4350
    %v4367 = vpack.c.b16 %v4364, %v4363
    %v4368 = vpack.c.b16 %v4366, %v4365
    %v4372 = vsel %vm343, %v4344, 0
    %v4375 = vsel %vm343, %v4345, 0
    %4377 = vmatprep.subr.bf16.mxu0 0
    %4378 = vmatpush1.bf16.msra.mxu0 %v4367
    %4379 = vmatprep.subr.bf16.mxu0 0
    %4380 = vmatpush1.bf16.msra.mxu0 %v4368
    %4381 = vmatprep.subr.bf16.mxu0 0
    %4382 = vmatpush1.bf16.msra.mxu0 0
    %4383 = vmatprep.subr.bf16.mxu0 0
    %4384 = vmatpush1.bf16.msra.mxu0 0
    %4385 = vmatprep.subr.bf16.mxu0 0
    %4386 = vmatpush1.bf16.msra.mxu0 0
    %4387 = vmatprep.subr.bf16.mxu0 0
    %4388 = vmatpush1.bf16.msra.mxu0 0
    %4389 = vmatprep.subr.bf16.mxu0 0
    %4390 = vmatpush1.bf16.msra.mxu0 0
    %4391 = vmatprep.subr.bf16.mxu0 0
    %4392 = vmatpush1.bf16.msra.mxu0 0
    %4393 = vmatprep.subr.bf16.mxu0 0
    %4394 = vmatpush1.bf16.msra.mxu0 0
    %4395 = vmatprep.subr.bf16.mxu0 0
    %4396 = vmatpush1.bf16.msra.mxu0 0
    %4397 = vmatprep.subr.bf16.mxu0 0
    %4398 = vmatpush1.bf16.msra.mxu0 0
    %4399 = vmatprep.subr.bf16.mxu0 0
    %4400 = vmatpush1.bf16.msra.mxu0 0
    %4401 = vmatprep.subr.bf16.mxu0 0
    %4402 = vmatpush1.bf16.msra.mxu0 0
    %4403 = vmatprep.subr.bf16.mxu0 0
    %4404 = vmatpush1.bf16.msra.mxu0 0
    %4405 = vmatprep.subr.bf16.mxu0 0
    %4406 = vmatpush1.bf16.msra.mxu0 0
    %4407 = vmatprep.subr.bf16.mxu0 0
    %4408 = vmatpush1.bf16.msra.mxu0 0
    %4409 = vmatprep.mubr.bf16.mxu0 0
    %4410 = vmatmul.mubr.bf16.gmra.mrb[0].mxu0 %v4372
    %v4411 = vpop.f32.mrb[0].mxu0
    %v4412 = vadd.f32 %v4357, %v4411
    %v4413 = vpop.f32.mrb[0].mxu0
    %v4414 = vpop.f32.mrb[0].mxu0
    %v4415 = vadd.f32 %v4357, %v4414
    %v4416 = vpop.f32.mrb[0].mxu0
    %4417 = vmatprep.mubr.bf16.mxu0 0
    %4418 = vmatmul.mubr.bf16.gmra.mrb[0].mxu0 %v4375
    %v4419 = vpop.f32.mrb[0].mxu0
    %v4420 = vadd.f32 %v4357, %v4419
    %v4421 = vpop.f32.mrb[0].mxu0
    %v4422 = vpop.f32.mrb[0].mxu0
    %v4423 = vadd.f32 %v4357, %v4422
    %v4424 = vpop.f32.mrb[0].mxu0
    %4425 = vdwg.mxu0
    %v4426 = vadd.f32 %v3862, %v4412
    %v4427 = vadd.f32 %v3863, %v4415
    %v4428 = vadd.f32 %v3864, %v4420
    %v4429 = vadd.f32 %v3865, %v4423
    %v4430 = vmul.f32 %v4426, %v46
    %v4431 = vmul.f32 %v4427, %v51
    %v4432 = vmul.f32 %v4428, %v56
    %v4433 = vmul.f32 %v4429, %v61
    %v4434 = vadd.f32 %v3866, %v4412
    %v4435 = vadd.f32 %v3867, %v4415
    %v4436 = vadd.f32 %v3868, %v4420
    %v4437 = vadd.f32 %v3869, %v4423
    %v4438 = vrot.slane %v4430, 6
    %v4439 = vrot.slane %v4431, 6
    %v4440 = vrot.slane %v4432, 6
    %v4441 = vrot.slane %v4433, 6
    %v4442 = vsel %vm296, %v4440, %v4441
    %v4443 = vsel %vm296, %v4439, %v4440
    %v4444 = vsel %vm296, %v4438, %v4439
    %v4445 = vsel %vm296, %v4441, %v4438
    %v4446 = vmul.f32 %v4445, %v136
    %v4447 = vmul.f32 %v4444, %v137
    %v4448 = vmul.f32 %v4443, %v138
    %v4449 = vmul.f32 %v4442, %v139
    %v4450 = vpack.c.bf16 %v4447, %v4446
    %v4451 = vpack.c.bf16 %v4449, %v4448
    %s4452 = scalar_lea.vmem [#allocation2], 640
    %v4453 = vld [vmem:[%s4452] sm:$0xf]
    %v4454 = vld [vmem:[%s4452 + $0x4] sm:$0xf]
    %v4455 = vld [vmem:[%s4452 + $0x8] sm:$0xf]
    %v4456 = vld [vmem:[%s4452 + $0xc] sm:$0xf]
    %v4457 = vrot.slane %v4430, 7
    %v4458 = vrot.slane %v4431, 7
    %v4459 = vrot.slane %v4432, 7
    %v4460 = vrot.slane %v4433, 7
    %v4461 = vsel %vm315, %v4459, %v4460
    %v4462 = vsel %vm315, %v4458, %v4459
    %v4463 = vsel %vm315, %v4457, %v4458
    %v4464 = vsel %vm315, %v4460, %v4457
    %v4465 = vmul.f32 %v4464, %v160
    %v4466 = vmul.f32 %v4463, %v161
    %v4467 = vmul.f32 %v4462, %v162
    %v4468 = vmul.f32 %v4461, %v163
    %v4469 = vpack.c.bf16 %v4466, %v4465
    %v4470 = vpack.c.bf16 %v4468, %v4467
    %s4471 = scalar_lea.vmem [#allocation2], 656
    %v4472 = vld [vmem:[%s4471] sm:$0xf]
    %v4473 = vld [vmem:[%s4471 + $0x4] sm:$0xf]
    %v4474 = vld [vmem:[%s4471 + $0x8] sm:$0xf]
    %v4475 = vld [vmem:[%s4471 + $0xc] sm:$0xf]
    %v4480 = vunpack.c.l.b16 %v4472
    %v4481 = vunpack.c.l.b16 %v4473
    %v4482 = vunpack.c.l.b16 %v4474
    %v4483 = vunpack.c.l.b16 %v4475
    %v4484 = vpack.c.b16 %v4481, %v4480
    %v4485 = vpack.c.b16 %v4483, %v4482
    %v4489 = vsel %vm343, %v4469, 0
    %v4492 = vsel %vm343, %v4470, 0
    %4494 = vmatprep.subr.bf16.mxu0 0
    %4495 = vmatpush1.bf16.msra.mxu0 %v4484
    %4496 = vmatprep.subr.bf16.mxu0 0
    %4497 = vmatpush1.bf16.msra.mxu0 %v4485
    %4498 = vmatprep.subr.bf16.mxu0 0
    %4499 = vmatpush1.bf16.msra.mxu0 0
    %4500 = vmatprep.subr.bf16.mxu0 0
    %4501 = vmatpush1.bf16.msra.mxu0 0
    %4502 = vmatprep.subr.bf16.mxu0 0
    %4503 = vmatpush1.bf16.msra.mxu0 0
    %4504 = vmatprep.subr.bf16.mxu0 0
    %4505 = vmatpush1.bf16.msra.mxu0 0
    %4506 = vmatprep.subr.bf16.mxu0 0
    %4507 = vmatpush1.bf16.msra.mxu0 0
    %4508 = vmatprep.subr.bf16.mxu0 0
    %4509 = vmatpush1.bf16.msra.mxu0 0
    %4510 = vmatprep.subr.bf16.mxu0 0
    %4511 = vmatpush1.bf16.msra.mxu0 0
    %4512 = vmatprep.subr.bf16.mxu0 0
    %4513 = vmatpush1.bf16.msra.mxu0 0
    %4514 = vmatprep.subr.bf16.mxu0 0
    %4515 = vmatpush1.bf16.msra.mxu0 0
    %4516 = vmatprep.subr.bf16.mxu0 0
    %4517 = vmatpush1.bf16.msra.mxu0 0
    %4518 = vmatprep.subr.bf16.mxu0 0
    %4519 = vmatpush1.bf16.msra.mxu0 0
    %4520 = vmatprep.subr.bf16.mxu0 0
    %4521 = vmatpush1.bf16.msra.mxu0 0
    %4522 = vmatprep.subr.bf16.mxu0 0
    %4523 = vmatpush1.bf16.msra.mxu0 0
    %4524 = vmatprep.subr.bf16.mxu0 0
    %4525 = vmatpush1.bf16.msra.mxu0 0
    %4526 = vmatprep.mubr.bf16.mxu0 0
    %4527 = vmatmul.mubr.bf16.gmra.mrb[0].mxu0 %v4489
    %v4528 = vpop.f32.mrb[0].mxu0
    %v4529 = vadd.f32 0.0, %v4528
    %v4530 = vpop.f32.mrb[0].mxu0
    %v4531 = vpop.f32.mrb[0].mxu0
    %v4532 = vadd.f32 0.0, %v4531
    %v4533 = vpop.f32.mrb[0].mxu0
    %4534 = vmatprep.mubr.bf16.mxu0 0
    %4535 = vmatmul.mubr.bf16.gmra.mrb[0].mxu0 %v4492
    %v4536 = vpop.f32.mrb[0].mxu0
    %v4537 = vadd.f32 0.0, %v4536
    %v4538 = vpop.f32.mrb[0].mxu0
    %v4539 = vpop.f32.mrb[0].mxu0
    %v4540 = vadd.f32 0.0, %v4539
    %v4541 = vpop.f32.mrb[0].mxu0
    %4542 = vdwg.mxu0
    %v4547 = vunpack.c.l.b16 %v4453
    %v4548 = vunpack.c.l.b16 %v4454
    %v4549 = vunpack.c.l.b16 %v4455
    %v4550 = vunpack.c.l.b16 %v4456
    %v4551 = vpack.c.b16 %v4548, %v4547
    %v4552 = vpack.c.b16 %v4550, %v4549
    %v4556 = vsel %vm343, %v4450, 0
    %v4559 = vsel %vm343, %v4451, 0
    %4561 = vmatprep.subr.bf16.mxu0 0
    %4562 = vmatpush1.bf16.msra.mxu0 %v4551
    %4563 = vmatprep.subr.bf16.mxu0 0
    %4564 = vmatpush1.bf16.msra.mxu0 %v4552
    %4565 = vmatprep.subr.bf16.mxu0 0
    %4566 = vmatpush1.bf16.msra.mxu0 0
    %4567 = vmatprep.subr.bf16.mxu0 0
    %4568 = vmatpush1.bf16.msra.mxu0 0
    %4569 = vmatprep.subr.bf16.mxu0 0
    %4570 = vmatpush1.bf16.msra.mxu0 0
    %4571 = vmatprep.subr.bf16.mxu0 0
    %4572 = vmatpush1.bf16.msra.mxu0 0
    %4573 = vmatprep.subr.bf16.mxu0 0
    %4574 = vmatpush1.bf16.msra.mxu0 0
    %4575 = vmatprep.subr.bf16.mxu0 0
    %4576 = vmatpush1.bf16.msra.mxu0 0
    %4577 = vmatprep.subr.bf16.mxu0 0
    %4578 = vmatpush1.bf16.msra.mxu0 0
    %4579 = vmatprep.subr.bf16.mxu0 0
    %4580 = vmatpush1.bf16.msra.mxu0 0
    %4581 = vmatprep.subr.bf16.mxu0 0
    %4582 = vmatpush1.bf16.msra.mxu0 0
    %4583 = vmatprep.subr.bf16.mxu0 0
    %4584 = vmatpush1.bf16.msra.mxu0 0
    %4585 = vmatprep.subr.bf16.mxu0 0
    %4586 = vmatpush1.bf16.msra.mxu0 0
    %4587 = vmatprep.subr.bf16.mxu0 0
    %4588 = vmatpush1.bf16.msra.mxu0 0
    %4589 = vmatprep.subr.bf16.mxu0 0
    %4590 = vmatpush1.bf16.msra.mxu0 0
    %4591 = vmatprep.subr.bf16.mxu0 0
    %4592 = vmatpush1.bf16.msra.mxu0 0
    %4593 = vmatprep.mubr.bf16.mxu0 0
    %4594 = vmatmul.mubr.bf16.gmra.mrb[0].mxu0 %v4556
    %v4595 = vpop.f32.mrb[0].mxu0
    %v4596 = vadd.f32 %v4529, %v4595
    %v4597 = vpop.f32.mrb[0].mxu0
    %v4598 = vpop.f32.mrb[0].mxu0
    %v4599 = vadd.f32 %v4532, %v4598
    %v4600 = vpop.f32.mrb[0].mxu0
    %4601 = vmatprep.mubr.bf16.mxu0 0
    %4602 = vmatmul.mubr.bf16.gmra.mrb[0].mxu0 %v4559
    %v4603 = vpop.f32.mrb[0].mxu0
    %v4604 = vadd.f32 %v4537, %v4603
    %v4605 = vpop.f32.mrb[0].mxu0
    %v4606 = vpop.f32.mrb[0].mxu0
    %v4607 = vadd.f32 %v4540, %v4606
    %v4608 = vpop.f32.mrb[0].mxu0
    %4609 = vdwg.mxu0
    %v4610 = vpack.c.bf16 %v4431, %v4430
    %v4611 = vpack.c.bf16 %v4433, %v4432
    %s4612 = scalar_lea.vmem [#allocation2], 672
    %v4613 = vld [vmem:[%s4612] sm:$0xf]
    %v4614 = vld [vmem:[%s4612 + $0x4] sm:$0xf]
    %v4615 = vld [vmem:[%s4612 + $0x8] sm:$0xf]
    %v4616 = vld [vmem:[%s4612 + $0xc] sm:$0xf]
    %v4621 = vunpack.c.l.b16 %v4613
    %v4622 = vunpack.c.l.b16 %v4614
    %v4623 = vunpack.c.l.b16 %v4615
    %v4624 = vunpack.c.l.b16 %v4616
    %v4625 = vpack.c.b16 %v4622, %v4621
    %v4626 = vpack.c.b16 %v4624, %v4623
    %v4630 = vsel %vm343, %v4610, 0
    %v4633 = vsel %vm343, %v4611, 0
    %4635 = vmatprep.subr.bf16.mxu0 0
    %4636 = vmatpush1.bf16.msra.mxu0 %v4625
    %4637 = vmatprep.subr.bf16.mxu0 0
    %4638 = vmatpush1.bf16.msra.mxu0 %v4626
    %4639 = vmatprep.subr.bf16.mxu0 0
    %4640 = vmatpush1.bf16.msra.mxu0 0
    %4641 = vmatprep.subr.bf16.mxu0 0
    %4642 = vmatpush1.bf16.msra.mxu0 0
    %4643 = vmatprep.subr.bf16.mxu0 0
    %4644 = vmatpush1.bf16.msra.mxu0 0
    %4645 = vmatprep.subr.bf16.mxu0 0
    %4646 = vmatpush1.bf16.msra.mxu0 0
    %4647 = vmatprep.subr.bf16.mxu0 0
    %4648 = vmatpush1.bf16.msra.mxu0 0
    %4649 = vmatprep.subr.bf16.mxu0 0
    %4650 = vmatpush1.bf16.msra.mxu0 0
    %4651 = vmatprep.subr.bf16.mxu0 0
    %4652 = vmatpush1.bf16.msra.mxu0 0
    %4653 = vmatprep.subr.bf16.mxu0 0
    %4654 = vmatpush1.bf16.msra.mxu0 0
    %4655 = vmatprep.subr.bf16.mxu0 0
    %4656 = vmatpush1.bf16.msra.mxu0 0
    %4657 = vmatprep.subr.bf16.mxu0 0
    %4658 = vmatpush1.bf16.msra.mxu0 0
    %4659 = vmatprep.subr.bf16.mxu0 0
    %4660 = vmatpush1.bf16.msra.mxu0 0
    %4661 = vmatprep.subr.bf16.mxu0 0
    %4662 = vmatpush1.bf16.msra.mxu0 0
    %4663 = vmatprep.subr.bf16.mxu0 0
    %4664 = vmatpush1.bf16.msra.mxu0 0
    %4665 = vmatprep.subr.bf16.mxu0 0
    %4666 = vmatpush1.bf16.msra.mxu0 0
    %4667 = vmatprep.mubr.bf16.mxu0 0
    %4668 = vmatmul.mubr.bf16.gmra.mrb[0].mxu0 %v4630
    %v4669 = vpop.f32.mrb[0].mxu0
    %v4670 = vadd.f32 0.0, %v4669
    %v4671 = vpop.f32.mrb[0].mxu0
    %v4672 = vpop.f32.mrb[0].mxu0
    %v4673 = vadd.f32 0.0, %v4672
    %v4674 = vpop.f32.mrb[0].mxu0
    %4675 = vmatprep.mubr.bf16.mxu0 0
    %4676 = vmatmul.mubr.bf16.gmra.mrb[0].mxu0 %v4633
    %v4677 = vpop.f32.mrb[0].mxu0
    %v4678 = vadd.f32 0.0, %v4677
    %v4679 = vpop.f32.mrb[0].mxu0
    %v4680 = vpop.f32.mrb[0].mxu0
    %v4681 = vadd.f32 0.0, %v4680
    %v4682 = vpop.f32.mrb[0].mxu0
    %4683 = vdwg.mxu0
    %v4684 = vadd.f32 %v4596, %v4670
    %v4685 = vadd.f32 %v4599, %v4673
    %v4686 = vadd.f32 %v4604, %v4678
    %v4687 = vadd.f32 %v4607, %v4681
    %v4688 = vrot.slane %v4430, 1
    %v4689 = vrot.slane %v4431, 1
    %v4690 = vrot.slane %v4432, 1
    %v4691 = vrot.slane %v4433, 1
    %v4692 = vsel %vm548, %v4690, %v4691
    %v4693 = vsel %vm548, %v4689, %v4690
    %v4694 = vsel %vm548, %v4688, %v4689
    %v4695 = vsel %vm548, %v4691, %v4688
    %v4696 = vmul.f32 %v4694, %v184
    %v4697 = vmul.f32 %v4693, %v185
    %v4698 = vmul.f32 %v4692, %v186
    %v4699 = vmul.f32 %v4695, %v187
    %v4700 = vpack.c.bf16 %v4697, %v4696
    %v4701 = vpack.c.bf16 %v4699, %v4698
    %s4702 = scalar_lea.vmem [#allocation2], 688
    %v4703 = vld [vmem:[%s4702] sm:$0xf]
    %v4704 = vld [vmem:[%s4702 + $0x4] sm:$0xf]
    %v4705 = vld [vmem:[%s4702 + $0x8] sm:$0xf]
    %v4706 = vld [vmem:[%s4702 + $0xc] sm:$0xf]
    %v4711 = vunpack.c.l.b16 %v4703
    %v4712 = vunpack.c.l.b16 %v4704
    %v4713 = vunpack.c.l.b16 %v4705
    %v4714 = vunpack.c.l.b16 %v4706
    %v4715 = vpack.c.b16 %v4712, %v4711
    %v4716 = vpack.c.b16 %v4714, %v4713
    %v4720 = vsel %vm343, %v4700, 0
    %v4723 = vsel %vm343, %v4701, 0
    %4725 = vmatprep.subr.bf16.mxu0 0
    %4726 = vmatpush1.bf16.msra.mxu0 %v4715
    %4727 = vmatprep.subr.bf16.mxu0 0
    %4728 = vmatpush1.bf16.msra.mxu0 %v4716
    %4729 = vmatprep.subr.bf16.mxu0 0
    %4730 = vmatpush1.bf16.msra.mxu0 0
    %4731 = vmatprep.subr.bf16.mxu0 0
    %4732 = vmatpush1.bf16.msra.mxu0 0
    %4733 = vmatprep.subr.bf16.mxu0 0
    %4734 = vmatpush1.bf16.msra.mxu0 0
    %4735 = vmatprep.subr.bf16.mxu0 0
    %4736 = vmatpush1.bf16.msra.mxu0 0
    %4737 = vmatprep.subr.bf16.mxu0 0
    %4738 = vmatpush1.bf16.msra.mxu0 0
    %4739 = vmatprep.subr.bf16.mxu0 0
    %4740 = vmatpush1.bf16.msra.mxu0 0
    %4741 = vmatprep.subr.bf16.mxu0 0
    %4742 = vmatpush1.bf16.msra.mxu0 0
    %4743 = vmatprep.subr.bf16.mxu0 0
    %4744 = vmatpush1.bf16.msra.mxu0 0
    %4745 = vmatprep.subr.bf16.mxu0 0
    %4746 = vmatpush1.bf16.msra.mxu0 0
    %4747 = vmatprep.subr.bf16.mxu0 0
    %4748 = vmatpush1.bf16.msra.mxu0 0
    %4749 = vmatprep.subr.bf16.mxu0 0
    %4750 = vmatpush1.bf16.msra.mxu0 0
    %4751 = vmatprep.subr.bf16.mxu0 0
    %4752 = vmatpush1.bf16.msra.mxu0 0
    %4753 = vmatprep.subr.bf16.mxu0 0
    %4754 = vmatpush1.bf16.msra.mxu0 0
    %4755 = vmatprep.subr.bf16.mxu0 0
    %4756 = vmatpush1.bf16.msra.mxu0 0
    %4757 = vmatprep.mubr.bf16.mxu0 0
    %4758 = vmatmul.mubr.bf16.gmra.mrb[0].mxu0 %v4720
    %v4759 = vpop.f32.mrb[0].mxu0
    %v4760 = vadd.f32 0.0, %v4759
    %v4761 = vpop.f32.mrb[0].mxu0
    %v4762 = vpop.f32.mrb[0].mxu0
    %v4763 = vadd.f32 0.0, %v4762
    %v4764 = vpop.f32.mrb[0].mxu0
    %4765 = vmatprep.mubr.bf16.mxu0 0
    %4766 = vmatmul.mubr.bf16.gmra.mrb[0].mxu0 %v4723
    %v4767 = vpop.f32.mrb[0].mxu0
    %v4768 = vadd.f32 0.0, %v4767
    %v4769 = vpop.f32.mrb[0].mxu0
    %v4770 = vpop.f32.mrb[0].mxu0
    %v4771 = vadd.f32 0.0, %v4770
    %v4772 = vpop.f32.mrb[0].mxu0
    %4773 = vdwg.mxu0
    %v4774 = vadd.f32 %v4684, %v4760
    %v4775 = vadd.f32 %v4685, %v4763
    %v4776 = vadd.f32 %v4686, %v4768
    %v4777 = vadd.f32 %v4687, %v4771
    %v4778 = vrot.slane %v4430, 2
    %v4779 = vrot.slane %v4431, 2
    %v4780 = vrot.slane %v4432, 2
    %v4781 = vrot.slane %v4433, 2
    %v4782 = vsel %vm639, %v4780, %v4781
    %v4783 = vsel %vm639, %v4779, %v4780
    %v4784 = vsel %vm639, %v4778, %v4779
    %v4785 = vsel %vm639, %v4781, %v4778
    %v4786 = vmul.f32 %v4784, %v208
    %v4787 = vmul.f32 %v4783, %v209
    %v4788 = vmul.f32 %v4782, %v210
    %v4789 = vmul.f32 %v4785, %v211
    %v4790 = vpack.c.bf16 %v4787, %v4786
    %v4791 = vpack.c.bf16 %v4789, %v4788
    %s4792 = scalar_lea.vmem [#allocation2], 704
    %v4793 = vld [vmem:[%s4792] sm:$0xf]
    %v4794 = vld [vmem:[%s4792 + $0x4] sm:$0xf]
    %v4795 = vld [vmem:[%s4792 + $0x8] sm:$0xf]
    %v4796 = vld [vmem:[%s4792 + $0xc] sm:$0xf]
    %v4801 = vunpack.c.l.b16 %v4793
    %v4802 = vunpack.c.l.b16 %v4794
    %v4803 = vunpack.c.l.b16 %v4795
    %v4804 = vunpack.c.l.b16 %v4796
    %v4805 = vpack.c.b16 %v4802, %v4801
    %v4806 = vpack.c.b16 %v4804, %v4803
    %v4810 = vsel %vm343, %v4790, 0
    %v4813 = vsel %vm343, %v4791, 0
    %4815 = vmatprep.subr.bf16.mxu0 0
    %4816 = vmatpush1.bf16.msra.mxu0 %v4805
    %4817 = vmatprep.subr.bf16.mxu0 0
    %4818 = vmatpush1.bf16.msra.mxu0 %v4806
    %4819 = vmatprep.subr.bf16.mxu0 0
    %4820 = vmatpush1.bf16.msra.mxu0 0
    %4821 = vmatprep.subr.bf16.mxu0 0
    %4822 = vmatpush1.bf16.msra.mxu0 0
    %4823 = vmatprep.subr.bf16.mxu0 0
    %4824 = vmatpush1.bf16.msra.mxu0 0
    %4825 = vmatprep.subr.bf16.mxu0 0
    %4826 = vmatpush1.bf16.msra.mxu0 0
    %4827 = vmatprep.subr.bf16.mxu0 0
    %4828 = vmatpush1.bf16.msra.mxu0 0
    %4829 = vmatprep.subr.bf16.mxu0 0
    %4830 = vmatpush1.bf16.msra.mxu0 0
    %4831 = vmatprep.subr.bf16.mxu0 0
    %4832 = vmatpush1.bf16.msra.mxu0 0
    %4833 = vmatprep.subr.bf16.mxu0 0
    %4834 = vmatpush1.bf16.msra.mxu0 0
    %4835 = vmatprep.subr.bf16.mxu0 0
    %4836 = vmatpush1.bf16.msra.mxu0 0
    %4837 = vmatprep.subr.bf16.mxu0 0
    %4838 = vmatpush1.bf16.msra.mxu0 0
    %4839 = vmatprep.subr.bf16.mxu0 0
    %4840 = vmatpush1.bf16.msra.mxu0 0
    %4841 = vmatprep.subr.bf16.mxu0 0
    %4842 = vmatpush1.bf16.msra.mxu0 0
    %4843 = vmatprep.subr.bf16.mxu0 0
    %4844 = vmatpush1.bf16.msra.mxu0 0
    %4845 = vmatprep.subr.bf16.mxu0 0
    %4846 = vmatpush1.bf16.msra.mxu0 0
    %4847 = vmatprep.mubr.bf16.mxu0 0
    %4848 = vmatmul.mubr.bf16.gmra.mrb[0].mxu0 %v4810
    %v4849 = vpop.f32.mrb[0].mxu0
    %v4850 = vadd.f32 0.0, %v4849
    %v4851 = vpop.f32.mrb[0].mxu0
    %v4852 = vpop.f32.mrb[0].mxu0
    %v4853 = vadd.f32 0.0, %v4852
    %v4854 = vpop.f32.mrb[0].mxu0
    %4855 = vmatprep.mubr.bf16.mxu0 0
    %4856 = vmatmul.mubr.bf16.gmra.mrb[0].mxu0 %v4813
    %v4857 = vpop.f32.mrb[0].mxu0
    %v4858 = vadd.f32 0.0, %v4857
    %v4859 = vpop.f32.mrb[0].mxu0
    %v4860 = vpop.f32.mrb[0].mxu0
    %v4861 = vadd.f32 0.0, %v4860
    %v4862 = vpop.f32.mrb[0].mxu0
    %4863 = vdwg.mxu0
    %v4864 = vadd.f32 %v4774, %v4850
    %v4865 = vadd.f32 %v4775, %v4853
    %v4866 = vadd.f32 %v4776, %v4858
    %v4867 = vadd.f32 %v4777, %v4861
    %s4868 = scalar_lea.vmem %s4, 14
    %v4869 = vld [vmem:[%s4868] sm:$0x1]
    %v4871 = vlaneseq
    %v4872 = vshrl.u32 %v4871, 7
    %v4873 = vsub.s32 0, %v4872
    %v4874 = vrot.slane %v4869, %v4873
    %v4876 = vadd.f32 %v4864, %v4874
    %v4877 = vadd.f32 %v4865, %v4874
    %v4878 = vadd.f32 %v4866, %v4874
    %v4879 = vadd.f32 %v4867, %v4874
    %v4880 = vtanh.pop %v4876
    %v4881 = vtanh.pop %v4877
    %v4882 = vtanh.pop %v4878
    %v4883 = vtanh.pop %v4879
    %v4884 = vmul.f32 %v4880, 0.5
    %v4885 = vmul.f32 %v4881, 0.5
    %v4886 = vmul.f32 %v4882, 0.5
    %v4887 = vmul.f32 %v4883, 0.5
    %v4888 = vadd.f32 %v4884, 0.5
    %v4889 = vadd.f32 %v4885, 0.5
    %v4890 = vadd.f32 %v4886, 0.5
    %v4891 = vadd.f32 %v4887, 0.5
    %4896 = vrot.lane.b32.xlu0 %v4888, 96
    %v4897 = vpop.permute.xlu0 %4896
    %4898 = vrot.lane.b32.xlu0 %v4889, 96
    %v4899 = vpop.permute.xlu0 %4898
    %4900 = vrot.lane.b32.xlu0 %v4890, 96
    %v4901 = vpop.permute.xlu0 %4900
    %4902 = vrot.lane.b32.xlu0 %v4891, 96
    %v4903 = vpop.permute.xlu0 %4902
    %v4908 = vmul.f32 %v4880, %v4897
    %v4909 = vmul.f32 %v4881, %v4899
    %v4910 = vmul.f32 %v4882, %v4901
    %v4911 = vmul.f32 %v4883, %v4903
    %v4912 = vpack.c.bf16 %v4909, %v4908
    %v4913 = vpack.c.bf16 %v4911, %v4910
    %s4914 = scalar_lea.vmem [#allocation2], 768
    %v4915 = vld [vmem:[%s4914] sm:$0xf]
    %v4916 = vld [vmem:[%s4914 + $0x4] sm:$0xf]
    %v4917 = vld [vmem:[%s4914 + $0x8] sm:$0xf]
    %v4918 = vld [vmem:[%s4914 + $0xc] sm:$0xf]
    %s4919 = scalar_lea.vmem %s4, 18
    %v4920 = vld [vmem:[%s4919] sm:$0x1]
    %v4922 = vlaneseq
    %v4923 = vshrl.u32 %v4922, 7
    %v4924 = vsub.s32 0, %v4923
    %v4925 = vrot.slane %v4920, %v4924
    %v4931 = vunpack.c.l.b16 %v4915
    %v4932 = vunpack.c.l.b16 %v4916
    %v4933 = vunpack.c.l.b16 %v4917
    %v4934 = vunpack.c.l.b16 %v4918
    %v4935 = vpack.c.b16 %v4932, %v4931
    %v4936 = vpack.c.b16 %v4934, %v4933
    %v4940 = vsel %vm343, %v4912, 0
    %v4943 = vsel %vm343, %v4913, 0
    %4945 = vmatprep.subr.bf16.mxu0 0
    %4946 = vmatpush1.bf16.msra.mxu0 %v4935
    %4947 = vmatprep.subr.bf16.mxu0 0
    %4948 = vmatpush1.bf16.msra.mxu0 %v4936
    %4949 = vmatprep.subr.bf16.mxu0 0
    %4950 = vmatpush1.bf16.msra.mxu0 0
    %4951 = vmatprep.subr.bf16.mxu0 0
    %4952 = vmatpush1.bf16.msra.mxu0 0
    %4953 = vmatprep.subr.bf16.mxu0 0
    %4954 = vmatpush1.bf16.msra.mxu0 0
    %4955 = vmatprep.subr.bf16.mxu0 0
    %4956 = vmatpush1.bf16.msra.mxu0 0
    %4957 = vmatprep.subr.bf16.mxu0 0
    %4958 = vmatpush1.bf16.msra.mxu0 0
    %4959 = vmatprep.subr.bf16.mxu0 0
    %4960 = vmatpush1.bf16.msra.mxu0 0
    %4961 = vmatprep.subr.bf16.mxu0 0
    %4962 = vmatpush1.bf16.msra.mxu0 0
    %4963 = vmatprep.subr.bf16.mxu0 0
    %4964 = vmatpush1.bf16.msra.mxu0 0
    %4965 = vmatprep.subr.bf16.mxu0 0
    %4966 = vmatpush1.bf16.msra.mxu0 0
    %4967 = vmatprep.subr.bf16.mxu0 0
    %4968 = vmatpush1.bf16.msra.mxu0 0
    %4969 = vmatprep.subr.bf16.mxu0 0
    %4970 = vmatpush1.bf16.msra.mxu0 0
    %4971 = vmatprep.subr.bf16.mxu0 0
    %4972 = vmatpush1.bf16.msra.mxu0 0
    %4973 = vmatprep.subr.bf16.mxu0 0
    %4974 = vmatpush1.bf16.msra.mxu0 0
    %4975 = vmatprep.subr.bf16.mxu0 0
    %4976 = vmatpush1.bf16.msra.mxu0 0
    %4977 = vmatprep.mubr.bf16.mxu0 0
    %4978 = vmatmul.mubr.bf16.gmra.mrb[0].mxu0 %v4940
    %v4979 = vpop.f32.mrb[0].mxu0
    %v4980 = vadd.f32 %v4925, %v4979
    %v4981 = vpop.f32.mrb[0].mxu0
    %v4982 = vpop.f32.mrb[0].mxu0
    %v4983 = vadd.f32 %v4925, %v4982
    %v4984 = vpop.f32.mrb[0].mxu0
    %4985 = vmatprep.mubr.bf16.mxu0 0
    %4986 = vmatmul.mubr.bf16.gmra.mrb[0].mxu0 %v4943
    %v4987 = vpop.f32.mrb[0].mxu0
    %v4988 = vadd.f32 %v4925, %v4987
    %v4989 = vpop.f32.mrb[0].mxu0
    %v4990 = vpop.f32.mrb[0].mxu0
    %v4991 = vadd.f32 %v4925, %v4990
    %v4992 = vpop.f32.mrb[0].mxu0
    %4993 = vdwg.mxu0
    %v4994 = vadd.f32 %v4434, %v4980
    %v4995 = vadd.f32 %v4435, %v4983
    %v4996 = vadd.f32 %v4436, %v4988
    %v4997 = vadd.f32 %v4437, %v4991
    %v4998 = vmul.f32 %v4994, %v46
    %v4999 = vmul.f32 %v4995, %v51
    %v5000 = vmul.f32 %v4996, %v56
    %v5001 = vmul.f32 %v4997, %v61
    %v5002 = vpack.c.bf16 %v4999, %v4998
    %v5003 = vpack.c.bf16 %v5001, %v5000
    %s5004 = scalar_lea.vmem [#allocation2], 784
    %v5005 = vld [vmem:[%s5004] sm:$0xf]
    %v5006 = vld [vmem:[%s5004 + $0x4] sm:$0xf]
    %v5007 = vld [vmem:[%s5004 + $0x8] sm:$0xf]
    %v5008 = vld [vmem:[%s5004 + $0xc] sm:$0xf]
    %5011 = vrot.lane.b32.xlu0 %v5002, 96
    %v5012 = vpop.permute.xlu0 %5011
    %5013 = vrot.lane.b32.xlu0 %v5003, 96
    %v5014 = vpop.permute.xlu0 %5013
    %v5019 = vunpack.c.l.b16 %v5005
    %v5020 = vunpack.c.l.b16 %v5006
    %v5021 = vunpack.c.l.b16 %v5007
    %v5022 = vunpack.c.l.b16 %v5008
    %v5023 = vpack.c.b16 %v5020, %v5019
    %v5024 = vpack.c.b16 %v5022, %v5021
    %v5028 = vsel %vm343, %v5012, 0
    %v5031 = vsel %vm343, %v5014, 0
    %5033 = vmatprep.subr.bf16.mxu0 0
    %5034 = vmatpush1.bf16.msra.mxu0 %v5023
    %5035 = vmatprep.subr.bf16.mxu0 0
    %5036 = vmatpush1.bf16.msra.mxu0 %v5024
    %5037 = vmatprep.subr.bf16.mxu0 0
    %5038 = vmatpush1.bf16.msra.mxu0 0
    %5039 = vmatprep.subr.bf16.mxu0 0
    %5040 = vmatpush1.bf16.msra.mxu0 0
    %5041 = vmatprep.subr.bf16.mxu0 0
    %5042 = vmatpush1.bf16.msra.mxu0 0
    %5043 = vmatprep.subr.bf16.mxu0 0
    %5044 = vmatpush1.bf16.msra.mxu0 0
    %5045 = vmatprep.subr.bf16.mxu0 0
    %5046 = vmatpush1.bf16.msra.mxu0 0
    %5047 = vmatprep.subr.bf16.mxu0 0
    %5048 = vmatpush1.bf16.msra.mxu0 0
    %5049 = vmatprep.subr.bf16.mxu0 0
    %5050 = vmatpush1.bf16.msra.mxu0 0
    %5051 = vmatprep.subr.bf16.mxu0 0
    %5052 = vmatpush1.bf16.msra.mxu0 0
    %5053 = vmatprep.subr.bf16.mxu0 0
    %5054 = vmatpush1.bf16.msra.mxu0 0
    %5055 = vmatprep.subr.bf16.mxu0 0
    %5056 = vmatpush1.bf16.msra.mxu0 0
    %5057 = vmatprep.subr.bf16.mxu0 0
    %5058 = vmatpush1.bf16.msra.mxu0 0
    %5059 = vmatprep.subr.bf16.mxu0 0
    %5060 = vmatpush1.bf16.msra.mxu0 0
    %5061 = vmatprep.subr.bf16.mxu0 0
    %5062 = vmatpush1.bf16.msra.mxu0 0
    %5063 = vmatprep.subr.bf16.mxu0 0
    %5064 = vmatpush1.bf16.msra.mxu0 0
    %5065 = vmatprep.mubr.bf16.mxu0 0
    %5066 = vmatmul.mubr.bf16.gmra.mrb[0].mxu0 %v5028
    %v5067 = vpop.f32.mrb[0].mxu0
    %v5068 = vadd.f32 0.0, %v5067
    %v5069 = vpop.f32.mrb[0].mxu0
    %v5070 = vpop.f32.mrb[0].mxu0
    %v5071 = vadd.f32 0.0, %v5070
    %v5072 = vpop.f32.mrb[0].mxu0
    %5073 = vmatprep.mubr.bf16.mxu0 0
    %5074 = vmatmul.mubr.bf16.gmra.mrb[0].mxu0 %v5031
    %v5075 = vpop.f32.mrb[0].mxu0
    %v5076 = vadd.f32 0.0, %v5075
    %v5077 = vpop.f32.mrb[0].mxu0
    %v5078 = vpop.f32.mrb[0].mxu0
    %v5079 = vadd.f32 0.0, %v5078
    %v5080 = vpop.f32.mrb[0].mxu0
    %5081 = vdwg.mxu0
    %s5082 = scalar_lea.vmem %s4, 19
    %v5083 = vld [vmem:[%s5082] sm:$0x1]
    %v5085 = vlaneseq
    %v5086 = vshrl.u32 %v5085, 7
    %v5087 = vsub.s32 0, %v5086
    %v5088 = vrot.slane %v5083, %v5087
    %v5090 = vadd.f32 %v5068, %v5088
    %v5091 = vadd.f32 %v5071, %v5088
    %v5092 = vadd.f32 %v5076, %v5088
    %v5093 = vadd.f32 %v5079, %v5088
    %v5094 = vmul.f32 %v5090, %v46
    %v5095 = vmul.f32 %v5091, %v51
    %v5096 = vmul.f32 %v5092, %v56
    %v5097 = vmul.f32 %v5093, %v61
    %5102 = vrot.lane.b32.xlu0 %v5094, 4
    %v5103 = vpop.permute.xlu0 %5102
    %5104 = vrot.lane.b32.xlu0 %v5095, 4
    %v5105 = vpop.permute.xlu0 %5104
    %5106 = vrot.lane.b32.xlu0 %v5096, 4
    %v5107 = vpop.permute.xlu0 %5106
    %5108 = vrot.lane.b32.xlu0 %v5097, 4
    %v5109 = vpop.permute.xlu0 %5108
    %v5114 = vsub.f32 %v35, %v5103
    %v5115 = vsub.f32 %v36, %v5105
    %v5116 = vsub.f32 %v37, %v5107
    %v5117 = vsub.f32 %v38, %v5109
    %v5118 = vmul.f32 %v5114, %v46
    %v5119 = vmul.f32 %v5115, %v51
    %v5120 = vmul.f32 %v5116, %v56
    %v5121 = vmul.f32 %v5117, %v61
    %s5122 = scalar_lea.vmem %s4, 20
    %v5123 = vld [vmem:[%s5122] sm:$0x1]
    %v5124 = vpack.c.bf16 %v5119, %v5118
    %v5125 = vpack.c.bf16 %v5121, %v5120
    %s5126 = scalar_lea.vmem %s2, 4
    %v5127 = vld [vmem:[%s5126] sm:$0x3]
    %v5129 = vlaneseq
    %v5130 = vshrl.u32 %v5129, 7
    %v5131 = vsub.s32 0, %v5130
    %v5132 = vrot.slane %v5123, %v5131
    %5136 = vrot.lane.b32.xlu0 %v5124, 124
    %v5137 = vpop.permute.xlu0 %5136
    %5138 = vrot.lane.b32.xlu0 %v5125, 124
    %v5139 = vpop.permute.xlu0 %5138
    %v5141 = vsel %vm228, %v5137, 0
    %v5144 = vsel %vm228, %v5139, 0
    %v5147 = vsel %vm235, %v5127, 0
    %5149 = vmatprep.subr.bf16.mxu0 0
    %5150 = vmatpush1.bf16.msra.mxu0 %v5147
    %5151 = vmatprep.subr.bf16.mxu0 0
    %5152 = vmatpush1.bf16.msra.mxu0 0
    %5153 = vmatprep.subr.bf16.mxu0 0
    %5154 = vmatpush1.bf16.msra.mxu0 0
    %5155 = vmatprep.subr.bf16.mxu0 0
    %5156 = vmatpush1.bf16.msra.mxu0 0
    %5157 = vmatprep.subr.bf16.mxu0 0
    %5158 = vmatpush1.bf16.msra.mxu0 0
    %5159 = vmatprep.subr.bf16.mxu0 0
    %5160 = vmatpush1.bf16.msra.mxu0 0
    %5161 = vmatprep.subr.bf16.mxu0 0
    %5162 = vmatpush1.bf16.msra.mxu0 0
    %5163 = vmatprep.subr.bf16.mxu0 0
    %5164 = vmatpush1.bf16.msra.mxu0 0
    %5165 = vmatprep.subr.bf16.mxu0 0
    %5166 = vmatpush1.bf16.msra.mxu0 0
    %5167 = vmatprep.subr.bf16.mxu0 0
    %5168 = vmatpush1.bf16.msra.mxu0 0
    %5169 = vmatprep.subr.bf16.mxu0 0
    %5170 = vmatpush1.bf16.msra.mxu0 0
    %5171 = vmatprep.subr.bf16.mxu0 0
    %5172 = vmatpush1.bf16.msra.mxu0 0
    %5173 = vmatprep.subr.bf16.mxu0 0
    %5174 = vmatpush1.bf16.msra.mxu0 0
    %5175 = vmatprep.subr.bf16.mxu0 0
    %5176 = vmatpush1.bf16.msra.mxu0 0
    %5177 = vmatprep.subr.bf16.mxu0 0
    %5178 = vmatpush1.bf16.msra.mxu0 0
    %5179 = vmatprep.subr.bf16.mxu0 0
    %5180 = vmatpush1.bf16.msra.mxu0 0
    %5181 = vmatprep.mubr.bf16.mxu0 0
    %5182 = vmatmul.mubr.bf16.gmra.mrb[0].mxu0 %v5141
    %v5183 = vpop.f32.mrb[0].mxu0
    %v5184 = vadd.f32 %v5132, %v5183
    %v5185 = vpop.f32.mrb[0].mxu0
    %v5186 = vpop.f32.mrb[0].mxu0
    %v5187 = vadd.f32 %v5132, %v5186
    %v5188 = vpop.f32.mrb[0].mxu0
    %5189 = vmatprep.mubr.bf16.mxu0 0
    %5190 = vmatmul.mubr.bf16.gmra.mrb[0].mxu0 %v5144
    %v5191 = vpop.f32.mrb[0].mxu0
    %v5192 = vadd.f32 %v5132, %v5191
    %v5193 = vpop.f32.mrb[0].mxu0
    %v5194 = vpop.f32.mrb[0].mxu0
    %v5195 = vadd.f32 %v5132, %v5194
    %v5196 = vpop.f32.mrb[0].mxu0
    %5197 = vdwg.mxu0
    %v5198 = vmul.f32 %v5184, %v46
    %v5199 = vmul.f32 %v5187, %v51
    %v5200 = vmul.f32 %v5192, %v56
    %v5201 = vmul.f32 %v5195, %v61
    %v5202 = vrot.slane %v5198, 6
    %v5203 = vrot.slane %v5199, 6
    %v5204 = vrot.slane %v5200, 6
    %v5205 = vrot.slane %v5201, 6
    %v5206 = vsel %vm296, %v5204, %v5205
    %v5207 = vsel %vm296, %v5203, %v5204
    %v5208 = vsel %vm296, %v5202, %v5203
    %v5209 = vsel %vm296, %v5205, %v5202
    %v5210 = vmul.f32 %v5209, %v136
    %v5211 = vmul.f32 %v5208, %v137
    %v5212 = vmul.f32 %v5207, %v138
    %v5213 = vmul.f32 %v5206, %v139
    %v5214 = vpack.c.bf16 %v5211, %v5210
    %v5215 = vpack.c.bf16 %v5213, %v5212
    %s5216 = scalar_lea.vmem [#allocation2], 800
    %v5217 = vld [vmem:[%s5216] sm:$0xf]
    %v5218 = vld [vmem:[%s5216 + $0x4] sm:$0xf]
    %v5219 = vld [vmem:[%s5216 + $0x8] sm:$0xf]
    %v5220 = vld [vmem:[%s5216 + $0xc] sm:$0xf]
    %v5221 = vrot.slane %v5198, 7
    %v5222 = vrot.slane %v5199, 7
    %v5223 = vrot.slane %v5200, 7
    %v5224 = vrot.slane %v5201, 7
    %v5225 = vsel %vm315, %v5223, %v5224
    %v5226 = vsel %vm315, %v5222, %v5223
    %v5227 = vsel %vm315, %v5221, %v5222
    %v5228 = vsel %vm315, %v5224, %v5221
    %v5229 = vmul.f32 %v5228, %v160
    %v5230 = vmul.f32 %v5227, %v161
    %v5231 = vmul.f32 %v5226, %v162
    %v5232 = vmul.f32 %v5225, %v163
    %v5233 = vpack.c.bf16 %v5230, %v5229
    %v5234 = vpack.c.bf16 %v5232, %v5231
    %s5235 = scalar_lea.vmem [#allocation2], 816
    %v5236 = vld [vmem:[%s5235] sm:$0xf]
    %v5237 = vld [vmem:[%s5235 + $0x4] sm:$0xf]
    %v5238 = vld [vmem:[%s5235 + $0x8] sm:$0xf]
    %v5239 = vld [vmem:[%s5235 + $0xc] sm:$0xf]
    %v5244 = vunpack.c.l.b16 %v5236
    %v5245 = vunpack.c.l.b16 %v5237
    %v5246 = vunpack.c.l.b16 %v5238
    %v5247 = vunpack.c.l.b16 %v5239
    %v5248 = vpack.c.b16 %v5245, %v5244
    %v5249 = vpack.c.b16 %v5247, %v5246
    %v5253 = vsel %vm343, %v5233, 0
    %v5256 = vsel %vm343, %v5234, 0
    %5258 = vmatprep.subr.bf16.mxu0 0
    %5259 = vmatpush1.bf16.msra.mxu0 %v5248
    %5260 = vmatprep.subr.bf16.mxu0 0
    %5261 = vmatpush1.bf16.msra.mxu0 %v5249
    %5262 = vmatprep.subr.bf16.mxu0 0
    %5263 = vmatpush1.bf16.msra.mxu0 0
    %5264 = vmatprep.subr.bf16.mxu0 0
    %5265 = vmatpush1.bf16.msra.mxu0 0
    %5266 = vmatprep.subr.bf16.mxu0 0
    %5267 = vmatpush1.bf16.msra.mxu0 0
    %5268 = vmatprep.subr.bf16.mxu0 0
    %5269 = vmatpush1.bf16.msra.mxu0 0
    %5270 = vmatprep.subr.bf16.mxu0 0
    %5271 = vmatpush1.bf16.msra.mxu0 0
    %5272 = vmatprep.subr.bf16.mxu0 0
    %5273 = vmatpush1.bf16.msra.mxu0 0
    %5274 = vmatprep.subr.bf16.mxu0 0
    %5275 = vmatpush1.bf16.msra.mxu0 0
    %5276 = vmatprep.subr.bf16.mxu0 0
    %5277 = vmatpush1.bf16.msra.mxu0 0
    %5278 = vmatprep.subr.bf16.mxu0 0
    %5279 = vmatpush1.bf16.msra.mxu0 0
    %5280 = vmatprep.subr.bf16.mxu0 0
    %5281 = vmatpush1.bf16.msra.mxu0 0
    %5282 = vmatprep.subr.bf16.mxu0 0
    %5283 = vmatpush1.bf16.msra.mxu0 0
    %5284 = vmatprep.subr.bf16.mxu0 0
    %5285 = vmatpush1.bf16.msra.mxu0 0
    %5286 = vmatprep.subr.bf16.mxu0 0
    %5287 = vmatpush1.bf16.msra.mxu0 0
    %5288 = vmatprep.subr.bf16.mxu0 0
    %5289 = vmatpush1.bf16.msra.mxu0 0
    %5290 = vmatprep.mubr.bf16.mxu0 0
    %5291 = vmatmul.mubr.bf16.gmra.mrb[0].mxu0 %v5253
    %v5292 = vpop.f32.mrb[0].mxu0
    %v5293 = vadd.f32 0.0, %v5292
    %v5294 = vpop.f32.mrb[0].mxu0
    %v5295 = vpop.f32.mrb[0].mxu0
    %v5296 = vadd.f32 0.0, %v5295
    %v5297 = vpop.f32.mrb[0].mxu0
    %5298 = vmatprep.mubr.bf16.mxu0 0
    %5299 = vmatmul.mubr.bf16.gmra.mrb[0].mxu0 %v5256
    %v5300 = vpop.f32.mrb[0].mxu0
    %v5301 = vadd.f32 0.0, %v5300
    %v5302 = vpop.f32.mrb[0].mxu0
    %v5303 = vpop.f32.mrb[0].mxu0
    %v5304 = vadd.f32 0.0, %v5303
    %v5305 = vpop.f32.mrb[0].mxu0
    %5306 = vdwg.mxu0
    %v5311 = vunpack.c.l.b16 %v5217
    %v5312 = vunpack.c.l.b16 %v5218
    %v5313 = vunpack.c.l.b16 %v5219
    %v5314 = vunpack.c.l.b16 %v5220
    %v5315 = vpack.c.b16 %v5312, %v5311
    %v5316 = vpack.c.b16 %v5314, %v5313
    %v5320 = vsel %vm343, %v5214, 0
    %v5323 = vsel %vm343, %v5215, 0
    %5325 = vmatprep.subr.bf16.mxu0 0
    %5326 = vmatpush1.bf16.msra.mxu0 %v5315
    %5327 = vmatprep.subr.bf16.mxu0 0
    %5328 = vmatpush1.bf16.msra.mxu0 %v5316
    %5329 = vmatprep.subr.bf16.mxu0 0
    %5330 = vmatpush1.bf16.msra.mxu0 0
    %5331 = vmatprep.subr.bf16.mxu0 0
    %5332 = vmatpush1.bf16.msra.mxu0 0
    %5333 = vmatprep.subr.bf16.mxu0 0
    %5334 = vmatpush1.bf16.msra.mxu0 0
    %5335 = vmatprep.subr.bf16.mxu0 0
    %5336 = vmatpush1.bf16.msra.mxu0 0
    %5337 = vmatprep.subr.bf16.mxu0 0
    %5338 = vmatpush1.bf16.msra.mxu0 0
    %5339 = vmatprep.subr.bf16.mxu0 0
    %5340 = vmatpush1.bf16.msra.mxu0 0
    %5341 = vmatprep.subr.bf16.mxu0 0
    %5342 = vmatpush1.bf16.msra.mxu0 0
    %5343 = vmatprep.subr.bf16.mxu0 0
    %5344 = vmatpush1.bf16.msra.mxu0 0
    %5345 = vmatprep.subr.bf16.mxu0 0
    %5346 = vmatpush1.bf16.msra.mxu0 0
    %5347 = vmatprep.subr.bf16.mxu0 0
    %5348 = vmatpush1.bf16.msra.mxu0 0
    %5349 = vmatprep.subr.bf16.mxu0 0
    %5350 = vmatpush1.bf16.msra.mxu0 0
    %5351 = vmatprep.subr.bf16.mxu0 0
    %5352 = vmatpush1.bf16.msra.mxu0 0
    %5353 = vmatprep.subr.bf16.mxu0 0
    %5354 = vmatpush1.bf16.msra.mxu0 0
    %5355 = vmatprep.subr.bf16.mxu0 0
    %5356 = vmatpush1.bf16.msra.mxu0 0
    %5357 = vmatprep.mubr.bf16.mxu0 0
    %5358 = vmatmul.mubr.bf16.gmra.mrb[0].mxu0 %v5320
    %v5359 = vpop.f32.mrb[0].mxu0
    %v5360 = vadd.f32 %v5293, %v5359
    %v5361 = vpop.f32.mrb[0].mxu0
    %v5362 = vpop.f32.mrb[0].mxu0
    %v5363 = vadd.f32 %v5296, %v5362
    %v5364 = vpop.f32.mrb[0].mxu0
    %5365 = vmatprep.mubr.bf16.mxu0 0
    %5366 = vmatmul.mubr.bf16.gmra.mrb[0].mxu0 %v5323
    %v5367 = vpop.f32.mrb[0].mxu0
    %v5368 = vadd.f32 %v5301, %v5367
    %v5369 = vpop.f32.mrb[0].mxu0
    %v5370 = vpop.f32.mrb[0].mxu0
    %v5371 = vadd.f32 %v5304, %v5370
    %v5372 = vpop.f32.mrb[0].mxu0
    %5373 = vdwg.mxu0
    %v5374 = vpack.c.bf16 %v5199, %v5198
    %v5375 = vpack.c.bf16 %v5201, %v5200
    %s5376 = scalar_lea.vmem [#allocation2], 832
    %v5377 = vld [vmem:[%s5376] sm:$0xf]
    %v5378 = vld [vmem:[%s5376 + $0x4] sm:$0xf]
    %v5379 = vld [vmem:[%s5376 + $0x8] sm:$0xf]
    %v5380 = vld [vmem:[%s5376 + $0xc] sm:$0xf]
    %v5385 = vunpack.c.l.b16 %v5377
    %v5386 = vunpack.c.l.b16 %v5378
    %v5387 = vunpack.c.l.b16 %v5379
    %v5388 = vunpack.c.l.b16 %v5380
    %v5389 = vpack.c.b16 %v5386, %v5385
    %v5390 = vpack.c.b16 %v5388, %v5387
    %v5394 = vsel %vm343, %v5374, 0
    %v5397 = vsel %vm343, %v5375, 0
    %5399 = vmatprep.subr.bf16.mxu0 0
    %5400 = vmatpush1.bf16.msra.mxu0 %v5389
    %5401 = vmatprep.subr.bf16.mxu0 0
    %5402 = vmatpush1.bf16.msra.mxu0 %v5390
    %5403 = vmatprep.subr.bf16.mxu0 0
    %5404 = vmatpush1.bf16.msra.mxu0 0
    %5405 = vmatprep.subr.bf16.mxu0 0
    %5406 = vmatpush1.bf16.msra.mxu0 0
    %5407 = vmatprep.subr.bf16.mxu0 0
    %5408 = vmatpush1.bf16.msra.mxu0 0
    %5409 = vmatprep.subr.bf16.mxu0 0
    %5410 = vmatpush1.bf16.msra.mxu0 0
    %5411 = vmatprep.subr.bf16.mxu0 0
    %5412 = vmatpush1.bf16.msra.mxu0 0
    %5413 = vmatprep.subr.bf16.mxu0 0
    %5414 = vmatpush1.bf16.msra.mxu0 0
    %5415 = vmatprep.subr.bf16.mxu0 0
    %5416 = vmatpush1.bf16.msra.mxu0 0
    %5417 = vmatprep.subr.bf16.mxu0 0
    %5418 = vmatpush1.bf16.msra.mxu0 0
    %5419 = vmatprep.subr.bf16.mxu0 0
    %5420 = vmatpush1.bf16.msra.mxu0 0
    %5421 = vmatprep.subr.bf16.mxu0 0
    %5422 = vmatpush1.bf16.msra.mxu0 0
    %5423 = vmatprep.subr.bf16.mxu0 0
    %5424 = vmatpush1.bf16.msra.mxu0 0
    %5425 = vmatprep.subr.bf16.mxu0 0
    %5426 = vmatpush1.bf16.msra.mxu0 0
    %5427 = vmatprep.subr.bf16.mxu0 0
    %5428 = vmatpush1.bf16.msra.mxu0 0
    %5429 = vmatprep.subr.bf16.mxu0 0
    %5430 = vmatpush1.bf16.msra.mxu0 0
    %5431 = vmatprep.mubr.bf16.mxu0 0
    %5432 = vmatmul.mubr.bf16.gmra.mrb[0].mxu0 %v5394
    %v5433 = vpop.f32.mrb[0].mxu0
    %v5434 = vadd.f32 0.0, %v5433
    %v5435 = vpop.f32.mrb[0].mxu0
    %v5436 = vpop.f32.mrb[0].mxu0
    %v5437 = vadd.f32 0.0, %v5436
    %v5438 = vpop.f32.mrb[0].mxu0
    %5439 = vmatprep.mubr.bf16.mxu0 0
    %5440 = vmatmul.mubr.bf16.gmra.mrb[0].mxu0 %v5397
    %v5441 = vpop.f32.mrb[0].mxu0
    %v5442 = vadd.f32 0.0, %v5441
    %v5443 = vpop.f32.mrb[0].mxu0
    %v5444 = vpop.f32.mrb[0].mxu0
    %v5445 = vadd.f32 0.0, %v5444
    %v5446 = vpop.f32.mrb[0].mxu0
    %5447 = vdwg.mxu0
    %v5448 = vadd.f32 %v5360, %v5434
    %v5449 = vadd.f32 %v5363, %v5437
    %v5450 = vadd.f32 %v5368, %v5442
    %v5451 = vadd.f32 %v5371, %v5445
    %v5452 = vrot.slane %v5198, 1
    %v5453 = vrot.slane %v5199, 1
    %v5454 = vrot.slane %v5200, 1
    %v5455 = vrot.slane %v5201, 1
    %v5456 = vsel %vm548, %v5454, %v5455
    %v5457 = vsel %vm548, %v5453, %v5454
    %v5458 = vsel %vm548, %v5452, %v5453
    %v5459 = vsel %vm548, %v5455, %v5452
    %v5460 = vmul.f32 %v5458, %v184
    %v5461 = vmul.f32 %v5457, %v185
    %v5462 = vmul.f32 %v5456, %v186
    %v5463 = vmul.f32 %v5459, %v187
    %v5464 = vpack.c.bf16 %v5461, %v5460
    %v5465 = vpack.c.bf16 %v5463, %v5462
    %s5466 = scalar_lea.vmem [#allocation2], 848
    %v5467 = vld [vmem:[%s5466] sm:$0xf]
    %v5468 = vld [vmem:[%s5466 + $0x4] sm:$0xf]
    %v5469 = vld [vmem:[%s5466 + $0x8] sm:$0xf]
    %v5470 = vld [vmem:[%s5466 + $0xc] sm:$0xf]
    %v5475 = vunpack.c.l.b16 %v5467
    %v5476 = vunpack.c.l.b16 %v5468
    %v5477 = vunpack.c.l.b16 %v5469
    %v5478 = vunpack.c.l.b16 %v5470
    %v5479 = vpack.c.b16 %v5476, %v5475
    %v5480 = vpack.c.b16 %v5478, %v5477
    %v5484 = vsel %vm343, %v5464, 0
    %v5487 = vsel %vm343, %v5465, 0
    %5489 = vmatprep.subr.bf16.mxu0 0
    %5490 = vmatpush1.bf16.msra.mxu0 %v5479
    %5491 = vmatprep.subr.bf16.mxu0 0
    %5492 = vmatpush1.bf16.msra.mxu0 %v5480
    %5493 = vmatprep.subr.bf16.mxu0 0
    %5494 = vmatpush1.bf16.msra.mxu0 0
    %5495 = vmatprep.subr.bf16.mxu0 0
    %5496 = vmatpush1.bf16.msra.mxu0 0
    %5497 = vmatprep.subr.bf16.mxu0 0
    %5498 = vmatpush1.bf16.msra.mxu0 0
    %5499 = vmatprep.subr.bf16.mxu0 0
    %5500 = vmatpush1.bf16.msra.mxu0 0
    %5501 = vmatprep.subr.bf16.mxu0 0
    %5502 = vmatpush1.bf16.msra.mxu0 0
    %5503 = vmatprep.subr.bf16.mxu0 0
    %5504 = vmatpush1.bf16.msra.mxu0 0
    %5505 = vmatprep.subr.bf16.mxu0 0
    %5506 = vmatpush1.bf16.msra.mxu0 0
    %5507 = vmatprep.subr.bf16.mxu0 0
    %5508 = vmatpush1.bf16.msra.mxu0 0
    %5509 = vmatprep.subr.bf16.mxu0 0
    %5510 = vmatpush1.bf16.msra.mxu0 0
    %5511 = vmatprep.subr.bf16.mxu0 0
    %5512 = vmatpush1.bf16.msra.mxu0 0
    %5513 = vmatprep.subr.bf16.mxu0 0
    %5514 = vmatpush1.bf16.msra.mxu0 0
    %5515 = vmatprep.subr.bf16.mxu0 0
    %5516 = vmatpush1.bf16.msra.mxu0 0
    %5517 = vmatprep.subr.bf16.mxu0 0
    %5518 = vmatpush1.bf16.msra.mxu0 0
    %5519 = vmatprep.subr.bf16.mxu0 0
    %5520 = vmatpush1.bf16.msra.mxu0 0
    %5521 = vmatprep.mubr.bf16.mxu0 0
    %5522 = vmatmul.mubr.bf16.gmra.mrb[0].mxu0 %v5484
    %v5523 = vpop.f32.mrb[0].mxu0
    %v5524 = vadd.f32 0.0, %v5523
    %v5525 = vpop.f32.mrb[0].mxu0
    %v5526 = vpop.f32.mrb[0].mxu0
    %v5527 = vadd.f32 0.0, %v5526
    %v5528 = vpop.f32.mrb[0].mxu0
    %5529 = vmatprep.mubr.bf16.mxu0 0
    %5530 = vmatmul.mubr.bf16.gmra.mrb[0].mxu0 %v5487
    %v5531 = vpop.f32.mrb[0].mxu0
    %v5532 = vadd.f32 0.0, %v5531
    %v5533 = vpop.f32.mrb[0].mxu0
    %v5534 = vpop.f32.mrb[0].mxu0
    %v5535 = vadd.f32 0.0, %v5534
    %v5536 = vpop.f32.mrb[0].mxu0
    %5537 = vdwg.mxu0
    %v5538 = vadd.f32 %v5448, %v5524
    %v5539 = vadd.f32 %v5449, %v5527
    %v5540 = vadd.f32 %v5450, %v5532
    %v5541 = vadd.f32 %v5451, %v5535
    %v5542 = vrot.slane %v5198, 2
    %v5543 = vrot.slane %v5199, 2
    %v5544 = vrot.slane %v5200, 2
    %v5545 = vrot.slane %v5201, 2
    %v5546 = vsel %vm639, %v5544, %v5545
    %v5547 = vsel %vm639, %v5543, %v5544
    %v5548 = vsel %vm639, %v5542, %v5543
    %v5549 = vsel %vm639, %v5545, %v5542
    %v5550 = vmul.f32 %v5548, %v208
    %v5551 = vmul.f32 %v5547, %v209
    %v5552 = vmul.f32 %v5546, %v210
    %v5553 = vmul.f32 %v5549, %v211
    %v5554 = vpack.c.bf16 %v5551, %v5550
    %v5555 = vpack.c.bf16 %v5553, %v5552
    %s5556 = scalar_lea.vmem [#allocation2], 864
    %v5557 = vld [vmem:[%s5556] sm:$0xf]
    %v5558 = vld [vmem:[%s5556 + $0x4] sm:$0xf]
    %v5559 = vld [vmem:[%s5556 + $0x8] sm:$0xf]
    %v5560 = vld [vmem:[%s5556 + $0xc] sm:$0xf]
    %v5565 = vunpack.c.l.b16 %v5557
    %v5566 = vunpack.c.l.b16 %v5558
    %v5567 = vunpack.c.l.b16 %v5559
    %v5568 = vunpack.c.l.b16 %v5560
    %v5569 = vpack.c.b16 %v5566, %v5565
    %v5570 = vpack.c.b16 %v5568, %v5567
    %v5574 = vsel %vm343, %v5554, 0
    %v5577 = vsel %vm343, %v5555, 0
    %5579 = vmatprep.subr.bf16.mxu0 0
    %5580 = vmatpush1.bf16.msra.mxu0 %v5569
    %5581 = vmatprep.subr.bf16.mxu0 0
    %5582 = vmatpush1.bf16.msra.mxu0 %v5570
    %5583 = vmatprep.subr.bf16.mxu0 0
    %5584 = vmatpush1.bf16.msra.mxu0 0
    %5585 = vmatprep.subr.bf16.mxu0 0
    %5586 = vmatpush1.bf16.msra.mxu0 0
    %5587 = vmatprep.subr.bf16.mxu0 0
    %5588 = vmatpush1.bf16.msra.mxu0 0
    %5589 = vmatprep.subr.bf16.mxu0 0
    %5590 = vmatpush1.bf16.msra.mxu0 0
    %5591 = vmatprep.subr.bf16.mxu0 0
    %5592 = vmatpush1.bf16.msra.mxu0 0
    %5593 = vmatprep.subr.bf16.mxu0 0
    %5594 = vmatpush1.bf16.msra.mxu0 0
    %5595 = vmatprep.subr.bf16.mxu0 0
    %5596 = vmatpush1.bf16.msra.mxu0 0
    %5597 = vmatprep.subr.bf16.mxu0 0
    %5598 = vmatpush1.bf16.msra.mxu0 0
    %5599 = vmatprep.subr.bf16.mxu0 0
    %5600 = vmatpush1.bf16.msra.mxu0 0
    %5601 = vmatprep.subr.bf16.mxu0 0
    %5602 = vmatpush1.bf16.msra.mxu0 0
    %5603 = vmatprep.subr.bf16.mxu0 0
    %5604 = vmatpush1.bf16.msra.mxu0 0
    %5605 = vmatprep.subr.bf16.mxu0 0
    %5606 = vmatpush1.bf16.msra.mxu0 0
    %5607 = vmatprep.subr.bf16.mxu0 0
    %5608 = vmatpush1.bf16.msra.mxu0 0
    %5609 = vmatprep.subr.bf16.mxu0 0
    %5610 = vmatpush1.bf16.msra.mxu0 0
    %5611 = vmatprep.mubr.bf16.mxu0 0
    %5612 = vmatmul.mubr.bf16.gmra.mrb[0].mxu0 %v5574
    %v5613 = vpop.f32.mrb[0].mxu0
    %v5614 = vadd.f32 0.0, %v5613
    %v5615 = vpop.f32.mrb[0].mxu0
    %v5616 = vpop.f32.mrb[0].mxu0
    %v5617 = vadd.f32 0.0, %v5616
    %v5618 = vpop.f32.mrb[0].mxu0
    %5619 = vmatprep.mubr.bf16.mxu0 0
    %5620 = vmatmul.mubr.bf16.gmra.mrb[0].mxu0 %v5577
    %v5621 = vpop.f32.mrb[0].mxu0
    %v5622 = vadd.f32 0.0, %v5621
    %v5623 = vpop.f32.mrb[0].mxu0
    %v5624 = vpop.f32.mrb[0].mxu0
    %v5625 = vadd.f32 0.0, %v5624
    %v5626 = vpop.f32.mrb[0].mxu0
    %5627 = vdwg.mxu0
    %v5628 = vadd.f32 %v5538, %v5614
    %v5629 = vadd.f32 %v5539, %v5617
    %v5630 = vadd.f32 %v5540, %v5622
    %v5631 = vadd.f32 %v5541, %v5625
    %s5632 = scalar_lea.vmem %s4, 21
    %v5633 = vld [vmem:[%s5632] sm:$0x1]
    %v5635 = vlaneseq
    %v5636 = vshrl.u32 %v5635, 7
    %v5637 = vsub.s32 0, %v5636
    %v5638 = vrot.slane %v5633, %v5637
    %v5640 = vadd.f32 %v5628, %v5638
    %v5641 = vadd.f32 %v5629, %v5638
    %v5642 = vadd.f32 %v5630, %v5638
    %v5643 = vadd.f32 %v5631, %v5638
    %v5644 = vtanh.pop %v5640
    %v5645 = vtanh.pop %v5641
    %v5646 = vtanh.pop %v5642
    %v5647 = vtanh.pop %v5643
    %v5648 = vmul.f32 %v5644, 0.5
    %v5649 = vmul.f32 %v5645, 0.5
    %v5650 = vmul.f32 %v5646, 0.5
    %v5651 = vmul.f32 %v5647, 0.5
    %v5652 = vadd.f32 %v5648, 0.5
    %v5653 = vadd.f32 %v5649, 0.5
    %v5654 = vadd.f32 %v5650, 0.5
    %v5655 = vadd.f32 %v5651, 0.5
    %5660 = vrot.lane.b32.xlu0 %v5652, 96
    %v5661 = vpop.permute.xlu0 %5660
    %5662 = vrot.lane.b32.xlu0 %v5653, 96
    %v5663 = vpop.permute.xlu0 %5662
    %5664 = vrot.lane.b32.xlu0 %v5654, 96
    %v5665 = vpop.permute.xlu0 %5664
    %5666 = vrot.lane.b32.xlu0 %v5655, 96
    %v5667 = vpop.permute.xlu0 %5666
    %v5672 = vmul.f32 %v5644, %v5661
    %v5673 = vmul.f32 %v5645, %v5663
    %v5674 = vmul.f32 %v5646, %v5665
    %v5675 = vmul.f32 %v5647, %v5667
    %v5676 = vpack.c.bf16 %v5673, %v5672
    %v5677 = vpack.c.bf16 %v5675, %v5674
    %s5678 = scalar_lea.vmem [#allocation2], 1120
    %v5679 = vld [vmem:[%s5678] sm:$0xf]
    %v5680 = vld [vmem:[%s5678 + $0x4] sm:$0xf]
    %v5681 = vld [vmem:[%s5678 + $0x8] sm:$0xf]
    %v5682 = vld [vmem:[%s5678 + $0xc] sm:$0xf]
    %s5683 = scalar_lea.vmem %s4, 25
    %v5684 = vld [vmem:[%s5683] sm:$0x1]
    %v5686 = vlaneseq
    %v5687 = vshrl.u32 %v5686, 7
    %v5688 = vsub.s32 0, %v5687
    %v5689 = vrot.slane %v5684, %v5688
    %v5695 = vunpack.c.l.b16 %v5679
    %v5696 = vunpack.c.l.b16 %v5680
    %v5697 = vunpack.c.l.b16 %v5681
    %v5698 = vunpack.c.l.b16 %v5682
    %v5699 = vpack.c.b16 %v5696, %v5695
    %v5700 = vpack.c.b16 %v5698, %v5697
    %v5704 = vsel %vm343, %v5676, 0
    %v5707 = vsel %vm343, %v5677, 0
    %5709 = vmatprep.subr.bf16.mxu0 0
    %5710 = vmatpush1.bf16.msra.mxu0 %v5699
    %5711 = vmatprep.subr.bf16.mxu0 0
    %5712 = vmatpush1.bf16.msra.mxu0 %v5700
    %5713 = vmatprep.subr.bf16.mxu0 0
    %5714 = vmatpush1.bf16.msra.mxu0 0
    %5715 = vmatprep.subr.bf16.mxu0 0
    %5716 = vmatpush1.bf16.msra.mxu0 0
    %5717 = vmatprep.subr.bf16.mxu0 0
    %5718 = vmatpush1.bf16.msra.mxu0 0
    %5719 = vmatprep.subr.bf16.mxu0 0
    %5720 = vmatpush1.bf16.msra.mxu0 0
    %5721 = vmatprep.subr.bf16.mxu0 0
    %5722 = vmatpush1.bf16.msra.mxu0 0
    %5723 = vmatprep.subr.bf16.mxu0 0
    %5724 = vmatpush1.bf16.msra.mxu0 0
    %5725 = vmatprep.subr.bf16.mxu0 0
    %5726 = vmatpush1.bf16.msra.mxu0 0
    %5727 = vmatprep.subr.bf16.mxu0 0
    %5728 = vmatpush1.bf16.msra.mxu0 0
    %5729 = vmatprep.subr.bf16.mxu0 0
    %5730 = vmatpush1.bf16.msra.mxu0 0
    %5731 = vmatprep.subr.bf16.mxu0 0
    %5732 = vmatpush1.bf16.msra.mxu0 0
    %5733 = vmatprep.subr.bf16.mxu0 0
    %5734 = vmatpush1.bf16.msra.mxu0 0
    %5735 = vmatprep.subr.bf16.mxu0 0
    %5736 = vmatpush1.bf16.msra.mxu0 0
    %5737 = vmatprep.subr.bf16.mxu0 0
    %5738 = vmatpush1.bf16.msra.mxu0 0
    %5739 = vmatprep.subr.bf16.mxu0 0
    %5740 = vmatpush1.bf16.msra.mxu0 0
    %5741 = vmatprep.mubr.bf16.mxu0 0
    %5742 = vmatmul.mubr.bf16.gmra.mrb[0].mxu0 %v5704
    %v5743 = vpop.f32.mrb[0].mxu0
    %v5744 = vadd.f32 %v5689, %v5743
    %v5745 = vpop.f32.mrb[0].mxu0
    %v5746 = vpop.f32.mrb[0].mxu0
    %v5747 = vadd.f32 %v5689, %v5746
    %v5748 = vpop.f32.mrb[0].mxu0
    %5749 = vmatprep.mubr.bf16.mxu0 0
    %5750 = vmatmul.mubr.bf16.gmra.mrb[0].mxu0 %v5707
    %v5751 = vpop.f32.mrb[0].mxu0
    %v5752 = vadd.f32 %v5689, %v5751
    %v5753 = vpop.f32.mrb[0].mxu0
    %v5754 = vpop.f32.mrb[0].mxu0
    %v5755 = vadd.f32 %v5689, %v5754
    %v5756 = vpop.f32.mrb[0].mxu0
    %5757 = vdwg.mxu0
    %v5758 = vadd.f32 %v5198, %v5744
    %v5759 = vadd.f32 %v5199, %v5747
    %v5760 = vadd.f32 %v5200, %v5752
    %v5761 = vadd.f32 %v5201, %v5755
    %v5762 = vmul.f32 %v5758, %v46
    %v5763 = vmul.f32 %v5759, %v51
    %v5764 = vmul.f32 %v5760, %v56
    %v5765 = vmul.f32 %v5761, %v61
    %v5766 = vrot.slane %v5762, 6
    %v5767 = vrot.slane %v5763, 6
    %v5768 = vrot.slane %v5764, 6
    %v5769 = vrot.slane %v5765, 6
    %v5770 = vsel %vm296, %v5768, %v5769
    %v5771 = vsel %vm296, %v5767, %v5768
    %v5772 = vsel %vm296, %v5766, %v5767
    %v5773 = vsel %vm296, %v5769, %v5766
    %v5774 = vmul.f32 %v5773, %v136
    %v5775 = vmul.f32 %v5772, %v137
    %v5776 = vmul.f32 %v5771, %v138
    %v5777 = vmul.f32 %v5770, %v139
    %v5778 = vpack.c.bf16 %v5775, %v5774
    %v5779 = vpack.c.bf16 %v5777, %v5776
    %s5780 = scalar_lea.vmem [#allocation2], 880
    %v5781 = vld [vmem:[%s5780] sm:$0xf]
    %v5782 = vld [vmem:[%s5780 + $0x4] sm:$0xf]
    %v5783 = vld [vmem:[%s5780 + $0x8] sm:$0xf]
    %v5784 = vld [vmem:[%s5780 + $0xc] sm:$0xf]
    %v5785 = vrot.slane %v5762, 7
    %v5786 = vrot.slane %v5763, 7
    %v5787 = vrot.slane %v5764, 7
    %v5788 = vrot.slane %v5765, 7
    %v5789 = vsel %vm315, %v5787, %v5788
    %v5790 = vsel %vm315, %v5786, %v5787
    %v5791 = vsel %vm315, %v5785, %v5786
    %v5792 = vsel %vm315, %v5788, %v5785
    %v5793 = vmul.f32 %v5792, %v160
    %v5794 = vmul.f32 %v5791, %v161
    %v5795 = vmul.f32 %v5790, %v162
    %v5796 = vmul.f32 %v5789, %v163
    %v5797 = vpack.c.bf16 %v5794, %v5793
    %v5798 = vpack.c.bf16 %v5796, %v5795
    %s5799 = scalar_lea.vmem [#allocation2], 896
    %v5800 = vld [vmem:[%s5799] sm:$0xf]
    %v5801 = vld [vmem:[%s5799 + $0x4] sm:$0xf]
    %v5802 = vld [vmem:[%s5799 + $0x8] sm:$0xf]
    %v5803 = vld [vmem:[%s5799 + $0xc] sm:$0xf]
    %v5808 = vunpack.c.l.b16 %v5800
    %v5809 = vunpack.c.l.b16 %v5801
    %v5810 = vunpack.c.l.b16 %v5802
    %v5811 = vunpack.c.l.b16 %v5803
    %v5812 = vpack.c.b16 %v5809, %v5808
    %v5813 = vpack.c.b16 %v5811, %v5810
    %v5817 = vsel %vm343, %v5797, 0
    %v5820 = vsel %vm343, %v5798, 0
    %5822 = vmatprep.subr.bf16.mxu0 0
    %5823 = vmatpush1.bf16.msra.mxu0 %v5812
    %5824 = vmatprep.subr.bf16.mxu0 0
    %5825 = vmatpush1.bf16.msra.mxu0 %v5813
    %5826 = vmatprep.subr.bf16.mxu0 0
    %5827 = vmatpush1.bf16.msra.mxu0 0
    %5828 = vmatprep.subr.bf16.mxu0 0
    %5829 = vmatpush1.bf16.msra.mxu0 0
    %5830 = vmatprep.subr.bf16.mxu0 0
    %5831 = vmatpush1.bf16.msra.mxu0 0
    %5832 = vmatprep.subr.bf16.mxu0 0
    %5833 = vmatpush1.bf16.msra.mxu0 0
    %5834 = vmatprep.subr.bf16.mxu0 0
    %5835 = vmatpush1.bf16.msra.mxu0 0
    %5836 = vmatprep.subr.bf16.mxu0 0
    %5837 = vmatpush1.bf16.msra.mxu0 0
    %5838 = vmatprep.subr.bf16.mxu0 0
    %5839 = vmatpush1.bf16.msra.mxu0 0
    %5840 = vmatprep.subr.bf16.mxu0 0
    %5841 = vmatpush1.bf16.msra.mxu0 0
    %5842 = vmatprep.subr.bf16.mxu0 0
    %5843 = vmatpush1.bf16.msra.mxu0 0
    %5844 = vmatprep.subr.bf16.mxu0 0
    %5845 = vmatpush1.bf16.msra.mxu0 0
    %5846 = vmatprep.subr.bf16.mxu0 0
    %5847 = vmatpush1.bf16.msra.mxu0 0
    %5848 = vmatprep.subr.bf16.mxu0 0
    %5849 = vmatpush1.bf16.msra.mxu0 0
    %5850 = vmatprep.subr.bf16.mxu0 0
    %5851 = vmatpush1.bf16.msra.mxu0 0
    %5852 = vmatprep.subr.bf16.mxu0 0
    %5853 = vmatpush1.bf16.msra.mxu0 0
    %5854 = vmatprep.mubr.bf16.mxu0 0
    %5855 = vmatmul.mubr.bf16.gmra.mrb[0].mxu0 %v5817
    %v5856 = vpop.f32.mrb[0].mxu0
    %v5857 = vadd.f32 0.0, %v5856
    %v5858 = vpop.f32.mrb[0].mxu0
    %v5859 = vpop.f32.mrb[0].mxu0
    %v5860 = vadd.f32 0.0, %v5859
    %v5861 = vpop.f32.mrb[0].mxu0
    %5862 = vmatprep.mubr.bf16.mxu0 0
    %5863 = vmatmul.mubr.bf16.gmra.mrb[0].mxu0 %v5820
    %v5864 = vpop.f32.mrb[0].mxu0
    %v5865 = vadd.f32 0.0, %v5864
    %v5866 = vpop.f32.mrb[0].mxu0
    %v5867 = vpop.f32.mrb[0].mxu0
    %v5868 = vadd.f32 0.0, %v5867
    %v5869 = vpop.f32.mrb[0].mxu0
    %5870 = vdwg.mxu0
    %v5875 = vunpack.c.l.b16 %v5781
    %v5876 = vunpack.c.l.b16 %v5782
    %v5877 = vunpack.c.l.b16 %v5783
    %v5878 = vunpack.c.l.b16 %v5784
    %v5879 = vpack.c.b16 %v5876, %v5875
    %v5880 = vpack.c.b16 %v5878, %v5877
    %v5884 = vsel %vm343, %v5778, 0
    %v5887 = vsel %vm343, %v5779, 0
    %5889 = vmatprep.subr.bf16.mxu0 0
    %5890 = vmatpush1.bf16.msra.mxu0 %v5879
    %5891 = vmatprep.subr.bf16.mxu0 0
    %5892 = vmatpush1.bf16.msra.mxu0 %v5880
    %5893 = vmatprep.subr.bf16.mxu0 0
    %5894 = vmatpush1.bf16.msra.mxu0 0
    %5895 = vmatprep.subr.bf16.mxu0 0
    %5896 = vmatpush1.bf16.msra.mxu0 0
    %5897 = vmatprep.subr.bf16.mxu0 0
    %5898 = vmatpush1.bf16.msra.mxu0 0
    %5899 = vmatprep.subr.bf16.mxu0 0
    %5900 = vmatpush1.bf16.msra.mxu0 0
    %5901 = vmatprep.subr.bf16.mxu0 0
    %5902 = vmatpush1.bf16.msra.mxu0 0
    %5903 = vmatprep.subr.bf16.mxu0 0
    %5904 = vmatpush1.bf16.msra.mxu0 0
    %5905 = vmatprep.subr.bf16.mxu0 0
    %5906 = vmatpush1.bf16.msra.mxu0 0
    %5907 = vmatprep.subr.bf16.mxu0 0
    %5908 = vmatpush1.bf16.msra.mxu0 0
    %5909 = vmatprep.subr.bf16.mxu0 0
    %5910 = vmatpush1.bf16.msra.mxu0 0
    %5911 = vmatprep.subr.bf16.mxu0 0
    %5912 = vmatpush1.bf16.msra.mxu0 0
    %5913 = vmatprep.subr.bf16.mxu0 0
    %5914 = vmatpush1.bf16.msra.mxu0 0
    %5915 = vmatprep.subr.bf16.mxu0 0
    %5916 = vmatpush1.bf16.msra.mxu0 0
    %5917 = vmatprep.subr.bf16.mxu0 0
    %5918 = vmatpush1.bf16.msra.mxu0 0
    %5919 = vmatprep.subr.bf16.mxu0 0
    %5920 = vmatpush1.bf16.msra.mxu0 0
    %5921 = vmatprep.mubr.bf16.mxu0 0
    %5922 = vmatmul.mubr.bf16.gmra.mrb[0].mxu0 %v5884
    %v5923 = vpop.f32.mrb[0].mxu0
    %v5924 = vadd.f32 %v5857, %v5923
    %v5925 = vpop.f32.mrb[0].mxu0
    %v5926 = vpop.f32.mrb[0].mxu0
    %v5927 = vadd.f32 %v5860, %v5926
    %v5928 = vpop.f32.mrb[0].mxu0
    %5929 = vmatprep.mubr.bf16.mxu0 0
    %5930 = vmatmul.mubr.bf16.gmra.mrb[0].mxu0 %v5887
    %v5931 = vpop.f32.mrb[0].mxu0
    %v5932 = vadd.f32 %v5865, %v5931
    %v5933 = vpop.f32.mrb[0].mxu0
    %v5934 = vpop.f32.mrb[0].mxu0
    %v5935 = vadd.f32 %v5868, %v5934
    %v5936 = vpop.f32.mrb[0].mxu0
    %5937 = vdwg.mxu0
    %v5938 = vpack.c.bf16 %v5763, %v5762
    %v5939 = vpack.c.bf16 %v5765, %v5764
    %s5940 = scalar_lea.vmem [#allocation2], 912
    %v5941 = vld [vmem:[%s5940] sm:$0xf]
    %v5942 = vld [vmem:[%s5940 + $0x4] sm:$0xf]
    %v5943 = vld [vmem:[%s5940 + $0x8] sm:$0xf]
    %v5944 = vld [vmem:[%s5940 + $0xc] sm:$0xf]
    %v5949 = vunpack.c.l.b16 %v5941
    %v5950 = vunpack.c.l.b16 %v5942
    %v5951 = vunpack.c.l.b16 %v5943
    %v5952 = vunpack.c.l.b16 %v5944
    %v5953 = vpack.c.b16 %v5950, %v5949
    %v5954 = vpack.c.b16 %v5952, %v5951
    %v5958 = vsel %vm343, %v5938, 0
    %v5961 = vsel %vm343, %v5939, 0
    %5963 = vmatprep.subr.bf16.mxu0 0
    %5964 = vmatpush1.bf16.msra.mxu0 %v5953
    %5965 = vmatprep.subr.bf16.mxu0 0
    %5966 = vmatpush1.bf16.msra.mxu0 %v5954
    %5967 = vmatprep.subr.bf16.mxu0 0
    %5968 = vmatpush1.bf16.msra.mxu0 0
    %5969 = vmatprep.subr.bf16.mxu0 0
    %5970 = vmatpush1.bf16.msra.mxu0 0
    %5971 = vmatprep.subr.bf16.mxu0 0
    %5972 = vmatpush1.bf16.msra.mxu0 0
    %5973 = vmatprep.subr.bf16.mxu0 0
    %5974 = vmatpush1.bf16.msra.mxu0 0
    %5975 = vmatprep.subr.bf16.mxu0 0
    %5976 = vmatpush1.bf16.msra.mxu0 0
    %5977 = vmatprep.subr.bf16.mxu0 0
    %5978 = vmatpush1.bf16.msra.mxu0 0
    %5979 = vmatprep.subr.bf16.mxu0 0
    %5980 = vmatpush1.bf16.msra.mxu0 0
    %5981 = vmatprep.subr.bf16.mxu0 0
    %5982 = vmatpush1.bf16.msra.mxu0 0
    %5983 = vmatprep.subr.bf16.mxu0 0
    %5984 = vmatpush1.bf16.msra.mxu0 0
    %5985 = vmatprep.subr.bf16.mxu0 0
    %5986 = vmatpush1.bf16.msra.mxu0 0
    %5987 = vmatprep.subr.bf16.mxu0 0
    %5988 = vmatpush1.bf16.msra.mxu0 0
    %5989 = vmatprep.subr.bf16.mxu0 0
    %5990 = vmatpush1.bf16.msra.mxu0 0
    %5991 = vmatprep.subr.bf16.mxu0 0
    %5992 = vmatpush1.bf16.msra.mxu0 0
    %5993 = vmatprep.subr.bf16.mxu0 0
    %5994 = vmatpush1.bf16.msra.mxu0 0
    %5995 = vmatprep.mubr.bf16.mxu0 0
    %5996 = vmatmul.mubr.bf16.gmra.mrb[0].mxu0 %v5958
    %v5997 = vpop.f32.mrb[0].mxu0
    %v5998 = vadd.f32 0.0, %v5997
    %v5999 = vpop.f32.mrb[0].mxu0
    %v6000 = vpop.f32.mrb[0].mxu0
    %v6001 = vadd.f32 0.0, %v6000
    %v6002 = vpop.f32.mrb[0].mxu0
    %6003 = vmatprep.mubr.bf16.mxu0 0
    %6004 = vmatmul.mubr.bf16.gmra.mrb[0].mxu0 %v5961
    %v6005 = vpop.f32.mrb[0].mxu0
    %v6006 = vadd.f32 0.0, %v6005
    %v6007 = vpop.f32.mrb[0].mxu0
    %v6008 = vpop.f32.mrb[0].mxu0
    %v6009 = vadd.f32 0.0, %v6008
    %v6010 = vpop.f32.mrb[0].mxu0
    %6011 = vdwg.mxu0
    %v6012 = vadd.f32 %v5924, %v5998
    %v6013 = vadd.f32 %v5927, %v6001
    %v6014 = vadd.f32 %v5932, %v6006
    %v6015 = vadd.f32 %v5935, %v6009
    %v6016 = vrot.slane %v5762, 1
    %v6017 = vrot.slane %v5763, 1
    %v6018 = vrot.slane %v5764, 1
    %v6019 = vrot.slane %v5765, 1
    %v6020 = vsel %vm548, %v6018, %v6019
    %v6021 = vsel %vm548, %v6017, %v6018
    %v6022 = vsel %vm548, %v6016, %v6017
    %v6023 = vsel %vm548, %v6019, %v6016
    %v6024 = vmul.f32 %v6022, %v184
    %v6025 = vmul.f32 %v6021, %v185
    %v6026 = vmul.f32 %v6020, %v186
    %v6027 = vmul.f32 %v6023, %v187
    %v6028 = vpack.c.bf16 %v6025, %v6024
    %v6029 = vpack.c.bf16 %v6027, %v6026
    %s6030 = scalar_lea.vmem [#allocation2], 928
    %v6031 = vld [vmem:[%s6030] sm:$0xf]
    %v6032 = vld [vmem:[%s6030 + $0x4] sm:$0xf]
    %v6033 = vld [vmem:[%s6030 + $0x8] sm:$0xf]
    %v6034 = vld [vmem:[%s6030 + $0xc] sm:$0xf]
    %v6039 = vunpack.c.l.b16 %v6031
    %v6040 = vunpack.c.l.b16 %v6032
    %v6041 = vunpack.c.l.b16 %v6033
    %v6042 = vunpack.c.l.b16 %v6034
    %v6043 = vpack.c.b16 %v6040, %v6039
    %v6044 = vpack.c.b16 %v6042, %v6041
    %v6048 = vsel %vm343, %v6028, 0
    %v6051 = vsel %vm343, %v6029, 0
    %6053 = vmatprep.subr.bf16.mxu0 0
    %6054 = vmatpush1.bf16.msra.mxu0 %v6043
    %6055 = vmatprep.subr.bf16.mxu0 0
    %6056 = vmatpush1.bf16.msra.mxu0 %v6044
    %6057 = vmatprep.subr.bf16.mxu0 0
    %6058 = vmatpush1.bf16.msra.mxu0 0
    %6059 = vmatprep.subr.bf16.mxu0 0
    %6060 = vmatpush1.bf16.msra.mxu0 0
    %6061 = vmatprep.subr.bf16.mxu0 0
    %6062 = vmatpush1.bf16.msra.mxu0 0
    %6063 = vmatprep.subr.bf16.mxu0 0
    %6064 = vmatpush1.bf16.msra.mxu0 0
    %6065 = vmatprep.subr.bf16.mxu0 0
    %6066 = vmatpush1.bf16.msra.mxu0 0
    %6067 = vmatprep.subr.bf16.mxu0 0
    %6068 = vmatpush1.bf16.msra.mxu0 0
    %6069 = vmatprep.subr.bf16.mxu0 0
    %6070 = vmatpush1.bf16.msra.mxu0 0
    %6071 = vmatprep.subr.bf16.mxu0 0
    %6072 = vmatpush1.bf16.msra.mxu0 0
    %6073 = vmatprep.subr.bf16.mxu0 0
    %6074 = vmatpush1.bf16.msra.mxu0 0
    %6075 = vmatprep.subr.bf16.mxu0 0
    %6076 = vmatpush1.bf16.msra.mxu0 0
    %6077 = vmatprep.subr.bf16.mxu0 0
    %6078 = vmatpush1.bf16.msra.mxu0 0
    %6079 = vmatprep.subr.bf16.mxu0 0
    %6080 = vmatpush1.bf16.msra.mxu0 0
    %6081 = vmatprep.subr.bf16.mxu0 0
    %6082 = vmatpush1.bf16.msra.mxu0 0
    %6083 = vmatprep.subr.bf16.mxu0 0
    %6084 = vmatpush1.bf16.msra.mxu0 0
    %6085 = vmatprep.mubr.bf16.mxu0 0
    %6086 = vmatmul.mubr.bf16.gmra.mrb[0].mxu0 %v6048
    %v6087 = vpop.f32.mrb[0].mxu0
    %v6088 = vadd.f32 0.0, %v6087
    %v6089 = vpop.f32.mrb[0].mxu0
    %v6090 = vpop.f32.mrb[0].mxu0
    %v6091 = vadd.f32 0.0, %v6090
    %v6092 = vpop.f32.mrb[0].mxu0
    %6093 = vmatprep.mubr.bf16.mxu0 0
    %6094 = vmatmul.mubr.bf16.gmra.mrb[0].mxu0 %v6051
    %v6095 = vpop.f32.mrb[0].mxu0
    %v6096 = vadd.f32 0.0, %v6095
    %v6097 = vpop.f32.mrb[0].mxu0
    %v6098 = vpop.f32.mrb[0].mxu0
    %v6099 = vadd.f32 0.0, %v6098
    %v6100 = vpop.f32.mrb[0].mxu0
    %6101 = vdwg.mxu0
    %v6102 = vadd.f32 %v6012, %v6088
    %v6103 = vadd.f32 %v6013, %v6091
    %v6104 = vadd.f32 %v6014, %v6096
    %v6105 = vadd.f32 %v6015, %v6099
    %v6106 = vrot.slane %v5762, 2
    %v6107 = vrot.slane %v5763, 2
    %v6108 = vrot.slane %v5764, 2
    %v6109 = vrot.slane %v5765, 2
    %v6110 = vsel %vm639, %v6108, %v6109
    %v6111 = vsel %vm639, %v6107, %v6108
    %v6112 = vsel %vm639, %v6106, %v6107
    %v6113 = vsel %vm639, %v6109, %v6106
    %v6114 = vmul.f32 %v6112, %v208
    %v6115 = vmul.f32 %v6111, %v209
    %v6116 = vmul.f32 %v6110, %v210
    %v6117 = vmul.f32 %v6113, %v211
    %v6118 = vpack.c.bf16 %v6115, %v6114
    %v6119 = vpack.c.bf16 %v6117, %v6116
    %s6120 = scalar_lea.vmem [#allocation2], 944
    %v6121 = vld [vmem:[%s6120] sm:$0xf]
    %v6122 = vld [vmem:[%s6120 + $0x4] sm:$0xf]
    %v6123 = vld [vmem:[%s6120 + $0x8] sm:$0xf]
    %v6124 = vld [vmem:[%s6120 + $0xc] sm:$0xf]
    %v6129 = vunpack.c.l.b16 %v6121
    %v6130 = vunpack.c.l.b16 %v6122
    %v6131 = vunpack.c.l.b16 %v6123
    %v6132 = vunpack.c.l.b16 %v6124
    %v6133 = vpack.c.b16 %v6130, %v6129
    %v6134 = vpack.c.b16 %v6132, %v6131
    %v6138 = vsel %vm343, %v6118, 0
    %v6141 = vsel %vm343, %v6119, 0
    %6143 = vmatprep.subr.bf16.mxu0 0
    %6144 = vmatpush1.bf16.msra.mxu0 %v6133
    %6145 = vmatprep.subr.bf16.mxu0 0
    %6146 = vmatpush1.bf16.msra.mxu0 %v6134
    %6147 = vmatprep.subr.bf16.mxu0 0
    %6148 = vmatpush1.bf16.msra.mxu0 0
    %6149 = vmatprep.subr.bf16.mxu0 0
    %6150 = vmatpush1.bf16.msra.mxu0 0
    %6151 = vmatprep.subr.bf16.mxu0 0
    %6152 = vmatpush1.bf16.msra.mxu0 0
    %6153 = vmatprep.subr.bf16.mxu0 0
    %6154 = vmatpush1.bf16.msra.mxu0 0
    %6155 = vmatprep.subr.bf16.mxu0 0
    %6156 = vmatpush1.bf16.msra.mxu0 0
    %6157 = vmatprep.subr.bf16.mxu0 0
    %6158 = vmatpush1.bf16.msra.mxu0 0
    %6159 = vmatprep.subr.bf16.mxu0 0
    %6160 = vmatpush1.bf16.msra.mxu0 0
    %6161 = vmatprep.subr.bf16.mxu0 0
    %6162 = vmatpush1.bf16.msra.mxu0 0
    %6163 = vmatprep.subr.bf16.mxu0 0
    %6164 = vmatpush1.bf16.msra.mxu0 0
    %6165 = vmatprep.subr.bf16.mxu0 0
    %6166 = vmatpush1.bf16.msra.mxu0 0
    %6167 = vmatprep.subr.bf16.mxu0 0
    %6168 = vmatpush1.bf16.msra.mxu0 0
    %6169 = vmatprep.subr.bf16.mxu0 0
    %6170 = vmatpush1.bf16.msra.mxu0 0
    %6171 = vmatprep.subr.bf16.mxu0 0
    %6172 = vmatpush1.bf16.msra.mxu0 0
    %6173 = vmatprep.subr.bf16.mxu0 0
    %6174 = vmatpush1.bf16.msra.mxu0 0
    %6175 = vmatprep.mubr.bf16.mxu0 0
    %6176 = vmatmul.mubr.bf16.gmra.mrb[0].mxu0 %v6138
    %v6177 = vpop.f32.mrb[0].mxu0
    %v6178 = vadd.f32 0.0, %v6177
    %v6179 = vpop.f32.mrb[0].mxu0
    %v6180 = vpop.f32.mrb[0].mxu0
    %v6181 = vadd.f32 0.0, %v6180
    %v6182 = vpop.f32.mrb[0].mxu0
    %6183 = vmatprep.mubr.bf16.mxu0 0
    %6184 = vmatmul.mubr.bf16.gmra.mrb[0].mxu0 %v6141
    %v6185 = vpop.f32.mrb[0].mxu0
    %v6186 = vadd.f32 0.0, %v6185
    %v6187 = vpop.f32.mrb[0].mxu0
    %v6188 = vpop.f32.mrb[0].mxu0
    %v6189 = vadd.f32 0.0, %v6188
    %v6190 = vpop.f32.mrb[0].mxu0
    %6191 = vdwg.mxu0
    %v6192 = vadd.f32 %v6102, %v6178
    %v6193 = vadd.f32 %v6103, %v6181
    %v6194 = vadd.f32 %v6104, %v6186
    %v6195 = vadd.f32 %v6105, %v6189
    %s6196 = scalar_lea.vmem %s4, 22
    %v6197 = vld [vmem:[%s6196] sm:$0x1]
    %v6199 = vlaneseq
    %v6200 = vshrl.u32 %v6199, 7
    %v6201 = vsub.s32 0, %v6200
    %v6202 = vrot.slane %v6197, %v6201
    %v6204 = vadd.f32 %v6192, %v6202
    %v6205 = vadd.f32 %v6193, %v6202
    %v6206 = vadd.f32 %v6194, %v6202
    %v6207 = vadd.f32 %v6195, %v6202
    %v6208 = vtanh.pop %v6204
    %v6209 = vtanh.pop %v6205
    %v6210 = vtanh.pop %v6206
    %v6211 = vtanh.pop %v6207
    %v6212 = vmul.f32 %v6208, 0.5
    %v6213 = vmul.f32 %v6209, 0.5
    %v6214 = vmul.f32 %v6210, 0.5
    %v6215 = vmul.f32 %v6211, 0.5
    %v6216 = vadd.f32 %v6212, 0.5
    %v6217 = vadd.f32 %v6213, 0.5
    %v6218 = vadd.f32 %v6214, 0.5
    %v6219 = vadd.f32 %v6215, 0.5
    %6224 = vrot.lane.b32.xlu0 %v6216, 96
    %v6225 = vpop.permute.xlu0 %6224
    %6226 = vrot.lane.b32.xlu0 %v6217, 96
    %v6227 = vpop.permute.xlu0 %6226
    %6228 = vrot.lane.b32.xlu0 %v6218, 96
    %v6229 = vpop.permute.xlu0 %6228
    %6230 = vrot.lane.b32.xlu0 %v6219, 96
    %v6231 = vpop.permute.xlu0 %6230
    %v6236 = vmul.f32 %v6208, %v6225
    %v6237 = vmul.f32 %v6209, %v6227
    %v6238 = vmul.f32 %v6210, %v6229
    %v6239 = vmul.f32 %v6211, %v6231
    %v6240 = vpack.c.bf16 %v6237, %v6236
    %v6241 = vpack.c.bf16 %v6239, %v6238
    %s6242 = scalar_lea.vmem [#allocation2], 1136
    %v6243 = vld [vmem:[%s6242] sm:$0xf]
    %v6244 = vld [vmem:[%s6242 + $0x4] sm:$0xf]
    %v6245 = vld [vmem:[%s6242 + $0x8] sm:$0xf]
    %v6246 = vld [vmem:[%s6242 + $0xc] sm:$0xf]
    %s6247 = scalar_lea.vmem %s4, 26
    %v6248 = vld [vmem:[%s6247] sm:$0x1]
    %v6250 = vlaneseq
    %v6251 = vshrl.u32 %v6250, 7
    %v6252 = vsub.s32 0, %v6251
    %v6253 = vrot.slane %v6248, %v6252
    %v6259 = vunpack.c.l.b16 %v6243
    %v6260 = vunpack.c.l.b16 %v6244
    %v6261 = vunpack.c.l.b16 %v6245
    %v6262 = vunpack.c.l.b16 %v6246
    %v6263 = vpack.c.b16 %v6260, %v6259
    %v6264 = vpack.c.b16 %v6262, %v6261
    %v6268 = vsel %vm343, %v6240, 0
    %v6271 = vsel %vm343, %v6241, 0
    %6273 = vmatprep.subr.bf16.mxu0 0
    %6274 = vmatpush1.bf16.msra.mxu0 %v6263
    %6275 = vmatprep.subr.bf16.mxu0 0
    %6276 = vmatpush1.bf16.msra.mxu0 %v6264
    %6277 = vmatprep.subr.bf16.mxu0 0
    %6278 = vmatpush1.bf16.msra.mxu0 0
    %6279 = vmatprep.subr.bf16.mxu0 0
    %6280 = vmatpush1.bf16.msra.mxu0 0
    %6281 = vmatprep.subr.bf16.mxu0 0
    %6282 = vmatpush1.bf16.msra.mxu0 0
    %6283 = vmatprep.subr.bf16.mxu0 0
    %6284 = vmatpush1.bf16.msra.mxu0 0
    %6285 = vmatprep.subr.bf16.mxu0 0
    %6286 = vmatpush1.bf16.msra.mxu0 0
    %6287 = vmatprep.subr.bf16.mxu0 0
    %6288 = vmatpush1.bf16.msra.mxu0 0
    %6289 = vmatprep.subr.bf16.mxu0 0
    %6290 = vmatpush1.bf16.msra.mxu0 0
    %6291 = vmatprep.subr.bf16.mxu0 0
    %6292 = vmatpush1.bf16.msra.mxu0 0
    %6293 = vmatprep.subr.bf16.mxu0 0
    %6294 = vmatpush1.bf16.msra.mxu0 0
    %6295 = vmatprep.subr.bf16.mxu0 0
    %6296 = vmatpush1.bf16.msra.mxu0 0
    %6297 = vmatprep.subr.bf16.mxu0 0
    %6298 = vmatpush1.bf16.msra.mxu0 0
    %6299 = vmatprep.subr.bf16.mxu0 0
    %6300 = vmatpush1.bf16.msra.mxu0 0
    %6301 = vmatprep.subr.bf16.mxu0 0
    %6302 = vmatpush1.bf16.msra.mxu0 0
    %6303 = vmatprep.subr.bf16.mxu0 0
    %6304 = vmatpush1.bf16.msra.mxu0 0
    %6305 = vmatprep.mubr.bf16.mxu0 0
    %6306 = vmatmul.mubr.bf16.gmra.mrb[0].mxu0 %v6268
    %v6307 = vpop.f32.mrb[0].mxu0
    %v6308 = vadd.f32 %v6253, %v6307
    %v6309 = vpop.f32.mrb[0].mxu0
    %v6310 = vpop.f32.mrb[0].mxu0
    %v6311 = vadd.f32 %v6253, %v6310
    %v6312 = vpop.f32.mrb[0].mxu0
    %6313 = vmatprep.mubr.bf16.mxu0 0
    %6314 = vmatmul.mubr.bf16.gmra.mrb[0].mxu0 %v6271
    %v6315 = vpop.f32.mrb[0].mxu0
    %v6316 = vadd.f32 %v6253, %v6315
    %v6317 = vpop.f32.mrb[0].mxu0
    %v6318 = vpop.f32.mrb[0].mxu0
    %v6319 = vadd.f32 %v6253, %v6318
    %v6320 = vpop.f32.mrb[0].mxu0
    %6321 = vdwg.mxu0
    %v6322 = vadd.f32 %v5762, %v6308
    %v6323 = vadd.f32 %v5763, %v6311
    %v6324 = vadd.f32 %v5764, %v6316
    %v6325 = vadd.f32 %v5765, %v6319
    %v6326 = vmul.f32 %v6322, %v46
    %v6327 = vmul.f32 %v6323, %v51
    %v6328 = vmul.f32 %v6324, %v56
    %v6329 = vmul.f32 %v6325, %v61
    %v6330 = vadd.f32 %v5744, %v6308
    %v6331 = vadd.f32 %v5747, %v6311
    %v6332 = vadd.f32 %v5752, %v6316
    %v6333 = vadd.f32 %v5755, %v6319
    %v6334 = vrot.slane %v6326, 6
    %v6335 = vrot.slane %v6327, 6
    %v6336 = vrot.slane %v6328, 6
    %v6337 = vrot.slane %v6329, 6
    %v6338 = vsel %vm296, %v6336, %v6337
    %v6339 = vsel %vm296, %v6335, %v6336
    %v6340 = vsel %vm296, %v6334, %v6335
    %v6341 = vsel %vm296, %v6337, %v6334
    %v6342 = vmul.f32 %v6341, %v136
    %v6343 = vmul.f32 %v6340, %v137
    %v6344 = vmul.f32 %v6339, %v138
    %v6345 = vmul.f32 %v6338, %v139
    %v6346 = vpack.c.bf16 %v6343, %v6342
    %v6347 = vpack.c.bf16 %v6345, %v6344
    %s6348 = scalar_lea.vmem [#allocation2], 960
    %v6349 = vld [vmem:[%s6348] sm:$0xf]
    %v6350 = vld [vmem:[%s6348 + $0x4] sm:$0xf]
    %v6351 = vld [vmem:[%s6348 + $0x8] sm:$0xf]
    %v6352 = vld [vmem:[%s6348 + $0xc] sm:$0xf]
    %v6353 = vrot.slane %v6326, 7
    %v6354 = vrot.slane %v6327, 7
    %v6355 = vrot.slane %v6328, 7
    %v6356 = vrot.slane %v6329, 7
    %v6357 = vsel %vm315, %v6355, %v6356
    %v6358 = vsel %vm315, %v6354, %v6355
    %v6359 = vsel %vm315, %v6353, %v6354
    %v6360 = vsel %vm315, %v6356, %v6353
    %v6361 = vmul.f32 %v6360, %v160
    %v6362 = vmul.f32 %v6359, %v161
    %v6363 = vmul.f32 %v6358, %v162
    %v6364 = vmul.f32 %v6357, %v163
    %v6365 = vpack.c.bf16 %v6362, %v6361
    %v6366 = vpack.c.bf16 %v6364, %v6363
    %s6367 = scalar_lea.vmem [#allocation2], 976
    %v6368 = vld [vmem:[%s6367] sm:$0xf]
    %v6369 = vld [vmem:[%s6367 + $0x4] sm:$0xf]
    %v6370 = vld [vmem:[%s6367 + $0x8] sm:$0xf]
    %v6371 = vld [vmem:[%s6367 + $0xc] sm:$0xf]
    %v6376 = vunpack.c.l.b16 %v6368
    %v6377 = vunpack.c.l.b16 %v6369
    %v6378 = vunpack.c.l.b16 %v6370
    %v6379 = vunpack.c.l.b16 %v6371
    %v6380 = vpack.c.b16 %v6377, %v6376
    %v6381 = vpack.c.b16 %v6379, %v6378
    %v6385 = vsel %vm343, %v6365, 0
    %v6388 = vsel %vm343, %v6366, 0
    %6390 = vmatprep.subr.bf16.mxu0 0
    %6391 = vmatpush1.bf16.msra.mxu0 %v6380
    %6392 = vmatprep.subr.bf16.mxu0 0
    %6393 = vmatpush1.bf16.msra.mxu0 %v6381
    %6394 = vmatprep.subr.bf16.mxu0 0
    %6395 = vmatpush1.bf16.msra.mxu0 0
    %6396 = vmatprep.subr.bf16.mxu0 0
    %6397 = vmatpush1.bf16.msra.mxu0 0
    %6398 = vmatprep.subr.bf16.mxu0 0
    %6399 = vmatpush1.bf16.msra.mxu0 0
    %6400 = vmatprep.subr.bf16.mxu0 0
    %6401 = vmatpush1.bf16.msra.mxu0 0
    %6402 = vmatprep.subr.bf16.mxu0 0
    %6403 = vmatpush1.bf16.msra.mxu0 0
    %6404 = vmatprep.subr.bf16.mxu0 0
    %6405 = vmatpush1.bf16.msra.mxu0 0
    %6406 = vmatprep.subr.bf16.mxu0 0
    %6407 = vmatpush1.bf16.msra.mxu0 0
    %6408 = vmatprep.subr.bf16.mxu0 0
    %6409 = vmatpush1.bf16.msra.mxu0 0
    %6410 = vmatprep.subr.bf16.mxu0 0
    %6411 = vmatpush1.bf16.msra.mxu0 0
    %6412 = vmatprep.subr.bf16.mxu0 0
    %6413 = vmatpush1.bf16.msra.mxu0 0
    %6414 = vmatprep.subr.bf16.mxu0 0
    %6415 = vmatpush1.bf16.msra.mxu0 0
    %6416 = vmatprep.subr.bf16.mxu0 0
    %6417 = vmatpush1.bf16.msra.mxu0 0
    %6418 = vmatprep.subr.bf16.mxu0 0
    %6419 = vmatpush1.bf16.msra.mxu0 0
    %6420 = vmatprep.subr.bf16.mxu0 0
    %6421 = vmatpush1.bf16.msra.mxu0 0
    %6422 = vmatprep.mubr.bf16.mxu0 0
    %6423 = vmatmul.mubr.bf16.gmra.mrb[0].mxu0 %v6385
    %v6424 = vpop.f32.mrb[0].mxu0
    %v6425 = vadd.f32 0.0, %v6424
    %v6426 = vpop.f32.mrb[0].mxu0
    %v6427 = vpop.f32.mrb[0].mxu0
    %v6428 = vadd.f32 0.0, %v6427
    %v6429 = vpop.f32.mrb[0].mxu0
    %6430 = vmatprep.mubr.bf16.mxu0 0
    %6431 = vmatmul.mubr.bf16.gmra.mrb[0].mxu0 %v6388
    %v6432 = vpop.f32.mrb[0].mxu0
    %v6433 = vadd.f32 0.0, %v6432
    %v6434 = vpop.f32.mrb[0].mxu0
    %v6435 = vpop.f32.mrb[0].mxu0
    %v6436 = vadd.f32 0.0, %v6435
    %v6437 = vpop.f32.mrb[0].mxu0
    %6438 = vdwg.mxu0
    %v6443 = vunpack.c.l.b16 %v6349
    %v6444 = vunpack.c.l.b16 %v6350
    %v6445 = vunpack.c.l.b16 %v6351
    %v6446 = vunpack.c.l.b16 %v6352
    %v6447 = vpack.c.b16 %v6444, %v6443
    %v6448 = vpack.c.b16 %v6446, %v6445
    %v6452 = vsel %vm343, %v6346, 0
    %v6455 = vsel %vm343, %v6347, 0
    %6457 = vmatprep.subr.bf16.mxu0 0
    %6458 = vmatpush1.bf16.msra.mxu0 %v6447
    %6459 = vmatprep.subr.bf16.mxu0 0
    %6460 = vmatpush1.bf16.msra.mxu0 %v6448
    %6461 = vmatprep.subr.bf16.mxu0 0
    %6462 = vmatpush1.bf16.msra.mxu0 0
    %6463 = vmatprep.subr.bf16.mxu0 0
    %6464 = vmatpush1.bf16.msra.mxu0 0
    %6465 = vmatprep.subr.bf16.mxu0 0
    %6466 = vmatpush1.bf16.msra.mxu0 0
    %6467 = vmatprep.subr.bf16.mxu0 0
    %6468 = vmatpush1.bf16.msra.mxu0 0
    %6469 = vmatprep.subr.bf16.mxu0 0
    %6470 = vmatpush1.bf16.msra.mxu0 0
    %6471 = vmatprep.subr.bf16.mxu0 0
    %6472 = vmatpush1.bf16.msra.mxu0 0
    %6473 = vmatprep.subr.bf16.mxu0 0
    %6474 = vmatpush1.bf16.msra.mxu0 0
    %6475 = vmatprep.subr.bf16.mxu0 0
    %6476 = vmatpush1.bf16.msra.mxu0 0
    %6477 = vmatprep.subr.bf16.mxu0 0
    %6478 = vmatpush1.bf16.msra.mxu0 0
    %6479 = vmatprep.subr.bf16.mxu0 0
    %6480 = vmatpush1.bf16.msra.mxu0 0
    %6481 = vmatprep.subr.bf16.mxu0 0
    %6482 = vmatpush1.bf16.msra.mxu0 0
    %6483 = vmatprep.subr.bf16.mxu0 0
    %6484 = vmatpush1.bf16.msra.mxu0 0
    %6485 = vmatprep.subr.bf16.mxu0 0
    %6486 = vmatpush1.bf16.msra.mxu0 0
    %6487 = vmatprep.subr.bf16.mxu0 0
    %6488 = vmatpush1.bf16.msra.mxu0 0
    %6489 = vmatprep.mubr.bf16.mxu0 0
    %6490 = vmatmul.mubr.bf16.gmra.mrb[0].mxu0 %v6452
    %v6491 = vpop.f32.mrb[0].mxu0
    %v6492 = vadd.f32 %v6425, %v6491
    %v6493 = vpop.f32.mrb[0].mxu0
    %v6494 = vpop.f32.mrb[0].mxu0
    %v6495 = vadd.f32 %v6428, %v6494
    %v6496 = vpop.f32.mrb[0].mxu0
    %6497 = vmatprep.mubr.bf16.mxu0 0
    %6498 = vmatmul.mubr.bf16.gmra.mrb[0].mxu0 %v6455
    %v6499 = vpop.f32.mrb[0].mxu0
    %v6500 = vadd.f32 %v6433, %v6499
    %v6501 = vpop.f32.mrb[0].mxu0
    %v6502 = vpop.f32.mrb[0].mxu0
    %v6503 = vadd.f32 %v6436, %v6502
    %v6504 = vpop.f32.mrb[0].mxu0
    %6505 = vdwg.mxu0
    %v6506 = vpack.c.bf16 %v6327, %v6326
    %v6507 = vpack.c.bf16 %v6329, %v6328
    %s6508 = scalar_lea.vmem [#allocation2], 992
    %v6509 = vld [vmem:[%s6508] sm:$0xf]
    %v6510 = vld [vmem:[%s6508 + $0x4] sm:$0xf]
    %v6511 = vld [vmem:[%s6508 + $0x8] sm:$0xf]
    %v6512 = vld [vmem:[%s6508 + $0xc] sm:$0xf]
    %v6517 = vunpack.c.l.b16 %v6509
    %v6518 = vunpack.c.l.b16 %v6510
    %v6519 = vunpack.c.l.b16 %v6511
    %v6520 = vunpack.c.l.b16 %v6512
    %v6521 = vpack.c.b16 %v6518, %v6517
    %v6522 = vpack.c.b16 %v6520, %v6519
    %v6526 = vsel %vm343, %v6506, 0
    %v6529 = vsel %vm343, %v6507, 0
    %6531 = vmatprep.subr.bf16.mxu0 0
    %6532 = vmatpush1.bf16.msra.mxu0 %v6521
    %6533 = vmatprep.subr.bf16.mxu0 0
    %6534 = vmatpush1.bf16.msra.mxu0 %v6522
    %6535 = vmatprep.subr.bf16.mxu0 0
    %6536 = vmatpush1.bf16.msra.mxu0 0
    %6537 = vmatprep.subr.bf16.mxu0 0
    %6538 = vmatpush1.bf16.msra.mxu0 0
    %6539 = vmatprep.subr.bf16.mxu0 0
    %6540 = vmatpush1.bf16.msra.mxu0 0
    %6541 = vmatprep.subr.bf16.mxu0 0
    %6542 = vmatpush1.bf16.msra.mxu0 0
    %6543 = vmatprep.subr.bf16.mxu0 0
    %6544 = vmatpush1.bf16.msra.mxu0 0
    %6545 = vmatprep.subr.bf16.mxu0 0
    %6546 = vmatpush1.bf16.msra.mxu0 0
    %6547 = vmatprep.subr.bf16.mxu0 0
    %6548 = vmatpush1.bf16.msra.mxu0 0
    %6549 = vmatprep.subr.bf16.mxu0 0
    %6550 = vmatpush1.bf16.msra.mxu0 0
    %6551 = vmatprep.subr.bf16.mxu0 0
    %6552 = vmatpush1.bf16.msra.mxu0 0
    %6553 = vmatprep.subr.bf16.mxu0 0
    %6554 = vmatpush1.bf16.msra.mxu0 0
    %6555 = vmatprep.subr.bf16.mxu0 0
    %6556 = vmatpush1.bf16.msra.mxu0 0
    %6557 = vmatprep.subr.bf16.mxu0 0
    %6558 = vmatpush1.bf16.msra.mxu0 0
    %6559 = vmatprep.subr.bf16.mxu0 0
    %6560 = vmatpush1.bf16.msra.mxu0 0
    %6561 = vmatprep.subr.bf16.mxu0 0
    %6562 = vmatpush1.bf16.msra.mxu0 0
    %6563 = vmatprep.mubr.bf16.mxu0 0
    %6564 = vmatmul.mubr.bf16.gmra.mrb[0].mxu0 %v6526
    %v6565 = vpop.f32.mrb[0].mxu0
    %v6566 = vadd.f32 0.0, %v6565
    %v6567 = vpop.f32.mrb[0].mxu0
    %v6568 = vpop.f32.mrb[0].mxu0
    %v6569 = vadd.f32 0.0, %v6568
    %v6570 = vpop.f32.mrb[0].mxu0
    %6571 = vmatprep.mubr.bf16.mxu0 0
    %6572 = vmatmul.mubr.bf16.gmra.mrb[0].mxu0 %v6529
    %v6573 = vpop.f32.mrb[0].mxu0
    %v6574 = vadd.f32 0.0, %v6573
    %v6575 = vpop.f32.mrb[0].mxu0
    %v6576 = vpop.f32.mrb[0].mxu0
    %v6577 = vadd.f32 0.0, %v6576
    %v6578 = vpop.f32.mrb[0].mxu0
    %6579 = vdwg.mxu0
    %v6580 = vadd.f32 %v6492, %v6566
    %v6581 = vadd.f32 %v6495, %v6569
    %v6582 = vadd.f32 %v6500, %v6574
    %v6583 = vadd.f32 %v6503, %v6577
    %v6584 = vrot.slane %v6326, 1
    %v6585 = vrot.slane %v6327, 1
    %v6586 = vrot.slane %v6328, 1
    %v6587 = vrot.slane %v6329, 1
    %v6588 = vsel %vm548, %v6586, %v6587
    %v6589 = vsel %vm548, %v6585, %v6586
    %v6590 = vsel %vm548, %v6584, %v6585
    %v6591 = vsel %vm548, %v6587, %v6584
    %v6592 = vmul.f32 %v6590, %v184
    %v6593 = vmul.f32 %v6589, %v185
    %v6594 = vmul.f32 %v6588, %v186
    %v6595 = vmul.f32 %v6591, %v187
    %v6596 = vpack.c.bf16 %v6593, %v6592
    %v6597 = vpack.c.bf16 %v6595, %v6594
    %s6598 = scalar_lea.vmem [#allocation2], 1008
    %v6599 = vld [vmem:[%s6598] sm:$0xf]
    %v6600 = vld [vmem:[%s6598 + $0x4] sm:$0xf]
    %v6601 = vld [vmem:[%s6598 + $0x8] sm:$0xf]
    %v6602 = vld [vmem:[%s6598 + $0xc] sm:$0xf]
    %v6607 = vunpack.c.l.b16 %v6599
    %v6608 = vunpack.c.l.b16 %v6600
    %v6609 = vunpack.c.l.b16 %v6601
    %v6610 = vunpack.c.l.b16 %v6602
    %v6611 = vpack.c.b16 %v6608, %v6607
    %v6612 = vpack.c.b16 %v6610, %v6609
    %v6616 = vsel %vm343, %v6596, 0
    %v6619 = vsel %vm343, %v6597, 0
    %6621 = vmatprep.subr.bf16.mxu0 0
    %6622 = vmatpush1.bf16.msra.mxu0 %v6611
    %6623 = vmatprep.subr.bf16.mxu0 0
    %6624 = vmatpush1.bf16.msra.mxu0 %v6612
    %6625 = vmatprep.subr.bf16.mxu0 0
    %6626 = vmatpush1.bf16.msra.mxu0 0
    %6627 = vmatprep.subr.bf16.mxu0 0
    %6628 = vmatpush1.bf16.msra.mxu0 0
    %6629 = vmatprep.subr.bf16.mxu0 0
    %6630 = vmatpush1.bf16.msra.mxu0 0
    %6631 = vmatprep.subr.bf16.mxu0 0
    %6632 = vmatpush1.bf16.msra.mxu0 0
    %6633 = vmatprep.subr.bf16.mxu0 0
    %6634 = vmatpush1.bf16.msra.mxu0 0
    %6635 = vmatprep.subr.bf16.mxu0 0
    %6636 = vmatpush1.bf16.msra.mxu0 0
    %6637 = vmatprep.subr.bf16.mxu0 0
    %6638 = vmatpush1.bf16.msra.mxu0 0
    %6639 = vmatprep.subr.bf16.mxu0 0
    %6640 = vmatpush1.bf16.msra.mxu0 0
    %6641 = vmatprep.subr.bf16.mxu0 0
    %6642 = vmatpush1.bf16.msra.mxu0 0
    %6643 = vmatprep.subr.bf16.mxu0 0
    %6644 = vmatpush1.bf16.msra.mxu0 0
    %6645 = vmatprep.subr.bf16.mxu0 0
    %6646 = vmatpush1.bf16.msra.mxu0 0
    %6647 = vmatprep.subr.bf16.mxu0 0
    %6648 = vmatpush1.bf16.msra.mxu0 0
    %6649 = vmatprep.subr.bf16.mxu0 0
    %6650 = vmatpush1.bf16.msra.mxu0 0
    %6651 = vmatprep.subr.bf16.mxu0 0
    %6652 = vmatpush1.bf16.msra.mxu0 0
    %6653 = vmatprep.mubr.bf16.mxu0 0
    %6654 = vmatmul.mubr.bf16.gmra.mrb[0].mxu0 %v6616
    %v6655 = vpop.f32.mrb[0].mxu0
    %v6656 = vadd.f32 0.0, %v6655
    %v6657 = vpop.f32.mrb[0].mxu0
    %v6658 = vpop.f32.mrb[0].mxu0
    %v6659 = vadd.f32 0.0, %v6658
    %v6660 = vpop.f32.mrb[0].mxu0
    %6661 = vmatprep.mubr.bf16.mxu0 0
    %6662 = vmatmul.mubr.bf16.gmra.mrb[0].mxu0 %v6619
    %v6663 = vpop.f32.mrb[0].mxu0
    %v6664 = vadd.f32 0.0, %v6663
    %v6665 = vpop.f32.mrb[0].mxu0
    %v6666 = vpop.f32.mrb[0].mxu0
    %v6667 = vadd.f32 0.0, %v6666
    %v6668 = vpop.f32.mrb[0].mxu0
    %6669 = vdwg.mxu0
    %v6670 = vadd.f32 %v6580, %v6656
    %v6671 = vadd.f32 %v6581, %v6659
    %v6672 = vadd.f32 %v6582, %v6664
    %v6673 = vadd.f32 %v6583, %v6667
    %v6674 = vrot.slane %v6326, 2
    %v6675 = vrot.slane %v6327, 2
    %v6676 = vrot.slane %v6328, 2
    %v6677 = vrot.slane %v6329, 2
    %v6678 = vsel %vm639, %v6676, %v6677
    %v6679 = vsel %vm639, %v6675, %v6676
    %v6680 = vsel %vm639, %v6674, %v6675
    %v6681 = vsel %vm639, %v6677, %v6674
    %v6682 = vmul.f32 %v6680, %v208
    %v6683 = vmul.f32 %v6679, %v209
    %v6684 = vmul.f32 %v6678, %v210
    %v6685 = vmul.f32 %v6681, %v211
    %v6686 = vpack.c.bf16 %v6683, %v6682
    %v6687 = vpack.c.bf16 %v6685, %v6684
    %s6688 = scalar_lea.vmem [#allocation2], 1024
    %v6689 = vld [vmem:[%s6688] sm:$0xf]
    %v6690 = vld [vmem:[%s6688 + $0x4] sm:$0xf]
    %v6691 = vld [vmem:[%s6688 + $0x8] sm:$0xf]
    %v6692 = vld [vmem:[%s6688 + $0xc] sm:$0xf]
    %v6697 = vunpack.c.l.b16 %v6689
    %v6698 = vunpack.c.l.b16 %v6690
    %v6699 = vunpack.c.l.b16 %v6691
    %v6700 = vunpack.c.l.b16 %v6692
    %v6701 = vpack.c.b16 %v6698, %v6697
    %v6702 = vpack.c.b16 %v6700, %v6699
    %v6706 = vsel %vm343, %v6686, 0
    %v6709 = vsel %vm343, %v6687, 0
    %6711 = vmatprep.subr.bf16.mxu0 0
    %6712 = vmatpush1.bf16.msra.mxu0 %v6701
    %6713 = vmatprep.subr.bf16.mxu0 0
    %6714 = vmatpush1.bf16.msra.mxu0 %v6702
    %6715 = vmatprep.subr.bf16.mxu0 0
    %6716 = vmatpush1.bf16.msra.mxu0 0
    %6717 = vmatprep.subr.bf16.mxu0 0
    %6718 = vmatpush1.bf16.msra.mxu0 0
    %6719 = vmatprep.subr.bf16.mxu0 0
    %6720 = vmatpush1.bf16.msra.mxu0 0
    %6721 = vmatprep.subr.bf16.mxu0 0
    %6722 = vmatpush1.bf16.msra.mxu0 0
    %6723 = vmatprep.subr.bf16.mxu0 0
    %6724 = vmatpush1.bf16.msra.mxu0 0
    %6725 = vmatprep.subr.bf16.mxu0 0
    %6726 = vmatpush1.bf16.msra.mxu0 0
    %6727 = vmatprep.subr.bf16.mxu0 0
    %6728 = vmatpush1.bf16.msra.mxu0 0
    %6729 = vmatprep.subr.bf16.mxu0 0
    %6730 = vmatpush1.bf16.msra.mxu0 0
    %6731 = vmatprep.subr.bf16.mxu0 0
    %6732 = vmatpush1.bf16.msra.mxu0 0
    %6733 = vmatprep.subr.bf16.mxu0 0
    %6734 = vmatpush1.bf16.msra.mxu0 0
    %6735 = vmatprep.subr.bf16.mxu0 0
    %6736 = vmatpush1.bf16.msra.mxu0 0
    %6737 = vmatprep.subr.bf16.mxu0 0
    %6738 = vmatpush1.bf16.msra.mxu0 0
    %6739 = vmatprep.subr.bf16.mxu0 0
    %6740 = vmatpush1.bf16.msra.mxu0 0
    %6741 = vmatprep.subr.bf16.mxu0 0
    %6742 = vmatpush1.bf16.msra.mxu0 0
    %6743 = vmatprep.mubr.bf16.mxu0 0
    %6744 = vmatmul.mubr.bf16.gmra.mrb[0].mxu0 %v6706
    %v6745 = vpop.f32.mrb[0].mxu0
    %v6746 = vadd.f32 0.0, %v6745
    %v6747 = vpop.f32.mrb[0].mxu0
    %v6748 = vpop.f32.mrb[0].mxu0
    %v6749 = vadd.f32 0.0, %v6748
    %v6750 = vpop.f32.mrb[0].mxu0
    %6751 = vmatprep.mubr.bf16.mxu0 0
    %6752 = vmatmul.mubr.bf16.gmra.mrb[0].mxu0 %v6709
    %v6753 = vpop.f32.mrb[0].mxu0
    %v6754 = vadd.f32 0.0, %v6753
    %v6755 = vpop.f32.mrb[0].mxu0
    %v6756 = vpop.f32.mrb[0].mxu0
    %v6757 = vadd.f32 0.0, %v6756
    %v6758 = vpop.f32.mrb[0].mxu0
    %6759 = vdwg.mxu0
    %v6760 = vadd.f32 %v6670, %v6746
    %v6761 = vadd.f32 %v6671, %v6749
    %v6762 = vadd.f32 %v6672, %v6754
    %v6763 = vadd.f32 %v6673, %v6757
    %s6764 = scalar_lea.vmem %s4, 23
    %v6765 = vld [vmem:[%s6764] sm:$0x1]
    %v6767 = vlaneseq
    %v6768 = vshrl.u32 %v6767, 7
    %v6769 = vsub.s32 0, %v6768
    %v6770 = vrot.slane %v6765, %v6769
    %v6772 = vadd.f32 %v6760, %v6770
    %v6773 = vadd.f32 %v6761, %v6770
    %v6774 = vadd.f32 %v6762, %v6770
    %v6775 = vadd.f32 %v6763, %v6770
    %v6776 = vtanh.pop %v6772
    %v6777 = vtanh.pop %v6773
    %v6778 = vtanh.pop %v6774
    %v6779 = vtanh.pop %v6775
    %v6780 = vmul.f32 %v6776, 0.5
    %v6781 = vmul.f32 %v6777, 0.5
    %v6782 = vmul.f32 %v6778, 0.5
    %v6783 = vmul.f32 %v6779, 0.5
    %v6784 = vadd.f32 %v6780, 0.5
    %v6785 = vadd.f32 %v6781, 0.5
    %v6786 = vadd.f32 %v6782, 0.5
    %v6787 = vadd.f32 %v6783, 0.5
    %6792 = vrot.lane.b32.xlu0 %v6784, 96
    %v6793 = vpop.permute.xlu0 %6792
    %6794 = vrot.lane.b32.xlu0 %v6785, 96
    %v6795 = vpop.permute.xlu0 %6794
    %6796 = vrot.lane.b32.xlu0 %v6786, 96
    %v6797 = vpop.permute.xlu0 %6796
    %6798 = vrot.lane.b32.xlu0 %v6787, 96
    %v6799 = vpop.permute.xlu0 %6798
    %v6804 = vmul.f32 %v6776, %v6793
    %v6805 = vmul.f32 %v6777, %v6795
    %v6806 = vmul.f32 %v6778, %v6797
    %v6807 = vmul.f32 %v6779, %v6799
    %v6808 = vpack.c.bf16 %v6805, %v6804
    %v6809 = vpack.c.bf16 %v6807, %v6806
    %s6810 = scalar_lea.vmem [#allocation2], 1152
    %v6811 = vld [vmem:[%s6810] sm:$0xf]
    %v6812 = vld [vmem:[%s6810 + $0x4] sm:$0xf]
    %v6813 = vld [vmem:[%s6810 + $0x8] sm:$0xf]
    %v6814 = vld [vmem:[%s6810 + $0xc] sm:$0xf]
    %s6815 = scalar_lea.vmem %s4, 27
    %v6816 = vld [vmem:[%s6815] sm:$0x1]
    %v6818 = vlaneseq
    %v6819 = vshrl.u32 %v6818, 7
    %v6820 = vsub.s32 0, %v6819
    %v6821 = vrot.slane %v6816, %v6820
    %v6827 = vunpack.c.l.b16 %v6811
    %v6828 = vunpack.c.l.b16 %v6812
    %v6829 = vunpack.c.l.b16 %v6813
    %v6830 = vunpack.c.l.b16 %v6814
    %v6831 = vpack.c.b16 %v6828, %v6827
    %v6832 = vpack.c.b16 %v6830, %v6829
    %v6836 = vsel %vm343, %v6808, 0
    %v6839 = vsel %vm343, %v6809, 0
    %6841 = vmatprep.subr.bf16.mxu0 0
    %6842 = vmatpush1.bf16.msra.mxu0 %v6831
    %6843 = vmatprep.subr.bf16.mxu0 0
    %6844 = vmatpush1.bf16.msra.mxu0 %v6832
    %6845 = vmatprep.subr.bf16.mxu0 0
    %6846 = vmatpush1.bf16.msra.mxu0 0
    %6847 = vmatprep.subr.bf16.mxu0 0
    %6848 = vmatpush1.bf16.msra.mxu0 0
    %6849 = vmatprep.subr.bf16.mxu0 0
    %6850 = vmatpush1.bf16.msra.mxu0 0
    %6851 = vmatprep.subr.bf16.mxu0 0
    %6852 = vmatpush1.bf16.msra.mxu0 0
    %6853 = vmatprep.subr.bf16.mxu0 0
    %6854 = vmatpush1.bf16.msra.mxu0 0
    %6855 = vmatprep.subr.bf16.mxu0 0
    %6856 = vmatpush1.bf16.msra.mxu0 0
    %6857 = vmatprep.subr.bf16.mxu0 0
    %6858 = vmatpush1.bf16.msra.mxu0 0
    %6859 = vmatprep.subr.bf16.mxu0 0
    %6860 = vmatpush1.bf16.msra.mxu0 0
    %6861 = vmatprep.subr.bf16.mxu0 0
    %6862 = vmatpush1.bf16.msra.mxu0 0
    %6863 = vmatprep.subr.bf16.mxu0 0
    %6864 = vmatpush1.bf16.msra.mxu0 0
    %6865 = vmatprep.subr.bf16.mxu0 0
    %6866 = vmatpush1.bf16.msra.mxu0 0
    %6867 = vmatprep.subr.bf16.mxu0 0
    %6868 = vmatpush1.bf16.msra.mxu0 0
    %6869 = vmatprep.subr.bf16.mxu0 0
    %6870 = vmatpush1.bf16.msra.mxu0 0
    %6871 = vmatprep.subr.bf16.mxu0 0
    %6872 = vmatpush1.bf16.msra.mxu0 0
    %6873 = vmatprep.mubr.bf16.mxu0 0
    %6874 = vmatmul.mubr.bf16.gmra.mrb[0].mxu0 %v6836
    %v6875 = vpop.f32.mrb[0].mxu0
    %v6876 = vadd.f32 %v6821, %v6875
    %v6877 = vpop.f32.mrb[0].mxu0
    %v6878 = vpop.f32.mrb[0].mxu0
    %v6879 = vadd.f32 %v6821, %v6878
    %v6880 = vpop.f32.mrb[0].mxu0
    %6881 = vmatprep.mubr.bf16.mxu0 0
    %6882 = vmatmul.mubr.bf16.gmra.mrb[0].mxu0 %v6839
    %v6883 = vpop.f32.mrb[0].mxu0
    %v6884 = vadd.f32 %v6821, %v6883
    %v6885 = vpop.f32.mrb[0].mxu0
    %v6886 = vpop.f32.mrb[0].mxu0
    %v6887 = vadd.f32 %v6821, %v6886
    %v6888 = vpop.f32.mrb[0].mxu0
    %6889 = vdwg.mxu0
    %v6890 = vadd.f32 %v6326, %v6876
    %v6891 = vadd.f32 %v6327, %v6879
    %v6892 = vadd.f32 %v6328, %v6884
    %v6893 = vadd.f32 %v6329, %v6887
    %v6894 = vmul.f32 %v6890, %v46
    %v6895 = vmul.f32 %v6891, %v51
    %v6896 = vmul.f32 %v6892, %v56
    %v6897 = vmul.f32 %v6893, %v61
    %v6898 = vadd.f32 %v6330, %v6876
    %v6899 = vadd.f32 %v6331, %v6879
    %v6900 = vadd.f32 %v6332, %v6884
    %v6901 = vadd.f32 %v6333, %v6887
    %v6902 = vrot.slane %v6894, 6
    %v6903 = vrot.slane %v6895, 6
    %v6904 = vrot.slane %v6896, 6
    %v6905 = vrot.slane %v6897, 6
    %v6906 = vsel %vm296, %v6904, %v6905
    %v6907 = vsel %vm296, %v6903, %v6904
    %v6908 = vsel %vm296, %v6902, %v6903
    %v6909 = vsel %vm296, %v6905, %v6902
    %v6910 = vmul.f32 %v6909, %v136
    %v6911 = vmul.f32 %v6908, %v137
    %v6912 = vmul.f32 %v6907, %v138
    %v6913 = vmul.f32 %v6906, %v139
    %v6914 = vpack.c.bf16 %v6911, %v6910
    %v6915 = vpack.c.bf16 %v6913, %v6912
    %s6916 = scalar_lea.vmem [#allocation2], 1040
    %v6917 = vld [vmem:[%s6916] sm:$0xf]
    %v6918 = vld [vmem:[%s6916 + $0x4] sm:$0xf]
    %v6919 = vld [vmem:[%s6916 + $0x8] sm:$0xf]
    %v6920 = vld [vmem:[%s6916 + $0xc] sm:$0xf]
    %v6921 = vrot.slane %v6894, 7
    %v6922 = vrot.slane %v6895, 7
    %v6923 = vrot.slane %v6896, 7
    %v6924 = vrot.slane %v6897, 7
    %v6925 = vsel %vm315, %v6923, %v6924
    %v6926 = vsel %vm315, %v6922, %v6923
    %v6927 = vsel %vm315, %v6921, %v6922
    %v6928 = vsel %vm315, %v6924, %v6921
    %v6929 = vmul.f32 %v6928, %v160
    %v6930 = vmul.f32 %v6927, %v161
    %v6931 = vmul.f32 %v6926, %v162
    %v6932 = vmul.f32 %v6925, %v163
    %v6933 = vpack.c.bf16 %v6930, %v6929
    %v6934 = vpack.c.bf16 %v6932, %v6931
    %s6935 = scalar_lea.vmem [#allocation2], 1056
    %v6936 = vld [vmem:[%s6935] sm:$0xf]
    %v6937 = vld [vmem:[%s6935 + $0x4] sm:$0xf]
    %v6938 = vld [vmem:[%s6935 + $0x8] sm:$0xf]
    %v6939 = vld [vmem:[%s6935 + $0xc] sm:$0xf]
    %v6944 = vunpack.c.l.b16 %v6936
    %v6945 = vunpack.c.l.b16 %v6937
    %v6946 = vunpack.c.l.b16 %v6938
    %v6947 = vunpack.c.l.b16 %v6939
    %v6948 = vpack.c.b16 %v6945, %v6944
    %v6949 = vpack.c.b16 %v6947, %v6946
    %v6953 = vsel %vm343, %v6933, 0
    %v6956 = vsel %vm343, %v6934, 0
    %6958 = vmatprep.subr.bf16.mxu0 0
    %6959 = vmatpush1.bf16.msra.mxu0 %v6948
    %6960 = vmatprep.subr.bf16.mxu0 0
    %6961 = vmatpush1.bf16.msra.mxu0 %v6949
    %6962 = vmatprep.subr.bf16.mxu0 0
    %6963 = vmatpush1.bf16.msra.mxu0 0
    %6964 = vmatprep.subr.bf16.mxu0 0
    %6965 = vmatpush1.bf16.msra.mxu0 0
    %6966 = vmatprep.subr.bf16.mxu0 0
    %6967 = vmatpush1.bf16.msra.mxu0 0
    %6968 = vmatprep.subr.bf16.mxu0 0
    %6969 = vmatpush1.bf16.msra.mxu0 0
    %6970 = vmatprep.subr.bf16.mxu0 0
    %6971 = vmatpush1.bf16.msra.mxu0 0
    %6972 = vmatprep.subr.bf16.mxu0 0
    %6973 = vmatpush1.bf16.msra.mxu0 0
    %6974 = vmatprep.subr.bf16.mxu0 0
    %6975 = vmatpush1.bf16.msra.mxu0 0
    %6976 = vmatprep.subr.bf16.mxu0 0
    %6977 = vmatpush1.bf16.msra.mxu0 0
    %6978 = vmatprep.subr.bf16.mxu0 0
    %6979 = vmatpush1.bf16.msra.mxu0 0
    %6980 = vmatprep.subr.bf16.mxu0 0
    %6981 = vmatpush1.bf16.msra.mxu0 0
    %6982 = vmatprep.subr.bf16.mxu0 0
    %6983 = vmatpush1.bf16.msra.mxu0 0
    %6984 = vmatprep.subr.bf16.mxu0 0
    %6985 = vmatpush1.bf16.msra.mxu0 0
    %6986 = vmatprep.subr.bf16.mxu0 0
    %6987 = vmatpush1.bf16.msra.mxu0 0
    %6988 = vmatprep.subr.bf16.mxu0 0
    %6989 = vmatpush1.bf16.msra.mxu0 0
    %6990 = vmatprep.mubr.bf16.mxu0 0
    %6991 = vmatmul.mubr.bf16.gmra.mrb[0].mxu0 %v6953
    %v6992 = vpop.f32.mrb[0].mxu0
    %v6993 = vadd.f32 0.0, %v6992
    %v6994 = vpop.f32.mrb[0].mxu0
    %v6995 = vpop.f32.mrb[0].mxu0
    %v6996 = vadd.f32 0.0, %v6995
    %v6997 = vpop.f32.mrb[0].mxu0
    %6998 = vmatprep.mubr.bf16.mxu0 0
    %6999 = vmatmul.mubr.bf16.gmra.mrb[0].mxu0 %v6956
    %v7000 = vpop.f32.mrb[0].mxu0
    %v7001 = vadd.f32 0.0, %v7000
    %v7002 = vpop.f32.mrb[0].mxu0
    %v7003 = vpop.f32.mrb[0].mxu0
    %v7004 = vadd.f32 0.0, %v7003
    %v7005 = vpop.f32.mrb[0].mxu0
    %7006 = vdwg.mxu0
    %v7011 = vunpack.c.l.b16 %v6917
    %v7012 = vunpack.c.l.b16 %v6918
    %v7013 = vunpack.c.l.b16 %v6919
    %v7014 = vunpack.c.l.b16 %v6920
    %v7015 = vpack.c.b16 %v7012, %v7011
    %v7016 = vpack.c.b16 %v7014, %v7013
    %v7020 = vsel %vm343, %v6914, 0
    %v7023 = vsel %vm343, %v6915, 0
    %7025 = vmatprep.subr.bf16.mxu0 0
    %7026 = vmatpush1.bf16.msra.mxu0 %v7015
    %7027 = vmatprep.subr.bf16.mxu0 0
    %7028 = vmatpush1.bf16.msra.mxu0 %v7016
    %7029 = vmatprep.subr.bf16.mxu0 0
    %7030 = vmatpush1.bf16.msra.mxu0 0
    %7031 = vmatprep.subr.bf16.mxu0 0
    %7032 = vmatpush1.bf16.msra.mxu0 0
    %7033 = vmatprep.subr.bf16.mxu0 0
    %7034 = vmatpush1.bf16.msra.mxu0 0
    %7035 = vmatprep.subr.bf16.mxu0 0
    %7036 = vmatpush1.bf16.msra.mxu0 0
    %7037 = vmatprep.subr.bf16.mxu0 0
    %7038 = vmatpush1.bf16.msra.mxu0 0
    %7039 = vmatprep.subr.bf16.mxu0 0
    %7040 = vmatpush1.bf16.msra.mxu0 0
    %7041 = vmatprep.subr.bf16.mxu0 0
    %7042 = vmatpush1.bf16.msra.mxu0 0
    %7043 = vmatprep.subr.bf16.mxu0 0
    %7044 = vmatpush1.bf16.msra.mxu0 0
    %7045 = vmatprep.subr.bf16.mxu0 0
    %7046 = vmatpush1.bf16.msra.mxu0 0
    %7047 = vmatprep.subr.bf16.mxu0 0
    %7048 = vmatpush1.bf16.msra.mxu0 0
    %7049 = vmatprep.subr.bf16.mxu0 0
    %7050 = vmatpush1.bf16.msra.mxu0 0
    %7051 = vmatprep.subr.bf16.mxu0 0
    %7052 = vmatpush1.bf16.msra.mxu0 0
    %7053 = vmatprep.subr.bf16.mxu0 0
    %7054 = vmatpush1.bf16.msra.mxu0 0
    %7055 = vmatprep.subr.bf16.mxu0 0
    %7056 = vmatpush1.bf16.msra.mxu0 0
    %7057 = vmatprep.mubr.bf16.mxu0 0
    %7058 = vmatmul.mubr.bf16.gmra.mrb[0].mxu0 %v7020
    %v7059 = vpop.f32.mrb[0].mxu0
    %v7060 = vadd.f32 %v6993, %v7059
    %v7061 = vpop.f32.mrb[0].mxu0
    %v7062 = vpop.f32.mrb[0].mxu0
    %v7063 = vadd.f32 %v6996, %v7062
    %v7064 = vpop.f32.mrb[0].mxu0
    %7065 = vmatprep.mubr.bf16.mxu0 0
    %7066 = vmatmul.mubr.bf16.gmra.mrb[0].mxu0 %v7023
    %v7067 = vpop.f32.mrb[0].mxu0
    %v7068 = vadd.f32 %v7001, %v7067
    %v7069 = vpop.f32.mrb[0].mxu0
    %v7070 = vpop.f32.mrb[0].mxu0
    %v7071 = vadd.f32 %v7004, %v7070
    %v7072 = vpop.f32.mrb[0].mxu0
    %7073 = vdwg.mxu0
    %v7074 = vpack.c.bf16 %v6895, %v6894
    %v7075 = vpack.c.bf16 %v6897, %v6896
    %s7076 = scalar_lea.vmem [#allocation2], 1072
    %v7077 = vld [vmem:[%s7076] sm:$0xf]
    %v7078 = vld [vmem:[%s7076 + $0x4] sm:$0xf]
    %v7079 = vld [vmem:[%s7076 + $0x8] sm:$0xf]
    %v7080 = vld [vmem:[%s7076 + $0xc] sm:$0xf]
    %v7085 = vunpack.c.l.b16 %v7077
    %v7086 = vunpack.c.l.b16 %v7078
    %v7087 = vunpack.c.l.b16 %v7079
    %v7088 = vunpack.c.l.b16 %v7080
    %v7089 = vpack.c.b16 %v7086, %v7085
    %v7090 = vpack.c.b16 %v7088, %v7087
    %v7094 = vsel %vm343, %v7074, 0
    %v7097 = vsel %vm343, %v7075, 0
    %7099 = vmatprep.subr.bf16.mxu0 0
    %7100 = vmatpush1.bf16.msra.mxu0 %v7089
    %7101 = vmatprep.subr.bf16.mxu0 0
    %7102 = vmatpush1.bf16.msra.mxu0 %v7090
    %7103 = vmatprep.subr.bf16.mxu0 0
    %7104 = vmatpush1.bf16.msra.mxu0 0
    %7105 = vmatprep.subr.bf16.mxu0 0
    %7106 = vmatpush1.bf16.msra.mxu0 0
    %7107 = vmatprep.subr.bf16.mxu0 0
    %7108 = vmatpush1.bf16.msra.mxu0 0
    %7109 = vmatprep.subr.bf16.mxu0 0
    %7110 = vmatpush1.bf16.msra.mxu0 0
    %7111 = vmatprep.subr.bf16.mxu0 0
    %7112 = vmatpush1.bf16.msra.mxu0 0
    %7113 = vmatprep.subr.bf16.mxu0 0
    %7114 = vmatpush1.bf16.msra.mxu0 0
    %7115 = vmatprep.subr.bf16.mxu0 0
    %7116 = vmatpush1.bf16.msra.mxu0 0
    %7117 = vmatprep.subr.bf16.mxu0 0
    %7118 = vmatpush1.bf16.msra.mxu0 0
    %7119 = vmatprep.subr.bf16.mxu0 0
    %7120 = vmatpush1.bf16.msra.mxu0 0
    %7121 = vmatprep.subr.bf16.mxu0 0
    %7122 = vmatpush1.bf16.msra.mxu0 0
    %7123 = vmatprep.subr.bf16.mxu0 0
    %7124 = vmatpush1.bf16.msra.mxu0 0
    %7125 = vmatprep.subr.bf16.mxu0 0
    %7126 = vmatpush1.bf16.msra.mxu0 0
    %7127 = vmatprep.subr.bf16.mxu0 0
    %7128 = vmatpush1.bf16.msra.mxu0 0
    %7129 = vmatprep.subr.bf16.mxu0 0
    %7130 = vmatpush1.bf16.msra.mxu0 0
    %7131 = vmatprep.mubr.bf16.mxu0 0
    %7132 = vmatmul.mubr.bf16.gmra.mrb[0].mxu0 %v7094
    %v7133 = vpop.f32.mrb[0].mxu0
    %v7134 = vadd.f32 0.0, %v7133
    %v7135 = vpop.f32.mrb[0].mxu0
    %v7136 = vpop.f32.mrb[0].mxu0
    %v7137 = vadd.f32 0.0, %v7136
    %v7138 = vpop.f32.mrb[0].mxu0
    %7139 = vmatprep.mubr.bf16.mxu0 0
    %7140 = vmatmul.mubr.bf16.gmra.mrb[0].mxu0 %v7097
    %v7141 = vpop.f32.mrb[0].mxu0
    %v7142 = vadd.f32 0.0, %v7141
    %v7143 = vpop.f32.mrb[0].mxu0
    %v7144 = vpop.f32.mrb[0].mxu0
    %v7145 = vadd.f32 0.0, %v7144
    %v7146 = vpop.f32.mrb[0].mxu0
    %7147 = vdwg.mxu0
    %v7148 = vadd.f32 %v7060, %v7134
    %v7149 = vadd.f32 %v7063, %v7137
    %v7150 = vadd.f32 %v7068, %v7142
    %v7151 = vadd.f32 %v7071, %v7145
    %v7152 = vrot.slane %v6894, 1
    %v7153 = vrot.slane %v6895, 1
    %v7154 = vrot.slane %v6896, 1
    %v7155 = vrot.slane %v6897, 1
    %v7156 = vsel %vm548, %v7154, %v7155
    %v7157 = vsel %vm548, %v7153, %v7154
    %v7158 = vsel %vm548, %v7152, %v7153
    %v7159 = vsel %vm548, %v7155, %v7152
    %v7160 = vmul.f32 %v7158, %v184
    %v7161 = vmul.f32 %v7157, %v185
    %v7162 = vmul.f32 %v7156, %v186
    %v7163 = vmul.f32 %v7159, %v187
    %v7164 = vpack.c.bf16 %v7161, %v7160
    %v7165 = vpack.c.bf16 %v7163, %v7162
    %s7166 = scalar_lea.vmem [#allocation2], 1088
    %v7167 = vld [vmem:[%s7166] sm:$0xf]
    %v7168 = vld [vmem:[%s7166 + $0x4] sm:$0xf]
    %v7169 = vld [vmem:[%s7166 + $0x8] sm:$0xf]
    %v7170 = vld [vmem:[%s7166 + $0xc] sm:$0xf]
    %v7175 = vunpack.c.l.b16 %v7167
    %v7176 = vunpack.c.l.b16 %v7168
    %v7177 = vunpack.c.l.b16 %v7169
    %v7178 = vunpack.c.l.b16 %v7170
    %v7179 = vpack.c.b16 %v7176, %v7175
    %v7180 = vpack.c.b16 %v7178, %v7177
    %v7184 = vsel %vm343, %v7164, 0
    %v7187 = vsel %vm343, %v7165, 0
    %7189 = vmatprep.subr.bf16.mxu0 0
    %7190 = vmatpush1.bf16.msra.mxu0 %v7179
    %7191 = vmatprep.subr.bf16.mxu0 0
    %7192 = vmatpush1.bf16.msra.mxu0 %v7180
    %7193 = vmatprep.subr.bf16.mxu0 0
    %7194 = vmatpush1.bf16.msra.mxu0 0
    %7195 = vmatprep.subr.bf16.mxu0 0
    %7196 = vmatpush1.bf16.msra.mxu0 0
    %7197 = vmatprep.subr.bf16.mxu0 0
    %7198 = vmatpush1.bf16.msra.mxu0 0
    %7199 = vmatprep.subr.bf16.mxu0 0
    %7200 = vmatpush1.bf16.msra.mxu0 0
    %7201 = vmatprep.subr.bf16.mxu0 0
    %7202 = vmatpush1.bf16.msra.mxu0 0
    %7203 = vmatprep.subr.bf16.mxu0 0
    %7204 = vmatpush1.bf16.msra.mxu0 0
    %7205 = vmatprep.subr.bf16.mxu0 0
    %7206 = vmatpush1.bf16.msra.mxu0 0
    %7207 = vmatprep.subr.bf16.mxu0 0
    %7208 = vmatpush1.bf16.msra.mxu0 0
    %7209 = vmatprep.subr.bf16.mxu0 0
    %7210 = vmatpush1.bf16.msra.mxu0 0
    %7211 = vmatprep.subr.bf16.mxu0 0
    %7212 = vmatpush1.bf16.msra.mxu0 0
    %7213 = vmatprep.subr.bf16.mxu0 0
    %7214 = vmatpush1.bf16.msra.mxu0 0
    %7215 = vmatprep.subr.bf16.mxu0 0
    %7216 = vmatpush1.bf16.msra.mxu0 0
    %7217 = vmatprep.subr.bf16.mxu0 0
    %7218 = vmatpush1.bf16.msra.mxu0 0
    %7219 = vmatprep.subr.bf16.mxu0 0
    %7220 = vmatpush1.bf16.msra.mxu0 0
    %7221 = vmatprep.mubr.bf16.mxu0 0
    %7222 = vmatmul.mubr.bf16.gmra.mrb[0].mxu0 %v7184
    %v7223 = vpop.f32.mrb[0].mxu0
    %v7224 = vadd.f32 0.0, %v7223
    %v7225 = vpop.f32.mrb[0].mxu0
    %v7226 = vpop.f32.mrb[0].mxu0
    %v7227 = vadd.f32 0.0, %v7226
    %v7228 = vpop.f32.mrb[0].mxu0
    %7229 = vmatprep.mubr.bf16.mxu0 0
    %7230 = vmatmul.mubr.bf16.gmra.mrb[0].mxu0 %v7187
    %v7231 = vpop.f32.mrb[0].mxu0
    %v7232 = vadd.f32 0.0, %v7231
    %v7233 = vpop.f32.mrb[0].mxu0
    %v7234 = vpop.f32.mrb[0].mxu0
    %v7235 = vadd.f32 0.0, %v7234
    %v7236 = vpop.f32.mrb[0].mxu0
    %7237 = vdwg.mxu0
    %v7238 = vadd.f32 %v7148, %v7224
    %v7239 = vadd.f32 %v7149, %v7227
    %v7240 = vadd.f32 %v7150, %v7232
    %v7241 = vadd.f32 %v7151, %v7235
    %v7242 = vrot.slane %v6894, 2
    %v7243 = vrot.slane %v6895, 2
    %v7244 = vrot.slane %v6896, 2
    %v7245 = vrot.slane %v6897, 2
    %v7246 = vsel %vm639, %v7244, %v7245
    %v7247 = vsel %vm639, %v7243, %v7244
    %v7248 = vsel %vm639, %v7242, %v7243
    %v7249 = vsel %vm639, %v7245, %v7242
    %v7250 = vmul.f32 %v7248, %v208
    %v7251 = vmul.f32 %v7247, %v209
    %v7252 = vmul.f32 %v7246, %v210
    %v7253 = vmul.f32 %v7249, %v211
    %v7254 = vpack.c.bf16 %v7251, %v7250
    %v7255 = vpack.c.bf16 %v7253, %v7252
    %s7256 = scalar_lea.vmem [#allocation2], 1104
    %v7257 = vld [vmem:[%s7256] sm:$0xf]
    %v7258 = vld [vmem:[%s7256 + $0x4] sm:$0xf]
    %v7259 = vld [vmem:[%s7256 + $0x8] sm:$0xf]
    %v7260 = vld [vmem:[%s7256 + $0xc] sm:$0xf]
    %v7265 = vunpack.c.l.b16 %v7257
    %v7266 = vunpack.c.l.b16 %v7258
    %v7267 = vunpack.c.l.b16 %v7259
    %v7268 = vunpack.c.l.b16 %v7260
    %v7269 = vpack.c.b16 %v7266, %v7265
    %v7270 = vpack.c.b16 %v7268, %v7267
    %v7274 = vsel %vm343, %v7254, 0
    %v7277 = vsel %vm343, %v7255, 0
    %7279 = vmatprep.subr.bf16.mxu0 0
    %7280 = vmatpush1.bf16.msra.mxu0 %v7269
    %7281 = vmatprep.subr.bf16.mxu0 0
    %7282 = vmatpush1.bf16.msra.mxu0 %v7270
    %7283 = vmatprep.subr.bf16.mxu0 0
    %7284 = vmatpush1.bf16.msra.mxu0 0
    %7285 = vmatprep.subr.bf16.mxu0 0
    %7286 = vmatpush1.bf16.msra.mxu0 0
    %7287 = vmatprep.subr.bf16.mxu0 0
    %7288 = vmatpush1.bf16.msra.mxu0 0
    %7289 = vmatprep.subr.bf16.mxu0 0
    %7290 = vmatpush1.bf16.msra.mxu0 0
    %7291 = vmatprep.subr.bf16.mxu0 0
    %7292 = vmatpush1.bf16.msra.mxu0 0
    %7293 = vmatprep.subr.bf16.mxu0 0
    %7294 = vmatpush1.bf16.msra.mxu0 0
    %7295 = vmatprep.subr.bf16.mxu0 0
    %7296 = vmatpush1.bf16.msra.mxu0 0
    %7297 = vmatprep.subr.bf16.mxu0 0
    %7298 = vmatpush1.bf16.msra.mxu0 0
    %7299 = vmatprep.subr.bf16.mxu0 0
    %7300 = vmatpush1.bf16.msra.mxu0 0
    %7301 = vmatprep.subr.bf16.mxu0 0
    %7302 = vmatpush1.bf16.msra.mxu0 0
    %7303 = vmatprep.subr.bf16.mxu0 0
    %7304 = vmatpush1.bf16.msra.mxu0 0
    %7305 = vmatprep.subr.bf16.mxu0 0
    %7306 = vmatpush1.bf16.msra.mxu0 0
    %7307 = vmatprep.subr.bf16.mxu0 0
    %7308 = vmatpush1.bf16.msra.mxu0 0
    %7309 = vmatprep.subr.bf16.mxu0 0
    %7310 = vmatpush1.bf16.msra.mxu0 0
    %7311 = vmatprep.mubr.bf16.mxu0 0
    %7312 = vmatmul.mubr.bf16.gmra.mrb[0].mxu0 %v7274
    %v7313 = vpop.f32.mrb[0].mxu0
    %v7314 = vadd.f32 0.0, %v7313
    %v7315 = vpop.f32.mrb[0].mxu0
    %v7316 = vpop.f32.mrb[0].mxu0
    %v7317 = vadd.f32 0.0, %v7316
    %v7318 = vpop.f32.mrb[0].mxu0
    %7319 = vmatprep.mubr.bf16.mxu0 0
    %7320 = vmatmul.mubr.bf16.gmra.mrb[0].mxu0 %v7277
    %v7321 = vpop.f32.mrb[0].mxu0
    %v7322 = vadd.f32 0.0, %v7321
    %v7323 = vpop.f32.mrb[0].mxu0
    %v7324 = vpop.f32.mrb[0].mxu0
    %v7325 = vadd.f32 0.0, %v7324
    %v7326 = vpop.f32.mrb[0].mxu0
    %7327 = vdwg.mxu0
    %v7328 = vadd.f32 %v7238, %v7314
    %v7329 = vadd.f32 %v7239, %v7317
    %v7330 = vadd.f32 %v7240, %v7322
    %v7331 = vadd.f32 %v7241, %v7325
    %s7332 = scalar_lea.vmem %s4, 24
    %v7333 = vld [vmem:[%s7332] sm:$0x1]
    %v7335 = vlaneseq
    %v7336 = vshrl.u32 %v7335, 7
    %v7337 = vsub.s32 0, %v7336
    %v7338 = vrot.slane %v7333, %v7337
    %v7340 = vadd.f32 %v7328, %v7338
    %v7341 = vadd.f32 %v7329, %v7338
    %v7342 = vadd.f32 %v7330, %v7338
    %v7343 = vadd.f32 %v7331, %v7338
    %v7344 = vtanh.pop %v7340
    %v7345 = vtanh.pop %v7341
    %v7346 = vtanh.pop %v7342
    %v7347 = vtanh.pop %v7343
    %v7348 = vmul.f32 %v7344, 0.5
    %v7349 = vmul.f32 %v7345, 0.5
    %v7350 = vmul.f32 %v7346, 0.5
    %v7351 = vmul.f32 %v7347, 0.5
    %v7352 = vadd.f32 %v7348, 0.5
    %v7353 = vadd.f32 %v7349, 0.5
    %v7354 = vadd.f32 %v7350, 0.5
    %v7355 = vadd.f32 %v7351, 0.5
    %7360 = vrot.lane.b32.xlu0 %v7352, 96
    %v7361 = vpop.permute.xlu0 %7360
    %7362 = vrot.lane.b32.xlu0 %v7353, 96
    %v7363 = vpop.permute.xlu0 %7362
    %7364 = vrot.lane.b32.xlu0 %v7354, 96
    %v7365 = vpop.permute.xlu0 %7364
    %7366 = vrot.lane.b32.xlu0 %v7355, 96
    %v7367 = vpop.permute.xlu0 %7366
    %v7372 = vmul.f32 %v7344, %v7361
    %v7373 = vmul.f32 %v7345, %v7363
    %v7374 = vmul.f32 %v7346, %v7365
    %v7375 = vmul.f32 %v7347, %v7367
    %v7376 = vpack.c.bf16 %v7373, %v7372
    %v7377 = vpack.c.bf16 %v7375, %v7374
    %s7378 = scalar_lea.vmem [#allocation2], 1168
    %v7379 = vld [vmem:[%s7378] sm:$0xf]
    %v7380 = vld [vmem:[%s7378 + $0x4] sm:$0xf]
    %v7381 = vld [vmem:[%s7378 + $0x8] sm:$0xf]
    %v7382 = vld [vmem:[%s7378 + $0xc] sm:$0xf]
    %s7383 = scalar_lea.vmem %s4, 28
    %v7384 = vld [vmem:[%s7383] sm:$0x1]
    %v7386 = vlaneseq
    %v7387 = vshrl.u32 %v7386, 7
    %v7388 = vsub.s32 0, %v7387
    %v7389 = vrot.slane %v7384, %v7388
    %v7395 = vunpack.c.l.b16 %v7379
    %v7396 = vunpack.c.l.b16 %v7380
    %v7397 = vunpack.c.l.b16 %v7381
    %v7398 = vunpack.c.l.b16 %v7382
    %v7399 = vpack.c.b16 %v7396, %v7395
    %v7400 = vpack.c.b16 %v7398, %v7397
    %v7404 = vsel %vm343, %v7376, 0
    %v7407 = vsel %vm343, %v7377, 0
    %7409 = vmatprep.subr.bf16.mxu0 0
    %7410 = vmatpush1.bf16.msra.mxu0 %v7399
    %7411 = vmatprep.subr.bf16.mxu0 0
    %7412 = vmatpush1.bf16.msra.mxu0 %v7400
    %7413 = vmatprep.subr.bf16.mxu0 0
    %7414 = vmatpush1.bf16.msra.mxu0 0
    %7415 = vmatprep.subr.bf16.mxu0 0
    %7416 = vmatpush1.bf16.msra.mxu0 0
    %7417 = vmatprep.subr.bf16.mxu0 0
    %7418 = vmatpush1.bf16.msra.mxu0 0
    %7419 = vmatprep.subr.bf16.mxu0 0
    %7420 = vmatpush1.bf16.msra.mxu0 0
    %7421 = vmatprep.subr.bf16.mxu0 0
    %7422 = vmatpush1.bf16.msra.mxu0 0
    %7423 = vmatprep.subr.bf16.mxu0 0
    %7424 = vmatpush1.bf16.msra.mxu0 0
    %7425 = vmatprep.subr.bf16.mxu0 0
    %7426 = vmatpush1.bf16.msra.mxu0 0
    %7427 = vmatprep.subr.bf16.mxu0 0
    %7428 = vmatpush1.bf16.msra.mxu0 0
    %7429 = vmatprep.subr.bf16.mxu0 0
    %7430 = vmatpush1.bf16.msra.mxu0 0
    %7431 = vmatprep.subr.bf16.mxu0 0
    %7432 = vmatpush1.bf16.msra.mxu0 0
    %7433 = vmatprep.subr.bf16.mxu0 0
    %7434 = vmatpush1.bf16.msra.mxu0 0
    %7435 = vmatprep.subr.bf16.mxu0 0
    %7436 = vmatpush1.bf16.msra.mxu0 0
    %7437 = vmatprep.subr.bf16.mxu0 0
    %7438 = vmatpush1.bf16.msra.mxu0 0
    %7439 = vmatprep.subr.bf16.mxu0 0
    %7440 = vmatpush1.bf16.msra.mxu0 0
    %7441 = vmatprep.mubr.bf16.mxu0 0
    %7442 = vmatmul.mubr.bf16.gmra.mrb[0].mxu0 %v7404
    %v7443 = vpop.f32.mrb[0].mxu0
    %v7444 = vadd.f32 %v7389, %v7443
    %v7445 = vpop.f32.mrb[0].mxu0
    %v7446 = vpop.f32.mrb[0].mxu0
    %v7447 = vadd.f32 %v7389, %v7446
    %v7448 = vpop.f32.mrb[0].mxu0
    %7449 = vmatprep.mubr.bf16.mxu0 0
    %7450 = vmatmul.mubr.bf16.gmra.mrb[0].mxu0 %v7407
    %v7451 = vpop.f32.mrb[0].mxu0
    %v7452 = vadd.f32 %v7389, %v7451
    %v7453 = vpop.f32.mrb[0].mxu0
    %v7454 = vpop.f32.mrb[0].mxu0
    %v7455 = vadd.f32 %v7389, %v7454
    %v7456 = vpop.f32.mrb[0].mxu0
    %7457 = vdwg.mxu0
    %v7458 = vadd.f32 %v6898, %v7444
    %v7459 = vadd.f32 %v6899, %v7447
    %v7460 = vadd.f32 %v6900, %v7452
    %v7461 = vadd.f32 %v6901, %v7455
    %v7462 = vmul.f32 %v7458, %v46
    %v7463 = vmul.f32 %v7459, %v51
    %v7464 = vmul.f32 %v7460, %v56
    %v7465 = vmul.f32 %v7461, %v61
    %v7466 = vpack.c.bf16 %v7463, %v7462
    %v7467 = vpack.c.bf16 %v7465, %v7464
    %s7468 = scalar_lea.vmem [#allocation2], 1184
    %v7469 = vld [vmem:[%s7468] sm:$0xf]
    %v7470 = vld [vmem:[%s7468 + $0x4] sm:$0xf]
    %v7471 = vld [vmem:[%s7468 + $0x8] sm:$0xf]
    %v7472 = vld [vmem:[%s7468 + $0xc] sm:$0xf]
    %7475 = vrot.lane.b32.xlu0 %v7466, 96
    %v7476 = vpop.permute.xlu0 %7475
    %7477 = vrot.lane.b32.xlu0 %v7467, 96
    %v7478 = vpop.permute.xlu0 %7477
    %v7483 = vunpack.c.l.b16 %v7469
    %v7484 = vunpack.c.l.b16 %v7470
    %v7485 = vunpack.c.l.b16 %v7471
    %v7486 = vunpack.c.l.b16 %v7472
    %v7487 = vpack.c.b16 %v7484, %v7483
    %v7488 = vpack.c.b16 %v7486, %v7485
    %v7492 = vsel %vm343, %v7476, 0
    %v7495 = vsel %vm343, %v7478, 0
    %7497 = vmatprep.subr.bf16.mxu0 0
    %7498 = vmatpush1.bf16.msra.mxu0 %v7487
    %7499 = vmatprep.subr.bf16.mxu0 0
    %7500 = vmatpush1.bf16.msra.mxu0 %v7488
    %7501 = vmatprep.subr.bf16.mxu0 0
    %7502 = vmatpush1.bf16.msra.mxu0 0
    %7503 = vmatprep.subr.bf16.mxu0 0
    %7504 = vmatpush1.bf16.msra.mxu0 0
    %7505 = vmatprep.subr.bf16.mxu0 0
    %7506 = vmatpush1.bf16.msra.mxu0 0
    %7507 = vmatprep.subr.bf16.mxu0 0
    %7508 = vmatpush1.bf16.msra.mxu0 0
    %7509 = vmatprep.subr.bf16.mxu0 0
    %7510 = vmatpush1.bf16.msra.mxu0 0
    %7511 = vmatprep.subr.bf16.mxu0 0
    %7512 = vmatpush1.bf16.msra.mxu0 0
    %7513 = vmatprep.subr.bf16.mxu0 0
    %7514 = vmatpush1.bf16.msra.mxu0 0
    %7515 = vmatprep.subr.bf16.mxu0 0
    %7516 = vmatpush1.bf16.msra.mxu0 0
    %7517 = vmatprep.subr.bf16.mxu0 0
    %7518 = vmatpush1.bf16.msra.mxu0 0
    %7519 = vmatprep.subr.bf16.mxu0 0
    %7520 = vmatpush1.bf16.msra.mxu0 0
    %7521 = vmatprep.subr.bf16.mxu0 0
    %7522 = vmatpush1.bf16.msra.mxu0 0
    %7523 = vmatprep.subr.bf16.mxu0 0
    %7524 = vmatpush1.bf16.msra.mxu0 0
    %7525 = vmatprep.subr.bf16.mxu0 0
    %7526 = vmatpush1.bf16.msra.mxu0 0
    %7527 = vmatprep.subr.bf16.mxu0 0
    %7528 = vmatpush1.bf16.msra.mxu0 0
    %7529 = vmatprep.mubr.bf16.mxu0 0
    %7530 = vmatmul.mubr.bf16.gmra.mrb[0].mxu0 %v7492
    %v7531 = vpop.f32.mrb[0].mxu0
    %v7532 = vadd.f32 0.0, %v7531
    %v7533 = vpop.f32.mrb[0].mxu0
    %v7534 = vpop.f32.mrb[0].mxu0
    %v7535 = vadd.f32 0.0, %v7534
    %v7536 = vpop.f32.mrb[0].mxu0
    %7537 = vmatprep.mubr.bf16.mxu0 0
    %7538 = vmatmul.mubr.bf16.gmra.mrb[0].mxu0 %v7495
    %v7539 = vpop.f32.mrb[0].mxu0
    %v7540 = vadd.f32 0.0, %v7539
    %v7541 = vpop.f32.mrb[0].mxu0
    %v7542 = vpop.f32.mrb[0].mxu0
    %v7543 = vadd.f32 0.0, %v7542
    %v7544 = vpop.f32.mrb[0].mxu0
    %7545 = vdwg.mxu0
    %s7546 = scalar_lea.vmem %s4, 29
    %v7547 = vld [vmem:[%s7546] sm:$0x1]
    %v7549 = vlaneseq
    %v7550 = vshrl.u32 %v7549, 7
    %v7551 = vsub.s32 0, %v7550
    %v7552 = vrot.slane %v7547, %v7551
    %v7554 = vadd.f32 %v7532, %v7552
    %v7555 = vadd.f32 %v7535, %v7552
    %v7556 = vadd.f32 %v7540, %v7552
    %v7557 = vadd.f32 %v7543, %v7552
    %v7558 = vmul.f32 %v7554, %v46
    %v7559 = vmul.f32 %v7555, %v51
    %v7560 = vmul.f32 %v7556, %v56
    %v7561 = vmul.f32 %v7557, %v61
    %v7562 = vsub.f32 %v2660, %v7558
    %v7563 = vsub.f32 %v2661, %v7559
    %v7564 = vsub.f32 %v2662, %v7560
    %v7565 = vsub.f32 %v2663, %v7561
    %v7566 = vmul.f32 %v7562, %v46
    %v7567 = vmul.f32 %v7563, %v51
    %v7568 = vmul.f32 %v7564, %v56
    %v7569 = vmul.f32 %v7565, %v61
    %s7570 = scalar_lea.vmem %s4, 30
    %v7571 = vld [vmem:[%s7570] sm:$0x1]
    %v7572 = vpack.c.bf16 %v7567, %v7566
    %v7573 = vpack.c.bf16 %v7569, %v7568
    %s7574 = scalar_lea.vmem %s2, 6
    %v7575 = vld [vmem:[%s7574] sm:$0x3]
    %v7577 = vlaneseq
    %v7578 = vshrl.u32 %v7577, 7
    %v7579 = vsub.s32 0, %v7578
    %v7580 = vrot.slane %v7571, %v7579
    %v7583 = vsel %vm228, %v7572, 0
    %v7586 = vsel %vm228, %v7573, 0
    %v7589 = vsel %vm235, %v7575, 0
    %7591 = vmatprep.subr.bf16.mxu0 0
    %7592 = vmatpush1.bf16.msra.mxu0 %v7589
    %7593 = vmatprep.subr.bf16.mxu0 0
    %7594 = vmatpush1.bf16.msra.mxu0 0
    %7595 = vmatprep.subr.bf16.mxu0 0
    %7596 = vmatpush1.bf16.msra.mxu0 0
    %7597 = vmatprep.subr.bf16.mxu0 0
    %7598 = vmatpush1.bf16.msra.mxu0 0
    %7599 = vmatprep.subr.bf16.mxu0 0
    %7600 = vmatpush1.bf16.msra.mxu0 0
    %7601 = vmatprep.subr.bf16.mxu0 0
    %7602 = vmatpush1.bf16.msra.mxu0 0
    %7603 = vmatprep.subr.bf16.mxu0 0
    %7604 = vmatpush1.bf16.msra.mxu0 0
    %7605 = vmatprep.subr.bf16.mxu0 0
    %7606 = vmatpush1.bf16.msra.mxu0 0
    %7607 = vmatprep.subr.bf16.mxu0 0
    %7608 = vmatpush1.bf16.msra.mxu0 0
    %7609 = vmatprep.subr.bf16.mxu0 0
    %7610 = vmatpush1.bf16.msra.mxu0 0
    %7611 = vmatprep.subr.bf16.mxu0 0
    %7612 = vmatpush1.bf16.msra.mxu0 0
    %7613 = vmatprep.subr.bf16.mxu0 0
    %7614 = vmatpush1.bf16.msra.mxu0 0
    %7615 = vmatprep.subr.bf16.mxu0 0
    %7616 = vmatpush1.bf16.msra.mxu0 0
    %7617 = vmatprep.subr.bf16.mxu0 0
    %7618 = vmatpush1.bf16.msra.mxu0 0
    %7619 = vmatprep.subr.bf16.mxu0 0
    %7620 = vmatpush1.bf16.msra.mxu0 0
    %7621 = vmatprep.subr.bf16.mxu0 0
    %7622 = vmatpush1.bf16.msra.mxu0 0
    %7623 = vmatprep.mubr.bf16.mxu0 0
    %7624 = vmatmul.mubr.bf16.gmra.mrb[0].mxu0 %v7583
    %v7625 = vpop.f32.mrb[0].mxu0
    %v7626 = vadd.f32 %v7580, %v7625
    %v7627 = vpop.f32.mrb[0].mxu0
    %v7628 = vpop.f32.mrb[0].mxu0
    %v7629 = vadd.f32 %v7580, %v7628
    %v7630 = vpop.f32.mrb[0].mxu0
    %7631 = vmatprep.mubr.bf16.mxu0 0
    %7632 = vmatmul.mubr.bf16.gmra.mrb[0].mxu0 %v7586
    %v7633 = vpop.f32.mrb[0].mxu0
    %v7634 = vadd.f32 %v7580, %v7633
    %v7635 = vpop.f32.mrb[0].mxu0
    %v7636 = vpop.f32.mrb[0].mxu0
    %v7637 = vadd.f32 %v7580, %v7636
    %v7638 = vpop.f32.mrb[0].mxu0
    %7639 = vdwg.mxu0
    %v7640 = vmul.f32 %v7626, %v46
    %v7641 = vmul.f32 %v7629, %v51
    %v7642 = vmul.f32 %v7634, %v56
    %v7643 = vmul.f32 %v7637, %v61
    %v7644 = vrot.slane %v7640, 6
    %v7645 = vrot.slane %v7641, 6
    %v7646 = vrot.slane %v7642, 6
    %v7647 = vrot.slane %v7643, 6
    %v7648 = vsel %vm296, %v7646, %v7647
    %v7649 = vsel %vm296, %v7645, %v7646
    %v7650 = vsel %vm296, %v7644, %v7645
    %v7651 = vsel %vm296, %v7647, %v7644
    %v7652 = vmul.f32 %v7651, %v136
    %v7653 = vmul.f32 %v7650, %v137
    %v7654 = vmul.f32 %v7649, %v138
    %v7655 = vmul.f32 %v7648, %v139
    %v7656 = vpack.c.bf16 %v7653, %v7652
    %v7657 = vpack.c.bf16 %v7655, %v7654
    %s7658 = scalar_lea.vmem [#allocation2], 1200
    %v7659 = vld [vmem:[%s7658] sm:$0xf]
    %v7660 = vld [vmem:[%s7658 + $0x4] sm:$0xf]
    %v7661 = vld [vmem:[%s7658 + $0x8] sm:$0xf]
    %v7662 = vld [vmem:[%s7658 + $0xc] sm:$0xf]
    %v7663 = vrot.slane %v7640, 7
    %v7664 = vrot.slane %v7641, 7
    %v7665 = vrot.slane %v7642, 7
    %v7666 = vrot.slane %v7643, 7
    %v7667 = vsel %vm315, %v7665, %v7666
    %v7668 = vsel %vm315, %v7664, %v7665
    %v7669 = vsel %vm315, %v7663, %v7664
    %v7670 = vsel %vm315, %v7666, %v7663
    %v7671 = vmul.f32 %v7670, %v160
    %v7672 = vmul.f32 %v7669, %v161
    %v7673 = vmul.f32 %v7668, %v162
    %v7674 = vmul.f32 %v7667, %v163
    %v7675 = vpack.c.bf16 %v7672, %v7671
    %v7676 = vpack.c.bf16 %v7674, %v7673
    %s7677 = scalar_lea.vmem [#allocation2], 1216
    %v7678 = vld [vmem:[%s7677] sm:$0xf]
    %v7679 = vld [vmem:[%s7677 + $0x4] sm:$0xf]
    %v7680 = vld [vmem:[%s7677 + $0x8] sm:$0xf]
    %v7681 = vld [vmem:[%s7677 + $0xc] sm:$0xf]
    %v7686 = vunpack.c.l.b16 %v7678
    %v7687 = vunpack.c.l.b16 %v7679
    %v7688 = vunpack.c.l.b16 %v7680
    %v7689 = vunpack.c.l.b16 %v7681
    %v7690 = vpack.c.b16 %v7687, %v7686
    %v7691 = vpack.c.b16 %v7689, %v7688
    %v7695 = vsel %vm343, %v7675, 0
    %v7698 = vsel %vm343, %v7676, 0
    %7700 = vmatprep.subr.bf16.mxu0 0
    %7701 = vmatpush1.bf16.msra.mxu0 %v7690
    %7702 = vmatprep.subr.bf16.mxu0 0
    %7703 = vmatpush1.bf16.msra.mxu0 %v7691
    %7704 = vmatprep.subr.bf16.mxu0 0
    %7705 = vmatpush1.bf16.msra.mxu0 0
    %7706 = vmatprep.subr.bf16.mxu0 0
    %7707 = vmatpush1.bf16.msra.mxu0 0
    %7708 = vmatprep.subr.bf16.mxu0 0
    %7709 = vmatpush1.bf16.msra.mxu0 0
    %7710 = vmatprep.subr.bf16.mxu0 0
    %7711 = vmatpush1.bf16.msra.mxu0 0
    %7712 = vmatprep.subr.bf16.mxu0 0
    %7713 = vmatpush1.bf16.msra.mxu0 0
    %7714 = vmatprep.subr.bf16.mxu0 0
    %7715 = vmatpush1.bf16.msra.mxu0 0
    %7716 = vmatprep.subr.bf16.mxu0 0
    %7717 = vmatpush1.bf16.msra.mxu0 0
    %7718 = vmatprep.subr.bf16.mxu0 0
    %7719 = vmatpush1.bf16.msra.mxu0 0
    %7720 = vmatprep.subr.bf16.mxu0 0
    %7721 = vmatpush1.bf16.msra.mxu0 0
    %7722 = vmatprep.subr.bf16.mxu0 0
    %7723 = vmatpush1.bf16.msra.mxu0 0
    %7724 = vmatprep.subr.bf16.mxu0 0
    %7725 = vmatpush1.bf16.msra.mxu0 0
    %7726 = vmatprep.subr.bf16.mxu0 0
    %7727 = vmatpush1.bf16.msra.mxu0 0
    %7728 = vmatprep.subr.bf16.mxu0 0
    %7729 = vmatpush1.bf16.msra.mxu0 0
    %7730 = vmatprep.subr.bf16.mxu0 0
    %7731 = vmatpush1.bf16.msra.mxu0 0
    %7732 = vmatprep.mubr.bf16.mxu0 0
    %7733 = vmatmul.mubr.bf16.gmra.mrb[0].mxu0 %v7695
    %v7734 = vpop.f32.mrb[0].mxu0
    %v7735 = vadd.f32 0.0, %v7734
    %v7736 = vpop.f32.mrb[0].mxu0
    %v7737 = vpop.f32.mrb[0].mxu0
    %v7738 = vadd.f32 0.0, %v7737
    %v7739 = vpop.f32.mrb[0].mxu0
    %7740 = vmatprep.mubr.bf16.mxu0 0
    %7741 = vmatmul.mubr.bf16.gmra.mrb[0].mxu0 %v7698
    %v7742 = vpop.f32.mrb[0].mxu0
    %v7743 = vadd.f32 0.0, %v7742
    %v7744 = vpop.f32.mrb[0].mxu0
    %v7745 = vpop.f32.mrb[0].mxu0
    %v7746 = vadd.f32 0.0, %v7745
    %v7747 = vpop.f32.mrb[0].mxu0
    %7748 = vdwg.mxu0
    %v7753 = vunpack.c.l.b16 %v7659
    %v7754 = vunpack.c.l.b16 %v7660
    %v7755 = vunpack.c.l.b16 %v7661
    %v7756 = vunpack.c.l.b16 %v7662
    %v7757 = vpack.c.b16 %v7754, %v7753
    %v7758 = vpack.c.b16 %v7756, %v7755
    %v7762 = vsel %vm343, %v7656, 0
    %v7765 = vsel %vm343, %v7657, 0
    %7767 = vmatprep.subr.bf16.mxu0 0
    %7768 = vmatpush1.bf16.msra.mxu0 %v7757
    %7769 = vmatprep.subr.bf16.mxu0 0
    %7770 = vmatpush1.bf16.msra.mxu0 %v7758
    %7771 = vmatprep.subr.bf16.mxu0 0
    %7772 = vmatpush1.bf16.msra.mxu0 0
    %7773 = vmatprep.subr.bf16.mxu0 0
    %7774 = vmatpush1.bf16.msra.mxu0 0
    %7775 = vmatprep.subr.bf16.mxu0 0
    %7776 = vmatpush1.bf16.msra.mxu0 0
    %7777 = vmatprep.subr.bf16.mxu0 0
    %7778 = vmatpush1.bf16.msra.mxu0 0
    %7779 = vmatprep.subr.bf16.mxu0 0
    %7780 = vmatpush1.bf16.msra.mxu0 0
    %7781 = vmatprep.subr.bf16.mxu0 0
    %7782 = vmatpush1.bf16.msra.mxu0 0
    %7783 = vmatprep.subr.bf16.mxu0 0
    %7784 = vmatpush1.bf16.msra.mxu0 0
    %7785 = vmatprep.subr.bf16.mxu0 0
    %7786 = vmatpush1.bf16.msra.mxu0 0
    %7787 = vmatprep.subr.bf16.mxu0 0
    %7788 = vmatpush1.bf16.msra.mxu0 0
    %7789 = vmatprep.subr.bf16.mxu0 0
    %7790 = vmatpush1.bf16.msra.mxu0 0
    %7791 = vmatprep.subr.bf16.mxu0 0
    %7792 = vmatpush1.bf16.msra.mxu0 0
    %7793 = vmatprep.subr.bf16.mxu0 0
    %7794 = vmatpush1.bf16.msra.mxu0 0
    %7795 = vmatprep.subr.bf16.mxu0 0
    %7796 = vmatpush1.bf16.msra.mxu0 0
    %7797 = vmatprep.subr.bf16.mxu0 0
    %7798 = vmatpush1.bf16.msra.mxu0 0
    %7799 = vmatprep.mubr.bf16.mxu0 0
    %7800 = vmatmul.mubr.bf16.gmra.mrb[0].mxu0 %v7762
    %v7801 = vpop.f32.mrb[0].mxu0
    %v7802 = vadd.f32 %v7735, %v7801
    %v7803 = vpop.f32.mrb[0].mxu0
    %v7804 = vpop.f32.mrb[0].mxu0
    %v7805 = vadd.f32 %v7738, %v7804
    %v7806 = vpop.f32.mrb[0].mxu0
    %7807 = vmatprep.mubr.bf16.mxu0 0
    %7808 = vmatmul.mubr.bf16.gmra.mrb[0].mxu0 %v7765
    %v7809 = vpop.f32.mrb[0].mxu0
    %v7810 = vadd.f32 %v7743, %v7809
    %v7811 = vpop.f32.mrb[0].mxu0
    %v7812 = vpop.f32.mrb[0].mxu0
    %v7813 = vadd.f32 %v7746, %v7812
    %v7814 = vpop.f32.mrb[0].mxu0
    %7815 = vdwg.mxu0
    %v7816 = vpack.c.bf16 %v7641, %v7640
    %v7817 = vpack.c.bf16 %v7643, %v7642
    %s7818 = scalar_lea.vmem [#allocation2], 1232
    %v7819 = vld [vmem:[%s7818] sm:$0xf]
    %v7820 = vld [vmem:[%s7818 + $0x4] sm:$0xf]
    %v7821 = vld [vmem:[%s7818 + $0x8] sm:$0xf]
    %v7822 = vld [vmem:[%s7818 + $0xc] sm:$0xf]
    %v7827 = vunpack.c.l.b16 %v7819
    %v7828 = vunpack.c.l.b16 %v7820
    %v7829 = vunpack.c.l.b16 %v7821
    %v7830 = vunpack.c.l.b16 %v7822
    %v7831 = vpack.c.b16 %v7828, %v7827
    %v7832 = vpack.c.b16 %v7830, %v7829
    %v7836 = vsel %vm343, %v7816, 0
    %v7839 = vsel %vm343, %v7817, 0
    %7841 = vmatprep.subr.bf16.mxu0 0
    %7842 = vmatpush1.bf16.msra.mxu0 %v7831
    %7843 = vmatprep.subr.bf16.mxu0 0
    %7844 = vmatpush1.bf16.msra.mxu0 %v7832
    %7845 = vmatprep.subr.bf16.mxu0 0
    %7846 = vmatpush1.bf16.msra.mxu0 0
    %7847 = vmatprep.subr.bf16.mxu0 0
    %7848 = vmatpush1.bf16.msra.mxu0 0
    %7849 = vmatprep.subr.bf16.mxu0 0
    %7850 = vmatpush1.bf16.msra.mxu0 0
    %7851 = vmatprep.subr.bf16.mxu0 0
    %7852 = vmatpush1.bf16.msra.mxu0 0
    %7853 = vmatprep.subr.bf16.mxu0 0
    %7854 = vmatpush1.bf16.msra.mxu0 0
    %7855 = vmatprep.subr.bf16.mxu0 0
    %7856 = vmatpush1.bf16.msra.mxu0 0
    %7857 = vmatprep.subr.bf16.mxu0 0
    %7858 = vmatpush1.bf16.msra.mxu0 0
    %7859 = vmatprep.subr.bf16.mxu0 0
    %7860 = vmatpush1.bf16.msra.mxu0 0
    %7861 = vmatprep.subr.bf16.mxu0 0
    %7862 = vmatpush1.bf16.msra.mxu0 0
    %7863 = vmatprep.subr.bf16.mxu0 0
    %7864 = vmatpush1.bf16.msra.mxu0 0
    %7865 = vmatprep.subr.bf16.mxu0 0
    %7866 = vmatpush1.bf16.msra.mxu0 0
    %7867 = vmatprep.subr.bf16.mxu0 0
    %7868 = vmatpush1.bf16.msra.mxu0 0
    %7869 = vmatprep.subr.bf16.mxu0 0
    %7870 = vmatpush1.bf16.msra.mxu0 0
    %7871 = vmatprep.subr.bf16.mxu0 0
    %7872 = vmatpush1.bf16.msra.mxu0 0
    %7873 = vmatprep.mubr.bf16.mxu0 0
    %7874 = vmatmul.mubr.bf16.gmra.mrb[0].mxu0 %v7836
    %v7875 = vpop.f32.mrb[0].mxu0
    %v7876 = vadd.f32 0.0, %v7875
    %v7877 = vpop.f32.mrb[0].mxu0
    %v7878 = vpop.f32.mrb[0].mxu0
    %v7879 = vadd.f32 0.0, %v7878
    %v7880 = vpop.f32.mrb[0].mxu0
    %7881 = vmatprep.mubr.bf16.mxu0 0
    %7882 = vmatmul.mubr.bf16.gmra.mrb[0].mxu0 %v7839
    %v7883 = vpop.f32.mrb[0].mxu0
    %v7884 = vadd.f32 0.0, %v7883
    %v7885 = vpop.f32.mrb[0].mxu0
    %v7886 = vpop.f32.mrb[0].mxu0
    %v7887 = vadd.f32 0.0, %v7886
    %v7888 = vpop.f32.mrb[0].mxu0
    %7889 = vdwg.mxu0
    %v7890 = vadd.f32 %v7802, %v7876
    %v7891 = vadd.f32 %v7805, %v7879
    %v7892 = vadd.f32 %v7810, %v7884
    %v7893 = vadd.f32 %v7813, %v7887
    %v7894 = vrot.slane %v7640, 1
    %v7895 = vrot.slane %v7641, 1
    %v7896 = vrot.slane %v7642, 1
    %v7897 = vrot.slane %v7643, 1
    %v7898 = vsel %vm548, %v7896, %v7897
    %v7899 = vsel %vm548, %v7895, %v7896
    %v7900 = vsel %vm548, %v7894, %v7895
    %v7901 = vsel %vm548, %v7897, %v7894
    %v7902 = vmul.f32 %v7900, %v184
    %v7903 = vmul.f32 %v7899, %v185
    %v7904 = vmul.f32 %v7898, %v186
    %v7905 = vmul.f32 %v7901, %v187
    %v7906 = vpack.c.bf16 %v7903, %v7902
    %v7907 = vpack.c.bf16 %v7905, %v7904
    %s7908 = scalar_lea.vmem [#allocation2], 1248
    %v7909 = vld [vmem:[%s7908] sm:$0xf]
    %v7910 = vld [vmem:[%s7908 + $0x4] sm:$0xf]
    %v7911 = vld [vmem:[%s7908 + $0x8] sm:$0xf]
    %v7912 = vld [vmem:[%s7908 + $0xc] sm:$0xf]
    %v7917 = vunpack.c.l.b16 %v7909
    %v7918 = vunpack.c.l.b16 %v7910
    %v7919 = vunpack.c.l.b16 %v7911
    %v7920 = vunpack.c.l.b16 %v7912
    %v7921 = vpack.c.b16 %v7918, %v7917
    %v7922 = vpack.c.b16 %v7920, %v7919
    %v7926 = vsel %vm343, %v7906, 0
    %v7929 = vsel %vm343, %v7907, 0
    %7931 = vmatprep.subr.bf16.mxu0 0
    %7932 = vmatpush1.bf16.msra.mxu0 %v7921
    %7933 = vmatprep.subr.bf16.mxu0 0
    %7934 = vmatpush1.bf16.msra.mxu0 %v7922
    %7935 = vmatprep.subr.bf16.mxu0 0
    %7936 = vmatpush1.bf16.msra.mxu0 0
    %7937 = vmatprep.subr.bf16.mxu0 0
    %7938 = vmatpush1.bf16.msra.mxu0 0
    %7939 = vmatprep.subr.bf16.mxu0 0
    %7940 = vmatpush1.bf16.msra.mxu0 0
    %7941 = vmatprep.subr.bf16.mxu0 0
    %7942 = vmatpush1.bf16.msra.mxu0 0
    %7943 = vmatprep.subr.bf16.mxu0 0
    %7944 = vmatpush1.bf16.msra.mxu0 0
    %7945 = vmatprep.subr.bf16.mxu0 0
    %7946 = vmatpush1.bf16.msra.mxu0 0
    %7947 = vmatprep.subr.bf16.mxu0 0
    %7948 = vmatpush1.bf16.msra.mxu0 0
    %7949 = vmatprep.subr.bf16.mxu0 0
    %7950 = vmatpush1.bf16.msra.mxu0 0
    %7951 = vmatprep.subr.bf16.mxu0 0
    %7952 = vmatpush1.bf16.msra.mxu0 0
    %7953 = vmatprep.subr.bf16.mxu0 0
    %7954 = vmatpush1.bf16.msra.mxu0 0
    %7955 = vmatprep.subr.bf16.mxu0 0
    %7956 = vmatpush1.bf16.msra.mxu0 0
    %7957 = vmatprep.subr.bf16.mxu0 0
    %7958 = vmatpush1.bf16.msra.mxu0 0
    %7959 = vmatprep.subr.bf16.mxu0 0
    %7960 = vmatpush1.bf16.msra.mxu0 0
    %7961 = vmatprep.subr.bf16.mxu0 0
    %7962 = vmatpush1.bf16.msra.mxu0 0
    %7963 = vmatprep.mubr.bf16.mxu0 0
    %7964 = vmatmul.mubr.bf16.gmra.mrb[0].mxu0 %v7926
    %v7965 = vpop.f32.mrb[0].mxu0
    %v7966 = vadd.f32 0.0, %v7965
    %v7967 = vpop.f32.mrb[0].mxu0
    %v7968 = vpop.f32.mrb[0].mxu0
    %v7969 = vadd.f32 0.0, %v7968
    %v7970 = vpop.f32.mrb[0].mxu0
    %7971 = vmatprep.mubr.bf16.mxu0 0
    %7972 = vmatmul.mubr.bf16.gmra.mrb[0].mxu0 %v7929
    %v7973 = vpop.f32.mrb[0].mxu0
    %v7974 = vadd.f32 0.0, %v7973
    %v7975 = vpop.f32.mrb[0].mxu0
    %v7976 = vpop.f32.mrb[0].mxu0
    %v7977 = vadd.f32 0.0, %v7976
    %v7978 = vpop.f32.mrb[0].mxu0
    %7979 = vdwg.mxu0
    %v7980 = vadd.f32 %v7890, %v7966
    %v7981 = vadd.f32 %v7891, %v7969
    %v7982 = vadd.f32 %v7892, %v7974
    %v7983 = vadd.f32 %v7893, %v7977
    %v7984 = vrot.slane %v7640, 2
    %v7985 = vrot.slane %v7641, 2
    %v7986 = vrot.slane %v7642, 2
    %v7987 = vrot.slane %v7643, 2
    %v7988 = vsel %vm639, %v7986, %v7987
    %v7989 = vsel %vm639, %v7985, %v7986
    %v7990 = vsel %vm639, %v7984, %v7985
    %v7991 = vsel %vm639, %v7987, %v7984
    %v7992 = vmul.f32 %v7990, %v208
    %v7993 = vmul.f32 %v7989, %v209
    %v7994 = vmul.f32 %v7988, %v210
    %v7995 = vmul.f32 %v7991, %v211
    %v7996 = vpack.c.bf16 %v7993, %v7992
    %v7997 = vpack.c.bf16 %v7995, %v7994
    %s7998 = scalar_lea.vmem [#allocation2], 1264
    %v7999 = vld [vmem:[%s7998] sm:$0xf]
    %v8000 = vld [vmem:[%s7998 + $0x4] sm:$0xf]
    %v8001 = vld [vmem:[%s7998 + $0x8] sm:$0xf]
    %v8002 = vld [vmem:[%s7998 + $0xc] sm:$0xf]
    %v8007 = vunpack.c.l.b16 %v7999
    %v8008 = vunpack.c.l.b16 %v8000
    %v8009 = vunpack.c.l.b16 %v8001
    %v8010 = vunpack.c.l.b16 %v8002
    %v8011 = vpack.c.b16 %v8008, %v8007
    %v8012 = vpack.c.b16 %v8010, %v8009
    %v8016 = vsel %vm343, %v7996, 0
    %v8019 = vsel %vm343, %v7997, 0
    %8021 = vmatprep.subr.bf16.mxu0 0
    %8022 = vmatpush1.bf16.msra.mxu0 %v8011
    %8023 = vmatprep.subr.bf16.mxu0 0
    %8024 = vmatpush1.bf16.msra.mxu0 %v8012
    %8025 = vmatprep.subr.bf16.mxu0 0
    %8026 = vmatpush1.bf16.msra.mxu0 0
    %8027 = vmatprep.subr.bf16.mxu0 0
    %8028 = vmatpush1.bf16.msra.mxu0 0
    %8029 = vmatprep.subr.bf16.mxu0 0
    %8030 = vmatpush1.bf16.msra.mxu0 0
    %8031 = vmatprep.subr.bf16.mxu0 0
    %8032 = vmatpush1.bf16.msra.mxu0 0
    %8033 = vmatprep.subr.bf16.mxu0 0
    %8034 = vmatpush1.bf16.msra.mxu0 0
    %8035 = vmatprep.subr.bf16.mxu0 0
    %8036 = vmatpush1.bf16.msra.mxu0 0
    %8037 = vmatprep.subr.bf16.mxu0 0
    %8038 = vmatpush1.bf16.msra.mxu0 0
    %8039 = vmatprep.subr.bf16.mxu0 0
    %8040 = vmatpush1.bf16.msra.mxu0 0
    %8041 = vmatprep.subr.bf16.mxu0 0
    %8042 = vmatpush1.bf16.msra.mxu0 0
    %8043 = vmatprep.subr.bf16.mxu0 0
    %8044 = vmatpush1.bf16.msra.mxu0 0
    %8045 = vmatprep.subr.bf16.mxu0 0
    %8046 = vmatpush1.bf16.msra.mxu0 0
    %8047 = vmatprep.subr.bf16.mxu0 0
    %8048 = vmatpush1.bf16.msra.mxu0 0
    %8049 = vmatprep.subr.bf16.mxu0 0
    %8050 = vmatpush1.bf16.msra.mxu0 0
    %8051 = vmatprep.subr.bf16.mxu0 0
    %8052 = vmatpush1.bf16.msra.mxu0 0
    %8053 = vmatprep.mubr.bf16.mxu0 0
    %8054 = vmatmul.mubr.bf16.gmra.mrb[0].mxu0 %v8016
    %v8055 = vpop.f32.mrb[0].mxu0
    %v8056 = vadd.f32 0.0, %v8055
    %v8057 = vpop.f32.mrb[0].mxu0
    %v8058 = vpop.f32.mrb[0].mxu0
    %v8059 = vadd.f32 0.0, %v8058
    %v8060 = vpop.f32.mrb[0].mxu0
    %8061 = vmatprep.mubr.bf16.mxu0 0
    %8062 = vmatmul.mubr.bf16.gmra.mrb[0].mxu0 %v8019
    %v8063 = vpop.f32.mrb[0].mxu0
    %v8064 = vadd.f32 0.0, %v8063
    %v8065 = vpop.f32.mrb[0].mxu0
    %v8066 = vpop.f32.mrb[0].mxu0
    %v8067 = vadd.f32 0.0, %v8066
    %v8068 = vpop.f32.mrb[0].mxu0
    %8069 = vdwg.mxu0
    %v8070 = vadd.f32 %v7980, %v8056
    %v8071 = vadd.f32 %v7981, %v8059
    %v8072 = vadd.f32 %v7982, %v8064
    %v8073 = vadd.f32 %v7983, %v8067
    %s8074 = scalar_lea.vmem %s4, 31
    %v8075 = vld [vmem:[%s8074] sm:$0x1]
    %v8077 = vlaneseq
    %v8078 = vshrl.u32 %v8077, 7
    %v8079 = vsub.s32 0, %v8078
    %v8080 = vrot.slane %v8075, %v8079
    %v8082 = vadd.f32 %v8070, %v8080
    %v8083 = vadd.f32 %v8071, %v8080
    %v8084 = vadd.f32 %v8072, %v8080
    %v8085 = vadd.f32 %v8073, %v8080
    %v8086 = vtanh.pop %v8082
    %v8087 = vtanh.pop %v8083
    %v8088 = vtanh.pop %v8084
    %v8089 = vtanh.pop %v8085
    %v8090 = vmul.f32 %v8086, 0.5
    %v8091 = vmul.f32 %v8087, 0.5
    %v8092 = vmul.f32 %v8088, 0.5
    %v8093 = vmul.f32 %v8089, 0.5
    %v8094 = vadd.f32 %v8090, 0.5
    %v8095 = vadd.f32 %v8091, 0.5
    %v8096 = vadd.f32 %v8092, 0.5
    %v8097 = vadd.f32 %v8093, 0.5
    %8102 = vrot.lane.b32.xlu0 %v8094, 96
    %v8103 = vpop.permute.xlu0 %8102
    %8104 = vrot.lane.b32.xlu0 %v8095, 96
    %v8105 = vpop.permute.xlu0 %8104
    %8106 = vrot.lane.b32.xlu0 %v8096, 96
    %v8107 = vpop.permute.xlu0 %8106
    %8108 = vrot.lane.b32.xlu0 %v8097, 96
    %v8109 = vpop.permute.xlu0 %8108
    %v8114 = vmul.f32 %v8086, %v8103
    %v8115 = vmul.f32 %v8087, %v8105
    %v8116 = vmul.f32 %v8088, %v8107
    %v8117 = vmul.f32 %v8089, %v8109
    %v8118 = vpack.c.bf16 %v8115, %v8114
    %v8119 = vpack.c.bf16 %v8117, %v8116
    %s8120 = scalar_lea.vmem [#allocation2], 1520
    %v8121 = vld [vmem:[%s8120] sm:$0xf]
    %v8122 = vld [vmem:[%s8120 + $0x4] sm:$0xf]
    %v8123 = vld [vmem:[%s8120 + $0x8] sm:$0xf]
    %v8124 = vld [vmem:[%s8120 + $0xc] sm:$0xf]
    %s8125 = scalar_lea.vmem %s4, 35
    %v8126 = vld [vmem:[%s8125] sm:$0x1]
    %v8128 = vlaneseq
    %v8129 = vshrl.u32 %v8128, 7
    %v8130 = vsub.s32 0, %v8129
    %v8131 = vrot.slane %v8126, %v8130
    %v8137 = vunpack.c.l.b16 %v8121
    %v8138 = vunpack.c.l.b16 %v8122
    %v8139 = vunpack.c.l.b16 %v8123
    %v8140 = vunpack.c.l.b16 %v8124
    %v8141 = vpack.c.b16 %v8138, %v8137
    %v8142 = vpack.c.b16 %v8140, %v8139
    %v8146 = vsel %vm343, %v8118, 0
    %v8149 = vsel %vm343, %v8119, 0
    %8151 = vmatprep.subr.bf16.mxu0 0
    %8152 = vmatpush1.bf16.msra.mxu0 %v8141
    %8153 = vmatprep.subr.bf16.mxu0 0
    %8154 = vmatpush1.bf16.msra.mxu0 %v8142
    %8155 = vmatprep.subr.bf16.mxu0 0
    %8156 = vmatpush1.bf16.msra.mxu0 0
    %8157 = vmatprep.subr.bf16.mxu0 0
    %8158 = vmatpush1.bf16.msra.mxu0 0
    %8159 = vmatprep.subr.bf16.mxu0 0
    %8160 = vmatpush1.bf16.msra.mxu0 0
    %8161 = vmatprep.subr.bf16.mxu0 0
    %8162 = vmatpush1.bf16.msra.mxu0 0
    %8163 = vmatprep.subr.bf16.mxu0 0
    %8164 = vmatpush1.bf16.msra.mxu0 0
    %8165 = vmatprep.subr.bf16.mxu0 0
    %8166 = vmatpush1.bf16.msra.mxu0 0
    %8167 = vmatprep.subr.bf16.mxu0 0
    %8168 = vmatpush1.bf16.msra.mxu0 0
    %8169 = vmatprep.subr.bf16.mxu0 0
    %8170 = vmatpush1.bf16.msra.mxu0 0
    %8171 = vmatprep.subr.bf16.mxu0 0
    %8172 = vmatpush1.bf16.msra.mxu0 0
    %8173 = vmatprep.subr.bf16.mxu0 0
    %8174 = vmatpush1.bf16.msra.mxu0 0
    %8175 = vmatprep.subr.bf16.mxu0 0
    %8176 = vmatpush1.bf16.msra.mxu0 0
    %8177 = vmatprep.subr.bf16.mxu0 0
    %8178 = vmatpush1.bf16.msra.mxu0 0
    %8179 = vmatprep.subr.bf16.mxu0 0
    %8180 = vmatpush1.bf16.msra.mxu0 0
    %8181 = vmatprep.subr.bf16.mxu0 0
    %8182 = vmatpush1.bf16.msra.mxu0 0
    %8183 = vmatprep.mubr.bf16.mxu0 0
    %8184 = vmatmul.mubr.bf16.gmra.mrb[0].mxu0 %v8146
    %v8185 = vpop.f32.mrb[0].mxu0
    %v8186 = vadd.f32 %v8131, %v8185
    %v8187 = vpop.f32.mrb[0].mxu0
    %v8188 = vpop.f32.mrb[0].mxu0
    %v8189 = vadd.f32 %v8131, %v8188
    %v8190 = vpop.f32.mrb[0].mxu0
    %8191 = vmatprep.mubr.bf16.mxu0 0
    %8192 = vmatmul.mubr.bf16.gmra.mrb[0].mxu0 %v8149
    %v8193 = vpop.f32.mrb[0].mxu0
    %v8194 = vadd.f32 %v8131, %v8193
    %v8195 = vpop.f32.mrb[0].mxu0
    %v8196 = vpop.f32.mrb[0].mxu0
    %v8197 = vadd.f32 %v8131, %v8196
    %v8198 = vpop.f32.mrb[0].mxu0
    %8199 = vdwg.mxu0
    %v8200 = vadd.f32 %v7640, %v8186
    %v8201 = vadd.f32 %v7641, %v8189
    %v8202 = vadd.f32 %v7642, %v8194
    %v8203 = vadd.f32 %v7643, %v8197
    %v8204 = vmul.f32 %v8200, %v46
    %v8205 = vmul.f32 %v8201, %v51
    %v8206 = vmul.f32 %v8202, %v56
    %v8207 = vmul.f32 %v8203, %v61
    %v8208 = vrot.slane %v8204, 6
    %v8209 = vrot.slane %v8205, 6
    %v8210 = vrot.slane %v8206, 6
    %v8211 = vrot.slane %v8207, 6
    %v8212 = vsel %vm296, %v8210, %v8211
    %v8213 = vsel %vm296, %v8209, %v8210
    %v8214 = vsel %vm296, %v8208, %v8209
    %v8215 = vsel %vm296, %v8211, %v8208
    %v8216 = vmul.f32 %v8215, %v136
    %v8217 = vmul.f32 %v8214, %v137
    %v8218 = vmul.f32 %v8213, %v138
    %v8219 = vmul.f32 %v8212, %v139
    %v8220 = vpack.c.bf16 %v8217, %v8216
    %v8221 = vpack.c.bf16 %v8219, %v8218
    %s8222 = scalar_lea.vmem [#allocation2], 1280
    %v8223 = vld [vmem:[%s8222] sm:$0xf]
    %v8224 = vld [vmem:[%s8222 + $0x4] sm:$0xf]
    %v8225 = vld [vmem:[%s8222 + $0x8] sm:$0xf]
    %v8226 = vld [vmem:[%s8222 + $0xc] sm:$0xf]
    %v8227 = vrot.slane %v8204, 7
    %v8228 = vrot.slane %v8205, 7
    %v8229 = vrot.slane %v8206, 7
    %v8230 = vrot.slane %v8207, 7
    %v8231 = vsel %vm315, %v8229, %v8230
    %v8232 = vsel %vm315, %v8228, %v8229
    %v8233 = vsel %vm315, %v8227, %v8228
    %v8234 = vsel %vm315, %v8230, %v8227
    %v8235 = vmul.f32 %v8234, %v160
    %v8236 = vmul.f32 %v8233, %v161
    %v8237 = vmul.f32 %v8232, %v162
    %v8238 = vmul.f32 %v8231, %v163
    %v8239 = vpack.c.bf16 %v8236, %v8235
    %v8240 = vpack.c.bf16 %v8238, %v8237
    %s8241 = scalar_lea.vmem [#allocation2], 1296
    %v8242 = vld [vmem:[%s8241] sm:$0xf]
    %v8243 = vld [vmem:[%s8241 + $0x4] sm:$0xf]
    %v8244 = vld [vmem:[%s8241 + $0x8] sm:$0xf]
    %v8245 = vld [vmem:[%s8241 + $0xc] sm:$0xf]
    %v8250 = vunpack.c.l.b16 %v8242
    %v8251 = vunpack.c.l.b16 %v8243
    %v8252 = vunpack.c.l.b16 %v8244
    %v8253 = vunpack.c.l.b16 %v8245
    %v8254 = vpack.c.b16 %v8251, %v8250
    %v8255 = vpack.c.b16 %v8253, %v8252
    %v8259 = vsel %vm343, %v8239, 0
    %v8262 = vsel %vm343, %v8240, 0
    %8264 = vmatprep.subr.bf16.mxu0 0
    %8265 = vmatpush1.bf16.msra.mxu0 %v8254
    %8266 = vmatprep.subr.bf16.mxu0 0
    %8267 = vmatpush1.bf16.msra.mxu0 %v8255
    %8268 = vmatprep.subr.bf16.mxu0 0
    %8269 = vmatpush1.bf16.msra.mxu0 0
    %8270 = vmatprep.subr.bf16.mxu0 0
    %8271 = vmatpush1.bf16.msra.mxu0 0
    %8272 = vmatprep.subr.bf16.mxu0 0
    %8273 = vmatpush1.bf16.msra.mxu0 0
    %8274 = vmatprep.subr.bf16.mxu0 0
    %8275 = vmatpush1.bf16.msra.mxu0 0
    %8276 = vmatprep.subr.bf16.mxu0 0
    %8277 = vmatpush1.bf16.msra.mxu0 0
    %8278 = vmatprep.subr.bf16.mxu0 0
    %8279 = vmatpush1.bf16.msra.mxu0 0
    %8280 = vmatprep.subr.bf16.mxu0 0
    %8281 = vmatpush1.bf16.msra.mxu0 0
    %8282 = vmatprep.subr.bf16.mxu0 0
    %8283 = vmatpush1.bf16.msra.mxu0 0
    %8284 = vmatprep.subr.bf16.mxu0 0
    %8285 = vmatpush1.bf16.msra.mxu0 0
    %8286 = vmatprep.subr.bf16.mxu0 0
    %8287 = vmatpush1.bf16.msra.mxu0 0
    %8288 = vmatprep.subr.bf16.mxu0 0
    %8289 = vmatpush1.bf16.msra.mxu0 0
    %8290 = vmatprep.subr.bf16.mxu0 0
    %8291 = vmatpush1.bf16.msra.mxu0 0
    %8292 = vmatprep.subr.bf16.mxu0 0
    %8293 = vmatpush1.bf16.msra.mxu0 0
    %8294 = vmatprep.subr.bf16.mxu0 0
    %8295 = vmatpush1.bf16.msra.mxu0 0
    %8296 = vmatprep.mubr.bf16.mxu0 0
    %8297 = vmatmul.mubr.bf16.gmra.mrb[0].mxu0 %v8259
    %v8298 = vpop.f32.mrb[0].mxu0
    %v8299 = vadd.f32 0.0, %v8298
    %v8300 = vpop.f32.mrb[0].mxu0
    %v8301 = vpop.f32.mrb[0].mxu0
    %v8302 = vadd.f32 0.0, %v8301
    %v8303 = vpop.f32.mrb[0].mxu0
    %8304 = vmatprep.mubr.bf16.mxu0 0
    %8305 = vmatmul.mubr.bf16.gmra.mrb[0].mxu0 %v8262
    %v8306 = vpop.f32.mrb[0].mxu0
    %v8307 = vadd.f32 0.0, %v8306
    %v8308 = vpop.f32.mrb[0].mxu0
    %v8309 = vpop.f32.mrb[0].mxu0
    %v8310 = vadd.f32 0.0, %v8309
    %v8311 = vpop.f32.mrb[0].mxu0
    %8312 = vdwg.mxu0
    %v8317 = vunpack.c.l.b16 %v8223
    %v8318 = vunpack.c.l.b16 %v8224
    %v8319 = vunpack.c.l.b16 %v8225
    %v8320 = vunpack.c.l.b16 %v8226
    %v8321 = vpack.c.b16 %v8318, %v8317
    %v8322 = vpack.c.b16 %v8320, %v8319
    %v8326 = vsel %vm343, %v8220, 0
    %v8329 = vsel %vm343, %v8221, 0
    %8331 = vmatprep.subr.bf16.mxu0 0
    %8332 = vmatpush1.bf16.msra.mxu0 %v8321
    %8333 = vmatprep.subr.bf16.mxu0 0
    %8334 = vmatpush1.bf16.msra.mxu0 %v8322
    %8335 = vmatprep.subr.bf16.mxu0 0
    %8336 = vmatpush1.bf16.msra.mxu0 0
    %8337 = vmatprep.subr.bf16.mxu0 0
    %8338 = vmatpush1.bf16.msra.mxu0 0
    %8339 = vmatprep.subr.bf16.mxu0 0
    %8340 = vmatpush1.bf16.msra.mxu0 0
    %8341 = vmatprep.subr.bf16.mxu0 0
    %8342 = vmatpush1.bf16.msra.mxu0 0
    %8343 = vmatprep.subr.bf16.mxu0 0
    %8344 = vmatpush1.bf16.msra.mxu0 0
    %8345 = vmatprep.subr.bf16.mxu0 0
    %8346 = vmatpush1.bf16.msra.mxu0 0
    %8347 = vmatprep.subr.bf16.mxu0 0
    %8348 = vmatpush1.bf16.msra.mxu0 0
    %8349 = vmatprep.subr.bf16.mxu0 0
    %8350 = vmatpush1.bf16.msra.mxu0 0
    %8351 = vmatprep.subr.bf16.mxu0 0
    %8352 = vmatpush1.bf16.msra.mxu0 0
    %8353 = vmatprep.subr.bf16.mxu0 0
    %8354 = vmatpush1.bf16.msra.mxu0 0
    %8355 = vmatprep.subr.bf16.mxu0 0
    %8356 = vmatpush1.bf16.msra.mxu0 0
    %8357 = vmatprep.subr.bf16.mxu0 0
    %8358 = vmatpush1.bf16.msra.mxu0 0
    %8359 = vmatprep.subr.bf16.mxu0 0
    %8360 = vmatpush1.bf16.msra.mxu0 0
    %8361 = vmatprep.subr.bf16.mxu0 0
    %8362 = vmatpush1.bf16.msra.mxu0 0
    %8363 = vmatprep.mubr.bf16.mxu0 0
    %8364 = vmatmul.mubr.bf16.gmra.mrb[0].mxu0 %v8326
    %v8365 = vpop.f32.mrb[0].mxu0
    %v8366 = vadd.f32 %v8299, %v8365
    %v8367 = vpop.f32.mrb[0].mxu0
    %v8368 = vpop.f32.mrb[0].mxu0
    %v8369 = vadd.f32 %v8302, %v8368
    %v8370 = vpop.f32.mrb[0].mxu0
    %8371 = vmatprep.mubr.bf16.mxu0 0
    %8372 = vmatmul.mubr.bf16.gmra.mrb[0].mxu0 %v8329
    %v8373 = vpop.f32.mrb[0].mxu0
    %v8374 = vadd.f32 %v8307, %v8373
    %v8375 = vpop.f32.mrb[0].mxu0
    %v8376 = vpop.f32.mrb[0].mxu0
    %v8377 = vadd.f32 %v8310, %v8376
    %v8378 = vpop.f32.mrb[0].mxu0
    %8379 = vdwg.mxu0
    %v8380 = vpack.c.bf16 %v8205, %v8204
    %v8381 = vpack.c.bf16 %v8207, %v8206
    %s8382 = scalar_lea.vmem [#allocation2], 1312
    %v8383 = vld [vmem:[%s8382] sm:$0xf]
    %v8384 = vld [vmem:[%s8382 + $0x4] sm:$0xf]
    %v8385 = vld [vmem:[%s8382 + $0x8] sm:$0xf]
    %v8386 = vld [vmem:[%s8382 + $0xc] sm:$0xf]
    %v8391 = vunpack.c.l.b16 %v8383
    %v8392 = vunpack.c.l.b16 %v8384
    %v8393 = vunpack.c.l.b16 %v8385
    %v8394 = vunpack.c.l.b16 %v8386
    %v8395 = vpack.c.b16 %v8392, %v8391
    %v8396 = vpack.c.b16 %v8394, %v8393
    %v8400 = vsel %vm343, %v8380, 0
    %v8403 = vsel %vm343, %v8381, 0
    %8405 = vmatprep.subr.bf16.mxu0 0
    %8406 = vmatpush1.bf16.msra.mxu0 %v8395
    %8407 = vmatprep.subr.bf16.mxu0 0
    %8408 = vmatpush1.bf16.msra.mxu0 %v8396
    %8409 = vmatprep.subr.bf16.mxu0 0
    %8410 = vmatpush1.bf16.msra.mxu0 0
    %8411 = vmatprep.subr.bf16.mxu0 0
    %8412 = vmatpush1.bf16.msra.mxu0 0
    %8413 = vmatprep.subr.bf16.mxu0 0
    %8414 = vmatpush1.bf16.msra.mxu0 0
    %8415 = vmatprep.subr.bf16.mxu0 0
    %8416 = vmatpush1.bf16.msra.mxu0 0
    %8417 = vmatprep.subr.bf16.mxu0 0
    %8418 = vmatpush1.bf16.msra.mxu0 0
    %8419 = vmatprep.subr.bf16.mxu0 0
    %8420 = vmatpush1.bf16.msra.mxu0 0
    %8421 = vmatprep.subr.bf16.mxu0 0
    %8422 = vmatpush1.bf16.msra.mxu0 0
    %8423 = vmatprep.subr.bf16.mxu0 0
    %8424 = vmatpush1.bf16.msra.mxu0 0
    %8425 = vmatprep.subr.bf16.mxu0 0
    %8426 = vmatpush1.bf16.msra.mxu0 0
    %8427 = vmatprep.subr.bf16.mxu0 0
    %8428 = vmatpush1.bf16.msra.mxu0 0
    %8429 = vmatprep.subr.bf16.mxu0 0
    %8430 = vmatpush1.bf16.msra.mxu0 0
    %8431 = vmatprep.subr.bf16.mxu0 0
    %8432 = vmatpush1.bf16.msra.mxu0 0
    %8433 = vmatprep.subr.bf16.mxu0 0
    %8434 = vmatpush1.bf16.msra.mxu0 0
    %8435 = vmatprep.subr.bf16.mxu0 0
    %8436 = vmatpush1.bf16.msra.mxu0 0
    %8437 = vmatprep.mubr.bf16.mxu0 0
    %8438 = vmatmul.mubr.bf16.gmra.mrb[0].mxu0 %v8400
    %v8439 = vpop.f32.mrb[0].mxu0
    %v8440 = vadd.f32 0.0, %v8439
    %v8441 = vpop.f32.mrb[0].mxu0
    %v8442 = vpop.f32.mrb[0].mxu0
    %v8443 = vadd.f32 0.0, %v8442
    %v8444 = vpop.f32.mrb[0].mxu0
    %8445 = vmatprep.mubr.bf16.mxu0 0
    %8446 = vmatmul.mubr.bf16.gmra.mrb[0].mxu0 %v8403
    %v8447 = vpop.f32.mrb[0].mxu0
    %v8448 = vadd.f32 0.0, %v8447
    %v8449 = vpop.f32.mrb[0].mxu0
    %v8450 = vpop.f32.mrb[0].mxu0
    %v8451 = vadd.f32 0.0, %v8450
    %v8452 = vpop.f32.mrb[0].mxu0
    %8453 = vdwg.mxu0
    %v8454 = vadd.f32 %v8366, %v8440
    %v8455 = vadd.f32 %v8369, %v8443
    %v8456 = vadd.f32 %v8374, %v8448
    %v8457 = vadd.f32 %v8377, %v8451
    %v8458 = vrot.slane %v8204, 1
    %v8459 = vrot.slane %v8205, 1
    %v8460 = vrot.slane %v8206, 1
    %v8461 = vrot.slane %v8207, 1
    %v8462 = vsel %vm548, %v8460, %v8461
    %v8463 = vsel %vm548, %v8459, %v8460
    %v8464 = vsel %vm548, %v8458, %v8459
    %v8465 = vsel %vm548, %v8461, %v8458
    %v8466 = vmul.f32 %v8464, %v184
    %v8467 = vmul.f32 %v8463, %v185
    %v8468 = vmul.f32 %v8462, %v186
    %v8469 = vmul.f32 %v8465, %v187
    %v8470 = vpack.c.bf16 %v8467, %v8466
    %v8471 = vpack.c.bf16 %v8469, %v8468
    %s8472 = scalar_lea.vmem [#allocation2], 1328
    %v8473 = vld [vmem:[%s8472] sm:$0xf]
    %v8474 = vld [vmem:[%s8472 + $0x4] sm:$0xf]
    %v8475 = vld [vmem:[%s8472 + $0x8] sm:$0xf]
    %v8476 = vld [vmem:[%s8472 + $0xc] sm:$0xf]
    %v8481 = vunpack.c.l.b16 %v8473
    %v8482 = vunpack.c.l.b16 %v8474
    %v8483 = vunpack.c.l.b16 %v8475
    %v8484 = vunpack.c.l.b16 %v8476
    %v8485 = vpack.c.b16 %v8482, %v8481
    %v8486 = vpack.c.b16 %v8484, %v8483
    %v8490 = vsel %vm343, %v8470, 0
    %v8493 = vsel %vm343, %v8471, 0
    %8495 = vmatprep.subr.bf16.mxu0 0
    %8496 = vmatpush1.bf16.msra.mxu0 %v8485
    %8497 = vmatprep.subr.bf16.mxu0 0
    %8498 = vmatpush1.bf16.msra.mxu0 %v8486
    %8499 = vmatprep.subr.bf16.mxu0 0
    %8500 = vmatpush1.bf16.msra.mxu0 0
    %8501 = vmatprep.subr.bf16.mxu0 0
    %8502 = vmatpush1.bf16.msra.mxu0 0
    %8503 = vmatprep.subr.bf16.mxu0 0
    %8504 = vmatpush1.bf16.msra.mxu0 0
    %8505 = vmatprep.subr.bf16.mxu0 0
    %8506 = vmatpush1.bf16.msra.mxu0 0
    %8507 = vmatprep.subr.bf16.mxu0 0
    %8508 = vmatpush1.bf16.msra.mxu0 0
    %8509 = vmatprep.subr.bf16.mxu0 0
    %8510 = vmatpush1.bf16.msra.mxu0 0
    %8511 = vmatprep.subr.bf16.mxu0 0
    %8512 = vmatpush1.bf16.msra.mxu0 0
    %8513 = vmatprep.subr.bf16.mxu0 0
    %8514 = vmatpush1.bf16.msra.mxu0 0
    %8515 = vmatprep.subr.bf16.mxu0 0
    %8516 = vmatpush1.bf16.msra.mxu0 0
    %8517 = vmatprep.subr.bf16.mxu0 0
    %8518 = vmatpush1.bf16.msra.mxu0 0
    %8519 = vmatprep.subr.bf16.mxu0 0
    %8520 = vmatpush1.bf16.msra.mxu0 0
    %8521 = vmatprep.subr.bf16.mxu0 0
    %8522 = vmatpush1.bf16.msra.mxu0 0
    %8523 = vmatprep.subr.bf16.mxu0 0
    %8524 = vmatpush1.bf16.msra.mxu0 0
    %8525 = vmatprep.subr.bf16.mxu0 0
    %8526 = vmatpush1.bf16.msra.mxu0 0
    %8527 = vmatprep.mubr.bf16.mxu0 0
    %8528 = vmatmul.mubr.bf16.gmra.mrb[0].mxu0 %v8490
    %v8529 = vpop.f32.mrb[0].mxu0
    %v8530 = vadd.f32 0.0, %v8529
    %v8531 = vpop.f32.mrb[0].mxu0
    %v8532 = vpop.f32.mrb[0].mxu0
    %v8533 = vadd.f32 0.0, %v8532
    %v8534 = vpop.f32.mrb[0].mxu0
    %8535 = vmatprep.mubr.bf16.mxu0 0
    %8536 = vmatmul.mubr.bf16.gmra.mrb[0].mxu0 %v8493
    %v8537 = vpop.f32.mrb[0].mxu0
    %v8538 = vadd.f32 0.0, %v8537
    %v8539 = vpop.f32.mrb[0].mxu0
    %v8540 = vpop.f32.mrb[0].mxu0
    %v8541 = vadd.f32 0.0, %v8540
    %v8542 = vpop.f32.mrb[0].mxu0
    %8543 = vdwg.mxu0
    %v8544 = vadd.f32 %v8454, %v8530
    %v8545 = vadd.f32 %v8455, %v8533
    %v8546 = vadd.f32 %v8456, %v8538
    %v8547 = vadd.f32 %v8457, %v8541
    %v8548 = vrot.slane %v8204, 2
    %v8549 = vrot.slane %v8205, 2
    %v8550 = vrot.slane %v8206, 2
    %v8551 = vrot.slane %v8207, 2
    %v8552 = vsel %vm639, %v8550, %v8551
    %v8553 = vsel %vm639, %v8549, %v8550
    %v8554 = vsel %vm639, %v8548, %v8549
    %v8555 = vsel %vm639, %v8551, %v8548
    %v8556 = vmul.f32 %v8554, %v208
    %v8557 = vmul.f32 %v8553, %v209
    %v8558 = vmul.f32 %v8552, %v210
    %v8559 = vmul.f32 %v8555, %v211
    %v8560 = vpack.c.bf16 %v8557, %v8556
    %v8561 = vpack.c.bf16 %v8559, %v8558
    %s8562 = scalar_lea.vmem [#allocation2], 1344
    %v8563 = vld [vmem:[%s8562] sm:$0xf]
    %v8564 = vld [vmem:[%s8562 + $0x4] sm:$0xf]
    %v8565 = vld [vmem:[%s8562 + $0x8] sm:$0xf]
    %v8566 = vld [vmem:[%s8562 + $0xc] sm:$0xf]
    %v8571 = vunpack.c.l.b16 %v8563
    %v8572 = vunpack.c.l.b16 %v8564
    %v8573 = vunpack.c.l.b16 %v8565
    %v8574 = vunpack.c.l.b16 %v8566
    %v8575 = vpack.c.b16 %v8572, %v8571
    %v8576 = vpack.c.b16 %v8574, %v8573
    %v8580 = vsel %vm343, %v8560, 0
    %v8583 = vsel %vm343, %v8561, 0
    %8585 = vmatprep.subr.bf16.mxu0 0
    %8586 = vmatpush1.bf16.msra.mxu0 %v8575
    %8587 = vmatprep.subr.bf16.mxu0 0
    %8588 = vmatpush1.bf16.msra.mxu0 %v8576
    %8589 = vmatprep.subr.bf16.mxu0 0
    %8590 = vmatpush1.bf16.msra.mxu0 0
    %8591 = vmatprep.subr.bf16.mxu0 0
    %8592 = vmatpush1.bf16.msra.mxu0 0
    %8593 = vmatprep.subr.bf16.mxu0 0
    %8594 = vmatpush1.bf16.msra.mxu0 0
    %8595 = vmatprep.subr.bf16.mxu0 0
    %8596 = vmatpush1.bf16.msra.mxu0 0
    %8597 = vmatprep.subr.bf16.mxu0 0
    %8598 = vmatpush1.bf16.msra.mxu0 0
    %8599 = vmatprep.subr.bf16.mxu0 0
    %8600 = vmatpush1.bf16.msra.mxu0 0
    %8601 = vmatprep.subr.bf16.mxu0 0
    %8602 = vmatpush1.bf16.msra.mxu0 0
    %8603 = vmatprep.subr.bf16.mxu0 0
    %8604 = vmatpush1.bf16.msra.mxu0 0
    %8605 = vmatprep.subr.bf16.mxu0 0
    %8606 = vmatpush1.bf16.msra.mxu0 0
    %8607 = vmatprep.subr.bf16.mxu0 0
    %8608 = vmatpush1.bf16.msra.mxu0 0
    %8609 = vmatprep.subr.bf16.mxu0 0
    %8610 = vmatpush1.bf16.msra.mxu0 0
    %8611 = vmatprep.subr.bf16.mxu0 0
    %8612 = vmatpush1.bf16.msra.mxu0 0
    %8613 = vmatprep.subr.bf16.mxu0 0
    %8614 = vmatpush1.bf16.msra.mxu0 0
    %8615 = vmatprep.subr.bf16.mxu0 0
    %8616 = vmatpush1.bf16.msra.mxu0 0
    %8617 = vmatprep.mubr.bf16.mxu0 0
    %8618 = vmatmul.mubr.bf16.gmra.mrb[0].mxu0 %v8580
    %v8619 = vpop.f32.mrb[0].mxu0
    %v8620 = vadd.f32 0.0, %v8619
    %v8621 = vpop.f32.mrb[0].mxu0
    %v8622 = vpop.f32.mrb[0].mxu0
    %v8623 = vadd.f32 0.0, %v8622
    %v8624 = vpop.f32.mrb[0].mxu0
    %8625 = vmatprep.mubr.bf16.mxu0 0
    %8626 = vmatmul.mubr.bf16.gmra.mrb[0].mxu0 %v8583
    %v8627 = vpop.f32.mrb[0].mxu0
    %v8628 = vadd.f32 0.0, %v8627
    %v8629 = vpop.f32.mrb[0].mxu0
    %v8630 = vpop.f32.mrb[0].mxu0
    %v8631 = vadd.f32 0.0, %v8630
    %v8632 = vpop.f32.mrb[0].mxu0
    %8633 = vdwg.mxu0
    %v8634 = vadd.f32 %v8544, %v8620
    %v8635 = vadd.f32 %v8545, %v8623
    %v8636 = vadd.f32 %v8546, %v8628
    %v8637 = vadd.f32 %v8547, %v8631
    %s8638 = scalar_lea.vmem %s4, 32
    %v8639 = vld [vmem:[%s8638] sm:$0x1]
    %v8641 = vlaneseq
    %v8642 = vshrl.u32 %v8641, 7
    %v8643 = vsub.s32 0, %v8642
    %v8644 = vrot.slane %v8639, %v8643
    %v8646 = vadd.f32 %v8634, %v8644
    %v8647 = vadd.f32 %v8635, %v8644
    %v8648 = vadd.f32 %v8636, %v8644
    %v8649 = vadd.f32 %v8637, %v8644
    %v8650 = vtanh.pop %v8646
    %v8651 = vtanh.pop %v8647
    %v8652 = vtanh.pop %v8648
    %v8653 = vtanh.pop %v8649
    %v8654 = vmul.f32 %v8650, 0.5
    %v8655 = vmul.f32 %v8651, 0.5
    %v8656 = vmul.f32 %v8652, 0.5
    %v8657 = vmul.f32 %v8653, 0.5
    %v8658 = vadd.f32 %v8654, 0.5
    %v8659 = vadd.f32 %v8655, 0.5
    %v8660 = vadd.f32 %v8656, 0.5
    %v8661 = vadd.f32 %v8657, 0.5
    %8666 = vrot.lane.b32.xlu0 %v8658, 96
    %v8667 = vpop.permute.xlu0 %8666
    %8668 = vrot.lane.b32.xlu0 %v8659, 96
    %v8669 = vpop.permute.xlu0 %8668
    %8670 = vrot.lane.b32.xlu0 %v8660, 96
    %v8671 = vpop.permute.xlu0 %8670
    %8672 = vrot.lane.b32.xlu0 %v8661, 96
    %v8673 = vpop.permute.xlu0 %8672
    %v8678 = vmul.f32 %v8650, %v8667
    %v8679 = vmul.f32 %v8651, %v8669
    %v8680 = vmul.f32 %v8652, %v8671
    %v8681 = vmul.f32 %v8653, %v8673
    %v8682 = vpack.c.bf16 %v8679, %v8678
    %v8683 = vpack.c.bf16 %v8681, %v8680
    %s8684 = scalar_lea.vmem [#allocation2], 1536
    %v8685 = vld [vmem:[%s8684] sm:$0xf]
    %v8686 = vld [vmem:[%s8684 + $0x4] sm:$0xf]
    %v8687 = vld [vmem:[%s8684 + $0x8] sm:$0xf]
    %v8688 = vld [vmem:[%s8684 + $0xc] sm:$0xf]
    %s8689 = scalar_lea.vmem %s4, 36
    %v8690 = vld [vmem:[%s8689] sm:$0x1]
    %v8692 = vlaneseq
    %v8693 = vshrl.u32 %v8692, 7
    %v8694 = vsub.s32 0, %v8693
    %v8695 = vrot.slane %v8690, %v8694
    %v8701 = vunpack.c.l.b16 %v8685
    %v8702 = vunpack.c.l.b16 %v8686
    %v8703 = vunpack.c.l.b16 %v8687
    %v8704 = vunpack.c.l.b16 %v8688
    %v8705 = vpack.c.b16 %v8702, %v8701
    %v8706 = vpack.c.b16 %v8704, %v8703
    %v8710 = vsel %vm343, %v8682, 0
    %v8713 = vsel %vm343, %v8683, 0
    %8715 = vmatprep.subr.bf16.mxu0 0
    %8716 = vmatpush1.bf16.msra.mxu0 %v8705
    %8717 = vmatprep.subr.bf16.mxu0 0
    %8718 = vmatpush1.bf16.msra.mxu0 %v8706
    %8719 = vmatprep.subr.bf16.mxu0 0
    %8720 = vmatpush1.bf16.msra.mxu0 0
    %8721 = vmatprep.subr.bf16.mxu0 0
    %8722 = vmatpush1.bf16.msra.mxu0 0
    %8723 = vmatprep.subr.bf16.mxu0 0
    %8724 = vmatpush1.bf16.msra.mxu0 0
    %8725 = vmatprep.subr.bf16.mxu0 0
    %8726 = vmatpush1.bf16.msra.mxu0 0
    %8727 = vmatprep.subr.bf16.mxu0 0
    %8728 = vmatpush1.bf16.msra.mxu0 0
    %8729 = vmatprep.subr.bf16.mxu0 0
    %8730 = vmatpush1.bf16.msra.mxu0 0
    %8731 = vmatprep.subr.bf16.mxu0 0
    %8732 = vmatpush1.bf16.msra.mxu0 0
    %8733 = vmatprep.subr.bf16.mxu0 0
    %8734 = vmatpush1.bf16.msra.mxu0 0
    %8735 = vmatprep.subr.bf16.mxu0 0
    %8736 = vmatpush1.bf16.msra.mxu0 0
    %8737 = vmatprep.subr.bf16.mxu0 0
    %8738 = vmatpush1.bf16.msra.mxu0 0
    %8739 = vmatprep.subr.bf16.mxu0 0
    %8740 = vmatpush1.bf16.msra.mxu0 0
    %8741 = vmatprep.subr.bf16.mxu0 0
    %8742 = vmatpush1.bf16.msra.mxu0 0
    %8743 = vmatprep.subr.bf16.mxu0 0
    %8744 = vmatpush1.bf16.msra.mxu0 0
    %8745 = vmatprep.subr.bf16.mxu0 0
    %8746 = vmatpush1.bf16.msra.mxu0 0
    %8747 = vmatprep.mubr.bf16.mxu0 0
    %8748 = vmatmul.mubr.bf16.gmra.mrb[0].mxu0 %v8710
    %v8749 = vpop.f32.mrb[0].mxu0
    %v8750 = vadd.f32 %v8695, %v8749
    %v8751 = vpop.f32.mrb[0].mxu0
    %v8752 = vpop.f32.mrb[0].mxu0
    %v8753 = vadd.f32 %v8695, %v8752
    %v8754 = vpop.f32.mrb[0].mxu0
    %8755 = vmatprep.mubr.bf16.mxu0 0
    %8756 = vmatmul.mubr.bf16.gmra.mrb[0].mxu0 %v8713
    %v8757 = vpop.f32.mrb[0].mxu0
    %v8758 = vadd.f32 %v8695, %v8757
    %v8759 = vpop.f32.mrb[0].mxu0
    %v8760 = vpop.f32.mrb[0].mxu0
    %v8761 = vadd.f32 %v8695, %v8760
    %v8762 = vpop.f32.mrb[0].mxu0
    %8763 = vdwg.mxu0
    %v8764 = vadd.f32 %v8204, %v8750
    %v8765 = vadd.f32 %v8205, %v8753
    %v8766 = vadd.f32 %v8206, %v8758
    %v8767 = vadd.f32 %v8207, %v8761
    %v8768 = vmul.f32 %v8764, %v46
    %v8769 = vmul.f32 %v8765, %v51
    %v8770 = vmul.f32 %v8766, %v56
    %v8771 = vmul.f32 %v8767, %v61
    %v8772 = vadd.f32 %v8186, %v8750
    %v8773 = vadd.f32 %v8189, %v8753
    %v8774 = vadd.f32 %v8194, %v8758
    %v8775 = vadd.f32 %v8197, %v8761
    %v8776 = vrot.slane %v8768, 6
    %v8777 = vrot.slane %v8769, 6
    %v8778 = vrot.slane %v8770, 6
    %v8779 = vrot.slane %v8771, 6
    %v8780 = vsel %vm296, %v8778, %v8779
    %v8781 = vsel %vm296, %v8777, %v8778
    %v8782 = vsel %vm296, %v8776, %v8777
    %v8783 = vsel %vm296, %v8779, %v8776
    %v8784 = vmul.f32 %v8783, %v136
    %v8785 = vmul.f32 %v8782, %v137
    %v8786 = vmul.f32 %v8781, %v138
    %v8787 = vmul.f32 %v8780, %v139
    %v8788 = vpack.c.bf16 %v8785, %v8784
    %v8789 = vpack.c.bf16 %v8787, %v8786
    %s8790 = scalar_lea.vmem [#allocation2], 1360
    %v8791 = vld [vmem:[%s8790] sm:$0xf]
    %v8792 = vld [vmem:[%s8790 + $0x4] sm:$0xf]
    %v8793 = vld [vmem:[%s8790 + $0x8] sm:$0xf]
    %v8794 = vld [vmem:[%s8790 + $0xc] sm:$0xf]
    %v8795 = vrot.slane %v8768, 7
    %v8796 = vrot.slane %v8769, 7
    %v8797 = vrot.slane %v8770, 7
    %v8798 = vrot.slane %v8771, 7
    %v8799 = vsel %vm315, %v8797, %v8798
    %v8800 = vsel %vm315, %v8796, %v8797
    %v8801 = vsel %vm315, %v8795, %v8796
    %v8802 = vsel %vm315, %v8798, %v8795
    %v8803 = vmul.f32 %v8802, %v160
    %v8804 = vmul.f32 %v8801, %v161
    %v8805 = vmul.f32 %v8800, %v162
    %v8806 = vmul.f32 %v8799, %v163
    %v8807 = vpack.c.bf16 %v8804, %v8803
    %v8808 = vpack.c.bf16 %v8806, %v8805
    %s8809 = scalar_lea.vmem [#allocation2], 1376
    %v8810 = vld [vmem:[%s8809] sm:$0xf]
    %v8811 = vld [vmem:[%s8809 + $0x4] sm:$0xf]
    %v8812 = vld [vmem:[%s8809 + $0x8] sm:$0xf]
    %v8813 = vld [vmem:[%s8809 + $0xc] sm:$0xf]
    %v8818 = vunpack.c.l.b16 %v8810
    %v8819 = vunpack.c.l.b16 %v8811
    %v8820 = vunpack.c.l.b16 %v8812
    %v8821 = vunpack.c.l.b16 %v8813
    %v8822 = vpack.c.b16 %v8819, %v8818
    %v8823 = vpack.c.b16 %v8821, %v8820
    %v8827 = vsel %vm343, %v8807, 0
    %v8830 = vsel %vm343, %v8808, 0
    %8832 = vmatprep.subr.bf16.mxu0 0
    %8833 = vmatpush1.bf16.msra.mxu0 %v8822
    %8834 = vmatprep.subr.bf16.mxu0 0
    %8835 = vmatpush1.bf16.msra.mxu0 %v8823
    %8836 = vmatprep.subr.bf16.mxu0 0
    %8837 = vmatpush1.bf16.msra.mxu0 0
    %8838 = vmatprep.subr.bf16.mxu0 0
    %8839 = vmatpush1.bf16.msra.mxu0 0
    %8840 = vmatprep.subr.bf16.mxu0 0
    %8841 = vmatpush1.bf16.msra.mxu0 0
    %8842 = vmatprep.subr.bf16.mxu0 0
    %8843 = vmatpush1.bf16.msra.mxu0 0
    %8844 = vmatprep.subr.bf16.mxu0 0
    %8845 = vmatpush1.bf16.msra.mxu0 0
    %8846 = vmatprep.subr.bf16.mxu0 0
    %8847 = vmatpush1.bf16.msra.mxu0 0
    %8848 = vmatprep.subr.bf16.mxu0 0
    %8849 = vmatpush1.bf16.msra.mxu0 0
    %8850 = vmatprep.subr.bf16.mxu0 0
    %8851 = vmatpush1.bf16.msra.mxu0 0
    %8852 = vmatprep.subr.bf16.mxu0 0
    %8853 = vmatpush1.bf16.msra.mxu0 0
    %8854 = vmatprep.subr.bf16.mxu0 0
    %8855 = vmatpush1.bf16.msra.mxu0 0
    %8856 = vmatprep.subr.bf16.mxu0 0
    %8857 = vmatpush1.bf16.msra.mxu0 0
    %8858 = vmatprep.subr.bf16.mxu0 0
    %8859 = vmatpush1.bf16.msra.mxu0 0
    %8860 = vmatprep.subr.bf16.mxu0 0
    %8861 = vmatpush1.bf16.msra.mxu0 0
    %8862 = vmatprep.subr.bf16.mxu0 0
    %8863 = vmatpush1.bf16.msra.mxu0 0
    %8864 = vmatprep.mubr.bf16.mxu0 0
    %8865 = vmatmul.mubr.bf16.gmra.mrb[0].mxu0 %v8827
    %v8866 = vpop.f32.mrb[0].mxu0
    %v8867 = vadd.f32 0.0, %v8866
    %v8868 = vpop.f32.mrb[0].mxu0
    %v8869 = vpop.f32.mrb[0].mxu0
    %v8870 = vadd.f32 0.0, %v8869
    %v8871 = vpop.f32.mrb[0].mxu0
    %8872 = vmatprep.mubr.bf16.mxu0 0
    %8873 = vmatmul.mubr.bf16.gmra.mrb[0].mxu0 %v8830
    %v8874 = vpop.f32.mrb[0].mxu0
    %v8875 = vadd.f32 0.0, %v8874
    %v8876 = vpop.f32.mrb[0].mxu0
    %v8877 = vpop.f32.mrb[0].mxu0
    %v8878 = vadd.f32 0.0, %v8877
    %v8879 = vpop.f32.mrb[0].mxu0
    %8880 = vdwg.mxu0
    %v8885 = vunpack.c.l.b16 %v8791
    %v8886 = vunpack.c.l.b16 %v8792
    %v8887 = vunpack.c.l.b16 %v8793
    %v8888 = vunpack.c.l.b16 %v8794
    %v8889 = vpack.c.b16 %v8886, %v8885
    %v8890 = vpack.c.b16 %v8888, %v8887
    %v8894 = vsel %vm343, %v8788, 0
    %v8897 = vsel %vm343, %v8789, 0
    %8899 = vmatprep.subr.bf16.mxu0 0
    %8900 = vmatpush1.bf16.msra.mxu0 %v8889
    %8901 = vmatprep.subr.bf16.mxu0 0
    %8902 = vmatpush1.bf16.msra.mxu0 %v8890
    %8903 = vmatprep.subr.bf16.mxu0 0
    %8904 = vmatpush1.bf16.msra.mxu0 0
    %8905 = vmatprep.subr.bf16.mxu0 0
    %8906 = vmatpush1.bf16.msra.mxu0 0
    %8907 = vmatprep.subr.bf16.mxu0 0
    %8908 = vmatpush1.bf16.msra.mxu0 0
    %8909 = vmatprep.subr.bf16.mxu0 0
    %8910 = vmatpush1.bf16.msra.mxu0 0
    %8911 = vmatprep.subr.bf16.mxu0 0
    %8912 = vmatpush1.bf16.msra.mxu0 0
    %8913 = vmatprep.subr.bf16.mxu0 0
    %8914 = vmatpush1.bf16.msra.mxu0 0
    %8915 = vmatprep.subr.bf16.mxu0 0
    %8916 = vmatpush1.bf16.msra.mxu0 0
    %8917 = vmatprep.subr.bf16.mxu0 0
    %8918 = vmatpush1.bf16.msra.mxu0 0
    %8919 = vmatprep.subr.bf16.mxu0 0
    %8920 = vmatpush1.bf16.msra.mxu0 0
    %8921 = vmatprep.subr.bf16.mxu0 0
    %8922 = vmatpush1.bf16.msra.mxu0 0
    %8923 = vmatprep.subr.bf16.mxu0 0
    %8924 = vmatpush1.bf16.msra.mxu0 0
    %8925 = vmatprep.subr.bf16.mxu0 0
    %8926 = vmatpush1.bf16.msra.mxu0 0
    %8927 = vmatprep.subr.bf16.mxu0 0
    %8928 = vmatpush1.bf16.msra.mxu0 0
    %8929 = vmatprep.subr.bf16.mxu0 0
    %8930 = vmatpush1.bf16.msra.mxu0 0
    %8931 = vmatprep.mubr.bf16.mxu0 0
    %8932 = vmatmul.mubr.bf16.gmra.mrb[0].mxu0 %v8894
    %v8933 = vpop.f32.mrb[0].mxu0
    %v8934 = vadd.f32 %v8867, %v8933
    %v8935 = vpop.f32.mrb[0].mxu0
    %v8936 = vpop.f32.mrb[0].mxu0
    %v8937 = vadd.f32 %v8870, %v8936
    %v8938 = vpop.f32.mrb[0].mxu0
    %8939 = vmatprep.mubr.bf16.mxu0 0
    %8940 = vmatmul.mubr.bf16.gmra.mrb[0].mxu0 %v8897
    %v8941 = vpop.f32.mrb[0].mxu0
    %v8942 = vadd.f32 %v8875, %v8941
    %v8943 = vpop.f32.mrb[0].mxu0
    %v8944 = vpop.f32.mrb[0].mxu0
    %v8945 = vadd.f32 %v8878, %v8944
    %v8946 = vpop.f32.mrb[0].mxu0
    %8947 = vdwg.mxu0
    %v8948 = vpack.c.bf16 %v8769, %v8768
    %v8949 = vpack.c.bf16 %v8771, %v8770
    %s8950 = scalar_lea.vmem [#allocation2], 1392
    %v8951 = vld [vmem:[%s8950] sm:$0xf]
    %v8952 = vld [vmem:[%s8950 + $0x4] sm:$0xf]
    %v8953 = vld [vmem:[%s8950 + $0x8] sm:$0xf]
    %v8954 = vld [vmem:[%s8950 + $0xc] sm:$0xf]
    %v8959 = vunpack.c.l.b16 %v8951
    %v8960 = vunpack.c.l.b16 %v8952
    %v8961 = vunpack.c.l.b16 %v8953
    %v8962 = vunpack.c.l.b16 %v8954
    %v8963 = vpack.c.b16 %v8960, %v8959
    %v8964 = vpack.c.b16 %v8962, %v8961
    %v8968 = vsel %vm343, %v8948, 0
    %v8971 = vsel %vm343, %v8949, 0
    %8973 = vmatprep.subr.bf16.mxu0 0
    %8974 = vmatpush1.bf16.msra.mxu0 %v8963
    %8975 = vmatprep.subr.bf16.mxu0 0
    %8976 = vmatpush1.bf16.msra.mxu0 %v8964
    %8977 = vmatprep.subr.bf16.mxu0 0
    %8978 = vmatpush1.bf16.msra.mxu0 0
    %8979 = vmatprep.subr.bf16.mxu0 0
    %8980 = vmatpush1.bf16.msra.mxu0 0
    %8981 = vmatprep.subr.bf16.mxu0 0
    %8982 = vmatpush1.bf16.msra.mxu0 0
    %8983 = vmatprep.subr.bf16.mxu0 0
    %8984 = vmatpush1.bf16.msra.mxu0 0
    %8985 = vmatprep.subr.bf16.mxu0 0
    %8986 = vmatpush1.bf16.msra.mxu0 0
    %8987 = vmatprep.subr.bf16.mxu0 0
    %8988 = vmatpush1.bf16.msra.mxu0 0
    %8989 = vmatprep.subr.bf16.mxu0 0
    %8990 = vmatpush1.bf16.msra.mxu0 0
    %8991 = vmatprep.subr.bf16.mxu0 0
    %8992 = vmatpush1.bf16.msra.mxu0 0
    %8993 = vmatprep.subr.bf16.mxu0 0
    %8994 = vmatpush1.bf16.msra.mxu0 0
    %8995 = vmatprep.subr.bf16.mxu0 0
    %8996 = vmatpush1.bf16.msra.mxu0 0
    %8997 = vmatprep.subr.bf16.mxu0 0
    %8998 = vmatpush1.bf16.msra.mxu0 0
    %8999 = vmatprep.subr.bf16.mxu0 0
    %9000 = vmatpush1.bf16.msra.mxu0 0
    %9001 = vmatprep.subr.bf16.mxu0 0
    %9002 = vmatpush1.bf16.msra.mxu0 0
    %9003 = vmatprep.subr.bf16.mxu0 0
    %9004 = vmatpush1.bf16.msra.mxu0 0
    %9005 = vmatprep.mubr.bf16.mxu0 0
    %9006 = vmatmul.mubr.bf16.gmra.mrb[0].mxu0 %v8968
    %v9007 = vpop.f32.mrb[0].mxu0
    %v9008 = vadd.f32 0.0, %v9007
    %v9009 = vpop.f32.mrb[0].mxu0
    %v9010 = vpop.f32.mrb[0].mxu0
    %v9011 = vadd.f32 0.0, %v9010
    %v9012 = vpop.f32.mrb[0].mxu0
    %9013 = vmatprep.mubr.bf16.mxu0 0
    %9014 = vmatmul.mubr.bf16.gmra.mrb[0].mxu0 %v8971
    %v9015 = vpop.f32.mrb[0].mxu0
    %v9016 = vadd.f32 0.0, %v9015
    %v9017 = vpop.f32.mrb[0].mxu0
    %v9018 = vpop.f32.mrb[0].mxu0
    %v9019 = vadd.f32 0.0, %v9018
    %v9020 = vpop.f32.mrb[0].mxu0
    %9021 = vdwg.mxu0
    %v9022 = vadd.f32 %v8934, %v9008
    %v9023 = vadd.f32 %v8937, %v9011
    %v9024 = vadd.f32 %v8942, %v9016
    %v9025 = vadd.f32 %v8945, %v9019
    %v9026 = vrot.slane %v8768, 1
    %v9027 = vrot.slane %v8769, 1
    %v9028 = vrot.slane %v8770, 1
    %v9029 = vrot.slane %v8771, 1
    %v9030 = vsel %vm548, %v9028, %v9029
    %v9031 = vsel %vm548, %v9027, %v9028
    %v9032 = vsel %vm548, %v9026, %v9027
    %v9033 = vsel %vm548, %v9029, %v9026
    %v9034 = vmul.f32 %v9032, %v184
    %v9035 = vmul.f32 %v9031, %v185
    %v9036 = vmul.f32 %v9030, %v186
    %v9037 = vmul.f32 %v9033, %v187
    %v9038 = vpack.c.bf16 %v9035, %v9034
    %v9039 = vpack.c.bf16 %v9037, %v9036
    %s9040 = scalar_lea.vmem [#allocation2], 1408
    %v9041 = vld [vmem:[%s9040] sm:$0xf]
    %v9042 = vld [vmem:[%s9040 + $0x4] sm:$0xf]
    %v9043 = vld [vmem:[%s9040 + $0x8] sm:$0xf]
    %v9044 = vld [vmem:[%s9040 + $0xc] sm:$0xf]
    %v9049 = vunpack.c.l.b16 %v9041
    %v9050 = vunpack.c.l.b16 %v9042
    %v9051 = vunpack.c.l.b16 %v9043
    %v9052 = vunpack.c.l.b16 %v9044
    %v9053 = vpack.c.b16 %v9050, %v9049
    %v9054 = vpack.c.b16 %v9052, %v9051
    %v9058 = vsel %vm343, %v9038, 0
    %v9061 = vsel %vm343, %v9039, 0
    %9063 = vmatprep.subr.bf16.mxu0 0
    %9064 = vmatpush1.bf16.msra.mxu0 %v9053
    %9065 = vmatprep.subr.bf16.mxu0 0
    %9066 = vmatpush1.bf16.msra.mxu0 %v9054
    %9067 = vmatprep.subr.bf16.mxu0 0
    %9068 = vmatpush1.bf16.msra.mxu0 0
    %9069 = vmatprep.subr.bf16.mxu0 0
    %9070 = vmatpush1.bf16.msra.mxu0 0
    %9071 = vmatprep.subr.bf16.mxu0 0
    %9072 = vmatpush1.bf16.msra.mxu0 0
    %9073 = vmatprep.subr.bf16.mxu0 0
    %9074 = vmatpush1.bf16.msra.mxu0 0
    %9075 = vmatprep.subr.bf16.mxu0 0
    %9076 = vmatpush1.bf16.msra.mxu0 0
    %9077 = vmatprep.subr.bf16.mxu0 0
    %9078 = vmatpush1.bf16.msra.mxu0 0
    %9079 = vmatprep.subr.bf16.mxu0 0
    %9080 = vmatpush1.bf16.msra.mxu0 0
    %9081 = vmatprep.subr.bf16.mxu0 0
    %9082 = vmatpush1.bf16.msra.mxu0 0
    %9083 = vmatprep.subr.bf16.mxu0 0
    %9084 = vmatpush1.bf16.msra.mxu0 0
    %9085 = vmatprep.subr.bf16.mxu0 0
    %9086 = vmatpush1.bf16.msra.mxu0 0
    %9087 = vmatprep.subr.bf16.mxu0 0
    %9088 = vmatpush1.bf16.msra.mxu0 0
    %9089 = vmatprep.subr.bf16.mxu0 0
    %9090 = vmatpush1.bf16.msra.mxu0 0
    %9091 = vmatprep.subr.bf16.mxu0 0
    %9092 = vmatpush1.bf16.msra.mxu0 0
    %9093 = vmatprep.subr.bf16.mxu0 0
    %9094 = vmatpush1.bf16.msra.mxu0 0
    %9095 = vmatprep.mubr.bf16.mxu0 0
    %9096 = vmatmul.mubr.bf16.gmra.mrb[0].mxu0 %v9058
    %v9097 = vpop.f32.mrb[0].mxu0
    %v9098 = vadd.f32 0.0, %v9097
    %v9099 = vpop.f32.mrb[0].mxu0
    %v9100 = vpop.f32.mrb[0].mxu0
    %v9101 = vadd.f32 0.0, %v9100
    %v9102 = vpop.f32.mrb[0].mxu0
    %9103 = vmatprep.mubr.bf16.mxu0 0
    %9104 = vmatmul.mubr.bf16.gmra.mrb[0].mxu0 %v9061
    %v9105 = vpop.f32.mrb[0].mxu0
    %v9106 = vadd.f32 0.0, %v9105
    %v9107 = vpop.f32.mrb[0].mxu0
    %v9108 = vpop.f32.mrb[0].mxu0
    %v9109 = vadd.f32 0.0, %v9108
    %v9110 = vpop.f32.mrb[0].mxu0
    %9111 = vdwg.mxu0
    %v9112 = vadd.f32 %v9022, %v9098
    %v9113 = vadd.f32 %v9023, %v9101
    %v9114 = vadd.f32 %v9024, %v9106
    %v9115 = vadd.f32 %v9025, %v9109
    %v9116 = vrot.slane %v8768, 2
    %v9117 = vrot.slane %v8769, 2
    %v9118 = vrot.slane %v8770, 2
    %v9119 = vrot.slane %v8771, 2
    %v9120 = vsel %vm639, %v9118, %v9119
    %v9121 = vsel %vm639, %v9117, %v9118
    %v9122 = vsel %vm639, %v9116, %v9117
    %v9123 = vsel %vm639, %v9119, %v9116
    %v9124 = vmul.f32 %v9122, %v208
    %v9125 = vmul.f32 %v9121, %v209
    %v9126 = vmul.f32 %v9120, %v210
    %v9127 = vmul.f32 %v9123, %v211
    %v9128 = vpack.c.bf16 %v9125, %v9124
    %v9129 = vpack.c.bf16 %v9127, %v9126
    %s9130 = scalar_lea.vmem [#allocation2], 1424
    %v9131 = vld [vmem:[%s9130] sm:$0xf]
    %v9132 = vld [vmem:[%s9130 + $0x4] sm:$0xf]
    %v9133 = vld [vmem:[%s9130 + $0x8] sm:$0xf]
    %v9134 = vld [vmem:[%s9130 + $0xc] sm:$0xf]
    %v9139 = vunpack.c.l.b16 %v9131
    %v9140 = vunpack.c.l.b16 %v9132
    %v9141 = vunpack.c.l.b16 %v9133
    %v9142 = vunpack.c.l.b16 %v9134
    %v9143 = vpack.c.b16 %v9140, %v9139
    %v9144 = vpack.c.b16 %v9142, %v9141
    %v9148 = vsel %vm343, %v9128, 0
    %v9151 = vsel %vm343, %v9129, 0
    %9153 = vmatprep.subr.bf16.mxu0 0
    %9154 = vmatpush1.bf16.msra.mxu0 %v9143
    %9155 = vmatprep.subr.bf16.mxu0 0
    %9156 = vmatpush1.bf16.msra.mxu0 %v9144
    %9157 = vmatprep.subr.bf16.mxu0 0
    %9158 = vmatpush1.bf16.msra.mxu0 0
    %9159 = vmatprep.subr.bf16.mxu0 0
    %9160 = vmatpush1.bf16.msra.mxu0 0
    %9161 = vmatprep.subr.bf16.mxu0 0
    %9162 = vmatpush1.bf16.msra.mxu0 0
    %9163 = vmatprep.subr.bf16.mxu0 0
    %9164 = vmatpush1.bf16.msra.mxu0 0
    %9165 = vmatprep.subr.bf16.mxu0 0
    %9166 = vmatpush1.bf16.msra.mxu0 0
    %9167 = vmatprep.subr.bf16.mxu0 0
    %9168 = vmatpush1.bf16.msra.mxu0 0
    %9169 = vmatprep.subr.bf16.mxu0 0
    %9170 = vmatpush1.bf16.msra.mxu0 0
    %9171 = vmatprep.subr.bf16.mxu0 0
    %9172 = vmatpush1.bf16.msra.mxu0 0
    %9173 = vmatprep.subr.bf16.mxu0 0
    %9174 = vmatpush1.bf16.msra.mxu0 0
    %9175 = vmatprep.subr.bf16.mxu0 0
    %9176 = vmatpush1.bf16.msra.mxu0 0
    %9177 = vmatprep.subr.bf16.mxu0 0
    %9178 = vmatpush1.bf16.msra.mxu0 0
    %9179 = vmatprep.subr.bf16.mxu0 0
    %9180 = vmatpush1.bf16.msra.mxu0 0
    %9181 = vmatprep.subr.bf16.mxu0 0
    %9182 = vmatpush1.bf16.msra.mxu0 0
    %9183 = vmatprep.subr.bf16.mxu0 0
    %9184 = vmatpush1.bf16.msra.mxu0 0
    %9185 = vmatprep.mubr.bf16.mxu0 0
    %9186 = vmatmul.mubr.bf16.gmra.mrb[0].mxu0 %v9148
    %v9187 = vpop.f32.mrb[0].mxu0
    %v9188 = vadd.f32 0.0, %v9187
    %v9189 = vpop.f32.mrb[0].mxu0
    %v9190 = vpop.f32.mrb[0].mxu0
    %v9191 = vadd.f32 0.0, %v9190
    %v9192 = vpop.f32.mrb[0].mxu0
    %9193 = vmatprep.mubr.bf16.mxu0 0
    %9194 = vmatmul.mubr.bf16.gmra.mrb[0].mxu0 %v9151
    %v9195 = vpop.f32.mrb[0].mxu0
    %v9196 = vadd.f32 0.0, %v9195
    %v9197 = vpop.f32.mrb[0].mxu0
    %v9198 = vpop.f32.mrb[0].mxu0
    %v9199 = vadd.f32 0.0, %v9198
    %v9200 = vpop.f32.mrb[0].mxu0
    %9201 = vdwg.mxu0
    %v9202 = vadd.f32 %v9112, %v9188
    %v9203 = vadd.f32 %v9113, %v9191
    %v9204 = vadd.f32 %v9114, %v9196
    %v9205 = vadd.f32 %v9115, %v9199
    %s9206 = scalar_lea.vmem %s4, 33
    %v9207 = vld [vmem:[%s9206] sm:$0x1]
    %v9209 = vlaneseq
    %v9210 = vshrl.u32 %v9209, 7
    %v9211 = vsub.s32 0, %v9210
    %v9212 = vrot.slane %v9207, %v9211
    %v9214 = vadd.f32 %v9202, %v9212
    %v9215 = vadd.f32 %v9203, %v9212
    %v9216 = vadd.f32 %v9204, %v9212
    %v9217 = vadd.f32 %v9205, %v9212
    %v9218 = vtanh.pop %v9214
    %v9219 = vtanh.pop %v9215
    %v9220 = vtanh.pop %v9216
    %v9221 = vtanh.pop %v9217
    %v9222 = vmul.f32 %v9218, 0.5
    %v9223 = vmul.f32 %v9219, 0.5
    %v9224 = vmul.f32 %v9220, 0.5
    %v9225 = vmul.f32 %v9221, 0.5
    %v9226 = vadd.f32 %v9222, 0.5
    %v9227 = vadd.f32 %v9223, 0.5
    %v9228 = vadd.f32 %v9224, 0.5
    %v9229 = vadd.f32 %v9225, 0.5
    %9234 = vrot.lane.b32.xlu0 %v9226, 96
    %v9235 = vpop.permute.xlu0 %9234
    %9236 = vrot.lane.b32.xlu0 %v9227, 96
    %v9237 = vpop.permute.xlu0 %9236
    %9238 = vrot.lane.b32.xlu0 %v9228, 96
    %v9239 = vpop.permute.xlu0 %9238
    %9240 = vrot.lane.b32.xlu0 %v9229, 96
    %v9241 = vpop.permute.xlu0 %9240
    %v9246 = vmul.f32 %v9218, %v9235
    %v9247 = vmul.f32 %v9219, %v9237
    %v9248 = vmul.f32 %v9220, %v9239
    %v9249 = vmul.f32 %v9221, %v9241
    %v9250 = vpack.c.bf16 %v9247, %v9246
    %v9251 = vpack.c.bf16 %v9249, %v9248
    %s9252 = scalar_lea.vmem [#allocation2], 1552
    %v9253 = vld [vmem:[%s9252] sm:$0xf]
    %v9254 = vld [vmem:[%s9252 + $0x4] sm:$0xf]
    %v9255 = vld [vmem:[%s9252 + $0x8] sm:$0xf]
    %v9256 = vld [vmem:[%s9252 + $0xc] sm:$0xf]
    %s9257 = scalar_lea.vmem %s4, 37
    %v9258 = vld [vmem:[%s9257] sm:$0x1]
    %v9260 = vlaneseq
    %v9261 = vshrl.u32 %v9260, 7
    %v9262 = vsub.s32 0, %v9261
    %v9263 = vrot.slane %v9258, %v9262
    %v9269 = vunpack.c.l.b16 %v9253
    %v9270 = vunpack.c.l.b16 %v9254
    %v9271 = vunpack.c.l.b16 %v9255
    %v9272 = vunpack.c.l.b16 %v9256
    %v9273 = vpack.c.b16 %v9270, %v9269
    %v9274 = vpack.c.b16 %v9272, %v9271
    %v9278 = vsel %vm343, %v9250, 0
    %v9281 = vsel %vm343, %v9251, 0
    %9283 = vmatprep.subr.bf16.mxu0 0
    %9284 = vmatpush1.bf16.msra.mxu0 %v9273
    %9285 = vmatprep.subr.bf16.mxu0 0
    %9286 = vmatpush1.bf16.msra.mxu0 %v9274
    %9287 = vmatprep.subr.bf16.mxu0 0
    %9288 = vmatpush1.bf16.msra.mxu0 0
    %9289 = vmatprep.subr.bf16.mxu0 0
    %9290 = vmatpush1.bf16.msra.mxu0 0
    %9291 = vmatprep.subr.bf16.mxu0 0
    %9292 = vmatpush1.bf16.msra.mxu0 0
    %9293 = vmatprep.subr.bf16.mxu0 0
    %9294 = vmatpush1.bf16.msra.mxu0 0
    %9295 = vmatprep.subr.bf16.mxu0 0
    %9296 = vmatpush1.bf16.msra.mxu0 0
    %9297 = vmatprep.subr.bf16.mxu0 0
    %9298 = vmatpush1.bf16.msra.mxu0 0
    %9299 = vmatprep.subr.bf16.mxu0 0
    %9300 = vmatpush1.bf16.msra.mxu0 0
    %9301 = vmatprep.subr.bf16.mxu0 0
    %9302 = vmatpush1.bf16.msra.mxu0 0
    %9303 = vmatprep.subr.bf16.mxu0 0
    %9304 = vmatpush1.bf16.msra.mxu0 0
    %9305 = vmatprep.subr.bf16.mxu0 0
    %9306 = vmatpush1.bf16.msra.mxu0 0
    %9307 = vmatprep.subr.bf16.mxu0 0
    %9308 = vmatpush1.bf16.msra.mxu0 0
    %9309 = vmatprep.subr.bf16.mxu0 0
    %9310 = vmatpush1.bf16.msra.mxu0 0
    %9311 = vmatprep.subr.bf16.mxu0 0
    %9312 = vmatpush1.bf16.msra.mxu0 0
    %9313 = vmatprep.subr.bf16.mxu0 0
    %9314 = vmatpush1.bf16.msra.mxu0 0
    %9315 = vmatprep.mubr.bf16.mxu0 0
    %9316 = vmatmul.mubr.bf16.gmra.mrb[0].mxu0 %v9278
    %v9317 = vpop.f32.mrb[0].mxu0
    %v9318 = vadd.f32 %v9263, %v9317
    %v9319 = vpop.f32.mrb[0].mxu0
    %v9320 = vpop.f32.mrb[0].mxu0
    %v9321 = vadd.f32 %v9263, %v9320
    %v9322 = vpop.f32.mrb[0].mxu0
    %9323 = vmatprep.mubr.bf16.mxu0 0
    %9324 = vmatmul.mubr.bf16.gmra.mrb[0].mxu0 %v9281
    %v9325 = vpop.f32.mrb[0].mxu0
    %v9326 = vadd.f32 %v9263, %v9325
    %v9327 = vpop.f32.mrb[0].mxu0
    %v9328 = vpop.f32.mrb[0].mxu0
    %v9329 = vadd.f32 %v9263, %v9328
    %v9330 = vpop.f32.mrb[0].mxu0
    %9331 = vdwg.mxu0
    %v9332 = vadd.f32 %v8768, %v9318
    %v9333 = vadd.f32 %v8769, %v9321
    %v9334 = vadd.f32 %v8770, %v9326
    %v9335 = vadd.f32 %v8771, %v9329
    %v9336 = vmul.f32 %v9332, %v46
    %v9337 = vmul.f32 %v9333, %v51
    %v9338 = vmul.f32 %v9334, %v56
    %v9339 = vmul.f32 %v9335, %v61
    %v9340 = vadd.f32 %v8772, %v9318
    %v9341 = vadd.f32 %v8773, %v9321
    %v9342 = vadd.f32 %v8774, %v9326
    %v9343 = vadd.f32 %v8775, %v9329
    %v9344 = vrot.slane %v9336, 6
    %v9345 = vrot.slane %v9337, 6
    %v9346 = vrot.slane %v9338, 6
    %v9347 = vrot.slane %v9339, 6
    %v9348 = vsel %vm296, %v9346, %v9347
    %v9349 = vsel %vm296, %v9345, %v9346
    %v9350 = vsel %vm296, %v9344, %v9345
    %v9351 = vsel %vm296, %v9347, %v9344
    %v9352 = vmul.f32 %v9351, %v136
    %v9353 = vmul.f32 %v9350, %v137
    %v9354 = vmul.f32 %v9349, %v138
    %v9355 = vmul.f32 %v9348, %v139
    %v9356 = vpack.c.bf16 %v9353, %v9352
    %v9357 = vpack.c.bf16 %v9355, %v9354
    %s9358 = scalar_lea.vmem [#allocation2], 1440
    %v9359 = vld [vmem:[%s9358] sm:$0xf]
    %v9360 = vld [vmem:[%s9358 + $0x4] sm:$0xf]
    %v9361 = vld [vmem:[%s9358 + $0x8] sm:$0xf]
    %v9362 = vld [vmem:[%s9358 + $0xc] sm:$0xf]
    %v9363 = vrot.slane %v9336, 7
    %v9364 = vrot.slane %v9337, 7
    %v9365 = vrot.slane %v9338, 7
    %v9366 = vrot.slane %v9339, 7
    %v9367 = vsel %vm315, %v9365, %v9366
    %v9368 = vsel %vm315, %v9364, %v9365
    %v9369 = vsel %vm315, %v9363, %v9364
    %v9370 = vsel %vm315, %v9366, %v9363
    %v9371 = vmul.f32 %v9370, %v160
    %v9372 = vmul.f32 %v9369, %v161
    %v9373 = vmul.f32 %v9368, %v162
    %v9374 = vmul.f32 %v9367, %v163
    %v9375 = vpack.c.bf16 %v9372, %v9371
    %v9376 = vpack.c.bf16 %v9374, %v9373
    %s9377 = scalar_lea.vmem [#allocation2], 1456
    %v9378 = vld [vmem:[%s9377] sm:$0xf]
    %v9379 = vld [vmem:[%s9377 + $0x4] sm:$0xf]
    %v9380 = vld [vmem:[%s9377 + $0x8] sm:$0xf]
    %v9381 = vld [vmem:[%s9377 + $0xc] sm:$0xf]
    %v9386 = vunpack.c.l.b16 %v9378
    %v9387 = vunpack.c.l.b16 %v9379
    %v9388 = vunpack.c.l.b16 %v9380
    %v9389 = vunpack.c.l.b16 %v9381
    %v9390 = vpack.c.b16 %v9387, %v9386
    %v9391 = vpack.c.b16 %v9389, %v9388
    %v9395 = vsel %vm343, %v9375, 0
    %v9398 = vsel %vm343, %v9376, 0
    %9400 = vmatprep.subr.bf16.mxu0 0
    %9401 = vmatpush1.bf16.msra.mxu0 %v9390
    %9402 = vmatprep.subr.bf16.mxu0 0
    %9403 = vmatpush1.bf16.msra.mxu0 %v9391
    %9404 = vmatprep.subr.bf16.mxu0 0
    %9405 = vmatpush1.bf16.msra.mxu0 0
    %9406 = vmatprep.subr.bf16.mxu0 0
    %9407 = vmatpush1.bf16.msra.mxu0 0
    %9408 = vmatprep.subr.bf16.mxu0 0
    %9409 = vmatpush1.bf16.msra.mxu0 0
    %9410 = vmatprep.subr.bf16.mxu0 0
    %9411 = vmatpush1.bf16.msra.mxu0 0
    %9412 = vmatprep.subr.bf16.mxu0 0
    %9413 = vmatpush1.bf16.msra.mxu0 0
    %9414 = vmatprep.subr.bf16.mxu0 0
    %9415 = vmatpush1.bf16.msra.mxu0 0
    %9416 = vmatprep.subr.bf16.mxu0 0
    %9417 = vmatpush1.bf16.msra.mxu0 0
    %9418 = vmatprep.subr.bf16.mxu0 0
    %9419 = vmatpush1.bf16.msra.mxu0 0
    %9420 = vmatprep.subr.bf16.mxu0 0
    %9421 = vmatpush1.bf16.msra.mxu0 0
    %9422 = vmatprep.subr.bf16.mxu0 0
    %9423 = vmatpush1.bf16.msra.mxu0 0
    %9424 = vmatprep.subr.bf16.mxu0 0
    %9425 = vmatpush1.bf16.msra.mxu0 0
    %9426 = vmatprep.subr.bf16.mxu0 0
    %9427 = vmatpush1.bf16.msra.mxu0 0
    %9428 = vmatprep.subr.bf16.mxu0 0
    %9429 = vmatpush1.bf16.msra.mxu0 0
    %9430 = vmatprep.subr.bf16.mxu0 0
    %9431 = vmatpush1.bf16.msra.mxu0 0
    %9432 = vmatprep.mubr.bf16.mxu0 0
    %9433 = vmatmul.mubr.bf16.gmra.mrb[0].mxu0 %v9395
    %v9434 = vpop.f32.mrb[0].mxu0
    %v9435 = vadd.f32 0.0, %v9434
    %v9436 = vpop.f32.mrb[0].mxu0
    %v9437 = vpop.f32.mrb[0].mxu0
    %v9438 = vadd.f32 0.0, %v9437
    %v9439 = vpop.f32.mrb[0].mxu0
    %9440 = vmatprep.mubr.bf16.mxu0 0
    %9441 = vmatmul.mubr.bf16.gmra.mrb[0].mxu0 %v9398
    %v9442 = vpop.f32.mrb[0].mxu0
    %v9443 = vadd.f32 0.0, %v9442
    %v9444 = vpop.f32.mrb[0].mxu0
    %v9445 = vpop.f32.mrb[0].mxu0
    %v9446 = vadd.f32 0.0, %v9445
    %v9447 = vpop.f32.mrb[0].mxu0
    %9448 = vdwg.mxu0
    %v9453 = vunpack.c.l.b16 %v9359
    %v9454 = vunpack.c.l.b16 %v9360
    %v9455 = vunpack.c.l.b16 %v9361
    %v9456 = vunpack.c.l.b16 %v9362
    %v9457 = vpack.c.b16 %v9454, %v9453
    %v9458 = vpack.c.b16 %v9456, %v9455
    %v9462 = vsel %vm343, %v9356, 0
    %v9465 = vsel %vm343, %v9357, 0
    %9467 = vmatprep.subr.bf16.mxu0 0
    %9468 = vmatpush1.bf16.msra.mxu0 %v9457
    %9469 = vmatprep.subr.bf16.mxu0 0
    %9470 = vmatpush1.bf16.msra.mxu0 %v9458
    %9471 = vmatprep.subr.bf16.mxu0 0
    %9472 = vmatpush1.bf16.msra.mxu0 0
    %9473 = vmatprep.subr.bf16.mxu0 0
    %9474 = vmatpush1.bf16.msra.mxu0 0
    %9475 = vmatprep.subr.bf16.mxu0 0
    %9476 = vmatpush1.bf16.msra.mxu0 0
    %9477 = vmatprep.subr.bf16.mxu0 0
    %9478 = vmatpush1.bf16.msra.mxu0 0
    %9479 = vmatprep.subr.bf16.mxu0 0
    %9480 = vmatpush1.bf16.msra.mxu0 0
    %9481 = vmatprep.subr.bf16.mxu0 0
    %9482 = vmatpush1.bf16.msra.mxu0 0
    %9483 = vmatprep.subr.bf16.mxu0 0
    %9484 = vmatpush1.bf16.msra.mxu0 0
    %9485 = vmatprep.subr.bf16.mxu0 0
    %9486 = vmatpush1.bf16.msra.mxu0 0
    %9487 = vmatprep.subr.bf16.mxu0 0
    %9488 = vmatpush1.bf16.msra.mxu0 0
    %9489 = vmatprep.subr.bf16.mxu0 0
    %9490 = vmatpush1.bf16.msra.mxu0 0
    %9491 = vmatprep.subr.bf16.mxu0 0
    %9492 = vmatpush1.bf16.msra.mxu0 0
    %9493 = vmatprep.subr.bf16.mxu0 0
    %9494 = vmatpush1.bf16.msra.mxu0 0
    %9495 = vmatprep.subr.bf16.mxu0 0
    %9496 = vmatpush1.bf16.msra.mxu0 0
    %9497 = vmatprep.subr.bf16.mxu0 0
    %9498 = vmatpush1.bf16.msra.mxu0 0
    %9499 = vmatprep.mubr.bf16.mxu0 0
    %9500 = vmatmul.mubr.bf16.gmra.mrb[0].mxu0 %v9462
    %v9501 = vpop.f32.mrb[0].mxu0
    %v9502 = vadd.f32 %v9435, %v9501
    %v9503 = vpop.f32.mrb[0].mxu0
    %v9504 = vpop.f32.mrb[0].mxu0
    %v9505 = vadd.f32 %v9438, %v9504
    %v9506 = vpop.f32.mrb[0].mxu0
    %9507 = vmatprep.mubr.bf16.mxu0 0
    %9508 = vmatmul.mubr.bf16.gmra.mrb[0].mxu0 %v9465
    %v9509 = vpop.f32.mrb[0].mxu0
    %v9510 = vadd.f32 %v9443, %v9509
    %v9511 = vpop.f32.mrb[0].mxu0
    %v9512 = vpop.f32.mrb[0].mxu0
    %v9513 = vadd.f32 %v9446, %v9512
    %v9514 = vpop.f32.mrb[0].mxu0
    %9515 = vdwg.mxu0
    %v9516 = vpack.c.bf16 %v9337, %v9336
    %v9517 = vpack.c.bf16 %v9339, %v9338
    %s9518 = scalar_lea.vmem [#allocation2], 1472
    %v9519 = vld [vmem:[%s9518] sm:$0xf]
    %v9520 = vld [vmem:[%s9518 + $0x4] sm:$0xf]
    %v9521 = vld [vmem:[%s9518 + $0x8] sm:$0xf]
    %v9522 = vld [vmem:[%s9518 + $0xc] sm:$0xf]
    %v9527 = vunpack.c.l.b16 %v9519
    %v9528 = vunpack.c.l.b16 %v9520
    %v9529 = vunpack.c.l.b16 %v9521
    %v9530 = vunpack.c.l.b16 %v9522
    %v9531 = vpack.c.b16 %v9528, %v9527
    %v9532 = vpack.c.b16 %v9530, %v9529
    %v9536 = vsel %vm343, %v9516, 0
    %v9539 = vsel %vm343, %v9517, 0
    %9541 = vmatprep.subr.bf16.mxu0 0
    %9542 = vmatpush1.bf16.msra.mxu0 %v9531
    %9543 = vmatprep.subr.bf16.mxu0 0
    %9544 = vmatpush1.bf16.msra.mxu0 %v9532
    %9545 = vmatprep.subr.bf16.mxu0 0
    %9546 = vmatpush1.bf16.msra.mxu0 0
    %9547 = vmatprep.subr.bf16.mxu0 0
    %9548 = vmatpush1.bf16.msra.mxu0 0
    %9549 = vmatprep.subr.bf16.mxu0 0
    %9550 = vmatpush1.bf16.msra.mxu0 0
    %9551 = vmatprep.subr.bf16.mxu0 0
    %9552 = vmatpush1.bf16.msra.mxu0 0
    %9553 = vmatprep.subr.bf16.mxu0 0
    %9554 = vmatpush1.bf16.msra.mxu0 0
    %9555 = vmatprep.subr.bf16.mxu0 0
    %9556 = vmatpush1.bf16.msra.mxu0 0
    %9557 = vmatprep.subr.bf16.mxu0 0
    %9558 = vmatpush1.bf16.msra.mxu0 0
    %9559 = vmatprep.subr.bf16.mxu0 0
    %9560 = vmatpush1.bf16.msra.mxu0 0
    %9561 = vmatprep.subr.bf16.mxu0 0
    %9562 = vmatpush1.bf16.msra.mxu0 0
    %9563 = vmatprep.subr.bf16.mxu0 0
    %9564 = vmatpush1.bf16.msra.mxu0 0
    %9565 = vmatprep.subr.bf16.mxu0 0
    %9566 = vmatpush1.bf16.msra.mxu0 0
    %9567 = vmatprep.subr.bf16.mxu0 0
    %9568 = vmatpush1.bf16.msra.mxu0 0
    %9569 = vmatprep.subr.bf16.mxu0 0
    %9570 = vmatpush1.bf16.msra.mxu0 0
    %9571 = vmatprep.subr.bf16.mxu0 0
    %9572 = vmatpush1.bf16.msra.mxu0 0
    %9573 = vmatprep.mubr.bf16.mxu0 0
    %9574 = vmatmul.mubr.bf16.gmra.mrb[0].mxu0 %v9536
    %v9575 = vpop.f32.mrb[0].mxu0
    %v9576 = vadd.f32 0.0, %v9575
    %v9577 = vpop.f32.mrb[0].mxu0
    %v9578 = vpop.f32.mrb[0].mxu0
    %v9579 = vadd.f32 0.0, %v9578
    %v9580 = vpop.f32.mrb[0].mxu0
    %9581 = vmatprep.mubr.bf16.mxu0 0
    %9582 = vmatmul.mubr.bf16.gmra.mrb[0].mxu0 %v9539
    %v9583 = vpop.f32.mrb[0].mxu0
    %v9584 = vadd.f32 0.0, %v9583
    %v9585 = vpop.f32.mrb[0].mxu0
    %v9586 = vpop.f32.mrb[0].mxu0
    %v9587 = vadd.f32 0.0, %v9586
    %v9588 = vpop.f32.mrb[0].mxu0
    %9589 = vdwg.mxu0
    %v9590 = vadd.f32 %v9502, %v9576
    %v9591 = vadd.f32 %v9505, %v9579
    %v9592 = vadd.f32 %v9510, %v9584
    %v9593 = vadd.f32 %v9513, %v9587
    %v9594 = vrot.slane %v9336, 1
    %v9595 = vrot.slane %v9337, 1
    %v9596 = vrot.slane %v9338, 1
    %v9597 = vrot.slane %v9339, 1
    %v9598 = vsel %vm548, %v9596, %v9597
    %v9599 = vsel %vm548, %v9595, %v9596
    %v9600 = vsel %vm548, %v9594, %v9595
    %v9601 = vsel %vm548, %v9597, %v9594
    %v9602 = vmul.f32 %v9600, %v184
    %v9603 = vmul.f32 %v9599, %v185
    %v9604 = vmul.f32 %v9598, %v186
    %v9605 = vmul.f32 %v9601, %v187
    %v9606 = vpack.c.bf16 %v9603, %v9602
    %v9607 = vpack.c.bf16 %v9605, %v9604
    %s9608 = scalar_lea.vmem [#allocation2], 1488
    %v9609 = vld [vmem:[%s9608] sm:$0xf]
    %v9610 = vld [vmem:[%s9608 + $0x4] sm:$0xf]
    %v9611 = vld [vmem:[%s9608 + $0x8] sm:$0xf]
    %v9612 = vld [vmem:[%s9608 + $0xc] sm:$0xf]
    %v9617 = vunpack.c.l.b16 %v9609
    %v9618 = vunpack.c.l.b16 %v9610
    %v9619 = vunpack.c.l.b16 %v9611
    %v9620 = vunpack.c.l.b16 %v9612
    %v9621 = vpack.c.b16 %v9618, %v9617
    %v9622 = vpack.c.b16 %v9620, %v9619
    %v9626 = vsel %vm343, %v9606, 0
    %v9629 = vsel %vm343, %v9607, 0
    %9631 = vmatprep.subr.bf16.mxu0 0
    %9632 = vmatpush1.bf16.msra.mxu0 %v9621
    %9633 = vmatprep.subr.bf16.mxu0 0
    %9634 = vmatpush1.bf16.msra.mxu0 %v9622
    %9635 = vmatprep.subr.bf16.mxu0 0
    %9636 = vmatpush1.bf16.msra.mxu0 0
    %9637 = vmatprep.subr.bf16.mxu0 0
    %9638 = vmatpush1.bf16.msra.mxu0 0
    %9639 = vmatprep.subr.bf16.mxu0 0
    %9640 = vmatpush1.bf16.msra.mxu0 0
    %9641 = vmatprep.subr.bf16.mxu0 0
    %9642 = vmatpush1.bf16.msra.mxu0 0
    %9643 = vmatprep.subr.bf16.mxu0 0
    %9644 = vmatpush1.bf16.msra.mxu0 0
    %9645 = vmatprep.subr.bf16.mxu0 0
    %9646 = vmatpush1.bf16.msra.mxu0 0
    %9647 = vmatprep.subr.bf16.mxu0 0
    %9648 = vmatpush1.bf16.msra.mxu0 0
    %9649 = vmatprep.subr.bf16.mxu0 0
    %9650 = vmatpush1.bf16.msra.mxu0 0
    %9651 = vmatprep.subr.bf16.mxu0 0
    %9652 = vmatpush1.bf16.msra.mxu0 0
    %9653 = vmatprep.subr.bf16.mxu0 0
    %9654 = vmatpush1.bf16.msra.mxu0 0
    %9655 = vmatprep.subr.bf16.mxu0 0
    %9656 = vmatpush1.bf16.msra.mxu0 0
    %9657 = vmatprep.subr.bf16.mxu0 0
    %9658 = vmatpush1.bf16.msra.mxu0 0
    %9659 = vmatprep.subr.bf16.mxu0 0
    %9660 = vmatpush1.bf16.msra.mxu0 0
    %9661 = vmatprep.subr.bf16.mxu0 0
    %9662 = vmatpush1.bf16.msra.mxu0 0
    %9663 = vmatprep.mubr.bf16.mxu0 0
    %9664 = vmatmul.mubr.bf16.gmra.mrb[0].mxu0 %v9626
    %v9665 = vpop.f32.mrb[0].mxu0
    %v9666 = vadd.f32 0.0, %v9665
    %v9667 = vpop.f32.mrb[0].mxu0
    %v9668 = vpop.f32.mrb[0].mxu0
    %v9669 = vadd.f32 0.0, %v9668
    %v9670 = vpop.f32.mrb[0].mxu0
    %9671 = vmatprep.mubr.bf16.mxu0 0
    %9672 = vmatmul.mubr.bf16.gmra.mrb[0].mxu0 %v9629
    %v9673 = vpop.f32.mrb[0].mxu0
    %v9674 = vadd.f32 0.0, %v9673
    %v9675 = vpop.f32.mrb[0].mxu0
    %v9676 = vpop.f32.mrb[0].mxu0
    %v9677 = vadd.f32 0.0, %v9676
    %v9678 = vpop.f32.mrb[0].mxu0
    %9679 = vdwg.mxu0
    %v9680 = vadd.f32 %v9590, %v9666
    %v9681 = vadd.f32 %v9591, %v9669
    %v9682 = vadd.f32 %v9592, %v9674
    %v9683 = vadd.f32 %v9593, %v9677
    %v9684 = vrot.slane %v9336, 2
    %v9685 = vrot.slane %v9337, 2
    %v9686 = vrot.slane %v9338, 2
    %v9687 = vrot.slane %v9339, 2
    %v9688 = vsel %vm639, %v9686, %v9687
    %v9689 = vsel %vm639, %v9685, %v9686
    %v9690 = vsel %vm639, %v9684, %v9685
    %v9691 = vsel %vm639, %v9687, %v9684
    %v9692 = vmul.f32 %v9690, %v208
    %v9693 = vmul.f32 %v9689, %v209
    %v9694 = vmul.f32 %v9688, %v210
    %v9695 = vmul.f32 %v9691, %v211
    %v9696 = vpack.c.bf16 %v9693, %v9692
    %v9697 = vpack.c.bf16 %v9695, %v9694
    %s9698 = scalar_lea.vmem [#allocation2], 1504
    %v9699 = vld [vmem:[%s9698] sm:$0xf]
    %v9700 = vld [vmem:[%s9698 + $0x4] sm:$0xf]
    %v9701 = vld [vmem:[%s9698 + $0x8] sm:$0xf]
    %v9702 = vld [vmem:[%s9698 + $0xc] sm:$0xf]
    %v9707 = vunpack.c.l.b16 %v9699
    %v9708 = vunpack.c.l.b16 %v9700
    %v9709 = vunpack.c.l.b16 %v9701
    %v9710 = vunpack.c.l.b16 %v9702
    %v9711 = vpack.c.b16 %v9708, %v9707
    %v9712 = vpack.c.b16 %v9710, %v9709
    %v9716 = vsel %vm343, %v9696, 0
    %v9719 = vsel %vm343, %v9697, 0
    %9721 = vmatprep.subr.bf16.mxu0 0
    %9722 = vmatpush1.bf16.msra.mxu0 %v9711
    %9723 = vmatprep.subr.bf16.mxu0 0
    %9724 = vmatpush1.bf16.msra.mxu0 %v9712
    %9725 = vmatprep.subr.bf16.mxu0 0
    %9726 = vmatpush1.bf16.msra.mxu0 0
    %9727 = vmatprep.subr.bf16.mxu0 0
    %9728 = vmatpush1.bf16.msra.mxu0 0
    %9729 = vmatprep.subr.bf16.mxu0 0
    %9730 = vmatpush1.bf16.msra.mxu0 0
    %9731 = vmatprep.subr.bf16.mxu0 0
    %9732 = vmatpush1.bf16.msra.mxu0 0
    %9733 = vmatprep.subr.bf16.mxu0 0
    %9734 = vmatpush1.bf16.msra.mxu0 0
    %9735 = vmatprep.subr.bf16.mxu0 0
    %9736 = vmatpush1.bf16.msra.mxu0 0
    %9737 = vmatprep.subr.bf16.mxu0 0
    %9738 = vmatpush1.bf16.msra.mxu0 0
    %9739 = vmatprep.subr.bf16.mxu0 0
    %9740 = vmatpush1.bf16.msra.mxu0 0
    %9741 = vmatprep.subr.bf16.mxu0 0
    %9742 = vmatpush1.bf16.msra.mxu0 0
    %9743 = vmatprep.subr.bf16.mxu0 0
    %9744 = vmatpush1.bf16.msra.mxu0 0
    %9745 = vmatprep.subr.bf16.mxu0 0
    %9746 = vmatpush1.bf16.msra.mxu0 0
    %9747 = vmatprep.subr.bf16.mxu0 0
    %9748 = vmatpush1.bf16.msra.mxu0 0
    %9749 = vmatprep.subr.bf16.mxu0 0
    %9750 = vmatpush1.bf16.msra.mxu0 0
    %9751 = vmatprep.subr.bf16.mxu0 0
    %9752 = vmatpush1.bf16.msra.mxu0 0
    %9753 = vmatprep.mubr.bf16.mxu0 0
    %9754 = vmatmul.mubr.bf16.gmra.mrb[0].mxu0 %v9716
    %v9755 = vpop.f32.mrb[0].mxu0
    %v9756 = vadd.f32 0.0, %v9755
    %v9757 = vpop.f32.mrb[0].mxu0
    %v9758 = vpop.f32.mrb[0].mxu0
    %v9759 = vadd.f32 0.0, %v9758
    %v9760 = vpop.f32.mrb[0].mxu0
    %9761 = vmatprep.mubr.bf16.mxu0 0
    %9762 = vmatmul.mubr.bf16.gmra.mrb[0].mxu0 %v9719
    %v9763 = vpop.f32.mrb[0].mxu0
    %v9764 = vadd.f32 0.0, %v9763
    %v9765 = vpop.f32.mrb[0].mxu0
    %v9766 = vpop.f32.mrb[0].mxu0
    %v9767 = vadd.f32 0.0, %v9766
    %v9768 = vpop.f32.mrb[0].mxu0
    %9769 = vdwg.mxu0
    %v9770 = vadd.f32 %v9680, %v9756
    %v9771 = vadd.f32 %v9681, %v9759
    %v9772 = vadd.f32 %v9682, %v9764
    %v9773 = vadd.f32 %v9683, %v9767
    %s9774 = scalar_lea.vmem %s4, 34
    %v9775 = vld [vmem:[%s9774] sm:$0x1]
    %v9777 = vlaneseq
    %v9778 = vshrl.u32 %v9777, 7
    %v9779 = vsub.s32 0, %v9778
    %v9780 = vrot.slane %v9775, %v9779
    %v9782 = vadd.f32 %v9770, %v9780
    %v9783 = vadd.f32 %v9771, %v9780
    %v9784 = vadd.f32 %v9772, %v9780
    %v9785 = vadd.f32 %v9773, %v9780
    %v9786 = vtanh.pop %v9782
    %v9787 = vtanh.pop %v9783
    %v9788 = vtanh.pop %v9784
    %v9789 = vtanh.pop %v9785
    %v9790 = vmul.f32 %v9786, 0.5
    %v9791 = vmul.f32 %v9787, 0.5
    %v9792 = vmul.f32 %v9788, 0.5
    %v9793 = vmul.f32 %v9789, 0.5
    %v9794 = vadd.f32 %v9790, 0.5
    %v9795 = vadd.f32 %v9791, 0.5
    %v9796 = vadd.f32 %v9792, 0.5
    %v9797 = vadd.f32 %v9793, 0.5
    %9802 = vrot.lane.b32.xlu0 %v9794, 96
    %v9803 = vpop.permute.xlu0 %9802
    %9804 = vrot.lane.b32.xlu0 %v9795, 96
    %v9805 = vpop.permute.xlu0 %9804
    %9806 = vrot.lane.b32.xlu0 %v9796, 96
    %v9807 = vpop.permute.xlu0 %9806
    %9808 = vrot.lane.b32.xlu0 %v9797, 96
    %v9809 = vpop.permute.xlu0 %9808
    %v9814 = vmul.f32 %v9786, %v9803
    %v9815 = vmul.f32 %v9787, %v9805
    %v9816 = vmul.f32 %v9788, %v9807
    %v9817 = vmul.f32 %v9789, %v9809
    %v9818 = vpack.c.bf16 %v9815, %v9814
    %v9819 = vpack.c.bf16 %v9817, %v9816
    %s9820 = scalar_lea.vmem [#allocation2], 1568
    %v9821 = vld [vmem:[%s9820] sm:$0xf]
    %v9822 = vld [vmem:[%s9820 + $0x4] sm:$0xf]
    %v9823 = vld [vmem:[%s9820 + $0x8] sm:$0xf]
    %v9824 = vld [vmem:[%s9820 + $0xc] sm:$0xf]
    %s9825 = scalar_lea.vmem %s4, 38
    %v9826 = vld [vmem:[%s9825] sm:$0x1]
    %v9828 = vlaneseq
    %v9829 = vshrl.u32 %v9828, 7
    %v9830 = vsub.s32 0, %v9829
    %v9831 = vrot.slane %v9826, %v9830
    %v9837 = vunpack.c.l.b16 %v9821
    %v9838 = vunpack.c.l.b16 %v9822
    %v9839 = vunpack.c.l.b16 %v9823
    %v9840 = vunpack.c.l.b16 %v9824
    %v9841 = vpack.c.b16 %v9838, %v9837
    %v9842 = vpack.c.b16 %v9840, %v9839
    %v9846 = vsel %vm343, %v9818, 0
    %v9849 = vsel %vm343, %v9819, 0
    %9851 = vmatprep.subr.bf16.mxu0 0
    %9852 = vmatpush1.bf16.msra.mxu0 %v9841
    %9853 = vmatprep.subr.bf16.mxu0 0
    %9854 = vmatpush1.bf16.msra.mxu0 %v9842
    %9855 = vmatprep.subr.bf16.mxu0 0
    %9856 = vmatpush1.bf16.msra.mxu0 0
    %9857 = vmatprep.subr.bf16.mxu0 0
    %9858 = vmatpush1.bf16.msra.mxu0 0
    %9859 = vmatprep.subr.bf16.mxu0 0
    %9860 = vmatpush1.bf16.msra.mxu0 0
    %9861 = vmatprep.subr.bf16.mxu0 0
    %9862 = vmatpush1.bf16.msra.mxu0 0
    %9863 = vmatprep.subr.bf16.mxu0 0
    %9864 = vmatpush1.bf16.msra.mxu0 0
    %9865 = vmatprep.subr.bf16.mxu0 0
    %9866 = vmatpush1.bf16.msra.mxu0 0
    %9867 = vmatprep.subr.bf16.mxu0 0
    %9868 = vmatpush1.bf16.msra.mxu0 0
    %9869 = vmatprep.subr.bf16.mxu0 0
    %9870 = vmatpush1.bf16.msra.mxu0 0
    %9871 = vmatprep.subr.bf16.mxu0 0
    %9872 = vmatpush1.bf16.msra.mxu0 0
    %9873 = vmatprep.subr.bf16.mxu0 0
    %9874 = vmatpush1.bf16.msra.mxu0 0
    %9875 = vmatprep.subr.bf16.mxu0 0
    %9876 = vmatpush1.bf16.msra.mxu0 0
    %9877 = vmatprep.subr.bf16.mxu0 0
    %9878 = vmatpush1.bf16.msra.mxu0 0
    %9879 = vmatprep.subr.bf16.mxu0 0
    %9880 = vmatpush1.bf16.msra.mxu0 0
    %9881 = vmatprep.subr.bf16.mxu0 0
    %9882 = vmatpush1.bf16.msra.mxu0 0
    %9883 = vmatprep.mubr.bf16.mxu0 0
    %9884 = vmatmul.mubr.bf16.gmra.mrb[0].mxu0 %v9846
    %v9885 = vpop.f32.mrb[0].mxu0
    %v9886 = vadd.f32 %v9831, %v9885
    %v9887 = vpop.f32.mrb[0].mxu0
    %v9888 = vpop.f32.mrb[0].mxu0
    %v9889 = vadd.f32 %v9831, %v9888
    %v9890 = vpop.f32.mrb[0].mxu0
    %9891 = vmatprep.mubr.bf16.mxu0 0
    %9892 = vmatmul.mubr.bf16.gmra.mrb[0].mxu0 %v9849
    %v9893 = vpop.f32.mrb[0].mxu0
    %v9894 = vadd.f32 %v9831, %v9893
    %v9895 = vpop.f32.mrb[0].mxu0
    %v9896 = vpop.f32.mrb[0].mxu0
    %v9897 = vadd.f32 %v9831, %v9896
    %v9898 = vpop.f32.mrb[0].mxu0
    %9899 = vdwg.mxu0
    %v9900 = vadd.f32 %v9340, %v9886
    %v9901 = vadd.f32 %v9341, %v9889
    %v9902 = vadd.f32 %v9342, %v9894
    %v9903 = vadd.f32 %v9343, %v9897
    %v9904 = vmul.f32 %v9900, %v46
    %v9905 = vmul.f32 %v9901, %v51
    %v9906 = vmul.f32 %v9902, %v56
    %v9907 = vmul.f32 %v9903, %v61
    %v9908 = vpack.c.bf16 %v9905, %v9904
    %v9909 = vpack.c.bf16 %v9907, %v9906
    %s9910 = scalar_lea.vmem [#allocation2], 1584
    %v9911 = vld [vmem:[%s9910] sm:$0xf]
    %v9912 = vld [vmem:[%s9910 + $0x4] sm:$0xf]
    %v9913 = vld [vmem:[%s9910 + $0x8] sm:$0xf]
    %v9914 = vld [vmem:[%s9910 + $0xc] sm:$0xf]
    %9917 = vrot.lane.b32.xlu0 %v9908, 96
    %v9918 = vpop.permute.xlu0 %9917
    %9919 = vrot.lane.b32.xlu0 %v9909, 96
    %v9920 = vpop.permute.xlu0 %9919
    %v9925 = vunpack.c.l.b16 %v9911
    %v9926 = vunpack.c.l.b16 %v9912
    %v9927 = vunpack.c.l.b16 %v9913
    %v9928 = vunpack.c.l.b16 %v9914
    %v9929 = vpack.c.b16 %v9926, %v9925
    %v9930 = vpack.c.b16 %v9928, %v9927
    %v9934 = vsel %vm343, %v9918, 0
    %v9937 = vsel %vm343, %v9920, 0
    %9939 = vmatprep.subr.bf16.mxu0 0
    %9940 = vmatpush1.bf16.msra.mxu0 %v9929
    %9941 = vmatprep.subr.bf16.mxu0 0
    %9942 = vmatpush1.bf16.msra.mxu0 %v9930
    %9943 = vmatprep.subr.bf16.mxu0 0
    %9944 = vmatpush1.bf16.msra.mxu0 0
    %9945 = vmatprep.subr.bf16.mxu0 0
    %9946 = vmatpush1.bf16.msra.mxu0 0
    %9947 = vmatprep.subr.bf16.mxu0 0
    %9948 = vmatpush1.bf16.msra.mxu0 0
    %9949 = vmatprep.subr.bf16.mxu0 0
    %9950 = vmatpush1.bf16.msra.mxu0 0
    %9951 = vmatprep.subr.bf16.mxu0 0
    %9952 = vmatpush1.bf16.msra.mxu0 0
    %9953 = vmatprep.subr.bf16.mxu0 0
    %9954 = vmatpush1.bf16.msra.mxu0 0
    %9955 = vmatprep.subr.bf16.mxu0 0
    %9956 = vmatpush1.bf16.msra.mxu0 0
    %9957 = vmatprep.subr.bf16.mxu0 0
    %9958 = vmatpush1.bf16.msra.mxu0 0
    %9959 = vmatprep.subr.bf16.mxu0 0
    %9960 = vmatpush1.bf16.msra.mxu0 0
    %9961 = vmatprep.subr.bf16.mxu0 0
    %9962 = vmatpush1.bf16.msra.mxu0 0
    %9963 = vmatprep.subr.bf16.mxu0 0
    %9964 = vmatpush1.bf16.msra.mxu0 0
    %9965 = vmatprep.subr.bf16.mxu0 0
    %9966 = vmatpush1.bf16.msra.mxu0 0
    %9967 = vmatprep.subr.bf16.mxu0 0
    %9968 = vmatpush1.bf16.msra.mxu0 0
    %9969 = vmatprep.subr.bf16.mxu0 0
    %9970 = vmatpush1.bf16.msra.mxu0 0
    %9971 = vmatprep.mubr.bf16.mxu0 0
    %9972 = vmatmul.mubr.bf16.gmra.mrb[0].mxu0 %v9934
    %v9973 = vpop.f32.mrb[0].mxu0
    %v9974 = vadd.f32 0.0, %v9973
    %v9975 = vpop.f32.mrb[0].mxu0
    %v9976 = vpop.f32.mrb[0].mxu0
    %v9977 = vadd.f32 0.0, %v9976
    %v9978 = vpop.f32.mrb[0].mxu0
    %9979 = vmatprep.mubr.bf16.mxu0 0
    %9980 = vmatmul.mubr.bf16.gmra.mrb[0].mxu0 %v9937
    %v9981 = vpop.f32.mrb[0].mxu0
    %v9982 = vadd.f32 0.0, %v9981
    %v9983 = vpop.f32.mrb[0].mxu0
    %v9984 = vpop.f32.mrb[0].mxu0
    %v9985 = vadd.f32 0.0, %v9984
    %v9986 = vpop.f32.mrb[0].mxu0
    %9987 = vdwg.mxu0
    %s9988 = scalar_lea.vmem %s4, 39
    %v9989 = vld [vmem:[%s9988] sm:$0x1]
    %v9991 = vlaneseq
    %v9992 = vshrl.u32 %v9991, 7
    %v9993 = vsub.s32 0, %v9992
    %v9994 = vrot.slane %v9989, %v9993
    %v9996 = vadd.f32 %v9974, %v9994
    %v9997 = vadd.f32 %v9977, %v9994
    %v9998 = vadd.f32 %v9982, %v9994
    %v9999 = vadd.f32 %v9985, %v9994
    %v10000 = vmul.f32 %v9996, %v46
    %v10001 = vmul.f32 %v9997, %v51
    %v10002 = vmul.f32 %v9998, %v56
    %v10003 = vmul.f32 %v9999, %v61
    %10008 = vrot.lane.b32.xlu0 %v10000, 4
    %v10009 = vpop.permute.xlu0 %10008
    %10010 = vrot.lane.b32.xlu0 %v10001, 4
    %v10011 = vpop.permute.xlu0 %10010
    %10012 = vrot.lane.b32.xlu0 %v10002, 4
    %v10013 = vpop.permute.xlu0 %10012
    %10014 = vrot.lane.b32.xlu0 %v10003, 4
    %v10015 = vpop.permute.xlu0 %10014
    %v10020 = vsub.f32 %v5118, %v10009
    %v10021 = vsub.f32 %v5119, %v10011
    %v10022 = vsub.f32 %v5120, %v10013
    %v10023 = vsub.f32 %v5121, %v10015
    %v10024 = vmul.f32 %v10020, %v46
    %v10025 = vmul.f32 %v10021, %v51
    %v10026 = vmul.f32 %v10022, %v56
    %v10027 = vmul.f32 %v10023, %v61
    %10032 = vrot.lane.b32.xlu0 %v10024, 127
    %v10033 = vpop.permute.xlu0 %10032
    %10034 = vrot.lane.b32.xlu0 %v10025, 127
    %v10035 = vpop.permute.xlu0 %10034
    %10036 = vrot.lane.b32.xlu0 %v10026, 127
    %v10037 = vpop.permute.xlu0 %10036
    %10038 = vrot.lane.b32.xlu0 %v10027, 127
    %v10039 = vpop.permute.xlu0 %10038
    %v10044 = vsel %vm228, %v7566, %v10033
    %v10045 = vsel %vm228, %v7567, %v10035
    %v10046 = vsel %vm228, %v7568, %v10037
    %v10047 = vsel %vm228, %v7569, %v10039
    %v10048 = vmul.f32 %v10044, %v46
    %v10049 = vmul.f32 %v10045, %v51
    %v10050 = vmul.f32 %v10046, %v56
    %v10051 = vmul.f32 %v10047, %v61
    %vm10052 = vcmask 48128
    %10053 = vst.msk [vmem:[%s5] sm:$0xff] %vm10052, %v10048
    %10054 = vst.msk [vmem:[%s5 + $0x8] sm:$0xff] %vm10052, %v10049
    %10055 = vst.msk [vmem:[%s5 + $0x10] sm:$0xff] %vm10052, %v10050
    %10056 = vst.msk [vmem:[%s5 + $0x18] sm:$0xff] %vm10052, %v10051
    // Predicated region
    $region26: #{run.1} parent=1 // pred_check
      _
    $region27: #{run.1} parent=1 // pred_check_branch
      %10058 = sbr.rel (0) target = $region29
    $region28: #{run.1} parent=1 // pred_region
      _
    $region29: #{run.1} parent=1 // pred_fallthru
      _
    // Predicated region
    $region30: #{run.1} parent=1 // pred_check
      _
    $region31: #{run.1} parent=1 // pred_check_branch
      %10060 = sbr.rel (0) target = $region33
    $region32: #{run.1} parent=1 // pred_region
      _
    $region33: #{run.1} parent=1 // pred_fallthru
      _
    %10061 = vsyncpa [#allocation3], 1

</llo_original>
